<compile_context>
chip_gen: v6e
topology: v6e:2x2x1
jax: 0.10.0
libtpu: 0.0.40
codegen_flags: <defaults>
</compile_context>

<pallas_src>
import math
import functools

import jax
import jax.numpy as jnp
from jax import lax
from jax.experimental import pallas as pl
from jax.experimental.pallas import tpu as pltpu

LN_EPS = 1e-5  # PyTorch layer_norm_eps default


def _scoped_vmem_limit():
    """Generation-aware scoped-VMEM budget (~65% of physical per-core VMEM).

    v5e/v6e (128 MiB physical) -> ~83 MiB; v7x (64 MiB physical) -> ~41 MiB.
    Falls back to a conservative 32 MiB if the query is unavailable."""
    try:
        info = pltpu.get_tpu_info()
        phys = getattr(info, "vmem_capacity_bytes", None)
    except Exception:
        phys = None
    if not phys:
        return 32 * 1024 * 1024
    return min(int(phys * 0.65), 100 * 1024 * 1024)


_VMEM_LIMIT = _scoped_vmem_limit()


def _pick_tile(dim, target, bases):
    """Largest tile <= target that is a multiple of one of `bases` (tried in
    order) and divides `dim`; falls back to the full extent (always legal,
    although it can be large for awkward dims — fine for this model's shapes)."""
    if dim <= target:
        return dim
    for base in bases:
        t = (target // base) * base
        while t >= base:
            if dim % t == 0:
                return t
            t -= base
    return dim


def _as_bf16(x):
    # Static (trace-time) guard: no-op when activations are already bf16.
    return x if x.dtype == jnp.bfloat16 else x.astype(jnp.bfloat16)


def _ln_body(x, g, b):
    x = x.astype(jnp.float32)
    mean = jnp.mean(x, axis=-1, keepdims=True)
    var = jnp.mean(jnp.square(x - mean), axis=-1, keepdims=True)
    return (x - mean) * lax.rsqrt(var + LN_EPS) * g + b


# ----------------------------------------------------------------------------
# Tiled matmul + bias (+ReLU, or fused residual+LayerNorm epilogue).
# grid (M, N, K) with an f32 VMEM accumulator; K (reduction) axis last.
# Weights are stored pre-transposed (K, N) and in bf16; activations arrive
# bf16 (cast once at the model boundary), so there is no per-step cast.
# ----------------------------------------------------------------------------
def _matmul_kernel(x_ref, w_ref, b_ref, o_ref, acc_ref, *, relu):
    @pl.when(pl.program_id(2) == 0)
    def _init():
        acc_ref[...] = jnp.zeros_like(acc_ref)

    acc_ref[...] += jnp.dot(_as_bf16(x_ref[...]), w_ref[...],
                            preferred_element_type=jnp.float32)

    @pl.when(pl.program_id(2) == pl.num_programs(2) - 1)
    def _finalize():
        y = acc_ref[...] + b_ref[...]
        if relu:
            y = jnp.maximum(y, 0.0)
        o_ref[...] = y.astype(o_ref.dtype)


def _matmul_res_ln_kernel(x_ref, w_ref, b_ref, r_ref, g_ref, bn_ref,
                          o_ref, acc_ref):
    @pl.when(pl.program_id(2) == 0)
    def _init():
        acc_ref[...] = jnp.zeros_like(acc_ref)

    acc_ref[...] += jnp.dot(_as_bf16(x_ref[...]), w_ref[...],
                            preferred_element_type=jnp.float32)

    @pl.when(pl.program_id(2) == pl.num_programs(2) - 1)
    def _finalize():
        z = acc_ref[...] + b_ref[...] + r_ref[...].astype(jnp.float32)
        o_ref[...] = _ln_body(z, g_ref[...], bn_ref[...]).astype(o_ref.dtype)


def pallas_linear(x, w_t, b, *, relu=False, residual=None, ln_gamma=None,
                  ln_beta=None, out_dtype=jnp.bfloat16):
    """x: (..., K) bf16; w_t: (K, N) bf16 pre-transposed; b: (N,) f32.
    If ln_gamma/ln_beta are given, a residual-add + LayerNorm epilogue is fused
    into the last K step (requires the full N width per tile, i.e. N = d_model)."""
    orig = x.shape
    K = orig[-1]
    M = math.prod(orig[:-1])
    N = w_t.shape[1]
    x2 = x.reshape(M, K)
    fuse_ln = ln_gamma is not None

    tm = _pick_tile(M, 512, (16, 8))          # 16: bf16 packs 2 rows / sublane
    tk = _pick_tile(K, 512, (128,))
    tn = N if fuse_ln else _pick_tile(N, 512, (128,))
    grid = (M // tm, N // tn, K // tk)

    in_specs = [
        pl.BlockSpec((tm, tk), lambda i, j, k: (i, k)),
        pl.BlockSpec((tk, tn), lambda i, j, k: (k, j)),
        pl.BlockSpec((1, tn), lambda i, j, k: (0, j)),
    ]
    args = [x2, w_t, b.reshape(1, N)]
    if fuse_ln:
        kernel = _matmul_res_ln_kernel
        in_specs += [
            pl.BlockSpec((tm, N), lambda i, j, k: (i, 0)),
            pl.BlockSpec((1, N), lambda i, j, k: (0, 0)),
            pl.BlockSpec((1, N), lambda i, j, k: (0, 0)),
        ]
        args += [residual.reshape(M, N), ln_gamma.reshape(1, N),
                 ln_beta.reshape(1, N)]
    else:
        kernel = functools.partial(_matmul_kernel, relu=relu)

    out = pl.pallas_call(
        kernel,
        out_shape=jax.ShapeDtypeStruct((M, N), out_dtype),
        grid=grid,
        in_specs=in_specs,
        out_specs=pl.BlockSpec((tm, tn), lambda i, j, k: (i, j)),
        scratch_shapes=[pltpu.VMEM((tm, tn), jnp.float32)],
        compiler_params=pltpu.CompilerParams(
            dimension_semantics=("parallel", "parallel", "arbitrary"),
            vmem_limit_bytes=_VMEM_LIMIT),
    )(*args)
    return out.reshape(orig[:-1] + (N,))


# ----------------------------------------------------------------------------
# Standalone LayerNorm (encoder / decoder final norms only — the per-layer
# norms are fused into the adjacent matmul epilogues).
# ----------------------------------------------------------------------------
def _ln_kernel(x_ref, g_ref, b_ref, o_ref):
    o_ref[...] = _ln_body(x_ref[...], g_ref[...], b_ref[...]).astype(o_ref.dtype)


def pallas_layer_norm(x, gamma, beta):
    orig = x.shape
    D = orig[-1]
    M = math.prod(orig[:-1])
    tm = _pick_tile(M, 512, (16, 8))
    out = pl.pallas_call(
        _ln_kernel,
        out_shape=jax.ShapeDtypeStruct((M, D), jnp.bfloat16),
        grid=(M // tm,),
        in_specs=[pl.BlockSpec((tm, D), lambda i: (i, 0)),
                  pl.BlockSpec((1, D), lambda i: (0, 0)),
                  pl.BlockSpec((1, D), lambda i: (0, 0))],
        out_specs=pl.BlockSpec((tm, D), lambda i: (i, 0)),
        compiler_params=pltpu.CompilerParams(
            dimension_semantics=("parallel",),
            vmem_limit_bytes=_VMEM_LIMIT),
    )(x.reshape(M, D), gamma.reshape(1, D), beta.reshape(1, D))
    return out.reshape(orig)


# ----------------------------------------------------------------------------
# Feed-forward sub-block. Weight-resident fused path when W1+W2 (bf16) plus the
# (tm, F) f32 hidden comfortably fit VMEM; otherwise two tiled linears with the
# residual + LayerNorm fused into the second one's epilogue.
# ----------------------------------------------------------------------------
def _ffn_kernel(x_ref, w1_ref, b1_ref, w2_ref, b2_ref, g_ref, bn_ref, o_ref):
    x = x_ref[...]                                            # (tm, D) bf16
    h = jnp.dot(x, w1_ref[...], preferred_element_type=jnp.float32)
    h = jnp.maximum(h + b1_ref[...], 0.0)
    y = jnp.dot(h.astype(jnp.bfloat16), w2_ref[...],
                preferred_element_type=jnp.float32)
    z = x.astype(jnp.float32) + y + b2_ref[...]               # residual + bias
    o_ref[...] = _ln_body(z, g_ref[...], bn_ref[...]).astype(o_ref.dtype)


def pallas_ffn_block(x, p, g_key, b_key):
    orig = x.shape
    D = orig[-1]
    M = math.prod(orig[:-1])
    F = p["lin1_t"].shape[1]
    tm = _pick_tile(M, 256, (16, 8))

    fused_bytes = 2 * D * F * 2 + tm * F * 4 + 4 * tm * D * 4
    if fused_bytes > _VMEM_LIMIT // 2:
        # Large D*F (e.g. v7x 64 MiB VMEM): fall back to tiled matmuls; the
        # residual + LayerNorm still ride on the second matmul's epilogue.
        h = pallas_linear(x, p["lin1_t"], p["lin1_b"], relu=True)
        return pallas_linear(h, p["lin2_t"], p["lin2_b"], residual=x,
                             ln_gamma=p[g_key], ln_beta=p[b_key])

    out = pl.pallas_call(
        _ffn_kernel,
        out_shape=jax.ShapeDtypeStruct((M, D), jnp.bfloat16),
        grid=(M // tm,),
        in_specs=[
            pl.BlockSpec((tm, D), lambda i: (i, 0)),
            pl.BlockSpec((D, F), lambda i: (0, 0)),
            pl.BlockSpec((1, F), lambda i: (0, 0)),
            pl.BlockSpec((F, D), lambda i: (0, 0)),
            pl.BlockSpec((1, D), lambda i: (0, 0)),
            pl.BlockSpec((1, D), lambda i: (0, 0)),
            pl.BlockSpec((1, D), lambda i: (0, 0)),
        ],
        out_specs=pl.BlockSpec((tm, D), lambda i: (i, 0)),
        compiler_params=pltpu.CompilerParams(
            dimension_semantics=("parallel",),
            vmem_limit_bytes=_VMEM_LIMIT),
    )(x.reshape(M, D), p["lin1_t"], p["lin1_b"].reshape(1, F),
      p["lin2_t"], p["lin2_b"].reshape(1, D),
      p[g_key].reshape(1, D), p[b_key].reshape(1, D))
    return out.reshape(orig)


# ----------------------------------------------------------------------------
# Flash-style multi-head attention: grid (B, q_tiles, kv_tiles), kv axis last
# ("arbitrary"), online softmax state in VMEM scratch. The full (L, S) score
# matrix is never materialized; heads are statically unrolled with per-head
# scores/state and written directly into their lane slice of the output block.
# ----------------------------------------------------------------------------
def _flash_attn_kernel(q_ref, k_ref, v_ref, o_ref, m_sc, l_sc, acc_sc, *,
                       nhead, scale):
    ki = pl.program_id(2)

    @pl.when(ki == 0)
    def _init():
        m_sc[...] = jnp.full_like(m_sc, -jnp.inf)
        l_sc[...] = jnp.zeros_like(l_sc)
        acc_sc[...] = jnp.zeros_like(acc_sc)

    q = q_ref[0]                                   # (tq, E)  bf16
    k = k_ref[0]                                   # (tkv, E) bf16
    v = v_ref[0]                                   # (tkv, E) bf16
    E = q.shape[-1]
    dh = E // nhead

    for h in range(nhead):                         # static unroll over heads
        lo = h * dh
        qh = q[:, lo:lo + dh]
        kh = k[:, lo:lo + dh]
        vh = v[:, lo:lo + dh]
        s = lax.dot_general(qh, kh, (((1,), (1,)), ((), ())),
                            preferred_element_type=jnp.float32) * scale
        m_prev = m_sc[h]
        m_new = jnp.maximum(m_prev, jnp.max(s, axis=-1, keepdims=True))
        alpha = jnp.exp(m_prev - m_new)
        p = jnp.exp(s - m_new)
        l_sc[h] = alpha * l_sc[h] + jnp.sum(p, axis=-1, keepdims=True)
        acc_sc[h] = alpha * acc_sc[h] + lax.dot_general(
            p.astype(jnp.bfloat16), vh, (((1,), (0,)), ((), ())),
            preferred_element_type=jnp.float32)
        m_sc[h] = m_new

    @pl.when(ki == pl.num_programs(2) - 1)
    def _finalize():
        for h in range(nhead):
            lo = h * dh
            o_ref[0, :, lo:lo + dh] = (
                acc_sc[h] * pl.reciprocal(l_sc[h], approx=True)
            ).astype(o_ref.dtype)


def _flash_attention(q_arr, k_arr, v_arr, q_blk, k_blk, v_blk, nhead, L, S, E):
    """q/k/v may alias the same packed projection array; *_blk selects which
    E-wide block of the last dim holds that operand."""
    B = q_arr.shape[0]
    dh = E // nhead
    scale = 1.0 / math.sqrt(dh)
    tq = _pick_tile(L, 256, (16, 8))
    tkv = _pick_tile(S, 512, (16, 8))
    grid = (B, L // tq, S // tkv)
    return pl.pallas_call(
        functools.partial(_flash_attn_kernel, nhead=nhead, scale=scale),
        out_shape=jax.ShapeDtypeStruct((B, L, E), jnp.bfloat16),
        grid=grid,
        in_specs=[
            pl.BlockSpec((1, tq, E), lambda b, qi, ki: (b, qi, q_blk)),
            pl.BlockSpec((1, tkv, E), lambda b, qi, ki: (b, ki, k_blk)),
            pl.BlockSpec((1, tkv, E), lambda b, qi, ki: (b, ki, v_blk)),
        ],
        out_specs=pl.BlockSpec((1, tq, E), lambda b, qi, ki: (b, qi, 0)),
        scratch_shapes=[
            pltpu.VMEM((nhead, tq, 1), jnp.float32),    # running max
            pltpu.VMEM((nhead, tq, 1), jnp.float32),    # running denom
            pltpu.VMEM((nhead, tq, dh), jnp.float32),   # running context
        ],
        compiler_params=pltpu.CompilerParams(
            dimension_semantics=("parallel", "parallel", "arbitrary"),
            vmem_limit_bytes=_VMEM_LIMIT),
    )(q_arr, k_arr, v_arr)


def self_attn_core(x, p, nhead):
    B, L, E = x.shape
    qkv = pallas_linear(x, p["wqkv_t"], p["bqkv"])          # (B, L, 3E) bf16
    if E % 128 == 0:
        # Slice q/k/v straight out of the packed array via last-dim block index
        # (no extra HBM copies).
        return _flash_attention(qkv, qkv, qkv, 0, 1, 2, nhead, L, L, E)
    # TODO(synk): odd/small d_model fallback — split packed qkv in XLA (extra copy).
    q, k, v = qkv[..., :E], qkv[..., E:2 * E], qkv[..., 2 * E:]
    return _flash_attention(q, k, v, 0, 0, 0, nhead, L, L, E)


def cross_attn_core(x, memory, p, nhead):
    B, L, E = x.shape
    S = memory.shape[1]
    q = pallas_linear(x, p["wq_t"], p["bq"])                # (B, L, E)  bf16
    kv = pallas_linear(memory, p["wkv_t"], p["bkv"])        # (B, S, 2E) bf16
    if E % 128 == 0:
        return _flash_attention(q, kv, kv, 0, 0, 1, nhead, L, S, E)
    k, v = kv[..., :E], kv[..., E:]
    return _flash_attention(q, k, v, 0, 0, 0, nhead, L, S, E)


# ----------------------------------------------------------------------------
# Transformer layers (post-LN, ReLU FFN — nn.Transformer defaults).
# ----------------------------------------------------------------------------
def encoder_layer(x, p, nhead):
    # TODO(synk): dropout is stochastic in train mode; implemented as identity (eval).
    sa = p["self_attn"]
    o = self_attn_core(x, sa, nhead)
    x = pallas_linear(o, sa["wo_t"], sa["bo"], residual=x,
                      ln_gamma=p["norm1_g"], ln_beta=p["norm1_b"])
    return pallas_ffn_block(x, p, "norm2_g", "norm2_b")


def decoder_layer(x, memory, p, nhead):
    sa = p["self_attn"]
    o = self_attn_core(x, sa, nhead)
    x = pallas_linear(o, sa["wo_t"], sa["bo"], residual=x,
                      ln_gamma=p["norm1_g"], ln_beta=p["norm1_b"])
    ca = p["cross_attn"]
    o = cross_attn_core(x, memory, ca, nhead)
    x = pallas_linear(o, ca["wo_t"], ca["bo"], residual=x,
                      ln_gamma=p["norm2_g"], ln_beta=p["norm2_b"])
    return pallas_ffn_block(x, p, "norm3_g", "norm3_b")


# ----------------------------------------------------------------------------
# Model glue (plain JAX: embedding gather + PE fuse in XLA, layer stacking).
# ----------------------------------------------------------------------------
def make_positional_encoding(d_model, max_seq_length=512):
    pos = jnp.arange(max_seq_length, dtype=jnp.float32)[:, None]
    div = jnp.exp(jnp.arange(0, d_model, 2, dtype=jnp.float32)
                  * (-math.log(10000.0) / d_model))
    pe = jnp.zeros((max_seq_length, d_model), jnp.float32)
    pe = pe.at[:, 0::2].set(jnp.sin(pos * div))
    pe = pe.at[:, 1::2].set(jnp.cos(pos * div))
    return pe[None]                                # (1, max_len, d_model)


def transformer_forward(params, src, tgt, *, d_model, nhead):
    # TODO(synk): src_mask / tgt_mask are None in the reference forward, so no
    # attention masking (incl. causal decoding) is applied here either.
    scale = math.sqrt(d_model)
    pe = params["pe"]

    src_b = src.T                                  # (N, S) batch-first layout
    tgt_b = tgt.T                                  # (N, T)
    N = src_b.shape[0]

    # Faithful to the PyTorch module: pe[:, :x.size(1)] indexes the *batch* dim
    # of the seq-first activation, so token (s, n) receives pe[n]. Reproduced in
    # batch-first layout; left to XLA so it fuses with the embedding gather.
    # Activations are cast to bf16 once here (halves all inter-kernel traffic).
    pe_b = pe[0, :N][:, None, :]                   # (N, 1, D)
    src_e = (jnp.take(params["embedding"], src_b, axis=0) * scale + pe_b
             ).astype(jnp.bfloat16)
    tgt_e = (jnp.take(params["embedding"], tgt_b, axis=0) * scale + pe_b
             ).astype(jnp.bfloat16)

    memory = src_e
    for lp in params["encoder_layers"]:
        memory = encoder_layer(memory, lp, nhead)
    memory = pallas_layer_norm(memory, params["enc_norm_g"], params["enc_norm_b"])

    x = tgt_e
    for lp in params["decoder_layers"]:
        x = decoder_layer(x, memory, lp, nhead)
    x = pallas_layer_norm(x, params["dec_norm_g"], params["dec_norm_b"])

    # Final projection on a seq-first view: the cheap (T,N,D) transpose happens
    # before the vocab expansion, so the big logits tensor is written once,
    # directly in (T, N, vocab) layout.
    x_t = jnp.transpose(x, (1, 0, 2))              # (T, N, D)
    return pallas_linear(x_t, params["out_t"], params["out_b"],
                         out_dtype=jnp.float32)    # (T, N, vocab) f32


# ----------------------------------------------------------------------------
# Deterministic parameter init (shapes follow the nn.Module __init__); weights
# are stored pre-transposed (K, N) and in bf16, QKV / KV projections fused.
# ----------------------------------------------------------------------------
def init_params(key, vocab_size, d_model, nhead, num_enc, num_dec, dim_ff):
    keys = iter(jax.random.split(key, 4096))

    def dense_t(in_dim, out_dim):
        w = 0.02 * jax.random.normal(next(keys), (out_dim, in_dim), jnp.float32)
        return jnp.transpose(w).astype(jnp.bfloat16)   # stored (in, out), bf16

    def zeros(n):
        return jnp.zeros((n,), jnp.float32)

    def ones(n):
        return jnp.ones((n,), jnp.float32)

    def self_attn_params():
        return {
            "wqkv_t": jnp.concatenate(
                [dense_t(d_model, d_model) for _ in range(3)], axis=1),
            "bqkv": zeros(3 * d_model),
            "wo_t": dense_t(d_model, d_model), "bo": zeros(d_model),
        }

    def cross_attn_params():
        return {
            "wq_t": dense_t(d_model, d_model), "bq": zeros(d_model),
            "wkv_t": jnp.concatenate(
                [dense_t(d_model, d_model) for _ in range(2)], axis=1),
            "bkv": zeros(2 * d_model),
            "wo_t": dense_t(d_model, d_model), "bo": zeros(d_model),
        }

    def enc_layer_params():
        return {
            "self_attn": self_attn_params(),
            "lin1_t": dense_t(d_model, dim_ff), "lin1_b": zeros(dim_ff),
            "lin2_t": dense_t(dim_ff, d_model), "lin2_b": zeros(d_model),
            "norm1_g": ones(d_model), "norm1_b": zeros(d_model),
            "norm2_g": ones(d_model), "norm2_b": zeros(d_model),
        }

    def dec_layer_params():
        p = enc_layer_params()
        p["cross_attn"] = cross_attn_params()
        p["norm3_g"] = ones(d_model)
        p["norm3_b"] = zeros(d_model)
        return p

    return {
        "embedding": 0.02 * jax.random.normal(
            next(keys), (vocab_size, d_model), jnp.float32),
        "pe": make_positional_encoding(d_model),
        "encoder_layers": [enc_layer_params() for _ in range(num_enc)],
        "decoder_layers": [dec_layer_params() for _ in range(num_dec)],
        "enc_norm_g": ones(d_model), "enc_norm_b": zeros(d_model),
        "dec_norm_g": ones(d_model), "dec_norm_b": zeros(d_model),
        "out_t": dense_t(d_model, vocab_size), "out_b": zeros(vocab_size),
    }


# ----------------------------------------------------------------------------
if __name__ == "__main__":
    vocab_size = 128
    d_model = 128        # 128-lane aligned -> exercises the packed flash path
    nhead = 4
    num_enc = 2
    num_dec = 2
    dim_ff = 256
    S, T, N = 16, 16, 2  # src seq len, tgt seq len, batch

    root = jax.random.PRNGKey(0)
    k_par, k_src, k_tgt = jax.random.split(root, 3)
    params = init_params(k_par, vocab_size, d_model, nhead, num_enc, num_dec, dim_ff)

    src = jax.random.randint(k_src, (S, N), 0, vocab_size, dtype=jnp.int32)
    tgt = jax.random.randint(k_tgt, (T, N), 0, vocab_size, dtype=jnp.int32)

    fwd = jax.jit(functools.partial(transformer_forward, d_model=d_model, nhead=nhead))
    out = jax.block_until_ready(fwd(params, src, tgt))
    assert out.shape == (T, N, vocab_size) and out.dtype == jnp.float32
    print("KERNEL_OK")
</pallas_src>

<mosaic_0001>
module attributes {stable_mosaic.version = 11 : i64} {
  func.func @_matmul_kernel(%arg0: i32, %arg1: i32, %arg2: i32, %arg3: memref<32x128xbf16, #tpu.memory_space<vmem>>, %arg4: memref<128x384xbf16, #tpu.memory_space<vmem>>, %arg5: memref<1x384xf32, #tpu.memory_space<vmem>>, %arg6: memref<32x384xbf16, #tpu.memory_space<vmem>>, %arg7: memref<32x384xf32, #tpu.memory_space<vmem>>) attributes {dimension_semantics = [#tpu.dimension_semantics<parallel>, #tpu.dimension_semantics<parallel>, #tpu.dimension_semantics<arbitrary>], iteration_bounds = array<i64: 1, 1, 1>, scalar_prefetch = 0 : i64, scratch_operands = 1 : i64, tpu.core_type = #tpu.core_type<tc>, window_params = [{transform_indices = @transform_0, window_bounds = array<i64: 32, 128>}, {transform_indices = @transform_1, window_bounds = array<i64: 128, 384>}, {transform_indices = @transform_2, window_bounds = array<i64: 1, 384>}, {transform_indices = @transform_3, window_bounds = array<i64: 32, 384>}]} {
    %c0_i32 = arith.constant 0 : i32
    %0 = arith.cmpi eq, %arg2, %c0_i32 : i32
    %1 = arith.extui %0 : i1 to i32
    %c0_i32_0 = arith.constant 0 : i32
    %2 = arith.cmpi ne, %1, %c0_i32_0 : i32
    scf.if %2 {
      %cst_10 = arith.constant 0.000000e+00 : f32
      %12 = vector.broadcast %cst_10 : f32 to vector<32x384xf32>
      %c0_11 = arith.constant 0 : index
      %c0_12 = arith.constant 0 : index
      %13 = vector.load %arg7[%c0_11, %c0_12] : memref<32x384xf32, #tpu.memory_space<vmem>>, vector<32x384xf32>
      tpu.vector_store %arg7[%c0_11, %c0_12], %12 {strides = array<i32>} : memref<32x384xf32, #tpu.memory_space<vmem>>, vector<32x384xf32>,
    } else {
    }
    %c0 = arith.constant 0 : index
    %c0_1 = arith.constant 0 : index
    %3 = vector.load %arg7[%c0, %c0_1] : memref<32x384xf32, #tpu.memory_space<vmem>>, vector<32x384xf32>
    %c0_2 = arith.constant 0 : index
    %c0_3 = arith.constant 0 : index
    %4 = vector.load %arg3[%c0_2, %c0_3] : memref<32x128xbf16, #tpu.memory_space<vmem>>, vector<32x128xbf16>
    %c0_4 = arith.constant 0 : index
    %c0_5 = arith.constant 0 : index
    %5 = vector.load %arg4[%c0_4, %c0_5] : memref<128x384xbf16, #tpu.memory_space<vmem>>, vector<128x384xbf16>
    %cst = arith.constant dense<0.000000e+00> : vector<32x384xf32>
    %6 = tpu.matmul %4, %5, %cst {dimension_numbers = #tpu.dot_dimension_numbers<[1], [0], [0], [1], [0, 0, 1, 1], [], []>} : vector<32x128xbf16>, vector<128x384xbf16>, vector<32x384xf32> -> vector<32x384xf32>
    %7 = arith.addf %3, %6 : vector<32x384xf32>
    %c0_6 = arith.constant 0 : index
    %c0_7 = arith.constant 0 : index
    %8 = vector.load %arg7[%c0_6, %c0_7] : memref<32x384xf32, #tpu.memory_space<vmem>>, vector<32x384xf32>
    tpu.vector_store %arg7[%c0_6, %c0_7], %7 {strides = array<i32>} : memref<32x384xf32, #tpu.memory_space<vmem>>, vector<32x384xf32>,
    %c0_i32_8 = arith.constant 0 : i32
    %9 = arith.cmpi eq, %arg2, %c0_i32_8 : i32
    %10 = arith.extui %9 : i1 to i32
    %c0_i32_9 = arith.constant 0 : i32
    %11 = arith.cmpi ne, %10, %c0_i32_9 : i32
    scf.if %11 {
      %c0_10 = arith.constant 0 : index
      %c0_11 = arith.constant 0 : index
      %12 = vector.load %arg7[%c0_10, %c0_11] : memref<32x384xf32, #tpu.memory_space<vmem>>, vector<32x384xf32>
      %c0_12 = arith.constant 0 : index
      %c0_13 = arith.constant 0 : index
      %13 = vector.load %arg5[%c0_12, %c0_13] : memref<1x384xf32, #tpu.memory_space<vmem>>, vector<1x384xf32>
      %14 = vector.broadcast %13 : vector<1x384xf32> to vector<32x384xf32>
      %15 = arith.addf %12, %14 : vector<32x384xf32>
      %16 = arith.truncf %15 : vector<32x384xf32> to vector<32x384xbf16>
      %c0_14 = arith.constant 0 : index
      %c0_15 = arith.constant 0 : index
      %17 = vector.load %arg6[%c0_14, %c0_15] : memref<32x384xbf16, #tpu.memory_space<vmem>>, vector<32x384xbf16>
      tpu.vector_store %arg6[%c0_14, %c0_15], %16 {strides = array<i32>} : memref<32x384xbf16, #tpu.memory_space<vmem>>, vector<32x384xbf16>,
    } else {
    }
    return
  }
  func.func @transform_0(%arg0: i32, %arg1: i32, %arg2: i32) -> (i32, i32) {
    %c0_i32 = arith.constant 0 : i32
    return %arg0, %arg2 : i32, i32
  }
  func.func @transform_1(%arg0: i32, %arg1: i32, %arg2: i32) -> (i32, i32) {
    %c0_i32 = arith.constant 0 : i32
    return %arg2, %arg1 : i32, i32
  }
  func.func @transform_2(%arg0: i32, %arg1: i32, %arg2: i32) -> (i32, i32) {
    %c0_i32 = arith.constant 0 : i32
    %c0_i32_0 = arith.constant 0 : i32
    return %c0_i32, %arg1 : i32, i32
  }
  func.func @transform_3(%arg0: i32, %arg1: i32, %arg2: i32) -> (i32, i32) {
    %c0_i32 = arith.constant 0 : i32
    return %arg0, %arg1 : i32, i32
  }
}

module attributes {stable_mosaic.version = 11 : i64} {
  func.func @_matmul_res_ln_kernel(%arg0: i32, %arg1: i32, %arg2: i32, %arg3: memref<32x128xbf16, #tpu.memory_space<vmem>>, %arg4: memref<128x128xbf16, #tpu.memory_space<vmem>>, %arg5: memref<1x128xf32, #tpu.memory_space<vmem>>, %arg6: memref<32x128xbf16, #tpu.memory_space<vmem>>, %arg7: memref<1x128xf32, #tpu.memory_space<vmem>>, %arg8: memref<1x128xf32, #tpu.memory_space<vmem>>, %arg9: memref<32x128xbf16, #tpu.memory_space<vmem>>, %arg10: memref<32x128xf32, #tpu.memory_space<vmem>>) attributes {dimension_semantics = [#tpu.dimension_semantics<parallel>, #tpu.dimension_semantics<parallel>, #tpu.dimension_semantics<arbitrary>], iteration_bounds = array<i64: 1, 1, 1>, scalar_prefetch = 0 : i64, scratch_operands = 1 : i64, tpu.core_type = #tpu.core_type<tc>, window_params = [{transform_indices = @transform_0, window_bounds = array<i64: 32, 128>}, {transform_indices = @transform_1, window_bounds = array<i64: 128, 128>}, {transform_indices = @transform_2, window_bounds = array<i64: 1, 128>}, {transform_indices = @transform_3, window_bounds = array<i64: 32, 128>}, {pipeline_mode = #tpu.pipeline_mode<synchronous>, transform_indices = @transform_4, window_bounds = array<i64: 1, 128>}, {pipeline_mode = #tpu.pipeline_mode<synchronous>, transform_indices = @transform_5, window_bounds = array<i64: 1, 128>}, {transform_indices = @transform_6, window_bounds = array<i64: 32, 128>}]} {
    %c0_i32 = arith.constant 0 : i32
    %0 = arith.cmpi eq, %arg2, %c0_i32 : i32
    %1 = arith.extui %0 : i1 to i32
    %c0_i32_0 = arith.constant 0 : i32
    %2 = arith.cmpi ne, %1, %c0_i32_0 : i32
    scf.if %2 {
      %cst_10 = arith.constant 0.000000e+00 : f32
      %12 = vector.broadcast %cst_10 : f32 to vector<32x128xf32>
      %c0_11 = arith.constant 0 : index
      %c0_12 = arith.constant 0 : index
      %13 = vector.load %arg10[%c0_11, %c0_12] : memref<32x128xf32, #tpu.memory_space<vmem>>, vector<32x128xf32>
      tpu.vector_store %arg10[%c0_11, %c0_12], %12 {strides = array<i32>} : memref<32x128xf32, #tpu.memory_space<vmem>>, vector<32x128xf32>,
    } else {
    }
    %c0 = arith.constant 0 : index
    %c0_1 = arith.constant 0 : index
    %3 = vector.load %arg10[%c0, %c0_1] : memref<32x128xf32, #tpu.memory_space<vmem>>, vector<32x128xf32>
    %c0_2 = arith.constant 0 : index
    %c0_3 = arith.constant 0 : index
    %4 = vector.load %arg3[%c0_2, %c0_3] : memref<32x128xbf16, #tpu.memory_space<vmem>>, vector<32x128xbf16>
    %c0_4 = arith.constant 0 : index
    %c0_5 = arith.constant 0 : index
    %5 = vector.load %arg4[%c0_4, %c0_5] : memref<128x128xbf16, #tpu.memory_space<vmem>>, vector<128x128xbf16>
    %cst = arith.constant dense<0.000000e+00> : vector<32x128xf32>
    %6 = tpu.matmul %4, %5, %cst {dimension_numbers = #tpu.dot_dimension_numbers<[1], [0], [0], [1], [0, 0, 1, 1], [], []>} : vector<32x128xbf16>, vector<128x128xbf16>, vector<32x128xf32> -> vector<32x128xf32>
    %7 = arith.addf %3, %6 : vector<32x128xf32>
    %c0_6 = arith.constant 0 : index
    %c0_7 = arith.constant 0 : index
    %8 = vector.load %arg10[%c0_6, %c0_7] : memref<32x128xf32, #tpu.memory_space<vmem>>, vector<32x128xf32>
    tpu.vector_store %arg10[%c0_6, %c0_7], %7 {strides = array<i32>} : memref<32x128xf32, #tpu.memory_space<vmem>>, vector<32x128xf32>,
    %c0_i32_8 = arith.constant 0 : i32
    %9 = arith.cmpi eq, %arg2, %c0_i32_8 : i32
    %10 = arith.extui %9 : i1 to i32
    %c0_i32_9 = arith.constant 0 : i32
    %11 = arith.cmpi ne, %10, %c0_i32_9 : i32
    scf.if %11 {
      %c0_10 = arith.constant 0 : index
      %c0_11 = arith.constant 0 : index
      %12 = vector.load %arg10[%c0_10, %c0_11] : memref<32x128xf32, #tpu.memory_space<vmem>>, vector<32x128xf32>
      %c0_12 = arith.constant 0 : index
      %c0_13 = arith.constant 0 : index
      %13 = vector.load %arg5[%c0_12, %c0_13] : memref<1x128xf32, #tpu.memory_space<vmem>>, vector<1x128xf32>
      %14 = vector.broadcast %13 : vector<1x128xf32> to vector<32x128xf32>
      %15 = arith.addf %12, %14 : vector<32x128xf32>
      %c0_14 = arith.constant 0 : index
      %c0_15 = arith.constant 0 : index
      %16 = vector.load %arg6[%c0_14, %c0_15] : memref<32x128xbf16, #tpu.memory_space<vmem>>, vector<32x128xbf16>
      %17 = arith.extf %16 : vector<32x128xbf16> to vector<32x128xf32>
      %18 = arith.addf %15, %17 : vector<32x128xf32>
      %c0_16 = arith.constant 0 : index
      %c0_17 = arith.constant 0 : index
      %19 = vector.load %arg7[%c0_16, %c0_17] : memref<1x128xf32, #tpu.memory_space<vmem>>, vector<1x128xf32>
      %c0_18 = arith.constant 0 : index
      %c0_19 = arith.constant 0 : index
      %20 = vector.load %arg8[%c0_18, %c0_19] : memref<1x128xf32, #tpu.memory_space<vmem>>, vector<1x128xf32>
      %cst_20 = arith.constant dense<0.000000e+00> : vector<32xf32>
      %21 = vector.multi_reduction <add>, %18, %cst_20 [1] : vector<32x128xf32> to vector<32xf32>
      %22 = vector.shape_cast %21 : vector<32xf32> to vector<32x1xf32>
      %cst_21 = arith.constant 1.280000e+02 : f32
      %23 = vector.broadcast %cst_21 : f32 to vector<32x1xf32>
      %24 = arith.divf %22, %23 : vector<32x1xf32>
      %25 = vector.broadcast %24 : vector<32x1xf32> to vector<32x128xf32>
      %26 = arith.subf %18, %25 : vector<32x128xf32>
      %27 = arith.mulf %26, %26 : vector<32x128xf32>
      %cst_22 = arith.constant dense<0.000000e+00> : vector<32xf32>
      %28 = vector.multi_reduction <add>, %27, %cst_22 [1] : vector<32x128xf32> to vector<32xf32>
      %29 = vector.shape_cast %28 : vector<32xf32> to vector<32x1xf32>
      %cst_23 = arith.constant 1.280000e+02 : f32
      %30 = vector.broadcast %cst_23 : f32 to vector<32x1xf32>
      %31 = arith.divf %29, %30 : vector<32x1xf32>
      %32 = vector.broadcast %24 : vector<32x1xf32> to vector<32x128xf32>
      %33 = arith.subf %18, %32 : vector<32x128xf32>
      %cst_24 = arith.constant 9.99999974E-6 : f32
      %34 = vector.broadcast %cst_24 : f32 to vector<32x1xf32>
      %35 = arith.addf %31, %34 : vector<32x1xf32>
      %36 = math.rsqrt %35 : vector<32x1xf32>
      %37 = vector.broadcast %36 : vector<32x1xf32> to vector<32x128xf32>
      %38 = arith.mulf %33, %37 : vector<32x128xf32>
      %39 = vector.broadcast %19 : vector<1x128xf32> to vector<32x128xf32>
      %40 = arith.mulf %38, %39 : vector<32x128xf32>
      %41 = vector.broadcast %20 : vector<1x128xf32> to vector<32x128xf32>
      %42 = arith.addf %40, %41 : vector<32x128xf32>
      %43 = arith.truncf %42 : vector<32x128xf32> to vector<32x128xbf16>
      %c0_25 = arith.constant 0 : index
      %c0_26 = arith.constant 0 : index
      %44 = vector.load %arg9[%c0_25, %c0_26] : memref<32x128xbf16, #tpu.memory_space<vmem>>, vector<32x128xbf16>
      tpu.vector_store %arg9[%c0_25, %c0_26], %43 {strides = array<i32>} : memref<32x128xbf16, #tpu.memory_space<vmem>>, vector<32x128xbf16>,
    } else {
    }
    return
  }
  func.func @transform_0(%arg0: i32, %arg1: i32, %arg2: i32) -> (i32, i32) {
    %c0_i32 = arith.constant 0 : i32
    return %arg0, %arg2 : i32, i32
  }
  func.func @transform_1(%arg0: i32, %arg1: i32, %arg2: i32) -> (i32, i32) {
    %c0_i32 = arith.constant 0 : i32
    return %arg2, %arg1 : i32, i32
  }
  func.func @transform_2(%arg0: i32, %arg1: i32, %arg2: i32) -> (i32, i32) {
    %c0_i32 = arith.constant 0 : i32
    %c0_i32_0 = arith.constant 0 : i32
    return %c0_i32, %arg1 : i32, i32
  }
  func.func @transform_3(%arg0: i32, %arg1: i32, %arg2: i32) -> (i32, i32) {
    %c0_i32 = arith.constant 0 : i32
    %c0_i32_0 = arith.constant 0 : i32
    return %arg0, %c0_i32 : i32, i32
  }
  func.func @transform_4(%arg0: i32, %arg1: i32, %arg2: i32) -> (i32, i32) {
    %c0_i32 = arith.constant 0 : i32
    %c0_i32_0 = arith.constant 0 : i32
    %c0_i32_1 = arith.constant 0 : i32
    return %c0_i32, %c0_i32_0 : i32, i32
  }
  func.func @transform_5(%arg0: i32, %arg1: i32, %arg2: i32) -> (i32, i32) {
    %c0_i32 = arith.constant 0 : i32
    %c0_i32_0 = arith.constant 0 : i32
    %c0_i32_1 = arith.constant 0 : i32
    return %c0_i32, %c0_i32_0 : i32, i32
  }
  func.func @transform_6(%arg0: i32, %arg1: i32, %arg2: i32) -> (i32, i32) {
    %c0_i32 = arith.constant 0 : i32
    return %arg0, %arg1 : i32, i32
  }
}

module attributes {stable_mosaic.version = 11 : i64} {
  func.func @_flash_attn_kernel(%arg0: i32, %arg1: i32, %arg2: i32, %arg3: memref<1x16x128xbf16, #tpu.memory_space<vmem>>, %arg4: memref<1x16x128xbf16, #tpu.memory_space<vmem>>, %arg5: memref<1x16x128xbf16, #tpu.memory_space<vmem>>, %arg6: memref<1x16x128xbf16, #tpu.memory_space<vmem>>, %arg7: memref<4x16x1xf32, #tpu.memory_space<vmem>>, %arg8: memref<4x16x1xf32, #tpu.memory_space<vmem>>, %arg9: memref<4x16x32xf32, #tpu.memory_space<vmem>>) attributes {dimension_semantics = [#tpu.dimension_semantics<parallel>, #tpu.dimension_semantics<parallel>, #tpu.dimension_semantics<arbitrary>], iteration_bounds = array<i64: 2, 1, 1>, scalar_prefetch = 0 : i64, scratch_operands = 3 : i64, tpu.core_type = #tpu.core_type<tc>, window_params = [{transform_indices = @transform_0, window_bounds = array<i64: 1, 16, 128>}, {transform_indices = @transform_1, window_bounds = array<i64: 1, 16, 128>}, {transform_indices = @transform_2, window_bounds = array<i64: 1, 16, 128>}, {transform_indices = @transform_3, window_bounds = array<i64: 1, 16, 128>}]} {
    %c0_i32 = arith.constant 0 : i32
    %0 = arith.cmpi eq, %arg2, %c0_i32 : i32
    %1 = arith.extui %0 : i1 to i32
    %c0_i32_0 = arith.constant 0 : i32
    %2 = arith.cmpi ne, %1, %c0_i32_0 : i32
    scf.if %2 {
      %cst_99 = arith.constant 0xFF800000 : f32
      %164 = vector.broadcast %cst_99 : f32 to vector<4x16x1xf32>
      %c0_100 = arith.constant 0 : index
      %c0_101 = arith.constant 0 : index
      %c0_102 = arith.constant 0 : index
      %165 = vector.load %arg7[%c0_100, %c0_101, %c0_102] : memref<4x16x1xf32, #tpu.memory_space<vmem>>, vector<4x16x1xf32>
      tpu.vector_store %arg7[%c0_100, %c0_101, %c0_102], %164 {strides = array<i32>} : memref<4x16x1xf32, #tpu.memory_space<vmem>>, vector<4x16x1xf32>,
      %cst_103 = arith.constant 0.000000e+00 : f32
      %166 = vector.broadcast %cst_103 : f32 to vector<4x16x1xf32>
      %c0_104 = arith.constant 0 : index
      %c0_105 = arith.constant 0 : index
      %c0_106 = arith.constant 0 : index
      %167 = vector.load %arg8[%c0_104, %c0_105, %c0_106] : memref<4x16x1xf32, #tpu.memory_space<vmem>>, vector<4x16x1xf32>
      tpu.vector_store %arg8[%c0_104, %c0_105, %c0_106], %166 {strides = array<i32>} : memref<4x16x1xf32, #tpu.memory_space<vmem>>, vector<4x16x1xf32>,
      %cst_107 = arith.constant 0.000000e+00 : f32
      %168 = vector.broadcast %cst_107 : f32 to vector<4x16x32xf32>
      %c0_108 = arith.constant 0 : index
      %c0_109 = arith.constant 0 : index
      %c0_110 = arith.constant 0 : index
      %169 = vector.load %arg9[%c0_108, %c0_109, %c0_110] : memref<4x16x32xf32, #tpu.memory_space<vmem>>, vector<4x16x32xf32>
      tpu.vector_store %arg9[%c0_108, %c0_109, %c0_110], %168 {strides = array<i32>} : memref<4x16x32xf32, #tpu.memory_space<vmem>>, vector<4x16x32xf32>,
    } else {
    }
    %c0 = arith.constant 0 : index
    %c0_1 = arith.constant 0 : index
    %c0_2 = arith.constant 0 : index
    %3 = vector.load %arg3[%c0, %c0_1, %c0_2] : memref<1x16x128xbf16, #tpu.memory_space<vmem>>, vector<1x16x128xbf16>
    %4 = vector.shape_cast %3 : vector<1x16x128xbf16> to vector<16x128xbf16>
    %c0_3 = arith.constant 0 : index
    %c0_4 = arith.constant 0 : index
    %c0_5 = arith.constant 0 : index
    %5 = vector.load %arg4[%c0_3, %c0_4, %c0_5] : memref<1x16x128xbf16, #tpu.memory_space<vmem>>, vector<1x16x128xbf16>
    %6 = vector.shape_cast %5 : vector<1x16x128xbf16> to vector<16x128xbf16>
    %c0_6 = arith.constant 0 : index
    %c0_7 = arith.constant 0 : index
    %c0_8 = arith.constant 0 : index
    %7 = vector.load %arg5[%c0_6, %c0_7, %c0_8] : memref<1x16x128xbf16, #tpu.memory_space<vmem>>, vector<1x16x128xbf16>
    %8 = vector.shape_cast %7 : vector<1x16x128xbf16> to vector<16x128xbf16>
    %9 = vector.extract_strided_slice %4 {offsets = [0, 0], sizes = [16, 32], strides = [1, 1]} : vector<16x128xbf16> to vector<16x32xbf16>
    %10 = vector.extract_strided_slice %6 {offsets = [0, 0], sizes = [16, 32], strides = [1, 1]} : vector<16x128xbf16> to vector<16x32xbf16>
    %11 = vector.extract_strided_slice %8 {offsets = [0, 0], sizes = [16, 32], strides = [1, 1]} : vector<16x128xbf16> to vector<16x32xbf16>
    %cst = arith.constant dense<0.000000e+00> : vector<16x16xf32>
    %12 = tpu.matmul %9, %10, %cst {dimension_numbers = #tpu.dot_dimension_numbers<[1], [1], [0], [0], [0, 0, 1, 0], [], []>} : vector<16x32xbf16>, vector<16x32xbf16>, vector<16x16xf32> -> vector<16x16xf32>
    %cst_9 = arith.constant 0.176776692 : f32
    %13 = vector.broadcast %cst_9 : f32 to vector<16x16xf32>
    %14 = arith.mulf %12, %13 : vector<16x16xf32>
    %c0_10 = arith.constant 0 : index
    %c0_11 = arith.constant 0 : index
    %c0_12 = arith.constant 0 : index
    %15 = vector.load %arg7[%c0_10, %c0_11, %c0_12] : memref<4x16x1xf32, #tpu.memory_space<vmem>>, vector<1x16x1xf32>
    %16 = vector.shape_cast %15 : vector<1x16x1xf32> to vector<16x1xf32>
    %cst_13 = arith.constant dense<0xFF800000> : vector<16xf32>
    %17 = vector.multi_reduction <maximumf>, %14, %cst_13 [1] : vector<16x16xf32> to vector<16xf32>
    %18 = vector.shape_cast %17 : vector<16xf32> to vector<16x1xf32>
    %19 = arith.maximumf %16, %18 : vector<16x1xf32>
    %20 = arith.subf %16, %19 : vector<16x1xf32>
    %21 = math.exp %20 : vector<16x1xf32>
    %22 = vector.broadcast %19 : vector<16x1xf32> to vector<16x16xf32>
    %23 = arith.subf %14, %22 : vector<16x16xf32>
    %24 = math.exp %23 : vector<16x16xf32>
    %c0_14 = arith.constant 0 : index
    %c0_15 = arith.constant 0 : index
    %c0_16 = arith.constant 0 : index
    %25 = vector.load %arg8[%c0_14, %c0_15, %c0_16] : memref<4x16x1xf32, #tpu.memory_space<vmem>>, vector<1x16x1xf32>
    %26 = vector.shape_cast %25 : vector<1x16x1xf32> to vector<16x1xf32>
    %27 = arith.mulf %21, %26 : vector<16x1xf32>
    %cst_17 = arith.constant dense<0.000000e+00> : vector<16xf32>
    %28 = vector.multi_reduction <add>, %24, %cst_17 [1] : vector<16x16xf32> to vector<16xf32>
    %29 = vector.shape_cast %28 : vector<16xf32> to vector<16x1xf32>
    %30 = arith.addf %27, %29 : vector<16x1xf32>
    %c0_18 = arith.constant 0 : index
    %c0_19 = arith.constant 0 : index
    %c0_20 = arith.constant 0 : index
    %31 = vector.load %arg8[%c0_18, %c0_19, %c0_20] : memref<4x16x1xf32, #tpu.memory_space<vmem>>, vector<1x16x1xf32>
    %32 = vector.shape_cast %31 : vector<1x16x1xf32> to vector<16x1xf32>
    %33 = vector.shape_cast %30 : vector<16x1xf32> to vector<1x16x1xf32>
    tpu.vector_store %arg8[%c0_18, %c0_19, %c0_20], %33 {strides = array<i32>} : memref<4x16x1xf32, #tpu.memory_space<vmem>>, vector<1x16x1xf32>,
    %c0_21 = arith.constant 0 : index
    %c0_22 = arith.constant 0 : index
    %c0_23 = arith.constant 0 : index
    %34 = vector.load %arg9[%c0_21, %c0_22, %c0_23] : memref<4x16x32xf32, #tpu.memory_space<vmem>>, vector<1x16x32xf32>
    %35 = vector.shape_cast %34 : vector<1x16x32xf32> to vector<16x32xf32>
    %36 = vector.broadcast %21 : vector<16x1xf32> to vector<16x32xf32>
    %37 = arith.mulf %36, %35 : vector<16x32xf32>
    %38 = arith.truncf %24 : vector<16x16xf32> to vector<16x16xbf16>
    %cst_24 = arith.constant dense<0.000000e+00> : vector<16x32xf32>
    %39 = tpu.matmul %38, %11, %cst_24 {dimension_numbers = #tpu.dot_dimension_numbers<[1], [0], [0], [1], [0, 0, 1, 1], [], []>} : vector<16x16xbf16>, vector<16x32xbf16>, vector<16x32xf32> -> vector<16x32xf32>
    %40 = arith.addf %37, %39 : vector<16x32xf32>
    %c0_25 = arith.constant 0 : index
    %c0_26 = arith.constant 0 : index
    %c0_27 = arith.constant 0 : index
    %41 = vector.load %arg9[%c0_25, %c0_26, %c0_27] : memref<4x16x32xf32, #tpu.memory_space<vmem>>, vector<1x16x32xf32>
    %42 = vector.shape_cast %41 : vector<1x16x32xf32> to vector<16x32xf32>
    %43 = vector.shape_cast %40 : vector<16x32xf32> to vector<1x16x32xf32>
    tpu.vector_store %arg9[%c0_25, %c0_26, %c0_27], %43 {strides = array<i32>} : memref<4x16x32xf32, #tpu.memory_space<vmem>>, vector<1x16x32xf32>,
    %c0_28 = arith.constant 0 : index
    %c0_29 = arith.constant 0 : index
    %c0_30 = arith.constant 0 : index
    %44 = vector.load %arg7[%c0_28, %c0_29, %c0_30] : memref<4x16x1xf32, #tpu.memory_space<vmem>>, vector<1x16x1xf32>
    %45 = vector.shape_cast %44 : vector<1x16x1xf32> to vector<16x1xf32>
    %46 = vector.shape_cast %19 : vector<16x1xf32> to vector<1x16x1xf32>
    tpu.vector_store %arg7[%c0_28, %c0_29, %c0_30], %46 {strides = array<i32>} : memref<4x16x1xf32, #tpu.memory_space<vmem>>, vector<1x16x1xf32>,
    %47 = vector.extract_strided_slice %4 {offsets = [0, 32], sizes = [16, 32], strides = [1, 1]} : vector<16x128xbf16> to vector<16x32xbf16>
    %48 = vector.extract_strided_slice %6 {offsets = [0, 32], sizes = [16, 32], strides = [1, 1]} : vector<16x128xbf16> to vector<16x32xbf16>
    %49 = vector.extract_strided_slice %8 {offsets = [0, 32], sizes = [16, 32], strides = [1, 1]} : vector<16x128xbf16> to vector<16x32xbf16>
    %cst_31 = arith.constant dense<0.000000e+00> : vector<16x16xf32>
    %50 = tpu.matmul %47, %48, %cst_31 {dimension_numbers = #tpu.dot_dimension_numbers<[1], [1], [0], [0], [0, 0, 1, 0], [], []>} : vector<16x32xbf16>, vector<16x32xbf16>, vector<16x16xf32> -> vector<16x16xf32>
    %cst_32 = arith.constant 0.176776692 : f32
    %51 = vector.broadcast %cst_32 : f32 to vector<16x16xf32>
    %52 = arith.mulf %50, %51 : vector<16x16xf32>
    %c1 = arith.constant 1 : index
    %c0_33 = arith.constant 0 : index
    %c0_34 = arith.constant 0 : index
    %53 = vector.load %arg7[%c1, %c0_33, %c0_34] : memref<4x16x1xf32, #tpu.memory_space<vmem>>, vector<1x16x1xf32>
    %54 = vector.shape_cast %53 : vector<1x16x1xf32> to vector<16x1xf32>
    %cst_35 = arith.constant dense<0xFF800000> : vector<16xf32>
    %55 = vector.multi_reduction <maximumf>, %52, %cst_35 [1] : vector<16x16xf32> to vector<16xf32>
    %56 = vector.shape_cast %55 : vector<16xf32> to vector<16x1xf32>
    %57 = arith.maximumf %54, %56 : vector<16x1xf32>
    %58 = arith.subf %54, %57 : vector<16x1xf32>
    %59 = math.exp %58 : vector<16x1xf32>
    %60 = vector.broadcast %57 : vector<16x1xf32> to vector<16x16xf32>
    %61 = arith.subf %52, %60 : vector<16x16xf32>
    %62 = math.exp %61 : vector<16x16xf32>
    %c1_36 = arith.constant 1 : index
    %c0_37 = arith.constant 0 : index
    %c0_38 = arith.constant 0 : index
    %63 = vector.load %arg8[%c1_36, %c0_37, %c0_38] : memref<4x16x1xf32, #tpu.memory_space<vmem>>, vector<1x16x1xf32>
    %64 = vector.shape_cast %63 : vector<1x16x1xf32> to vector<16x1xf32>
    %65 = arith.mulf %59, %64 : vector<16x1xf32>
    %cst_39 = arith.constant dense<0.000000e+00> : vector<16xf32>
    %66 = vector.multi_reduction <add>, %62, %cst_39 [1] : vector<16x16xf32> to vector<16xf32>
    %67 = vector.shape_cast %66 : vector<16xf32> to vector<16x1xf32>
    %68 = arith.addf %65, %67 : vector<16x1xf32>
    %c1_40 = arith.constant 1 : index
    %c0_41 = arith.constant 0 : index
    %c0_42 = arith.constant 0 : index
    %69 = vector.load %arg8[%c1_40, %c0_41, %c0_42] : memref<4x16x1xf32, #tpu.memory_space<vmem>>, vector<1x16x1xf32>
    %70 = vector.shape_cast %69 : vector<1x16x1xf32> to vector<16x1xf32>
    %71 = vector.shape_cast %68 : vector<16x1xf32> to vector<1x16x1xf32>
    tpu.vector_store %arg8[%c1_40, %c0_41, %c0_42], %71 {strides = array<i32>} : memref<4x16x1xf32, #tpu.memory_space<vmem>>, vector<1x16x1xf32>,
    %c1_43 = arith.constant 1 : index
    %c0_44 = arith.constant 0 : index
    %c0_45 = arith.constant 0 : index
    %72 = vector.load %arg9[%c1_43, %c0_44, %c0_45] : memref<4x16x32xf32, #tpu.memory_space<vmem>>, vector<1x16x32xf32>
    %73 = vector.shape_cast %72 : vector<1x16x32xf32> to vector<16x32xf32>
    %74 = vector.broadcast %59 : vector<16x1xf32> to vector<16x32xf32>
    %75 = arith.mulf %74, %73 : vector<16x32xf32>
    %76 = arith.truncf %62 : vector<16x16xf32> to vector<16x16xbf16>
    %cst_46 = arith.constant dense<0.000000e+00> : vector<16x32xf32>
    %77 = tpu.matmul %76, %49, %cst_46 {dimension_numbers = #tpu.dot_dimension_numbers<[1], [0], [0], [1], [0, 0, 1, 1], [], []>} : vector<16x16xbf16>, vector<16x32xbf16>, vector<16x32xf32> -> vector<16x32xf32>
    %78 = arith.addf %75, %77 : vector<16x32xf32>
    %c1_47 = arith.constant 1 : index
    %c0_48 = arith.constant 0 : index
    %c0_49 = arith.constant 0 : index
    %79 = vector.load %arg9[%c1_47, %c0_48, %c0_49] : memref<4x16x32xf32, #tpu.memory_space<vmem>>, vector<1x16x32xf32>
    %80 = vector.shape_cast %79 : vector<1x16x32xf32> to vector<16x32xf32>
    %81 = vector.shape_cast %78 : vector<16x32xf32> to vector<1x16x32xf32>
    tpu.vector_store %arg9[%c1_47, %c0_48, %c0_49], %81 {strides = array<i32>} : memref<4x16x32xf32, #tpu.memory_space<vmem>>, vector<1x16x32xf32>,
    %c1_50 = arith.constant 1 : index
    %c0_51 = arith.constant 0 : index
    %c0_52 = arith.constant 0 : index
    %82 = vector.load %arg7[%c1_50, %c0_51, %c0_52] : memref<4x16x1xf32, #tpu.memory_space<vmem>>, vector<1x16x1xf32>
    %83 = vector.shape_cast %82 : vector<1x16x1xf32> to vector<16x1xf32>
    %84 = vector.shape_cast %57 : vector<16x1xf32> to vector<1x16x1xf32>
    tpu.vector_store %arg7[%c1_50, %c0_51, %c0_52], %84 {strides = array<i32>} : memref<4x16x1xf32, #tpu.memory_space<vmem>>, vector<1x16x1xf32>,
    %85 = vector.extract_strided_slice %4 {offsets = [0, 64], sizes = [16, 32], strides = [1, 1]} : vector<16x128xbf16> to vector<16x32xbf16>
    %86 = vector.extract_strided_slice %6 {offsets = [0, 64], sizes = [16, 32], strides = [1, 1]} : vector<16x128xbf16> to vector<16x32xbf16>
    %87 = vector.extract_strided_slice %8 {offsets = [0, 64], sizes = [16, 32], strides = [1, 1]} : vector<16x128xbf16> to vector<16x32xbf16>
    %cst_53 = arith.constant dense<0.000000e+00> : vector<16x16xf32>
    %88 = tpu.matmul %85, %86, %cst_53 {dimension_numbers = #tpu.dot_dimension_numbers<[1], [1], [0], [0], [0, 0, 1, 0], [], []>} : vector<16x32xbf16>, vector<16x32xbf16>, vector<16x16xf32> -> vector<16x16xf32>
    %cst_54 = arith.constant 0.176776692 : f32
    %89 = vector.broadcast %cst_54 : f32 to vector<16x16xf32>
    %90 = arith.mulf %88, %89 : vector<16x16xf32>
    %c2 = arith.constant 2 : index
    %c0_55 = arith.constant 0 : index
    %c0_56 = arith.constant 0 : index
    %91 = vector.load %arg7[%c2, %c0_55, %c0_56] : memref<4x16x1xf32, #tpu.memory_space<vmem>>, vector<1x16x1xf32>
    %92 = vector.shape_cast %91 : vector<1x16x1xf32> to vector<16x1xf32>
    %cst_57 = arith.constant dense<0xFF800000> : vector<16xf32>
    %93 = vector.multi_reduction <maximumf>, %90, %cst_57 [1] : vector<16x16xf32> to vector<16xf32>
    %94 = vector.shape_cast %93 : vector<16xf32> to vector<16x1xf32>
    %95 = arith.maximumf %92, %94 : vector<16x1xf32>
    %96 = arith.subf %92, %95 : vector<16x1xf32>
    %97 = math.exp %96 : vector<16x1xf32>
    %98 = vector.broadcast %95 : vector<16x1xf32> to vector<16x16xf32>
    %99 = arith.subf %90, %98 : vector<16x16xf32>
    %100 = math.exp %99 : vector<16x16xf32>
    %c2_58 = arith.constant 2 : index
    %c0_59 = arith.constant 0 : index
    %c0_60 = arith.constant 0 : index
    %101 = vector.load %arg8[%c2_58, %c0_59, %c0_60] : memref<4x16x1xf32, #tpu.memory_space<vmem>>, vector<1x16x1xf32>
    %102 = vector.shape_cast %101 : vector<1x16x1xf32> to vector<16x1xf32>
    %103 = arith.mulf %97, %102 : vector<16x1xf32>
    %cst_61 = arith.constant dense<0.000000e+00> : vector<16xf32>
    %104 = vector.multi_reduction <add>, %100, %cst_61 [1] : vector<16x16xf32> to vector<16xf32>
    %105 = vector.shape_cast %104 : vector<16xf32> to vector<16x1xf32>
    %106 = arith.addf %103, %105 : vector<16x1xf32>
    %c2_62 = arith.constant 2 : index
    %c0_63 = arith.constant 0 : index
    %c0_64 = arith.constant 0 : index
    %107 = vector.load %arg8[%c2_62, %c0_63, %c0_64] : memref<4x16x1xf32, #tpu.memory_space<vmem>>, vector<1x16x1xf32>
    %108 = vector.shape_cast %107 : vector<1x16x1xf32> to vector<16x1xf32>
    %109 = vector.shape_cast %106 : vector<16x1xf32> to vector<1x16x1xf32>
    tpu.vector_store %arg8[%c2_62, %c0_63, %c0_64], %109 {strides = array<i32>} : memref<4x16x1xf32, #tpu.memory_space<vmem>>, vector<1x16x1xf32>,
    %c2_65 = arith.constant 2 : index
    %c0_66 = arith.constant 0 : index
    %c0_67 = arith.constant 0 : index
    %110 = vector.load %arg9[%c2_65, %c0_66, %c0_67] : memref<4x16x32xf32, #tpu.memory_space<vmem>>, vector<1x16x32xf32>
    %111 = vector.shape_cast %110 : vector<1x16x32xf32> to vector<16x32xf32>
    %112 = vector.broadcast %97 : vector<16x1xf32> to vector<16x32xf32>
    %113 = arith.mulf %112, %111 : vector<16x32xf32>
    %114 = arith.truncf %100 : vector<16x16xf32> to vector<16x16xbf16>
    %cst_68 = arith.constant dense<0.000000e+00> : vector<16x32xf32>
    %115 = tpu.matmul %114, %87, %cst_68 {dimension_numbers = #tpu.dot_dimension_numbers<[1], [0], [0], [1], [0, 0, 1, 1], [], []>} : vector<16x16xbf16>, vector<16x32xbf16>, vector<16x32xf32> -> vector<16x32xf32>
    %116 = arith.addf %113, %115 : vector<16x32xf32>
    %c2_69 = arith.constant 2 : index
    %c0_70 = arith.constant 0 : index
    %c0_71 = arith.constant 0 : index
    %117 = vector.load %arg9[%c2_69, %c0_70, %c0_71] : memref<4x16x32xf32, #tpu.memory_space<vmem>>, vector<1x16x32xf32>
    %118 = vector.shape_cast %117 : vector<1x16x32xf32> to vector<16x32xf32>
    %119 = vector.shape_cast %116 : vector<16x32xf32> to vector<1x16x32xf32>
    tpu.vector_store %arg9[%c2_69, %c0_70, %c0_71], %119 {strides = array<i32>} : memref<4x16x32xf32, #tpu.memory_space<vmem>>, vector<1x16x32xf32>,
    %c2_72 = arith.constant 2 : index
    %c0_73 = arith.constant 0 : index
    %c0_74 = arith.constant 0 : index
    %120 = vector.load %arg7[%c2_72, %c0_73, %c0_74] : memref<4x16x1xf32, #tpu.memory_space<vmem>>, vector<1x16x1xf32>
    %121 = vector.shape_cast %120 : vector<1x16x1xf32> to vector<16x1xf32>
    %122 = vector.shape_cast %95 : vector<16x1xf32> to vector<1x16x1xf32>
    tpu.vector_store %arg7[%c2_72, %c0_73, %c0_74], %122 {strides = array<i32>} : memref<4x16x1xf32, #tpu.memory_space<vmem>>, vector<1x16x1xf32>,
    %123 = vector.extract_strided_slice %4 {offsets = [0, 96], sizes = [16, 32], strides = [1, 1]} : vector<16x128xbf16> to vector<16x32xbf16>
    %124 = vector.extract_strided_slice %6 {offsets = [0, 96], sizes = [16, 32], strides = [1, 1]} : vector<16x128xbf16> to vector<16x32xbf16>
    %125 = vector.extract_strided_slice %8 {offsets = [0, 96], sizes = [16, 32], strides = [1, 1]} : vector<16x128xbf16> to vector<16x32xbf16>
    %cst_75 = arith.constant dense<0.000000e+00> : vector<16x16xf32>
    %126 = tpu.matmul %123, %124, %cst_75 {dimension_numbers = #tpu.dot_dimension_numbers<[1], [1], [0], [0], [0, 0, 1, 0], [], []>} : vector<16x32xbf16>, vector<16x32xbf16>, vector<16x16xf32> -> vector<16x16xf32>
    %cst_76 = arith.constant 0.176776692 : f32
    %127 = vector.broadcast %cst_76 : f32 to vector<16x16xf32>
    %128 = arith.mulf %126, %127 : vector<16x16xf32>
    %c3 = arith.constant 3 : index
    %c0_77 = arith.constant 0 : index
    %c0_78 = arith.constant 0 : index
    %129 = vector.load %arg7[%c3, %c0_77, %c0_78] : memref<4x16x1xf32, #tpu.memory_space<vmem>>, vector<1x16x1xf32>
    %130 = vector.shape_cast %129 : vector<1x16x1xf32> to vector<16x1xf32>
    %cst_79 = arith.constant dense<0xFF800000> : vector<16xf32>
    %131 = vector.multi_reduction <maximumf>, %128, %cst_79 [1] : vector<16x16xf32> to vector<16xf32>
    %132 = vector.shape_cast %131 : vector<16xf32> to vector<16x1xf32>
    %133 = arith.maximumf %130, %132 : vector<16x1xf32>
    %134 = arith.subf %130, %133 : vector<16x1xf32>
    %135 = math.exp %134 : vector<16x1xf32>
    %136 = vector.broadcast %133 : vector<16x1xf32> to vector<16x16xf32>
    %137 = arith.subf %128, %136 : vector<16x16xf32>
    %138 = math.exp %137 : vector<16x16xf32>
    %c3_80 = arith.constant 3 : index
    %c0_81 = arith.constant 0 : index
    %c0_82 = arith.constant 0 : index
    %139 = vector.load %arg8[%c3_80, %c0_81, %c0_82] : memref<4x16x1xf32, #tpu.memory_space<vmem>>, vector<1x16x1xf32>
    %140 = vector.shape_cast %139 : vector<1x16x1xf32> to vector<16x1xf32>
    %141 = arith.mulf %135, %140 : vector<16x1xf32>
    %cst_83 = arith.constant dense<0.000000e+00> : vector<16xf32>
    %142 = vector.multi_reduction <add>, %138, %cst_83 [1] : vector<16x16xf32> to vector<16xf32>
    %143 = vector.shape_cast %142 : vector<16xf32> to vector<16x1xf32>
    %144 = arith.addf %141, %143 : vector<16x1xf32>
    %c3_84 = arith.constant 3 : index
    %c0_85 = arith.constant 0 : index
    %c0_86 = arith.constant 0 : index
    %145 = vector.load %arg8[%c3_84, %c0_85, %c0_86] : memref<4x16x1xf32, #tpu.memory_space<vmem>>, vector<1x16x1xf32>
    %146 = vector.shape_cast %145 : vector<1x16x1xf32> to vector<16x1xf32>
    %147 = vector.shape_cast %144 : vector<16x1xf32> to vector<1x16x1xf32>
    tpu.vector_store %arg8[%c3_84, %c0_85, %c0_86], %147 {strides = array<i32>} : memref<4x16x1xf32, #tpu.memory_space<vmem>>, vector<1x16x1xf32>,
    %c3_87 = arith.constant 3 : index
    %c0_88 = arith.constant 0 : index
    %c0_89 = arith.constant 0 : index
    %148 = vector.load %arg9[%c3_87, %c0_88, %c0_89] : memref<4x16x32xf32, #tpu.memory_space<vmem>>, vector<1x16x32xf32>
    %149 = vector.shape_cast %148 : vector<1x16x32xf32> to vector<16x32xf32>
    %150 = vector.broadcast %135 : vector<16x1xf32> to vector<16x32xf32>
    %151 = arith.mulf %150, %149 : vector<16x32xf32>
    %152 = arith.truncf %138 : vector<16x16xf32> to vector<16x16xbf16>
    %cst_90 = arith.constant dense<0.000000e+00> : vector<16x32xf32>
    %153 = tpu.matmul %152, %125, %cst_90 {dimension_numbers = #tpu.dot_dimension_numbers<[1], [0], [0], [1], [0, 0, 1, 1], [], []>} : vector<16x16xbf16>, vector<16x32xbf16>, vector<16x32xf32> -> vector<16x32xf32>
    %154 = arith.addf %151, %153 : vector<16x32xf32>
    %c3_91 = arith.constant 3 : index
    %c0_92 = arith.constant 0 : index
    %c0_93 = arith.constant 0 : index
    %155 = vector.load %arg9[%c3_91, %c0_92, %c0_93] : memref<4x16x32xf32, #tpu.memory_space<vmem>>, vector<1x16x32xf32>
    %156 = vector.shape_cast %155 : vector<1x16x32xf32> to vector<16x32xf32>
    %157 = vector.shape_cast %154 : vector<16x32xf32> to vector<1x16x32xf32>
    tpu.vector_store %arg9[%c3_91, %c0_92, %c0_93], %157 {strides = array<i32>} : memref<4x16x32xf32, #tpu.memory_space<vmem>>, vector<1x16x32xf32>,
    %c3_94 = arith.constant 3 : index
    %c0_95 = arith.constant 0 : index
    %c0_96 = arith.constant 0 : index
    %158 = vector.load %arg7[%c3_94, %c0_95, %c0_96] : memref<4x16x1xf32, #tpu.memory_space<vmem>>, vector<1x16x1xf32>
    %159 = vector.shape_cast %158 : vector<1x16x1xf32> to vector<16x1xf32>
    %160 = vector.shape_cast %133 : vector<16x1xf32> to vector<1x16x1xf32>
    tpu.vector_store %arg7[%c3_94, %c0_95, %c0_96], %160 {strides = array<i32>} : memref<4x16x1xf32, #tpu.memory_space<vmem>>, vector<1x16x1xf32>,
    %c0_i32_97 = arith.constant 0 : i32
    %161 = arith.cmpi eq, %arg2, %c0_i32_97 : i32
    %162 = arith.extui %161 : i1 to i32
    %c0_i32_98 = arith.constant 0 : i32
    %163 = arith.cmpi ne, %162, %c0_i32_98 : i32
    scf.if %163 {
      %c0_99 = arith.constant 0 : index
      %c0_100 = arith.constant 0 : index
      %c0_101 = arith.constant 0 : index
      %164 = vector.load %arg9[%c0_99, %c0_100, %c0_101] : memref<4x16x32xf32, #tpu.memory_space<vmem>>, vector<1x16x32xf32>
      %165 = vector.shape_cast %164 : vector<1x16x32xf32> to vector<16x32xf32>
      %c0_102 = arith.constant 0 : index
      %c0_103 = arith.constant 0 : index
      %c0_104 = arith.constant 0 : index
      %166 = vector.load %arg8[%c0_102, %c0_103, %c0_104] : memref<4x16x1xf32, #tpu.memory_space<vmem>>, vector<1x16x1xf32>
      %167 = vector.shape_cast %166 : vector<1x16x1xf32> to vector<16x1xf32>
      %168 = tpu.reciprocal %167 {approx = true} : vector<16x1xf32> -> vector<16x1xf32>
      %169 = vector.broadcast %168 : vector<16x1xf32> to vector<16x32xf32>
      %170 = arith.mulf %165, %169 : vector<16x32xf32>
      %171 = arith.truncf %170 : vector<16x32xf32> to vector<16x32xbf16>
      %c0_105 = arith.constant 0 : index
      %c0_106 = arith.constant 0 : index
      %c0_107 = arith.constant 0 : index
      %172 = vector.load %arg6[%c0_105, %c0_106, %c0_107] : memref<1x16x128xbf16, #tpu.memory_space<vmem>>, vector<1x16x32xbf16>
      %173 = vector.shape_cast %172 : vector<1x16x32xbf16> to vector<16x32xbf16>
      %174 = vector.shape_cast %171 : vector<16x32xbf16> to vector<1x16x32xbf16>
      tpu.vector_store %arg6[%c0_105, %c0_106, %c0_107], %174 {strides = array<i32>} : memref<1x16x128xbf16, #tpu.memory_space<vmem>>, vector<1x16x32xbf16>,
      %c1_108 = arith.constant 1 : index
      %c0_109 = arith.constant 0 : index
      %c0_110 = arith.constant 0 : index
      %175 = vector.load %arg9[%c1_108, %c0_109, %c0_110] : memref<4x16x32xf32, #tpu.memory_space<vmem>>, vector<1x16x32xf32>
      %176 = vector.shape_cast %175 : vector<1x16x32xf32> to vector<16x32xf32>
      %c1_111 = arith.constant 1 : index
      %c0_112 = arith.constant 0 : index
      %c0_113 = arith.constant 0 : index
      %177 = vector.load %arg8[%c1_111, %c0_112, %c0_113] : memref<4x16x1xf32, #tpu.memory_space<vmem>>, vector<1x16x1xf32>
      %178 = vector.shape_cast %177 : vector<1x16x1xf32> to vector<16x1xf32>
      %179 = tpu.reciprocal %178 {approx = true} : vector<16x1xf32> -> vector<16x1xf32>
      %180 = vector.broadcast %179 : vector<16x1xf32> to vector<16x32xf32>
      %181 = arith.mulf %176, %180 : vector<16x32xf32>
      %182 = arith.truncf %181 : vector<16x32xf32> to vector<16x32xbf16>
      %c0_114 = arith.constant 0 : index
      %c0_115 = arith.constant 0 : index
      %c32 = arith.constant 32 : index
      %183 = vector.load %arg6[%c0_114, %c0_115, %c32] : memref<1x16x128xbf16, #tpu.memory_space<vmem>>, vector<1x16x32xbf16>
      %184 = vector.shape_cast %183 : vector<1x16x32xbf16> to vector<16x32xbf16>
      %185 = vector.shape_cast %182 : vector<16x32xbf16> to vector<1x16x32xbf16>
      tpu.vector_store %arg6[%c0_114, %c0_115, %c32], %185 {strides = array<i32>} : memref<1x16x128xbf16, #tpu.memory_space<vmem>>, vector<1x16x32xbf16>,
      %c2_116 = arith.constant 2 : index
      %c0_117 = arith.constant 0 : index
      %c0_118 = arith.constant 0 : index
      %186 = vector.load %arg9[%c2_116, %c0_117, %c0_118] : memref<4x16x32xf32, #tpu.memory_space<vmem>>, vector<1x16x32xf32>
      %187 = vector.shape_cast %186 : vector<1x16x32xf32> to vector<16x32xf32>
      %c2_119 = arith.constant 2 : index
      %c0_120 = arith.constant 0 : index
      %c0_121 = arith.constant 0 : index
      %188 = vector.load %arg8[%c2_119, %c0_120, %c0_121] : memref<4x16x1xf32, #tpu.memory_space<vmem>>, vector<1x16x1xf32>
      %189 = vector.shape_cast %188 : vector<1x16x1xf32> to vector<16x1xf32>
      %190 = tpu.reciprocal %189 {approx = true} : vector<16x1xf32> -> vector<16x1xf32>
      %191 = vector.broadcast %190 : vector<16x1xf32> to vector<16x32xf32>
      %192 = arith.mulf %187, %191 : vector<16x32xf32>
      %193 = arith.truncf %192 : vector<16x32xf32> to vector<16x32xbf16>
      %c0_122 = arith.constant 0 : index
      %c0_123 = arith.constant 0 : index
      %c64 = arith.constant 64 : index
      %194 = vector.load %arg6[%c0_122, %c0_123, %c64] : memref<1x16x128xbf16, #tpu.memory_space<vmem>>, vector<1x16x32xbf16>
      %195 = vector.shape_cast %194 : vector<1x16x32xbf16> to vector<16x32xbf16>
      %196 = vector.shape_cast %193 : vector<16x32xbf16> to vector<1x16x32xbf16>
      tpu.vector_store %arg6[%c0_122, %c0_123, %c64], %196 {strides = array<i32>} : memref<1x16x128xbf16, #tpu.memory_space<vmem>>, vector<1x16x32xbf16>,
      %c3_124 = arith.constant 3 : index
      %c0_125 = arith.constant 0 : index
      %c0_126 = arith.constant 0 : index
      %197 = vector.load %arg9[%c3_124, %c0_125, %c0_126] : memref<4x16x32xf32, #tpu.memory_space<vmem>>, vector<1x16x32xf32>
      %198 = vector.shape_cast %197 : vector<1x16x32xf32> to vector<16x32xf32>
      %c3_127 = arith.constant 3 : index
      %c0_128 = arith.constant 0 : index
      %c0_129 = arith.constant 0 : index
      %199 = vector.load %arg8[%c3_127, %c0_128, %c0_129] : memref<4x16x1xf32, #tpu.memory_space<vmem>>, vector<1x16x1xf32>
      %200 = vector.shape_cast %199 : vector<1x16x1xf32> to vector<16x1xf32>
      %201 = tpu.reciprocal %200 {approx = true} : vector<16x1xf32> -> vector<16x1xf32>
      %202 = vector.broadcast %201 : vector<16x1xf32> to vector<16x32xf32>
      %203 = arith.mulf %198, %202 : vector<16x32xf32>
      %204 = arith.truncf %203 : vector<16x32xf32> to vector<16x32xbf16>
      %c0_130 = arith.constant 0 : index
      %c0_131 = arith.constant 0 : index
      %c96 = arith.constant 96 : index
      %205 = vector.load %arg6[%c0_130, %c0_131, %c96] : memref<1x16x128xbf16, #tpu.memory_space<vmem>>, vector<1x16x32xbf16>
      %206 = vector.shape_cast %205 : vector<1x16x32xbf16> to vector<16x32xbf16>
      %207 = vector.shape_cast %204 : vector<16x32xbf16> to vector<1x16x32xbf16>
      tpu.vector_store %arg6[%c0_130, %c0_131, %c96], %207 {strides = array<i32>} : memref<1x16x128xbf16, #tpu.memory_space<vmem>>, vector<1x16x32xbf16>,
    } else {
    }
    return
  }
  func.func @transform_0(%arg0: i32, %arg1: i32, %arg2: i32) -> (i32, i32, i32) {
    %c0_i32 = arith.constant 0 : i32
    %c0_i32_0 = arith.constant 0 : i32
    return %arg0, %arg1, %c0_i32 : i32, i32, i32
  }
  func.func @transform_1(%arg0: i32, %arg1: i32, %arg2: i32) -> (i32, i32, i32) {
    %c1_i32 = arith.constant 1 : i32
    %c0_i32 = arith.constant 0 : i32
    return %arg0, %arg2, %c1_i32 : i32, i32, i32
  }
  func.func @transform_2(%arg0: i32, %arg1: i32, %arg2: i32) -> (i32, i32, i32) {
    %c2_i32 = arith.constant 2 : i32
    %c0_i32 = arith.constant 0 : i32
    return %arg0, %arg2, %c2_i32 : i32, i32, i32
  }
  func.func @transform_3(%arg0: i32, %arg1: i32, %arg2: i32) -> (i32, i32, i32) {
    %c0_i32 = arith.constant 0 : i32
    %c0_i32_0 = arith.constant 0 : i32
    return %arg0, %arg1, %c0_i32 : i32, i32, i32
  }
}

module attributes {stable_mosaic.version = 11 : i64} {
  func.func @_matmul_kernel(%arg0: i32, %arg1: i32, %arg2: i32, %arg3: memref<32x128xbf16, #tpu.memory_space<vmem>>, %arg4: memref<128x128xbf16, #tpu.memory_space<vmem>>, %arg5: memref<1x128xf32, #tpu.memory_space<vmem>>, %arg6: memref<32x128xbf16, #tpu.memory_space<vmem>>, %arg7: memref<32x128xf32, #tpu.memory_space<vmem>>) attributes {dimension_semantics = [#tpu.dimension_semantics<parallel>, #tpu.dimension_semantics<parallel>, #tpu.dimension_semantics<arbitrary>], iteration_bounds = array<i64: 1, 1, 1>, scalar_prefetch = 0 : i64, scratch_operands = 1 : i64, tpu.core_type = #tpu.core_type<tc>, window_params = [{transform_indices = @transform_0, window_bounds = array<i64: 32, 128>}, {transform_indices = @transform_1, window_bounds = array<i64: 128, 128>}, {transform_indices = @transform_2, window_bounds = array<i64: 1, 128>}, {transform_indices = @transform_3, window_bounds = array<i64: 32, 128>}]} {
    %c0_i32 = arith.constant 0 : i32
    %0 = arith.cmpi eq, %arg2, %c0_i32 : i32
    %1 = arith.extui %0 : i1 to i32
    %c0_i32_0 = arith.constant 0 : i32
    %2 = arith.cmpi ne, %1, %c0_i32_0 : i32
    scf.if %2 {
      %cst_10 = arith.constant 0.000000e+00 : f32
      %12 = vector.broadcast %cst_10 : f32 to vector<32x128xf32>
      %c0_11 = arith.constant 0 : index
      %c0_12 = arith.constant 0 : index
      %13 = vector.load %arg7[%c0_11, %c0_12] : memref<32x128xf32, #tpu.memory_space<vmem>>, vector<32x128xf32>
      tpu.vector_store %arg7[%c0_11, %c0_12], %12 {strides = array<i32>} : memref<32x128xf32, #tpu.memory_space<vmem>>, vector<32x128xf32>,
    } else {
    }
    %c0 = arith.constant 0 : index
    %c0_1 = arith.constant 0 : index
    %3 = vector.load %arg7[%c0, %c0_1] : memref<32x128xf32, #tpu.memory_space<vmem>>, vector<32x128xf32>
    %c0_2 = arith.constant 0 : index
    %c0_3 = arith.constant 0 : index
    %4 = vector.load %arg3[%c0_2, %c0_3] : memref<32x128xbf16, #tpu.memory_space<vmem>>, vector<32x128xbf16>
    %c0_4 = arith.constant 0 : index
    %c0_5 = arith.constant 0 : index
    %5 = vector.load %arg4[%c0_4, %c0_5] : memref<128x128xbf16, #tpu.memory_space<vmem>>, vector<128x128xbf16>
    %cst = arith.constant dense<0.000000e+00> : vector<32x128xf32>
    %6 = tpu.matmul %4, %5, %cst {dimension_numbers = #tpu.dot_dimension_numbers<[1], [0], [0], [1], [0, 0, 1, 1], [], []>} : vector<32x128xbf16>, vector<128x128xbf16>, vector<32x128xf32> -> vector<32x128xf32>
    %7 = arith.addf %3, %6 : vector<32x128xf32>
    %c0_6 = arith.constant 0 : index
    %c0_7 = arith.constant 0 : index
    %8 = vector.load %arg7[%c0_6, %c0_7] : memref<32x128xf32, #tpu.memory_space<vmem>>, vector<32x128xf32>
    tpu.vector_store %arg7[%c0_6, %c0_7], %7 {strides = array<i32>} : memref<32x128xf32, #tpu.memory_space<vmem>>, vector<32x128xf32>,
    %c0_i32_8 = arith.constant 0 : i32
    %9 = arith.cmpi eq, %arg2, %c0_i32_8 : i32
    %10 = arith.extui %9 : i1 to i32
    %c0_i32_9 = arith.constant 0 : i32
    %11 = arith.cmpi ne, %10, %c0_i32_9 : i32
    scf.if %11 {
      %c0_10 = arith.constant 0 : index
      %c0_11 = arith.constant 0 : index
      %12 = vector.load %arg7[%c0_10, %c0_11] : memref<32x128xf32, #tpu.memory_space<vmem>>, vector<32x128xf32>
      %c0_12 = arith.constant 0 : index
      %c0_13 = arith.constant 0 : index
      %13 = vector.load %arg5[%c0_12, %c0_13] : memref<1x128xf32, #tpu.memory_space<vmem>>, vector<1x128xf32>
      %14 = vector.broadcast %13 : vector<1x128xf32> to vector<32x128xf32>
      %15 = arith.addf %12, %14 : vector<32x128xf32>
      %16 = arith.truncf %15 : vector<32x128xf32> to vector<32x128xbf16>
      %c0_14 = arith.constant 0 : index
      %c0_15 = arith.constant 0 : index
      %17 = vector.load %arg6[%c0_14, %c0_15] : memref<32x128xbf16, #tpu.memory_space<vmem>>, vector<32x128xbf16>
      tpu.vector_store %arg6[%c0_14, %c0_15], %16 {strides = array<i32>} : memref<32x128xbf16, #tpu.memory_space<vmem>>, vector<32x128xbf16>,
    } else {
    }
    return
  }
  func.func @transform_0(%arg0: i32, %arg1: i32, %arg2: i32) -> (i32, i32) {
    %c0_i32 = arith.constant 0 : i32
    return %arg0, %arg2 : i32, i32
  }
  func.func @transform_1(%arg0: i32, %arg1: i32, %arg2: i32) -> (i32, i32) {
    %c0_i32 = arith.constant 0 : i32
    return %arg2, %arg1 : i32, i32
  }
  func.func @transform_2(%arg0: i32, %arg1: i32, %arg2: i32) -> (i32, i32) {
    %c0_i32 = arith.constant 0 : i32
    %c0_i32_0 = arith.constant 0 : i32
    return %c0_i32, %arg1 : i32, i32
  }
  func.func @transform_3(%arg0: i32, %arg1: i32, %arg2: i32) -> (i32, i32) {
    %c0_i32 = arith.constant 0 : i32
    return %arg0, %arg1 : i32, i32
  }
}

module attributes {stable_mosaic.version = 11 : i64} {
  func.func @_ffn_kernel(%arg0: i32, %arg1: memref<32x128xbf16, #tpu.memory_space<vmem>>, %arg2: memref<128x256xbf16, #tpu.memory_space<vmem>>, %arg3: memref<1x256xf32, #tpu.memory_space<vmem>>, %arg4: memref<256x128xbf16, #tpu.memory_space<vmem>>, %arg5: memref<1x128xf32, #tpu.memory_space<vmem>>, %arg6: memref<1x128xf32, #tpu.memory_space<vmem>>, %arg7: memref<1x128xf32, #tpu.memory_space<vmem>>, %arg8: memref<32x128xbf16, #tpu.memory_space<vmem>>) attributes {dimension_semantics = [#tpu.dimension_semantics<parallel>], iteration_bounds = array<i64: 1>, scalar_prefetch = 0 : i64, scratch_operands = 0 : i64, tpu.core_type = #tpu.core_type<tc>, window_params = [{transform_indices = @transform_0, window_bounds = array<i64: 32, 128>}, {pipeline_mode = #tpu.pipeline_mode<synchronous>, transform_indices = @transform_1, window_bounds = array<i64: 128, 256>}, {pipeline_mode = #tpu.pipeline_mode<synchronous>, transform_indices = @transform_2, window_bounds = array<i64: 1, 256>}, {pipeline_mode = #tpu.pipeline_mode<synchronous>, transform_indices = @transform_3, window_bounds = array<i64: 256, 128>}, {pipeline_mode = #tpu.pipeline_mode<synchronous>, transform_indices = @transform_4, window_bounds = array<i64: 1, 128>}, {pipeline_mode = #tpu.pipeline_mode<synchronous>, transform_indices = @transform_5, window_bounds = array<i64: 1, 128>}, {pipeline_mode = #tpu.pipeline_mode<synchronous>, transform_indices = @transform_6, window_bounds = array<i64: 1, 128>}, {transform_indices = @transform_7, window_bounds = array<i64: 32, 128>}]} {
    %c0 = arith.constant 0 : index
    %c0_0 = arith.constant 0 : index
    %0 = vector.load %arg1[%c0, %c0_0] : memref<32x128xbf16, #tpu.memory_space<vmem>>, vector<32x128xbf16>
    %c0_1 = arith.constant 0 : index
    %c0_2 = arith.constant 0 : index
    %1 = vector.load %arg2[%c0_1, %c0_2] : memref<128x256xbf16, #tpu.memory_space<vmem>>, vector<128x256xbf16>
    %cst = arith.constant dense<0.000000e+00> : vector<32x256xf32>
    %2 = tpu.matmul %0, %1, %cst {dimension_numbers = #tpu.dot_dimension_numbers<[1], [0], [0], [1], [0, 0, 1, 1], [], []>} : vector<32x128xbf16>, vector<128x256xbf16>, vector<32x256xf32> -> vector<32x256xf32>
    %c0_3 = arith.constant 0 : index
    %c0_4 = arith.constant 0 : index
    %3 = vector.load %arg3[%c0_3, %c0_4] : memref<1x256xf32, #tpu.memory_space<vmem>>, vector<1x256xf32>
    %4 = vector.broadcast %3 : vector<1x256xf32> to vector<32x256xf32>
    %5 = arith.addf %2, %4 : vector<32x256xf32>
    %cst_5 = arith.constant 0.000000e+00 : f32
    %6 = vector.broadcast %cst_5 : f32 to vector<32x256xf32>
    %7 = arith.maximumf %5, %6 : vector<32x256xf32>
    %8 = arith.truncf %7 : vector<32x256xf32> to vector<32x256xbf16>
    %c0_6 = arith.constant 0 : index
    %c0_7 = arith.constant 0 : index
    %9 = vector.load %arg4[%c0_6, %c0_7] : memref<256x128xbf16, #tpu.memory_space<vmem>>, vector<256x128xbf16>
    %cst_8 = arith.constant dense<0.000000e+00> : vector<32x128xf32>
    %10 = tpu.matmul %8, %9, %cst_8 {dimension_numbers = #tpu.dot_dimension_numbers<[1], [0], [0], [1], [0, 0, 1, 1], [], []>} : vector<32x256xbf16>, vector<256x128xbf16>, vector<32x128xf32> -> vector<32x128xf32>
    %11 = arith.extf %0 : vector<32x128xbf16> to vector<32x128xf32>
    %12 = arith.addf %11, %10 : vector<32x128xf32>
    %c0_9 = arith.constant 0 : index
    %c0_10 = arith.constant 0 : index
    %13 = vector.load %arg5[%c0_9, %c0_10] : memref<1x128xf32, #tpu.memory_space<vmem>>, vector<1x128xf32>
    %14 = vector.broadcast %13 : vector<1x128xf32> to vector<32x128xf32>
    %15 = arith.addf %12, %14 : vector<32x128xf32>
    %c0_11 = arith.constant 0 : index
    %c0_12 = arith.constant 0 : index
    %16 = vector.load %arg6[%c0_11, %c0_12] : memref<1x128xf32, #tpu.memory_space<vmem>>, vector<1x128xf32>
    %c0_13 = arith.constant 0 : index
    %c0_14 = arith.constant 0 : index
    %17 = vector.load %arg7[%c0_13, %c0_14] : memref<1x128xf32, #tpu.memory_space<vmem>>, vector<1x128xf32>
    %cst_15 = arith.constant dense<0.000000e+00> : vector<32xf32>
    %18 = vector.multi_reduction <add>, %15, %cst_15 [1] : vector<32x128xf32> to vector<32xf32>
    %19 = vector.shape_cast %18 : vector<32xf32> to vector<32x1xf32>
    %cst_16 = arith.constant 1.280000e+02 : f32
    %20 = vector.broadcast %cst_16 : f32 to vector<32x1xf32>
    %21 = arith.divf %19, %20 : vector<32x1xf32>
    %22 = vector.broadcast %21 : vector<32x1xf32> to vector<32x128xf32>
    %23 = arith.subf %15, %22 : vector<32x128xf32>
    %24 = arith.mulf %23, %23 : vector<32x128xf32>
    %cst_17 = arith.constant dense<0.000000e+00> : vector<32xf32>
    %25 = vector.multi_reduction <add>, %24, %cst_17 [1] : vector<32x128xf32> to vector<32xf32>
    %26 = vector.shape_cast %25 : vector<32xf32> to vector<32x1xf32>
    %cst_18 = arith.constant 1.280000e+02 : f32
    %27 = vector.broadcast %cst_18 : f32 to vector<32x1xf32>
    %28 = arith.divf %26, %27 : vector<32x1xf32>
    %29 = vector.broadcast %21 : vector<32x1xf32> to vector<32x128xf32>
    %30 = arith.subf %15, %29 : vector<32x128xf32>
    %cst_19 = arith.constant 9.99999974E-6 : f32
    %31 = vector.broadcast %cst_19 : f32 to vector<32x1xf32>
    %32 = arith.addf %28, %31 : vector<32x1xf32>
    %33 = math.rsqrt %32 : vector<32x1xf32>
    %34 = vector.broadcast %33 : vector<32x1xf32> to vector<32x128xf32>
    %35 = arith.mulf %30, %34 : vector<32x128xf32>
    %36 = vector.broadcast %16 : vector<1x128xf32> to vector<32x128xf32>
    %37 = arith.mulf %35, %36 : vector<32x128xf32>
    %38 = vector.broadcast %17 : vector<1x128xf32> to vector<32x128xf32>
    %39 = arith.addf %37, %38 : vector<32x128xf32>
    %40 = arith.truncf %39 : vector<32x128xf32> to vector<32x128xbf16>
    %c0_20 = arith.constant 0 : index
    %c0_21 = arith.constant 0 : index
    %41 = vector.load %arg8[%c0_20, %c0_21] : memref<32x128xbf16, #tpu.memory_space<vmem>>, vector<32x128xbf16>
    tpu.vector_store %arg8[%c0_20, %c0_21], %40 {strides = array<i32>} : memref<32x128xbf16, #tpu.memory_space<vmem>>, vector<32x128xbf16>,
    return
  }
  func.func @transform_0(%arg0: i32) -> (i32, i32) {
    %c0_i32 = arith.constant 0 : i32
    %c0_i32_0 = arith.constant 0 : i32
    return %arg0, %c0_i32 : i32, i32
  }
  func.func @transform_1(%arg0: i32) -> (i32, i32) {
    %c0_i32 = arith.constant 0 : i32
    %c0_i32_0 = arith.constant 0 : i32
    %c0_i32_1 = arith.constant 0 : i32
    return %c0_i32, %c0_i32_0 : i32, i32
  }
  func.func @transform_2(%arg0: i32) -> (i32, i32) {
    %c0_i32 = arith.constant 0 : i32
    %c0_i32_0 = arith.constant 0 : i32
    %c0_i32_1 = arith.constant 0 : i32
    return %c0_i32, %c0_i32_0 : i32, i32
  }
  func.func @transform_3(%arg0: i32) -> (i32, i32) {
    %c0_i32 = arith.constant 0 : i32
    %c0_i32_0 = arith.constant 0 : i32
    %c0_i32_1 = arith.constant 0 : i32
    return %c0_i32, %c0_i32_0 : i32, i32
  }
  func.func @transform_4(%arg0: i32) -> (i32, i32) {
    %c0_i32 = arith.constant 0 : i32
    %c0_i32_0 = arith.constant 0 : i32
    %c0_i32_1 = arith.constant 0 : i32
    return %c0_i32, %c0_i32_0 : i32, i32
  }
  func.func @transform_5(%arg0: i32) -> (i32, i32) {
    %c0_i32 = arith.constant 0 : i32
    %c0_i32_0 = arith.constant 0 : i32
    %c0_i32_1 = arith.constant 0 : i32
    return %c0_i32, %c0_i32_0 : i32, i32
  }
  func.func @transform_6(%arg0: i32) -> (i32, i32) {
    %c0_i32 = arith.constant 0 : i32
    %c0_i32_0 = arith.constant 0 : i32
    %c0_i32_1 = arith.constant 0 : i32
    return %c0_i32, %c0_i32_0 : i32, i32
  }
  func.func @transform_7(%arg0: i32) -> (i32, i32) {
    %c0_i32 = arith.constant 0 : i32
    %c0_i32_0 = arith.constant 0 : i32
    return %arg0, %c0_i32 : i32, i32
  }
}

module attributes {stable_mosaic.version = 11 : i64} {
  func.func @_ln_kernel(%arg0: i32, %arg1: memref<32x128xbf16, #tpu.memory_space<vmem>>, %arg2: memref<1x128xf32, #tpu.memory_space<vmem>>, %arg3: memref<1x128xf32, #tpu.memory_space<vmem>>, %arg4: memref<32x128xbf16, #tpu.memory_space<vmem>>) attributes {dimension_semantics = [#tpu.dimension_semantics<parallel>], iteration_bounds = array<i64: 1>, scalar_prefetch = 0 : i64, scratch_operands = 0 : i64, tpu.core_type = #tpu.core_type<tc>, window_params = [{transform_indices = @transform_0, window_bounds = array<i64: 32, 128>}, {pipeline_mode = #tpu.pipeline_mode<synchronous>, transform_indices = @transform_1, window_bounds = array<i64: 1, 128>}, {pipeline_mode = #tpu.pipeline_mode<synchronous>, transform_indices = @transform_2, window_bounds = array<i64: 1, 128>}, {transform_indices = @transform_3, window_bounds = array<i64: 32, 128>}]} {
    %c0 = arith.constant 0 : index
    %c0_0 = arith.constant 0 : index
    %0 = vector.load %arg1[%c0, %c0_0] : memref<32x128xbf16, #tpu.memory_space<vmem>>, vector<32x128xbf16>
    %c0_1 = arith.constant 0 : index
    %c0_2 = arith.constant 0 : index
    %1 = vector.load %arg2[%c0_1, %c0_2] : memref<1x128xf32, #tpu.memory_space<vmem>>, vector<1x128xf32>
    %c0_3 = arith.constant 0 : index
    %c0_4 = arith.constant 0 : index
    %2 = vector.load %arg3[%c0_3, %c0_4] : memref<1x128xf32, #tpu.memory_space<vmem>>, vector<1x128xf32>
    %3 = arith.extf %0 : vector<32x128xbf16> to vector<32x128xf32>
    %cst = arith.constant dense<0.000000e+00> : vector<32xf32>
    %4 = vector.multi_reduction <add>, %3, %cst [1] : vector<32x128xf32> to vector<32xf32>
    %5 = vector.shape_cast %4 : vector<32xf32> to vector<32x1xf32>
    %cst_5 = arith.constant 1.280000e+02 : f32
    %6 = vector.broadcast %cst_5 : f32 to vector<32x1xf32>
    %7 = arith.divf %5, %6 : vector<32x1xf32>
    %8 = vector.broadcast %7 : vector<32x1xf32> to vector<32x128xf32>
    %9 = arith.subf %3, %8 : vector<32x128xf32>
    %10 = arith.mulf %9, %9 : vector<32x128xf32>
    %cst_6 = arith.constant dense<0.000000e+00> : vector<32xf32>
    %11 = vector.multi_reduction <add>, %10, %cst_6 [1] : vector<32x128xf32> to vector<32xf32>
    %12 = vector.shape_cast %11 : vector<32xf32> to vector<32x1xf32>
    %cst_7 = arith.constant 1.280000e+02 : f32
    %13 = vector.broadcast %cst_7 : f32 to vector<32x1xf32>
    %14 = arith.divf %12, %13 : vector<32x1xf32>
    %15 = vector.broadcast %7 : vector<32x1xf32> to vector<32x128xf32>
    %16 = arith.subf %3, %15 : vector<32x128xf32>
    %cst_8 = arith.constant 9.99999974E-6 : f32
    %17 = vector.broadcast %cst_8 : f32 to vector<32x1xf32>
    %18 = arith.addf %14, %17 : vector<32x1xf32>
    %19 = math.rsqrt %18 : vector<32x1xf32>
    %20 = vector.broadcast %19 : vector<32x1xf32> to vector<32x128xf32>
    %21 = arith.mulf %16, %20 : vector<32x128xf32>
    %22 = vector.broadcast %1 : vector<1x128xf32> to vector<32x128xf32>
    %23 = arith.mulf %21, %22 : vector<32x128xf32>
    %24 = vector.broadcast %2 : vector<1x128xf32> to vector<32x128xf32>
    %25 = arith.addf %23, %24 : vector<32x128xf32>
    %26 = arith.truncf %25 : vector<32x128xf32> to vector<32x128xbf16>
    %c0_9 = arith.constant 0 : index
    %c0_10 = arith.constant 0 : index
    %27 = vector.load %arg4[%c0_9, %c0_10] : memref<32x128xbf16, #tpu.memory_space<vmem>>, vector<32x128xbf16>
    tpu.vector_store %arg4[%c0_9, %c0_10], %26 {strides = array<i32>} : memref<32x128xbf16, #tpu.memory_space<vmem>>, vector<32x128xbf16>,
    return
  }
  func.func @transform_0(%arg0: i32) -> (i32, i32) {
    %c0_i32 = arith.constant 0 : i32
    %c0_i32_0 = arith.constant 0 : i32
    return %arg0, %c0_i32 : i32, i32
  }
  func.func @transform_1(%arg0: i32) -> (i32, i32) {
    %c0_i32 = arith.constant 0 : i32
    %c0_i32_0 = arith.constant 0 : i32
    %c0_i32_1 = arith.constant 0 : i32
    return %c0_i32, %c0_i32_0 : i32, i32
  }
  func.func @transform_2(%arg0: i32) -> (i32, i32) {
    %c0_i32 = arith.constant 0 : i32
    %c0_i32_0 = arith.constant 0 : i32
    %c0_i32_1 = arith.constant 0 : i32
    return %c0_i32, %c0_i32_0 : i32, i32
  }
  func.func @transform_3(%arg0: i32) -> (i32, i32) {
    %c0_i32 = arith.constant 0 : i32
    %c0_i32_0 = arith.constant 0 : i32
    return %arg0, %c0_i32 : i32, i32
  }
}

module attributes {stable_mosaic.version = 11 : i64} {
  func.func @_matmul_kernel(%arg0: i32, %arg1: i32, %arg2: i32, %arg3: memref<32x128xbf16, #tpu.memory_space<vmem>>, %arg4: memref<128x256xbf16, #tpu.memory_space<vmem>>, %arg5: memref<1x256xf32, #tpu.memory_space<vmem>>, %arg6: memref<32x256xbf16, #tpu.memory_space<vmem>>, %arg7: memref<32x256xf32, #tpu.memory_space<vmem>>) attributes {dimension_semantics = [#tpu.dimension_semantics<parallel>, #tpu.dimension_semantics<parallel>, #tpu.dimension_semantics<arbitrary>], iteration_bounds = array<i64: 1, 1, 1>, scalar_prefetch = 0 : i64, scratch_operands = 1 : i64, tpu.core_type = #tpu.core_type<tc>, window_params = [{transform_indices = @transform_0, window_bounds = array<i64: 32, 128>}, {transform_indices = @transform_1, window_bounds = array<i64: 128, 256>}, {transform_indices = @transform_2, window_bounds = array<i64: 1, 256>}, {transform_indices = @transform_3, window_bounds = array<i64: 32, 256>}]} {
    %c0_i32 = arith.constant 0 : i32
    %0 = arith.cmpi eq, %arg2, %c0_i32 : i32
    %1 = arith.extui %0 : i1 to i32
    %c0_i32_0 = arith.constant 0 : i32
    %2 = arith.cmpi ne, %1, %c0_i32_0 : i32
    scf.if %2 {
      %cst_10 = arith.constant 0.000000e+00 : f32
      %12 = vector.broadcast %cst_10 : f32 to vector<32x256xf32>
      %c0_11 = arith.constant 0 : index
      %c0_12 = arith.constant 0 : index
      %13 = vector.load %arg7[%c0_11, %c0_12] : memref<32x256xf32, #tpu.memory_space<vmem>>, vector<32x256xf32>
      tpu.vector_store %arg7[%c0_11, %c0_12], %12 {strides = array<i32>} : memref<32x256xf32, #tpu.memory_space<vmem>>, vector<32x256xf32>,
    } else {
    }
    %c0 = arith.constant 0 : index
    %c0_1 = arith.constant 0 : index
    %3 = vector.load %arg7[%c0, %c0_1] : memref<32x256xf32, #tpu.memory_space<vmem>>, vector<32x256xf32>
    %c0_2 = arith.constant 0 : index
    %c0_3 = arith.constant 0 : index
    %4 = vector.load %arg3[%c0_2, %c0_3] : memref<32x128xbf16, #tpu.memory_space<vmem>>, vector<32x128xbf16>
    %c0_4 = arith.constant 0 : index
    %c0_5 = arith.constant 0 : index
    %5 = vector.load %arg4[%c0_4, %c0_5] : memref<128x256xbf16, #tpu.memory_space<vmem>>, vector<128x256xbf16>
    %cst = arith.constant dense<0.000000e+00> : vector<32x256xf32>
    %6 = tpu.matmul %4, %5, %cst {dimension_numbers = #tpu.dot_dimension_numbers<[1], [0], [0], [1], [0, 0, 1, 1], [], []>} : vector<32x128xbf16>, vector<128x256xbf16>, vector<32x256xf32> -> vector<32x256xf32>
    %7 = arith.addf %3, %6 : vector<32x256xf32>
    %c0_6 = arith.constant 0 : index
    %c0_7 = arith.constant 0 : index
    %8 = vector.load %arg7[%c0_6, %c0_7] : memref<32x256xf32, #tpu.memory_space<vmem>>, vector<32x256xf32>
    tpu.vector_store %arg7[%c0_6, %c0_7], %7 {strides = array<i32>} : memref<32x256xf32, #tpu.memory_space<vmem>>, vector<32x256xf32>,
    %c0_i32_8 = arith.constant 0 : i32
    %9 = arith.cmpi eq, %arg2, %c0_i32_8 : i32
    %10 = arith.extui %9 : i1 to i32
    %c0_i32_9 = arith.constant 0 : i32
    %11 = arith.cmpi ne, %10, %c0_i32_9 : i32
    scf.if %11 {
      %c0_10 = arith.constant 0 : index
      %c0_11 = arith.constant 0 : index
      %12 = vector.load %arg7[%c0_10, %c0_11] : memref<32x256xf32, #tpu.memory_space<vmem>>, vector<32x256xf32>
      %c0_12 = arith.constant 0 : index
      %c0_13 = arith.constant 0 : index
      %13 = vector.load %arg5[%c0_12, %c0_13] : memref<1x256xf32, #tpu.memory_space<vmem>>, vector<1x256xf32>
      %14 = vector.broadcast %13 : vector<1x256xf32> to vector<32x256xf32>
      %15 = arith.addf %12, %14 : vector<32x256xf32>
      %16 = arith.truncf %15 : vector<32x256xf32> to vector<32x256xbf16>
      %c0_14 = arith.constant 0 : index
      %c0_15 = arith.constant 0 : index
      %17 = vector.load %arg6[%c0_14, %c0_15] : memref<32x256xbf16, #tpu.memory_space<vmem>>, vector<32x256xbf16>
      tpu.vector_store %arg6[%c0_14, %c0_15], %16 {strides = array<i32>} : memref<32x256xbf16, #tpu.memory_space<vmem>>, vector<32x256xbf16>,
    } else {
    }
    return
  }
  func.func @transform_0(%arg0: i32, %arg1: i32, %arg2: i32) -> (i32, i32) {
    %c0_i32 = arith.constant 0 : i32
    return %arg0, %arg2 : i32, i32
  }
  func.func @transform_1(%arg0: i32, %arg1: i32, %arg2: i32) -> (i32, i32) {
    %c0_i32 = arith.constant 0 : i32
    return %arg2, %arg1 : i32, i32
  }
  func.func @transform_2(%arg0: i32, %arg1: i32, %arg2: i32) -> (i32, i32) {
    %c0_i32 = arith.constant 0 : i32
    %c0_i32_0 = arith.constant 0 : i32
    return %c0_i32, %arg1 : i32, i32
  }
  func.func @transform_3(%arg0: i32, %arg1: i32, %arg2: i32) -> (i32, i32) {
    %c0_i32 = arith.constant 0 : i32
    return %arg0, %arg1 : i32, i32
  }
}

module attributes {stable_mosaic.version = 11 : i64} {
  func.func @_flash_attn_kernel(%arg0: i32, %arg1: i32, %arg2: i32, %arg3: memref<1x16x128xbf16, #tpu.memory_space<vmem>>, %arg4: memref<1x16x128xbf16, #tpu.memory_space<vmem>>, %arg5: memref<1x16x128xbf16, #tpu.memory_space<vmem>>, %arg6: memref<1x16x128xbf16, #tpu.memory_space<vmem>>, %arg7: memref<4x16x1xf32, #tpu.memory_space<vmem>>, %arg8: memref<4x16x1xf32, #tpu.memory_space<vmem>>, %arg9: memref<4x16x32xf32, #tpu.memory_space<vmem>>) attributes {dimension_semantics = [#tpu.dimension_semantics<parallel>, #tpu.dimension_semantics<parallel>, #tpu.dimension_semantics<arbitrary>], iteration_bounds = array<i64: 2, 1, 1>, scalar_prefetch = 0 : i64, scratch_operands = 3 : i64, tpu.core_type = #tpu.core_type<tc>, window_params = [{transform_indices = @transform_0, window_bounds = array<i64: 1, 16, 128>}, {transform_indices = @transform_1, window_bounds = array<i64: 1, 16, 128>}, {transform_indices = @transform_2, window_bounds = array<i64: 1, 16, 128>}, {transform_indices = @transform_3, window_bounds = array<i64: 1, 16, 128>}]} {
    %c0_i32 = arith.constant 0 : i32
    %0 = arith.cmpi eq, %arg2, %c0_i32 : i32
    %1 = arith.extui %0 : i1 to i32
    %c0_i32_0 = arith.constant 0 : i32
    %2 = arith.cmpi ne, %1, %c0_i32_0 : i32
    scf.if %2 {
      %cst_99 = arith.constant 0xFF800000 : f32
      %164 = vector.broadcast %cst_99 : f32 to vector<4x16x1xf32>
      %c0_100 = arith.constant 0 : index
      %c0_101 = arith.constant 0 : index
      %c0_102 = arith.constant 0 : index
      %165 = vector.load %arg7[%c0_100, %c0_101, %c0_102] : memref<4x16x1xf32, #tpu.memory_space<vmem>>, vector<4x16x1xf32>
      tpu.vector_store %arg7[%c0_100, %c0_101, %c0_102], %164 {strides = array<i32>} : memref<4x16x1xf32, #tpu.memory_space<vmem>>, vector<4x16x1xf32>,
      %cst_103 = arith.constant 0.000000e+00 : f32
      %166 = vector.broadcast %cst_103 : f32 to vector<4x16x1xf32>
      %c0_104 = arith.constant 0 : index
      %c0_105 = arith.constant 0 : index
      %c0_106 = arith.constant 0 : index
      %167 = vector.load %arg8[%c0_104, %c0_105, %c0_106] : memref<4x16x1xf32, #tpu.memory_space<vmem>>, vector<4x16x1xf32>
      tpu.vector_store %arg8[%c0_104, %c0_105, %c0_106], %166 {strides = array<i32>} : memref<4x16x1xf32, #tpu.memory_space<vmem>>, vector<4x16x1xf32>,
      %cst_107 = arith.constant 0.000000e+00 : f32
      %168 = vector.broadcast %cst_107 : f32 to vector<4x16x32xf32>
      %c0_108 = arith.constant 0 : index
      %c0_109 = arith.constant 0 : index
      %c0_110 = arith.constant 0 : index
      %169 = vector.load %arg9[%c0_108, %c0_109, %c0_110] : memref<4x16x32xf32, #tpu.memory_space<vmem>>, vector<4x16x32xf32>
      tpu.vector_store %arg9[%c0_108, %c0_109, %c0_110], %168 {strides = array<i32>} : memref<4x16x32xf32, #tpu.memory_space<vmem>>, vector<4x16x32xf32>,
    } else {
    }
    %c0 = arith.constant 0 : index
    %c0_1 = arith.constant 0 : index
    %c0_2 = arith.constant 0 : index
    %3 = vector.load %arg3[%c0, %c0_1, %c0_2] : memref<1x16x128xbf16, #tpu.memory_space<vmem>>, vector<1x16x128xbf16>
    %4 = vector.shape_cast %3 : vector<1x16x128xbf16> to vector<16x128xbf16>
    %c0_3 = arith.constant 0 : index
    %c0_4 = arith.constant 0 : index
    %c0_5 = arith.constant 0 : index
    %5 = vector.load %arg4[%c0_3, %c0_4, %c0_5] : memref<1x16x128xbf16, #tpu.memory_space<vmem>>, vector<1x16x128xbf16>
    %6 = vector.shape_cast %5 : vector<1x16x128xbf16> to vector<16x128xbf16>
    %c0_6 = arith.constant 0 : index
    %c0_7 = arith.constant 0 : index
    %c0_8 = arith.constant 0 : index
    %7 = vector.load %arg5[%c0_6, %c0_7, %c0_8] : memref<1x16x128xbf16, #tpu.memory_space<vmem>>, vector<1x16x128xbf16>
    %8 = vector.shape_cast %7 : vector<1x16x128xbf16> to vector<16x128xbf16>
    %9 = vector.extract_strided_slice %4 {offsets = [0, 0], sizes = [16, 32], strides = [1, 1]} : vector<16x128xbf16> to vector<16x32xbf16>
    %10 = vector.extract_strided_slice %6 {offsets = [0, 0], sizes = [16, 32], strides = [1, 1]} : vector<16x128xbf16> to vector<16x32xbf16>
    %11 = vector.extract_strided_slice %8 {offsets = [0, 0], sizes = [16, 32], strides = [1, 1]} : vector<16x128xbf16> to vector<16x32xbf16>
    %cst = arith.constant dense<0.000000e+00> : vector<16x16xf32>
    %12 = tpu.matmul %9, %10, %cst {dimension_numbers = #tpu.dot_dimension_numbers<[1], [1], [0], [0], [0, 0, 1, 0], [], []>} : vector<16x32xbf16>, vector<16x32xbf16>, vector<16x16xf32> -> vector<16x16xf32>
    %cst_9 = arith.constant 0.176776692 : f32
    %13 = vector.broadcast %cst_9 : f32 to vector<16x16xf32>
    %14 = arith.mulf %12, %13 : vector<16x16xf32>
    %c0_10 = arith.constant 0 : index
    %c0_11 = arith.constant 0 : index
    %c0_12 = arith.constant 0 : index
    %15 = vector.load %arg7[%c0_10, %c0_11, %c0_12] : memref<4x16x1xf32, #tpu.memory_space<vmem>>, vector<1x16x1xf32>
    %16 = vector.shape_cast %15 : vector<1x16x1xf32> to vector<16x1xf32>
    %cst_13 = arith.constant dense<0xFF800000> : vector<16xf32>
    %17 = vector.multi_reduction <maximumf>, %14, %cst_13 [1] : vector<16x16xf32> to vector<16xf32>
    %18 = vector.shape_cast %17 : vector<16xf32> to vector<16x1xf32>
    %19 = arith.maximumf %16, %18 : vector<16x1xf32>
    %20 = arith.subf %16, %19 : vector<16x1xf32>
    %21 = math.exp %20 : vector<16x1xf32>
    %22 = vector.broadcast %19 : vector<16x1xf32> to vector<16x16xf32>
    %23 = arith.subf %14, %22 : vector<16x16xf32>
    %24 = math.exp %23 : vector<16x16xf32>
    %c0_14 = arith.constant 0 : index
    %c0_15 = arith.constant 0 : index
    %c0_16 = arith.constant 0 : index
    %25 = vector.load %arg8[%c0_14, %c0_15, %c0_16] : memref<4x16x1xf32, #tpu.memory_space<vmem>>, vector<1x16x1xf32>
    %26 = vector.shape_cast %25 : vector<1x16x1xf32> to vector<16x1xf32>
    %27 = arith.mulf %21, %26 : vector<16x1xf32>
    %cst_17 = arith.constant dense<0.000000e+00> : vector<16xf32>
    %28 = vector.multi_reduction <add>, %24, %cst_17 [1] : vector<16x16xf32> to vector<16xf32>
    %29 = vector.shape_cast %28 : vector<16xf32> to vector<16x1xf32>
    %30 = arith.addf %27, %29 : vector<16x1xf32>
    %c0_18 = arith.constant 0 : index
    %c0_19 = arith.constant 0 : index
    %c0_20 = arith.constant 0 : index
    %31 = vector.load %arg8[%c0_18, %c0_19, %c0_20] : memref<4x16x1xf32, #tpu.memory_space<vmem>>, vector<1x16x1xf32>
    %32 = vector.shape_cast %31 : vector<1x16x1xf32> to vector<16x1xf32>
    %33 = vector.shape_cast %30 : vector<16x1xf32> to vector<1x16x1xf32>
    tpu.vector_store %arg8[%c0_18, %c0_19, %c0_20], %33 {strides = array<i32>} : memref<4x16x1xf32, #tpu.memory_space<vmem>>, vector<1x16x1xf32>,
    %c0_21 = arith.constant 0 : index
    %c0_22 = arith.constant 0 : index
    %c0_23 = arith.constant 0 : index
    %34 = vector.load %arg9[%c0_21, %c0_22, %c0_23] : memref<4x16x32xf32, #tpu.memory_space<vmem>>, vector<1x16x32xf32>
    %35 = vector.shape_cast %34 : vector<1x16x32xf32> to vector<16x32xf32>
    %36 = vector.broadcast %21 : vector<16x1xf32> to vector<16x32xf32>
    %37 = arith.mulf %36, %35 : vector<16x32xf32>
    %38 = arith.truncf %24 : vector<16x16xf32> to vector<16x16xbf16>
    %cst_24 = arith.constant dense<0.000000e+00> : vector<16x32xf32>
    %39 = tpu.matmul %38, %11, %cst_24 {dimension_numbers = #tpu.dot_dimension_numbers<[1], [0], [0], [1], [0, 0, 1, 1], [], []>} : vector<16x16xbf16>, vector<16x32xbf16>, vector<16x32xf32> -> vector<16x32xf32>
    %40 = arith.addf %37, %39 : vector<16x32xf32>
    %c0_25 = arith.constant 0 : index
    %c0_26 = arith.constant 0 : index
    %c0_27 = arith.constant 0 : index
    %41 = vector.load %arg9[%c0_25, %c0_26, %c0_27] : memref<4x16x32xf32, #tpu.memory_space<vmem>>, vector<1x16x32xf32>
    %42 = vector.shape_cast %41 : vector<1x16x32xf32> to vector<16x32xf32>
    %43 = vector.shape_cast %40 : vector<16x32xf32> to vector<1x16x32xf32>
    tpu.vector_store %arg9[%c0_25, %c0_26, %c0_27], %43 {strides = array<i32>} : memref<4x16x32xf32, #tpu.memory_space<vmem>>, vector<1x16x32xf32>,
    %c0_28 = arith.constant 0 : index
    %c0_29 = arith.constant 0 : index
    %c0_30 = arith.constant 0 : index
    %44 = vector.load %arg7[%c0_28, %c0_29, %c0_30] : memref<4x16x1xf32, #tpu.memory_space<vmem>>, vector<1x16x1xf32>
    %45 = vector.shape_cast %44 : vector<1x16x1xf32> to vector<16x1xf32>
    %46 = vector.shape_cast %19 : vector<16x1xf32> to vector<1x16x1xf32>
    tpu.vector_store %arg7[%c0_28, %c0_29, %c0_30], %46 {strides = array<i32>} : memref<4x16x1xf32, #tpu.memory_space<vmem>>, vector<1x16x1xf32>,
    %47 = vector.extract_strided_slice %4 {offsets = [0, 32], sizes = [16, 32], strides = [1, 1]} : vector<16x128xbf16> to vector<16x32xbf16>
    %48 = vector.extract_strided_slice %6 {offsets = [0, 32], sizes = [16, 32], strides = [1, 1]} : vector<16x128xbf16> to vector<16x32xbf16>
    %49 = vector.extract_strided_slice %8 {offsets = [0, 32], sizes = [16, 32], strides = [1, 1]} : vector<16x128xbf16> to vector<16x32xbf16>
    %cst_31 = arith.constant dense<0.000000e+00> : vector<16x16xf32>
    %50 = tpu.matmul %47, %48, %cst_31 {dimension_numbers = #tpu.dot_dimension_numbers<[1], [1], [0], [0], [0, 0, 1, 0], [], []>} : vector<16x32xbf16>, vector<16x32xbf16>, vector<16x16xf32> -> vector<16x16xf32>
    %cst_32 = arith.constant 0.176776692 : f32
    %51 = vector.broadcast %cst_32 : f32 to vector<16x16xf32>
    %52 = arith.mulf %50, %51 : vector<16x16xf32>
    %c1 = arith.constant 1 : index
    %c0_33 = arith.constant 0 : index
    %c0_34 = arith.constant 0 : index
    %53 = vector.load %arg7[%c1, %c0_33, %c0_34] : memref<4x16x1xf32, #tpu.memory_space<vmem>>, vector<1x16x1xf32>
    %54 = vector.shape_cast %53 : vector<1x16x1xf32> to vector<16x1xf32>
    %cst_35 = arith.constant dense<0xFF800000> : vector<16xf32>
    %55 = vector.multi_reduction <maximumf>, %52, %cst_35 [1] : vector<16x16xf32> to vector<16xf32>
    %56 = vector.shape_cast %55 : vector<16xf32> to vector<16x1xf32>
    %57 = arith.maximumf %54, %56 : vector<16x1xf32>
    %58 = arith.subf %54, %57 : vector<16x1xf32>
    %59 = math.exp %58 : vector<16x1xf32>
    %60 = vector.broadcast %57 : vector<16x1xf32> to vector<16x16xf32>
    %61 = arith.subf %52, %60 : vector<16x16xf32>
    %62 = math.exp %61 : vector<16x16xf32>
    %c1_36 = arith.constant 1 : index
    %c0_37 = arith.constant 0 : index
    %c0_38 = arith.constant 0 : index
    %63 = vector.load %arg8[%c1_36, %c0_37, %c0_38] : memref<4x16x1xf32, #tpu.memory_space<vmem>>, vector<1x16x1xf32>
    %64 = vector.shape_cast %63 : vector<1x16x1xf32> to vector<16x1xf32>
    %65 = arith.mulf %59, %64 : vector<16x1xf32>
    %cst_39 = arith.constant dense<0.000000e+00> : vector<16xf32>
    %66 = vector.multi_reduction <add>, %62, %cst_39 [1] : vector<16x16xf32> to vector<16xf32>
    %67 = vector.shape_cast %66 : vector<16xf32> to vector<16x1xf32>
    %68 = arith.addf %65, %67 : vector<16x1xf32>
    %c1_40 = arith.constant 1 : index
    %c0_41 = arith.constant 0 : index
    %c0_42 = arith.constant 0 : index
    %69 = vector.load %arg8[%c1_40, %c0_41, %c0_42] : memref<4x16x1xf32, #tpu.memory_space<vmem>>, vector<1x16x1xf32>
    %70 = vector.shape_cast %69 : vector<1x16x1xf32> to vector<16x1xf32>
    %71 = vector.shape_cast %68 : vector<16x1xf32> to vector<1x16x1xf32>
    tpu.vector_store %arg8[%c1_40, %c0_41, %c0_42], %71 {strides = array<i32>} : memref<4x16x1xf32, #tpu.memory_space<vmem>>, vector<1x16x1xf32>,
    %c1_43 = arith.constant 1 : index
    %c0_44 = arith.constant 0 : index
    %c0_45 = arith.constant 0 : index
    %72 = vector.load %arg9[%c1_43, %c0_44, %c0_45] : memref<4x16x32xf32, #tpu.memory_space<vmem>>, vector<1x16x32xf32>
    %73 = vector.shape_cast %72 : vector<1x16x32xf32> to vector<16x32xf32>
    %74 = vector.broadcast %59 : vector<16x1xf32> to vector<16x32xf32>
    %75 = arith.mulf %74, %73 : vector<16x32xf32>
    %76 = arith.truncf %62 : vector<16x16xf32> to vector<16x16xbf16>
    %cst_46 = arith.constant dense<0.000000e+00> : vector<16x32xf32>
    %77 = tpu.matmul %76, %49, %cst_46 {dimension_numbers = #tpu.dot_dimension_numbers<[1], [0], [0], [1], [0, 0, 1, 1], [], []>} : vector<16x16xbf16>, vector<16x32xbf16>, vector<16x32xf32> -> vector<16x32xf32>
    %78 = arith.addf %75, %77 : vector<16x32xf32>
    %c1_47 = arith.constant 1 : index
    %c0_48 = arith.constant 0 : index
    %c0_49 = arith.constant 0 : index
    %79 = vector.load %arg9[%c1_47, %c0_48, %c0_49] : memref<4x16x32xf32, #tpu.memory_space<vmem>>, vector<1x16x32xf32>
    %80 = vector.shape_cast %79 : vector<1x16x32xf32> to vector<16x32xf32>
    %81 = vector.shape_cast %78 : vector<16x32xf32> to vector<1x16x32xf32>
    tpu.vector_store %arg9[%c1_47, %c0_48, %c0_49], %81 {strides = array<i32>} : memref<4x16x32xf32, #tpu.memory_space<vmem>>, vector<1x16x32xf32>,
    %c1_50 = arith.constant 1 : index
    %c0_51 = arith.constant 0 : index
    %c0_52 = arith.constant 0 : index
    %82 = vector.load %arg7[%c1_50, %c0_51, %c0_52] : memref<4x16x1xf32, #tpu.memory_space<vmem>>, vector<1x16x1xf32>
    %83 = vector.shape_cast %82 : vector<1x16x1xf32> to vector<16x1xf32>
    %84 = vector.shape_cast %57 : vector<16x1xf32> to vector<1x16x1xf32>
    tpu.vector_store %arg7[%c1_50, %c0_51, %c0_52], %84 {strides = array<i32>} : memref<4x16x1xf32, #tpu.memory_space<vmem>>, vector<1x16x1xf32>,
    %85 = vector.extract_strided_slice %4 {offsets = [0, 64], sizes = [16, 32], strides = [1, 1]} : vector<16x128xbf16> to vector<16x32xbf16>
    %86 = vector.extract_strided_slice %6 {offsets = [0, 64], sizes = [16, 32], strides = [1, 1]} : vector<16x128xbf16> to vector<16x32xbf16>
    %87 = vector.extract_strided_slice %8 {offsets = [0, 64], sizes = [16, 32], strides = [1, 1]} : vector<16x128xbf16> to vector<16x32xbf16>
    %cst_53 = arith.constant dense<0.000000e+00> : vector<16x16xf32>
    %88 = tpu.matmul %85, %86, %cst_53 {dimension_numbers = #tpu.dot_dimension_numbers<[1], [1], [0], [0], [0, 0, 1, 0], [], []>} : vector<16x32xbf16>, vector<16x32xbf16>, vector<16x16xf32> -> vector<16x16xf32>
    %cst_54 = arith.constant 0.176776692 : f32
    %89 = vector.broadcast %cst_54 : f32 to vector<16x16xf32>
    %90 = arith.mulf %88, %89 : vector<16x16xf32>
    %c2 = arith.constant 2 : index
    %c0_55 = arith.constant 0 : index
    %c0_56 = arith.constant 0 : index
    %91 = vector.load %arg7[%c2, %c0_55, %c0_56] : memref<4x16x1xf32, #tpu.memory_space<vmem>>, vector<1x16x1xf32>
    %92 = vector.shape_cast %91 : vector<1x16x1xf32> to vector<16x1xf32>
    %cst_57 = arith.constant dense<0xFF800000> : vector<16xf32>
    %93 = vector.multi_reduction <maximumf>, %90, %cst_57 [1] : vector<16x16xf32> to vector<16xf32>
    %94 = vector.shape_cast %93 : vector<16xf32> to vector<16x1xf32>
    %95 = arith.maximumf %92, %94 : vector<16x1xf32>
    %96 = arith.subf %92, %95 : vector<16x1xf32>
    %97 = math.exp %96 : vector<16x1xf32>
    %98 = vector.broadcast %95 : vector<16x1xf32> to vector<16x16xf32>
    %99 = arith.subf %90, %98 : vector<16x16xf32>
    %100 = math.exp %99 : vector<16x16xf32>
    %c2_58 = arith.constant 2 : index
    %c0_59 = arith.constant 0 : index
    %c0_60 = arith.constant 0 : index
    %101 = vector.load %arg8[%c2_58, %c0_59, %c0_60] : memref<4x16x1xf32, #tpu.memory_space<vmem>>, vector<1x16x1xf32>
    %102 = vector.shape_cast %101 : vector<1x16x1xf32> to vector<16x1xf32>
    %103 = arith.mulf %97, %102 : vector<16x1xf32>
    %cst_61 = arith.constant dense<0.000000e+00> : vector<16xf32>
    %104 = vector.multi_reduction <add>, %100, %cst_61 [1] : vector<16x16xf32> to vector<16xf32>
    %105 = vector.shape_cast %104 : vector<16xf32> to vector<16x1xf32>
    %106 = arith.addf %103, %105 : vector<16x1xf32>
    %c2_62 = arith.constant 2 : index
    %c0_63 = arith.constant 0 : index
    %c0_64 = arith.constant 0 : index
    %107 = vector.load %arg8[%c2_62, %c0_63, %c0_64] : memref<4x16x1xf32, #tpu.memory_space<vmem>>, vector<1x16x1xf32>
    %108 = vector.shape_cast %107 : vector<1x16x1xf32> to vector<16x1xf32>
    %109 = vector.shape_cast %106 : vector<16x1xf32> to vector<1x16x1xf32>
    tpu.vector_store %arg8[%c2_62, %c0_63, %c0_64], %109 {strides = array<i32>} : memref<4x16x1xf32, #tpu.memory_space<vmem>>, vector<1x16x1xf32>,
    %c2_65 = arith.constant 2 : index
    %c0_66 = arith.constant 0 : index
    %c0_67 = arith.constant 0 : index
    %110 = vector.load %arg9[%c2_65, %c0_66, %c0_67] : memref<4x16x32xf32, #tpu.memory_space<vmem>>, vector<1x16x32xf32>
    %111 = vector.shape_cast %110 : vector<1x16x32xf32> to vector<16x32xf32>
    %112 = vector.broadcast %97 : vector<16x1xf32> to vector<16x32xf32>
    %113 = arith.mulf %112, %111 : vector<16x32xf32>
    %114 = arith.truncf %100 : vector<16x16xf32> to vector<16x16xbf16>
    %cst_68 = arith.constant dense<0.000000e+00> : vector<16x32xf32>
    %115 = tpu.matmul %114, %87, %cst_68 {dimension_numbers = #tpu.dot_dimension_numbers<[1], [0], [0], [1], [0, 0, 1, 1], [], []>} : vector<16x16xbf16>, vector<16x32xbf16>, vector<16x32xf32> -> vector<16x32xf32>
    %116 = arith.addf %113, %115 : vector<16x32xf32>
    %c2_69 = arith.constant 2 : index
    %c0_70 = arith.constant 0 : index
    %c0_71 = arith.constant 0 : index
    %117 = vector.load %arg9[%c2_69, %c0_70, %c0_71] : memref<4x16x32xf32, #tpu.memory_space<vmem>>, vector<1x16x32xf32>
    %118 = vector.shape_cast %117 : vector<1x16x32xf32> to vector<16x32xf32>
    %119 = vector.shape_cast %116 : vector<16x32xf32> to vector<1x16x32xf32>
    tpu.vector_store %arg9[%c2_69, %c0_70, %c0_71], %119 {strides = array<i32>} : memref<4x16x32xf32, #tpu.memory_space<vmem>>, vector<1x16x32xf32>,
    %c2_72 = arith.constant 2 : index
    %c0_73 = arith.constant 0 : index
    %c0_74 = arith.constant 0 : index
    %120 = vector.load %arg7[%c2_72, %c0_73, %c0_74] : memref<4x16x1xf32, #tpu.memory_space<vmem>>, vector<1x16x1xf32>
    %121 = vector.shape_cast %120 : vector<1x16x1xf32> to vector<16x1xf32>
    %122 = vector.shape_cast %95 : vector<16x1xf32> to vector<1x16x1xf32>
    tpu.vector_store %arg7[%c2_72, %c0_73, %c0_74], %122 {strides = array<i32>} : memref<4x16x1xf32, #tpu.memory_space<vmem>>, vector<1x16x1xf32>,
    %123 = vector.extract_strided_slice %4 {offsets = [0, 96], sizes = [16, 32], strides = [1, 1]} : vector<16x128xbf16> to vector<16x32xbf16>
    %124 = vector.extract_strided_slice %6 {offsets = [0, 96], sizes = [16, 32], strides = [1, 1]} : vector<16x128xbf16> to vector<16x32xbf16>
    %125 = vector.extract_strided_slice %8 {offsets = [0, 96], sizes = [16, 32], strides = [1, 1]} : vector<16x128xbf16> to vector<16x32xbf16>
    %cst_75 = arith.constant dense<0.000000e+00> : vector<16x16xf32>
    %126 = tpu.matmul %123, %124, %cst_75 {dimension_numbers = #tpu.dot_dimension_numbers<[1], [1], [0], [0], [0, 0, 1, 0], [], []>} : vector<16x32xbf16>, vector<16x32xbf16>, vector<16x16xf32> -> vector<16x16xf32>
    %cst_76 = arith.constant 0.176776692 : f32
    %127 = vector.broadcast %cst_76 : f32 to vector<16x16xf32>
    %128 = arith.mulf %126, %127 : vector<16x16xf32>
    %c3 = arith.constant 3 : index
    %c0_77 = arith.constant 0 : index
    %c0_78 = arith.constant 0 : index
    %129 = vector.load %arg7[%c3, %c0_77, %c0_78] : memref<4x16x1xf32, #tpu.memory_space<vmem>>, vector<1x16x1xf32>
    %130 = vector.shape_cast %129 : vector<1x16x1xf32> to vector<16x1xf32>
    %cst_79 = arith.constant dense<0xFF800000> : vector<16xf32>
    %131 = vector.multi_reduction <maximumf>, %128, %cst_79 [1] : vector<16x16xf32> to vector<16xf32>
    %132 = vector.shape_cast %131 : vector<16xf32> to vector<16x1xf32>
    %133 = arith.maximumf %130, %132 : vector<16x1xf32>
    %134 = arith.subf %130, %133 : vector<16x1xf32>
    %135 = math.exp %134 : vector<16x1xf32>
    %136 = vector.broadcast %133 : vector<16x1xf32> to vector<16x16xf32>
    %137 = arith.subf %128, %136 : vector<16x16xf32>
    %138 = math.exp %137 : vector<16x16xf32>
    %c3_80 = arith.constant 3 : index
    %c0_81 = arith.constant 0 : index
    %c0_82 = arith.constant 0 : index
    %139 = vector.load %arg8[%c3_80, %c0_81, %c0_82] : memref<4x16x1xf32, #tpu.memory_space<vmem>>, vector<1x16x1xf32>
    %140 = vector.shape_cast %139 : vector<1x16x1xf32> to vector<16x1xf32>
    %141 = arith.mulf %135, %140 : vector<16x1xf32>
    %cst_83 = arith.constant dense<0.000000e+00> : vector<16xf32>
    %142 = vector.multi_reduction <add>, %138, %cst_83 [1] : vector<16x16xf32> to vector<16xf32>
    %143 = vector.shape_cast %142 : vector<16xf32> to vector<16x1xf32>
    %144 = arith.addf %141, %143 : vector<16x1xf32>
    %c3_84 = arith.constant 3 : index
    %c0_85 = arith.constant 0 : index
    %c0_86 = arith.constant 0 : index
    %145 = vector.load %arg8[%c3_84, %c0_85, %c0_86] : memref<4x16x1xf32, #tpu.memory_space<vmem>>, vector<1x16x1xf32>
    %146 = vector.shape_cast %145 : vector<1x16x1xf32> to vector<16x1xf32>
    %147 = vector.shape_cast %144 : vector<16x1xf32> to vector<1x16x1xf32>
    tpu.vector_store %arg8[%c3_84, %c0_85, %c0_86], %147 {strides = array<i32>} : memref<4x16x1xf32, #tpu.memory_space<vmem>>, vector<1x16x1xf32>,
    %c3_87 = arith.constant 3 : index
    %c0_88 = arith.constant 0 : index
    %c0_89 = arith.constant 0 : index
    %148 = vector.load %arg9[%c3_87, %c0_88, %c0_89] : memref<4x16x32xf32, #tpu.memory_space<vmem>>, vector<1x16x32xf32>
    %149 = vector.shape_cast %148 : vector<1x16x32xf32> to vector<16x32xf32>
    %150 = vector.broadcast %135 : vector<16x1xf32> to vector<16x32xf32>
    %151 = arith.mulf %150, %149 : vector<16x32xf32>
    %152 = arith.truncf %138 : vector<16x16xf32> to vector<16x16xbf16>
    %cst_90 = arith.constant dense<0.000000e+00> : vector<16x32xf32>
    %153 = tpu.matmul %152, %125, %cst_90 {dimension_numbers = #tpu.dot_dimension_numbers<[1], [0], [0], [1], [0, 0, 1, 1], [], []>} : vector<16x16xbf16>, vector<16x32xbf16>, vector<16x32xf32> -> vector<16x32xf32>
    %154 = arith.addf %151, %153 : vector<16x32xf32>
    %c3_91 = arith.constant 3 : index
    %c0_92 = arith.constant 0 : index
    %c0_93 = arith.constant 0 : index
    %155 = vector.load %arg9[%c3_91, %c0_92, %c0_93] : memref<4x16x32xf32, #tpu.memory_space<vmem>>, vector<1x16x32xf32>
    %156 = vector.shape_cast %155 : vector<1x16x32xf32> to vector<16x32xf32>
    %157 = vector.shape_cast %154 : vector<16x32xf32> to vector<1x16x32xf32>
    tpu.vector_store %arg9[%c3_91, %c0_92, %c0_93], %157 {strides = array<i32>} : memref<4x16x32xf32, #tpu.memory_space<vmem>>, vector<1x16x32xf32>,
    %c3_94 = arith.constant 3 : index
    %c0_95 = arith.constant 0 : index
    %c0_96 = arith.constant 0 : index
    %158 = vector.load %arg7[%c3_94, %c0_95, %c0_96] : memref<4x16x1xf32, #tpu.memory_space<vmem>>, vector<1x16x1xf32>
    %159 = vector.shape_cast %158 : vector<1x16x1xf32> to vector<16x1xf32>
    %160 = vector.shape_cast %133 : vector<16x1xf32> to vector<1x16x1xf32>
    tpu.vector_store %arg7[%c3_94, %c0_95, %c0_96], %160 {strides = array<i32>} : memref<4x16x1xf32, #tpu.memory_space<vmem>>, vector<1x16x1xf32>,
    %c0_i32_97 = arith.constant 0 : i32
    %161 = arith.cmpi eq, %arg2, %c0_i32_97 : i32
    %162 = arith.extui %161 : i1 to i32
    %c0_i32_98 = arith.constant 0 : i32
    %163 = arith.cmpi ne, %162, %c0_i32_98 : i32
    scf.if %163 {
      %c0_99 = arith.constant 0 : index
      %c0_100 = arith.constant 0 : index
      %c0_101 = arith.constant 0 : index
      %164 = vector.load %arg9[%c0_99, %c0_100, %c0_101] : memref<4x16x32xf32, #tpu.memory_space<vmem>>, vector<1x16x32xf32>
      %165 = vector.shape_cast %164 : vector<1x16x32xf32> to vector<16x32xf32>
      %c0_102 = arith.constant 0 : index
      %c0_103 = arith.constant 0 : index
      %c0_104 = arith.constant 0 : index
      %166 = vector.load %arg8[%c0_102, %c0_103, %c0_104] : memref<4x16x1xf32, #tpu.memory_space<vmem>>, vector<1x16x1xf32>
      %167 = vector.shape_cast %166 : vector<1x16x1xf32> to vector<16x1xf32>
      %168 = tpu.reciprocal %167 {approx = true} : vector<16x1xf32> -> vector<16x1xf32>
      %169 = vector.broadcast %168 : vector<16x1xf32> to vector<16x32xf32>
      %170 = arith.mulf %165, %169 : vector<16x32xf32>
      %171 = arith.truncf %170 : vector<16x32xf32> to vector<16x32xbf16>
      %c0_105 = arith.constant 0 : index
      %c0_106 = arith.constant 0 : index
      %c0_107 = arith.constant 0 : index
      %172 = vector.load %arg6[%c0_105, %c0_106, %c0_107] : memref<1x16x128xbf16, #tpu.memory_space<vmem>>, vector<1x16x32xbf16>
      %173 = vector.shape_cast %172 : vector<1x16x32xbf16> to vector<16x32xbf16>
      %174 = vector.shape_cast %171 : vector<16x32xbf16> to vector<1x16x32xbf16>
      tpu.vector_store %arg6[%c0_105, %c0_106, %c0_107], %174 {strides = array<i32>} : memref<1x16x128xbf16, #tpu.memory_space<vmem>>, vector<1x16x32xbf16>,
      %c1_108 = arith.constant 1 : index
      %c0_109 = arith.constant 0 : index
      %c0_110 = arith.constant 0 : index
      %175 = vector.load %arg9[%c1_108, %c0_109, %c0_110] : memref<4x16x32xf32, #tpu.memory_space<vmem>>, vector<1x16x32xf32>
      %176 = vector.shape_cast %175 : vector<1x16x32xf32> to vector<16x32xf32>
      %c1_111 = arith.constant 1 : index
      %c0_112 = arith.constant 0 : index
      %c0_113 = arith.constant 0 : index
      %177 = vector.load %arg8[%c1_111, %c0_112, %c0_113] : memref<4x16x1xf32, #tpu.memory_space<vmem>>, vector<1x16x1xf32>
      %178 = vector.shape_cast %177 : vector<1x16x1xf32> to vector<16x1xf32>
      %179 = tpu.reciprocal %178 {approx = true} : vector<16x1xf32> -> vector<16x1xf32>
      %180 = vector.broadcast %179 : vector<16x1xf32> to vector<16x32xf32>
      %181 = arith.mulf %176, %180 : vector<16x32xf32>
      %182 = arith.truncf %181 : vector<16x32xf32> to vector<16x32xbf16>
      %c0_114 = arith.constant 0 : index
      %c0_115 = arith.constant 0 : index
      %c32 = arith.constant 32 : index
      %183 = vector.load %arg6[%c0_114, %c0_115, %c32] : memref<1x16x128xbf16, #tpu.memory_space<vmem>>, vector<1x16x32xbf16>
      %184 = vector.shape_cast %183 : vector<1x16x32xbf16> to vector<16x32xbf16>
      %185 = vector.shape_cast %182 : vector<16x32xbf16> to vector<1x16x32xbf16>
      tpu.vector_store %arg6[%c0_114, %c0_115, %c32], %185 {strides = array<i32>} : memref<1x16x128xbf16, #tpu.memory_space<vmem>>, vector<1x16x32xbf16>,
      %c2_116 = arith.constant 2 : index
      %c0_117 = arith.constant 0 : index
      %c0_118 = arith.constant 0 : index
      %186 = vector.load %arg9[%c2_116, %c0_117, %c0_118] : memref<4x16x32xf32, #tpu.memory_space<vmem>>, vector<1x16x32xf32>
      %187 = vector.shape_cast %186 : vector<1x16x32xf32> to vector<16x32xf32>
      %c2_119 = arith.constant 2 : index
      %c0_120 = arith.constant 0 : index
      %c0_121 = arith.constant 0 : index
      %188 = vector.load %arg8[%c2_119, %c0_120, %c0_121] : memref<4x16x1xf32, #tpu.memory_space<vmem>>, vector<1x16x1xf32>
      %189 = vector.shape_cast %188 : vector<1x16x1xf32> to vector<16x1xf32>
      %190 = tpu.reciprocal %189 {approx = true} : vector<16x1xf32> -> vector<16x1xf32>
      %191 = vector.broadcast %190 : vector<16x1xf32> to vector<16x32xf32>
      %192 = arith.mulf %187, %191 : vector<16x32xf32>
      %193 = arith.truncf %192 : vector<16x32xf32> to vector<16x32xbf16>
      %c0_122 = arith.constant 0 : index
      %c0_123 = arith.constant 0 : index
      %c64 = arith.constant 64 : index
      %194 = vector.load %arg6[%c0_122, %c0_123, %c64] : memref<1x16x128xbf16, #tpu.memory_space<vmem>>, vector<1x16x32xbf16>
      %195 = vector.shape_cast %194 : vector<1x16x32xbf16> to vector<16x32xbf16>
      %196 = vector.shape_cast %193 : vector<16x32xbf16> to vector<1x16x32xbf16>
      tpu.vector_store %arg6[%c0_122, %c0_123, %c64], %196 {strides = array<i32>} : memref<1x16x128xbf16, #tpu.memory_space<vmem>>, vector<1x16x32xbf16>,
      %c3_124 = arith.constant 3 : index
      %c0_125 = arith.constant 0 : index
      %c0_126 = arith.constant 0 : index
      %197 = vector.load %arg9[%c3_124, %c0_125, %c0_126] : memref<4x16x32xf32, #tpu.memory_space<vmem>>, vector<1x16x32xf32>
      %198 = vector.shape_cast %197 : vector<1x16x32xf32> to vector<16x32xf32>
      %c3_127 = arith.constant 3 : index
      %c0_128 = arith.constant 0 : index
      %c0_129 = arith.constant 0 : index
      %199 = vector.load %arg8[%c3_127, %c0_128, %c0_129] : memref<4x16x1xf32, #tpu.memory_space<vmem>>, vector<1x16x1xf32>
      %200 = vector.shape_cast %199 : vector<1x16x1xf32> to vector<16x1xf32>
      %201 = tpu.reciprocal %200 {approx = true} : vector<16x1xf32> -> vector<16x1xf32>
      %202 = vector.broadcast %201 : vector<16x1xf32> to vector<16x32xf32>
      %203 = arith.mulf %198, %202 : vector<16x32xf32>
      %204 = arith.truncf %203 : vector<16x32xf32> to vector<16x32xbf16>
      %c0_130 = arith.constant 0 : index
      %c0_131 = arith.constant 0 : index
      %c96 = arith.constant 96 : index
      %205 = vector.load %arg6[%c0_130, %c0_131, %c96] : memref<1x16x128xbf16, #tpu.memory_space<vmem>>, vector<1x16x32xbf16>
      %206 = vector.shape_cast %205 : vector<1x16x32xbf16> to vector<16x32xbf16>
      %207 = vector.shape_cast %204 : vector<16x32xbf16> to vector<1x16x32xbf16>
      tpu.vector_store %arg6[%c0_130, %c0_131, %c96], %207 {strides = array<i32>} : memref<1x16x128xbf16, #tpu.memory_space<vmem>>, vector<1x16x32xbf16>,
    } else {
    }
    return
  }
  func.func @transform_0(%arg0: i32, %arg1: i32, %arg2: i32) -> (i32, i32, i32) {
    %c0_i32 = arith.constant 0 : i32
    %c0_i32_0 = arith.constant 0 : i32
    return %arg0, %arg1, %c0_i32 : i32, i32, i32
  }
  func.func @transform_1(%arg0: i32, %arg1: i32, %arg2: i32) -> (i32, i32, i32) {
    %c0_i32 = arith.constant 0 : i32
    %c0_i32_0 = arith.constant 0 : i32
    return %arg0, %arg2, %c0_i32 : i32, i32, i32
  }
  func.func @transform_2(%arg0: i32, %arg1: i32, %arg2: i32) -> (i32, i32, i32) {
    %c1_i32 = arith.constant 1 : i32
    %c0_i32 = arith.constant 0 : i32
    return %arg0, %arg2, %c1_i32 : i32, i32, i32
  }
  func.func @transform_3(%arg0: i32, %arg1: i32, %arg2: i32) -> (i32, i32, i32) {
    %c0_i32 = arith.constant 0 : i32
    %c0_i32_0 = arith.constant 0 : i32
    return %arg0, %arg1, %c0_i32 : i32, i32, i32
  }
}

module attributes {stable_mosaic.version = 11 : i64} {
  func.func @_matmul_kernel(%arg0: i32, %arg1: i32, %arg2: i32, %arg3: memref<32x128xbf16, #tpu.memory_space<vmem>>, %arg4: memref<128x128xbf16, #tpu.memory_space<vmem>>, %arg5: memref<1x128xf32, #tpu.memory_space<vmem>>, %arg6: memref<32x128xf32, #tpu.memory_space<vmem>>, %arg7: memref<32x128xf32, #tpu.memory_space<vmem>>) attributes {dimension_semantics = [#tpu.dimension_semantics<parallel>, #tpu.dimension_semantics<parallel>, #tpu.dimension_semantics<arbitrary>], iteration_bounds = array<i64: 1, 1, 1>, scalar_prefetch = 0 : i64, scratch_operands = 1 : i64, tpu.core_type = #tpu.core_type<tc>, window_params = [{transform_indices = @transform_0, window_bounds = array<i64: 32, 128>}, {transform_indices = @transform_1, window_bounds = array<i64: 128, 128>}, {transform_indices = @transform_2, window_bounds = array<i64: 1, 128>}, {transform_indices = @transform_3, window_bounds = array<i64: 32, 128>}]} {
    %c0_i32 = arith.constant 0 : i32
    %0 = arith.cmpi eq, %arg2, %c0_i32 : i32
    %1 = arith.extui %0 : i1 to i32
    %c0_i32_0 = arith.constant 0 : i32
    %2 = arith.cmpi ne, %1, %c0_i32_0 : i32
    scf.if %2 {
      %cst_10 = arith.constant 0.000000e+00 : f32
      %12 = vector.broadcast %cst_10 : f32 to vector<32x128xf32>
      %c0_11 = arith.constant 0 : index
      %c0_12 = arith.constant 0 : index
      %13 = vector.load %arg7[%c0_11, %c0_12] : memref<32x128xf32, #tpu.memory_space<vmem>>, vector<32x128xf32>
      tpu.vector_store %arg7[%c0_11, %c0_12], %12 {strides = array<i32>} : memref<32x128xf32, #tpu.memory_space<vmem>>, vector<32x128xf32>,
    } else {
    }
    %c0 = arith.constant 0 : index
    %c0_1 = arith.constant 0 : index
    %3 = vector.load %arg7[%c0, %c0_1] : memref<32x128xf32, #tpu.memory_space<vmem>>, vector<32x128xf32>
    %c0_2 = arith.constant 0 : index
    %c0_3 = arith.constant 0 : index
    %4 = vector.load %arg3[%c0_2, %c0_3] : memref<32x128xbf16, #tpu.memory_space<vmem>>, vector<32x128xbf16>
    %c0_4 = arith.constant 0 : index
    %c0_5 = arith.constant 0 : index
    %5 = vector.load %arg4[%c0_4, %c0_5] : memref<128x128xbf16, #tpu.memory_space<vmem>>, vector<128x128xbf16>
    %cst = arith.constant dense<0.000000e+00> : vector<32x128xf32>
    %6 = tpu.matmul %4, %5, %cst {dimension_numbers = #tpu.dot_dimension_numbers<[1], [0], [0], [1], [0, 0, 1, 1], [], []>} : vector<32x128xbf16>, vector<128x128xbf16>, vector<32x128xf32> -> vector<32x128xf32>
    %7 = arith.addf %3, %6 : vector<32x128xf32>
    %c0_6 = arith.constant 0 : index
    %c0_7 = arith.constant 0 : index
    %8 = vector.load %arg7[%c0_6, %c0_7] : memref<32x128xf32, #tpu.memory_space<vmem>>, vector<32x128xf32>
    tpu.vector_store %arg7[%c0_6, %c0_7], %7 {strides = array<i32>} : memref<32x128xf32, #tpu.memory_space<vmem>>, vector<32x128xf32>,
    %c0_i32_8 = arith.constant 0 : i32
    %9 = arith.cmpi eq, %arg2, %c0_i32_8 : i32
    %10 = arith.extui %9 : i1 to i32
    %c0_i32_9 = arith.constant 0 : i32
    %11 = arith.cmpi ne, %10, %c0_i32_9 : i32
    scf.if %11 {
      %c0_10 = arith.constant 0 : index
      %c0_11 = arith.constant 0 : index
      %12 = vector.load %arg7[%c0_10, %c0_11] : memref<32x128xf32, #tpu.memory_space<vmem>>, vector<32x128xf32>
      %c0_12 = arith.constant 0 : index
      %c0_13 = arith.constant 0 : index
      %13 = vector.load %arg5[%c0_12, %c0_13] : memref<1x128xf32, #tpu.memory_space<vmem>>, vector<1x128xf32>
      %14 = vector.broadcast %13 : vector<1x128xf32> to vector<32x128xf32>
      %15 = arith.addf %12, %14 : vector<32x128xf32>
      %c0_14 = arith.constant 0 : index
      %c0_15 = arith.constant 0 : index
      %16 = vector.load %arg6[%c0_14, %c0_15] : memref<32x128xf32, #tpu.memory_space<vmem>>, vector<32x128xf32>
      tpu.vector_store %arg6[%c0_14, %c0_15], %15 {strides = array<i32>} : memref<32x128xf32, #tpu.memory_space<vmem>>, vector<32x128xf32>,
    } else {
    }
    return
  }
  func.func @transform_0(%arg0: i32, %arg1: i32, %arg2: i32) -> (i32, i32) {
    %c0_i32 = arith.constant 0 : i32
    return %arg0, %arg2 : i32, i32
  }
  func.func @transform_1(%arg0: i32, %arg1: i32, %arg2: i32) -> (i32, i32) {
    %c0_i32 = arith.constant 0 : i32
    return %arg2, %arg1 : i32, i32
  }
  func.func @transform_2(%arg0: i32, %arg1: i32, %arg2: i32) -> (i32, i32) {
    %c0_i32 = arith.constant 0 : i32
    %c0_i32_0 = arith.constant 0 : i32
    return %c0_i32, %arg1 : i32, i32
  }
  func.func @transform_3(%arg0: i32, %arg1: i32, %arg2: i32) -> (i32, i32) {
    %c0_i32 = arith.constant 0 : i32
    return %arg0, %arg1 : i32, i32
  }
}

</mosaic_0001>

<llo_original>
// kernel: transformer_forward.39
$region0: #{transformer_forward.39}
  #allocation0 [shape = 'u32[]', space=smem, size = 0x4, offset = 0x4, fixed_abs, tag = 'smem constant byte address 0x4 - core index']
  #allocation1 [shape = 'u32[144,128]{1,0:T(1,128)}', space=vmem, size = 0x12000, scoped, tag = 'internal scratch']
  #allocation2 [shape = 'f32[32,128]{1,0:T(8,128)}', space=vmem, size = 0x4000, scoped, tag = 'scratch operand']
  %s0 = inlined_call_operand.vmem [shape: bf16[32,128], index: 0, kind: input, shape index: {}]
  %s1 = inlined_call_operand.vmem [shape: bf16[128,128], index: 1, kind: input, shape index: {}]
  %s2 = inlined_call_operand.vmem [shape: f32[1,128], index: 2, kind: input, shape index: {}]
  %s3 = inlined_call_operand.vmem [shape: bf16[32,128], index: 3, kind: output, shape index: {}]
  %s4 = sld [smem:[#allocation0]]
  $region30: #{transformer_forward.39} parent=0
    _
  %s6 = ssub.s32 1, %s4
  %s7 = scalar_select 0, %s6, %s4
  // Predicated region
  $region2: #{transformer_forward.39} parent=0 // pred_check
    _
  $region3: #{transformer_forward.39} parent=0 // pred_check_branch
    %9 = sbr.rel (0) target = $region5
  $region4: #{transformer_forward.39} parent=0 // pred_region
    _
  $region5: #{transformer_forward.39} parent=0 // pred_fallthru
    _
  // Predicated region
  $region6: #{transformer_forward.39} parent=0 // pred_check
    _
  $region7: #{transformer_forward.39} parent=0 // pred_check_branch
    %11 = sbr.rel (0) target = $region9
  $region8: #{transformer_forward.39} parent=0 // pred_region
    _
  $region9: #{transformer_forward.39} parent=0 // pred_fallthru
    _
  // Predicated region
  $region10: #{transformer_forward.39} parent=0 // pred_check
    _
  $region11: #{transformer_forward.39} parent=0 // pred_check_branch
    %13 = sbr.rel (0) target = $region13
  $region12: #{transformer_forward.39} parent=0 // pred_region
    _
  $region13: #{transformer_forward.39} parent=0 // pred_fallthru
    _
  %p15 = scmp.eq.s32.totalorder 0, 0
  // Predicated region
  $region14: #{transformer_forward.39} parent=0 // pred_check
    %p16 = pneg %p15
  $region15: #{transformer_forward.39} parent=0 // pred_check_branch
    %18 = sbr.rel (%p16) target = $region17
  $region16: #{transformer_forward.39} parent=0 // pred_region
    %19 = vst [vmem:[#allocation2] sm:$0xff] 0.0
    %20 = vst [vmem:[#allocation2 + $0x8] sm:$0xff] 0.0
    %21 = vst [vmem:[#allocation2 + $0x10] sm:$0xff] 0.0
    %22 = vst [vmem:[#allocation2 + $0x18] sm:$0xff] 0.0
  $region17: #{transformer_forward.39} parent=0 // pred_fallthru
    _
  %v23 = vld [vmem:[#allocation2] sm:$0xff]
  %v24 = vld [vmem:[#allocation2 + $0x8] sm:$0xff]
  %v25 = vld [vmem:[#allocation2 + $0x10] sm:$0xff]
  %v26 = vld [vmem:[#allocation2 + $0x18] sm:$0xff]
  %v27 = vld [vmem:[%s0] sm:$0xf]
  %v28 = vld [vmem:[%s0 + $0x4] sm:$0xf]
  %v29 = vld [vmem:[%s0 + $0x8] sm:$0xf]
  %v30 = vld [vmem:[%s0 + $0xc] sm:$0xf]
  %v31 = vld [vmem:[%s1] sm:$0xf]
  %v32 = vld [vmem:[%s1 + $0x4] sm:$0xf]
  %v33 = vld [vmem:[%s1 + $0x8] sm:$0xf]
  %v34 = vld [vmem:[%s1 + $0xc] sm:$0xf]
  %v35 = vld [vmem:[%s1 + $0x10] sm:$0xf]
  %v36 = vld [vmem:[%s1 + $0x14] sm:$0xf]
  %v37 = vld [vmem:[%s1 + $0x18] sm:$0xf]
  %v38 = vld [vmem:[%s1 + $0x1c] sm:$0xf]
  %v39 = vld [vmem:[%s1 + $0x20] sm:$0xf]
  %v40 = vld [vmem:[%s1 + $0x24] sm:$0xf]
  %v41 = vld [vmem:[%s1 + $0x28] sm:$0xf]
  %v42 = vld [vmem:[%s1 + $0x2c] sm:$0xf]
  %v43 = vld [vmem:[%s1 + $0x30] sm:$0xf]
  %v44 = vld [vmem:[%s1 + $0x34] sm:$0xf]
  %v45 = vld [vmem:[%s1 + $0x38] sm:$0xf]
  %v46 = vld [vmem:[%s1 + $0x3c] sm:$0xf]
  %v51 = vunpack.c.l.b16 %v27
  %v52 = vunpack.c.l.b16 %v28
  %v53 = vunpack.c.l.b16 %v29
  %v54 = vunpack.c.l.b16 %v30
  %v55 = vpack.c.b16 %v52, %v51
  %v56 = vpack.c.b16 %v54, %v53
  %v75 = vunpack.c.l.b16 %v31
  %v76 = vunpack.c.l.b16 %v32
  %v77 = vunpack.c.l.b16 %v33
  %v78 = vunpack.c.l.b16 %v34
  %v79 = vunpack.c.l.b16 %v35
  %v80 = vunpack.c.l.b16 %v36
  %v81 = vunpack.c.l.b16 %v37
  %v82 = vunpack.c.l.b16 %v38
  %v83 = vunpack.c.l.b16 %v39
  %v84 = vunpack.c.l.b16 %v40
  %v85 = vunpack.c.l.b16 %v41
  %v86 = vunpack.c.l.b16 %v42
  %v87 = vunpack.c.l.b16 %v43
  %v88 = vunpack.c.l.b16 %v44
  %v89 = vunpack.c.l.b16 %v45
  %v90 = vunpack.c.l.b16 %v46
  %v91 = vpack.c.b16 %v76, %v75
  %v92 = vpack.c.b16 %v78, %v77
  %v93 = vpack.c.b16 %v80, %v79
  %v94 = vpack.c.b16 %v82, %v81
  %v95 = vpack.c.b16 %v84, %v83
  %v96 = vpack.c.b16 %v86, %v85
  %v97 = vpack.c.b16 %v88, %v87
  %v98 = vpack.c.b16 %v90, %v89
  %107 = vmatprep.subr.bf16.mxu0 0
  %108 = vmatpush1.bf16.msra.mxu0 %v98
  %109 = vmatprep.subr.bf16.mxu0 0
  %110 = vmatpush1.bf16.msra.mxu0 %v97
  %111 = vmatprep.subr.bf16.mxu0 0
  %112 = vmatpush1.bf16.msra.mxu0 %v96
  %113 = vmatprep.subr.bf16.mxu0 0
  %114 = vmatpush1.bf16.msra.mxu0 %v95
  %115 = vmatprep.subr.bf16.mxu0 0
  %116 = vmatpush1.bf16.msra.mxu0 %v94
  %117 = vmatprep.subr.bf16.mxu0 0
  %118 = vmatpush1.bf16.msra.mxu0 %v93
  %119 = vmatprep.subr.bf16.mxu0 0
  %120 = vmatpush1.bf16.msra.mxu0 %v92
  %121 = vmatprep.subr.bf16.mxu0 0
  %122 = vmatpush1.bf16.msra.mxu0 %v91
  %123 = vmatprep.subr.bf16.mxu0 0
  %124 = vmatpush2.bf16.msra.mxu0 0
  %125 = vmatprep.subr.bf16.mxu0 0
  %126 = vmatpush2.bf16.msra.mxu0 0
  %127 = vmatprep.subr.bf16.mxu0 0
  %128 = vmatpush2.bf16.msra.mxu0 0
  %129 = vmatprep.subr.bf16.mxu0 0
  %130 = vmatpush2.bf16.msra.mxu0 0
  %131 = vmatprep.subr.bf16.mxu0 0
  %132 = vmatpush2.bf16.msra.mxu0 0
  %133 = vmatprep.subr.bf16.mxu0 0
  %134 = vmatpush2.bf16.msra.mxu0 0
  %135 = vmatprep.subr.bf16.mxu0 0
  %136 = vmatpush2.bf16.msra.mxu0 0
  %137 = vmatprep.subr.bf16.mxu0 0
  %138 = vmatpush2.bf16.msra.mxu0 0
  %139 = vmatprep.mubr.bf16.mxu0 0
  %140 = vmatmul.mubr.bf16.gmra.mxu0 %v55
  %v141 = vpop.f32.mrf.mxu0
  %v142 = vadd.f32 0.0, %v141
  %v143 = vpop.f32.mrf.mxu0
  %v144 = vpop.f32.mrf.mxu0
  %v145 = vadd.f32 0.0, %v144
  %v146 = vpop.f32.mrf.mxu0
  %147 = vmatprep.mubr.bf16.mxu0 0
  %148 = vmatmul.mubr.bf16.gmra.mxu0 %v56
  %v149 = vpop.f32.mrf.mxu0
  %v150 = vadd.f32 0.0, %v149
  %v151 = vpop.f32.mrf.mxu0
  %v152 = vpop.f32.mrf.mxu0
  %v153 = vadd.f32 0.0, %v152
  %v154 = vpop.f32.mrf.mxu0
  %155 = vdwg.mxu0
  %v156 = vadd.f32 %v23, %v142
  %v157 = vadd.f32 %v24, %v145
  %v158 = vadd.f32 %v25, %v150
  %v159 = vadd.f32 %v26, %v153
  %160 = vst [vmem:[#allocation2] sm:$0xff] %v156
  %161 = vst [vmem:[#allocation2 + $0x8] sm:$0xff] %v157
  %162 = vst [vmem:[#allocation2 + $0x10] sm:$0xff] %v158
  %163 = vst [vmem:[#allocation2 + $0x18] sm:$0xff] %v159
  // Predicated region
  $region18: #{transformer_forward.39} parent=0 // pred_check
    %p164 = pneg %p15
  $region19: #{transformer_forward.39} parent=0 // pred_check_branch
    %166 = sbr.rel (%p164) target = $region21
  $region20: #{transformer_forward.39} parent=0 // pred_region
    %v167 = vld [vmem:[#allocation2] sm:$0xff]
    %v168 = vld [vmem:[#allocation2 + $0x8] sm:$0xff]
    %v169 = vld [vmem:[#allocation2 + $0x10] sm:$0xff]
    %v170 = vld [vmem:[#allocation2 + $0x18] sm:$0xff]
    %v171 = vld [vmem:[%s2] sm:$0x1]
    %v173 = vlaneseq
    %v174 = vshrl.u32 %v173, 7
    %v175 = vsub.s32 0, %v174
    %v176 = vrot.slane %v171, %v175
    %v178 = vadd.f32 %v167, %v176
    %v179 = vadd.f32 %v168, %v176
    %v180 = vadd.f32 %v169, %v176
    %v181 = vadd.f32 %v170, %v176
    %v182 = vpack.c.bf16 %v179, %v178
    %v183 = vpack.c.bf16 %v181, %v180
    %v186 = vunpack.c.l.b16 %v182
    %v187 = vunpack.c.h.b16 %v182
    %v188 = vunpack.c.l.b16 %v183
    %v189 = vunpack.c.h.b16 %v183
    %v190 = vpack.c.b16 %v186, %v186
    %v191 = vpack.c.b16 %v187, %v187
    %v192 = vpack.c.b16 %v188, %v188
    %v193 = vpack.c.b16 %v189, %v189
    %198 = vst [vmem:[%s3] sm:$0xf] %v190
    %199 = vst [vmem:[%s3 + $0x4] sm:$0xf] %v191
    %200 = vst [vmem:[%s3 + $0x8] sm:$0xf] %v192
    %201 = vst [vmem:[%s3 + $0xc] sm:$0xf] %v193
  $region21: #{transformer_forward.39} parent=0 // pred_fallthru
    _
  // Predicated region
  $region22: #{transformer_forward.39} parent=0 // pred_check
    _
  $region23: #{transformer_forward.39} parent=0 // pred_check_branch
    %203 = sbr.rel (0) target = $region25
  $region24: #{transformer_forward.39} parent=0 // pred_region
    _
  $region25: #{transformer_forward.39} parent=0 // pred_fallthru
    _
  // Predicated region
  $region26: #{transformer_forward.39} parent=0 // pred_check
    _
  $region27: #{transformer_forward.39} parent=0 // pred_check_branch
    %205 = sbr.rel (0) target = $region29
  $region28: #{transformer_forward.39} parent=0 // pred_region
    _
  $region29: #{transformer_forward.39} parent=0 // pred_fallthru
    _

// kernel: transformer_forward.38
$region0: #{transformer_forward.38}
  #allocation0 [shape = 'u32[]', space=smem, size = 0x4, offset = 0x4, fixed_abs, tag = 'smem constant byte address 0x4 - core index']
  #allocation1 [shape = 'u32[144,128]{1,0:T(1,128)}', space=vmem, size = 0x12000, scoped, tag = 'internal scratch']
  #allocation2 [shape = 'f32[32,128]{1,0:T(8,128)}', space=vmem, size = 0x4000, scoped, tag = 'scratch operand']
  %s0 = inlined_call_operand.vmem [shape: bf16[32,128], index: 0, kind: input, shape index: {}]
  %s1 = inlined_call_operand.vmem [shape: bf16[128,128], index: 1, kind: input, shape index: {}]
  %s2 = inlined_call_operand.vmem [shape: f32[1,128], index: 2, kind: input, shape index: {}]
  %s3 = inlined_call_operand.vmem [shape: bf16[32,128], index: 3, kind: input, shape index: {}]
  %s4 = inlined_call_operand.vmem [shape: f32[1,128], index: 4, kind: input, shape index: {}]
  %s5 = inlined_call_operand.vmem [shape: f32[1,128], index: 5, kind: input, shape index: {}]
  %s6 = inlined_call_operand.vmem [shape: bf16[32,128], index: 6, kind: output, shape index: {}]
  %s7 = sld [smem:[#allocation0]]
  $region42: #{transformer_forward.38} parent=0
    _
  %s9 = ssub.s32 1, %s7
  %s10 = scalar_select 0, %s9, %s7
  // Predicated region
  $region2: #{transformer_forward.38} parent=0 // pred_check
    _
  $region3: #{transformer_forward.38} parent=0 // pred_check_branch
    %12 = sbr.rel (0) target = $region5
  $region4: #{transformer_forward.38} parent=0 // pred_region
    _
  $region5: #{transformer_forward.38} parent=0 // pred_fallthru
    _
  // Predicated region
  $region6: #{transformer_forward.38} parent=0 // pred_check
    _
  $region7: #{transformer_forward.38} parent=0 // pred_check_branch
    %14 = sbr.rel (0) target = $region9
  $region8: #{transformer_forward.38} parent=0 // pred_region
    _
  $region9: #{transformer_forward.38} parent=0 // pred_fallthru
    _
  // Predicated region
  $region10: #{transformer_forward.38} parent=0 // pred_check
    _
  $region11: #{transformer_forward.38} parent=0 // pred_check_branch
    %16 = sbr.rel (0) target = $region13
  $region12: #{transformer_forward.38} parent=0 // pred_region
    _
  $region13: #{transformer_forward.38} parent=0 // pred_fallthru
    _
  // Predicated region
  $region14: #{transformer_forward.38} parent=0 // pred_check
    _
  $region15: #{transformer_forward.38} parent=0 // pred_check_branch
    %18 = sbr.rel (0) target = $region17
  $region16: #{transformer_forward.38} parent=0 // pred_region
    _
  $region17: #{transformer_forward.38} parent=0 // pred_fallthru
    _
  // Predicated region
  $region18: #{transformer_forward.38} parent=0 // pred_check
    _
  $region19: #{transformer_forward.38} parent=0 // pred_check_branch
    %20 = sbr.rel (0) target = $region21
  $region20: #{transformer_forward.38} parent=0 // pred_region
    _
  $region21: #{transformer_forward.38} parent=0 // pred_fallthru
    _
  // Predicated region
  $region22: #{transformer_forward.38} parent=0 // pred_check
    _
  $region23: #{transformer_forward.38} parent=0 // pred_check_branch
    %22 = sbr.rel (0) target = $region25
  $region24: #{transformer_forward.38} parent=0 // pred_region
    _
  $region25: #{transformer_forward.38} parent=0 // pred_fallthru
    _
  %p24 = scmp.eq.s32.totalorder 0, 0
  // Predicated region
  $region26: #{transformer_forward.38} parent=0 // pred_check
    %p25 = pneg %p24
  $region27: #{transformer_forward.38} parent=0 // pred_check_branch
    %27 = sbr.rel (%p25) target = $region29
  $region28: #{transformer_forward.38} parent=0 // pred_region
    %28 = vst [vmem:[#allocation2] sm:$0xff] 0.0
    %29 = vst [vmem:[#allocation2 + $0x8] sm:$0xff] 0.0
    %30 = vst [vmem:[#allocation2 + $0x10] sm:$0xff] 0.0
    %31 = vst [vmem:[#allocation2 + $0x18] sm:$0xff] 0.0
  $region29: #{transformer_forward.38} parent=0 // pred_fallthru
    _
  %v32 = vld [vmem:[#allocation2] sm:$0xff]
  %v33 = vld [vmem:[#allocation2 + $0x8] sm:$0xff]
  %v34 = vld [vmem:[#allocation2 + $0x10] sm:$0xff]
  %v35 = vld [vmem:[#allocation2 + $0x18] sm:$0xff]
  %v36 = vld [vmem:[%s0] sm:$0xf]
  %v37 = vld [vmem:[%s0 + $0x4] sm:$0xf]
  %v38 = vld [vmem:[%s0 + $0x8] sm:$0xf]
  %v39 = vld [vmem:[%s0 + $0xc] sm:$0xf]
  %v40 = vld [vmem:[%s1] sm:$0xf]
  %v41 = vld [vmem:[%s1 + $0x4] sm:$0xf]
  %v42 = vld [vmem:[%s1 + $0x8] sm:$0xf]
  %v43 = vld [vmem:[%s1 + $0xc] sm:$0xf]
  %v44 = vld [vmem:[%s1 + $0x10] sm:$0xf]
  %v45 = vld [vmem:[%s1 + $0x14] sm:$0xf]
  %v46 = vld [vmem:[%s1 + $0x18] sm:$0xf]
  %v47 = vld [vmem:[%s1 + $0x1c] sm:$0xf]
  %v48 = vld [vmem:[%s1 + $0x20] sm:$0xf]
  %v49 = vld [vmem:[%s1 + $0x24] sm:$0xf]
  %v50 = vld [vmem:[%s1 + $0x28] sm:$0xf]
  %v51 = vld [vmem:[%s1 + $0x2c] sm:$0xf]
  %v52 = vld [vmem:[%s1 + $0x30] sm:$0xf]
  %v53 = vld [vmem:[%s1 + $0x34] sm:$0xf]
  %v54 = vld [vmem:[%s1 + $0x38] sm:$0xf]
  %v55 = vld [vmem:[%s1 + $0x3c] sm:$0xf]
  %v60 = vunpack.c.l.b16 %v36
  %v61 = vunpack.c.l.b16 %v37
  %v62 = vunpack.c.l.b16 %v38
  %v63 = vunpack.c.l.b16 %v39
  %v64 = vpack.c.b16 %v61, %v60
  %v65 = vpack.c.b16 %v63, %v62
  %v84 = vunpack.c.l.b16 %v40
  %v85 = vunpack.c.l.b16 %v41
  %v86 = vunpack.c.l.b16 %v42
  %v87 = vunpack.c.l.b16 %v43
  %v88 = vunpack.c.l.b16 %v44
  %v89 = vunpack.c.l.b16 %v45
  %v90 = vunpack.c.l.b16 %v46
  %v91 = vunpack.c.l.b16 %v47
  %v92 = vunpack.c.l.b16 %v48
  %v93 = vunpack.c.l.b16 %v49
  %v94 = vunpack.c.l.b16 %v50
  %v95 = vunpack.c.l.b16 %v51
  %v96 = vunpack.c.l.b16 %v52
  %v97 = vunpack.c.l.b16 %v53
  %v98 = vunpack.c.l.b16 %v54
  %v99 = vunpack.c.l.b16 %v55
  %v100 = vpack.c.b16 %v85, %v84
  %v101 = vpack.c.b16 %v87, %v86
  %v102 = vpack.c.b16 %v89, %v88
  %v103 = vpack.c.b16 %v91, %v90
  %v104 = vpack.c.b16 %v93, %v92
  %v105 = vpack.c.b16 %v95, %v94
  %v106 = vpack.c.b16 %v97, %v96
  %v107 = vpack.c.b16 %v99, %v98
  %116 = vmatprep.subr.bf16.mxu0 0
  %117 = vmatpush1.bf16.msra.mxu0 %v107
  %118 = vmatprep.subr.bf16.mxu0 0
  %119 = vmatpush1.bf16.msra.mxu0 %v106
  %120 = vmatprep.subr.bf16.mxu0 0
  %121 = vmatpush1.bf16.msra.mxu0 %v105
  %122 = vmatprep.subr.bf16.mxu0 0
  %123 = vmatpush1.bf16.msra.mxu0 %v104
  %124 = vmatprep.subr.bf16.mxu0 0
  %125 = vmatpush1.bf16.msra.mxu0 %v103
  %126 = vmatprep.subr.bf16.mxu0 0
  %127 = vmatpush1.bf16.msra.mxu0 %v102
  %128 = vmatprep.subr.bf16.mxu0 0
  %129 = vmatpush1.bf16.msra.mxu0 %v101
  %130 = vmatprep.subr.bf16.mxu0 0
  %131 = vmatpush1.bf16.msra.mxu0 %v100
  %132 = vmatprep.subr.bf16.mxu0 0
  %133 = vmatpush2.bf16.msra.mxu0 0
  %134 = vmatprep.subr.bf16.mxu0 0
  %135 = vmatpush2.bf16.msra.mxu0 0
  %136 = vmatprep.subr.bf16.mxu0 0
  %137 = vmatpush2.bf16.msra.mxu0 0
  %138 = vmatprep.subr.bf16.mxu0 0
  %139 = vmatpush2.bf16.msra.mxu0 0
  %140 = vmatprep.subr.bf16.mxu0 0
  %141 = vmatpush2.bf16.msra.mxu0 0
  %142 = vmatprep.subr.bf16.mxu0 0
  %143 = vmatpush2.bf16.msra.mxu0 0
  %144 = vmatprep.subr.bf16.mxu0 0
  %145 = vmatpush2.bf16.msra.mxu0 0
  %146 = vmatprep.subr.bf16.mxu0 0
  %147 = vmatpush2.bf16.msra.mxu0 0
  %148 = vmatprep.mubr.bf16.mxu0 0
  %149 = vmatmul.mubr.bf16.gmra.mxu0 %v64
  %v150 = vpop.f32.mrf.mxu0
  %v151 = vadd.f32 0.0, %v150
  %v152 = vpop.f32.mrf.mxu0
  %v153 = vpop.f32.mrf.mxu0
  %v154 = vadd.f32 0.0, %v153
  %v155 = vpop.f32.mrf.mxu0
  %156 = vmatprep.mubr.bf16.mxu0 0
  %157 = vmatmul.mubr.bf16.gmra.mxu0 %v65
  %v158 = vpop.f32.mrf.mxu0
  %v159 = vadd.f32 0.0, %v158
  %v160 = vpop.f32.mrf.mxu0
  %v161 = vpop.f32.mrf.mxu0
  %v162 = vadd.f32 0.0, %v161
  %v163 = vpop.f32.mrf.mxu0
  %164 = vdwg.mxu0
  %v165 = vadd.f32 %v32, %v151
  %v166 = vadd.f32 %v33, %v154
  %v167 = vadd.f32 %v34, %v159
  %v168 = vadd.f32 %v35, %v162
  %169 = vst [vmem:[#allocation2] sm:$0xff] %v165
  %170 = vst [vmem:[#allocation2 + $0x8] sm:$0xff] %v166
  %171 = vst [vmem:[#allocation2 + $0x10] sm:$0xff] %v167
  %172 = vst [vmem:[#allocation2 + $0x18] sm:$0xff] %v168
  // Predicated region
  $region30: #{transformer_forward.38} parent=0 // pred_check
    %p173 = pneg %p24
  $region31: #{transformer_forward.38} parent=0 // pred_check_branch
    %175 = sbr.rel (%p173) target = $region33
  $region32: #{transformer_forward.38} parent=0 // pred_region
    %v176 = vld [vmem:[#allocation2] sm:$0xff]
    %v177 = vld [vmem:[#allocation2 + $0x8] sm:$0xff]
    %v178 = vld [vmem:[#allocation2 + $0x10] sm:$0xff]
    %v179 = vld [vmem:[#allocation2 + $0x18] sm:$0xff]
    %v180 = vld [vmem:[%s2] sm:$0x1]
    %v182 = vlaneseq
    %v183 = vshrl.u32 %v182, 7
    %v184 = vsub.s32 0, %v183
    %v185 = vrot.slane %v180, %v184
    %v187 = vadd.f32 %v176, %v185
    %v188 = vadd.f32 %v177, %v185
    %v189 = vadd.f32 %v178, %v185
    %v190 = vadd.f32 %v179, %v185
    %v191 = vld [vmem:[%s3] sm:$0xf]
    %v192 = vld [vmem:[%s3 + $0x4] sm:$0xf]
    %v193 = vld [vmem:[%s3 + $0x8] sm:$0xf]
    %v194 = vld [vmem:[%s3 + $0xc] sm:$0xf]
    %v195 = vunpack.c.l.bf16 %v191
    %v196 = vunpack.c.l.bf16 %v192
    %v197 = vunpack.c.l.bf16 %v193
    %v198 = vunpack.c.l.bf16 %v194
    %v199 = vadd.f32 %v187, %v195
    %v200 = vadd.f32 %v188, %v196
    %v201 = vadd.f32 %v189, %v197
    %v202 = vadd.f32 %v190, %v198
    %v203 = vld [vmem:[%s4] sm:$0x1]
    %v204 = vld [vmem:[%s5] sm:$0x1]
    %205 = vadd.xlane.f32.xlu0 %v199
    %v206 = vpop.xlane.xlu0 %205
    %207 = vadd.xlane.f32.xlu0 %v200
    %v208 = vpop.xlane.xlu0 %207
    %209 = vadd.xlane.f32.xlu0 %v201
    %v210 = vpop.xlane.xlu0 %209
    %211 = vadd.xlane.f32.xlu0 %v202
    %v212 = vpop.xlane.xlu0 %211
    %v213 = vrcp.pop 128.0
    %v214 = vmul.f32 %v206, %v213
    %v215 = vmul.f32 %v208, %v213
    %v216 = vmul.f32 %v210, %v213
    %v217 = vmul.f32 %v212, %v213
    %v218 = vsub.f32 %v199, %v214
    %v219 = vsub.f32 %v200, %v215
    %v220 = vsub.f32 %v201, %v216
    %v221 = vsub.f32 %v202, %v217
    %v222 = vmul.f32 %v218, %v218
    %v223 = vmul.f32 %v219, %v219
    %v224 = vmul.f32 %v220, %v220
    %v225 = vmul.f32 %v221, %v221
    %226 = vadd.xlane.f32.xlu0 %v222
    %v227 = vpop.xlane.xlu0 %226
    %228 = vadd.xlane.f32.xlu0 %v223
    %v229 = vpop.xlane.xlu0 %228
    %230 = vadd.xlane.f32.xlu0 %v224
    %v231 = vpop.xlane.xlu0 %230
    %232 = vadd.xlane.f32.xlu0 %v225
    %v233 = vpop.xlane.xlu0 %232
    %v234 = vmul.f32 %v227, %v213
    %v235 = vmul.f32 %v229, %v213
    %v236 = vmul.f32 %v231, %v213
    %v237 = vmul.f32 %v233, %v213
    %v238 = vadd.f32 %v234, 1e-05
    %v239 = vadd.f32 %v235, 1e-05
    %v240 = vadd.f32 %v236, 1e-05
    %v241 = vadd.f32 %v237, 1e-05
    %v242 = vrsqrt.pop %v238
    %v243 = vrsqrt.pop %v239
    %v244 = vrsqrt.pop %v240
    %v245 = vrsqrt.pop %v241
    %v246 = vmul.f32 %v218, %v242
    %v247 = vmul.f32 %v219, %v243
    %v248 = vmul.f32 %v220, %v244
    %v249 = vmul.f32 %v221, %v245
    %v251 = vlaneseq
    %v252 = vshrl.u32 %v251, 7
    %v253 = vsub.s32 0, %v252
    %v254 = vrot.slane %v203, %v253
    %v256 = vmul.f32 %v246, %v254
    %v257 = vmul.f32 %v247, %v254
    %v258 = vmul.f32 %v248, %v254
    %v259 = vmul.f32 %v249, %v254
    %v261 = vlaneseq
    %v262 = vshrl.u32 %v261, 7
    %v263 = vsub.s32 0, %v262
    %v264 = vrot.slane %v204, %v263
    %v266 = vadd.f32 %v256, %v264
    %v267 = vadd.f32 %v257, %v264
    %v268 = vadd.f32 %v258, %v264
    %v269 = vadd.f32 %v259, %v264
    %v270 = vpack.c.bf16 %v267, %v266
    %v271 = vpack.c.bf16 %v269, %v268
    %v274 = vunpack.c.l.b16 %v270
    %v275 = vunpack.c.h.b16 %v270
    %v276 = vunpack.c.l.b16 %v271
    %v277 = vunpack.c.h.b16 %v271
    %v278 = vpack.c.b16 %v274, %v274
    %v279 = vpack.c.b16 %v275, %v275
    %v280 = vpack.c.b16 %v276, %v276
    %v281 = vpack.c.b16 %v277, %v277
    %286 = vst [vmem:[%s6] sm:$0xf] %v278
    %287 = vst [vmem:[%s6 + $0x4] sm:$0xf] %v279
    %288 = vst [vmem:[%s6 + $0x8] sm:$0xf] %v280
    %289 = vst [vmem:[%s6 + $0xc] sm:$0xf] %v281
  $region33: #{transformer_forward.38} parent=0 // pred_fallthru
    _
  // Predicated region
  $region34: #{transformer_forward.38} parent=0 // pred_check
    _
  $region35: #{transformer_forward.38} parent=0 // pred_check_branch
    %291 = sbr.rel (0) target = $region37
  $region36: #{transformer_forward.38} parent=0 // pred_region
    _
  $region37: #{transformer_forward.38} parent=0 // pred_fallthru
    _
  // Predicated region
  $region38: #{transformer_forward.38} parent=0 // pred_check
    _
  $region39: #{transformer_forward.38} parent=0 // pred_check_branch
    %293 = sbr.rel (0) target = $region41
  $region40: #{transformer_forward.38} parent=0 // pred_region
    _
  $region41: #{transformer_forward.38} parent=0 // pred_fallthru
    _

// kernel: transformer_forward.36
$region0: #{transformer_forward.36}
  #allocation0 [shape = 'u32[]', space=smem, size = 0x4, offset = 0x4, fixed_abs, tag = 'smem constant byte address 0x4 - core index']
  #allocation1 [shape = 'u32[144,128]{1,0:T(1,128)}', space=vmem, size = 0x12000, scoped, tag = 'internal scratch']
  #allocation2 [shape = 'f32[32,384]{1,0:T(8,128)}', space=vmem, size = 0xc000, scoped, tag = 'scratch operand']
  %s0 = inlined_call_operand.vmem [shape: bf16[32,128], index: 0, kind: input, shape index: {}]
  %s1 = inlined_call_operand.vmem [shape: bf16[128,384], index: 1, kind: input, shape index: {}]
  %s2 = inlined_call_operand.vmem [shape: f32[1,384], index: 2, kind: input, shape index: {}]
  %s3 = inlined_call_operand.vmem [shape: bf16[32,384], index: 3, kind: output, shape index: {}]
  %s4 = sld [smem:[#allocation0]]
  $region30: #{transformer_forward.36} parent=0
    _
  %s6 = ssub.s32 1, %s4
  %s7 = scalar_select 0, %s6, %s4
  // Predicated region
  $region2: #{transformer_forward.36} parent=0 // pred_check
    _
  $region3: #{transformer_forward.36} parent=0 // pred_check_branch
    %9 = sbr.rel (0) target = $region5
  $region4: #{transformer_forward.36} parent=0 // pred_region
    _
  $region5: #{transformer_forward.36} parent=0 // pred_fallthru
    _
  // Predicated region
  $region6: #{transformer_forward.36} parent=0 // pred_check
    _
  $region7: #{transformer_forward.36} parent=0 // pred_check_branch
    %11 = sbr.rel (0) target = $region9
  $region8: #{transformer_forward.36} parent=0 // pred_region
    _
  $region9: #{transformer_forward.36} parent=0 // pred_fallthru
    _
  // Predicated region
  $region10: #{transformer_forward.36} parent=0 // pred_check
    _
  $region11: #{transformer_forward.36} parent=0 // pred_check_branch
    %13 = sbr.rel (0) target = $region13
  $region12: #{transformer_forward.36} parent=0 // pred_region
    _
  $region13: #{transformer_forward.36} parent=0 // pred_fallthru
    _
  %p15 = scmp.eq.s32.totalorder 0, 0
  // Predicated region
  $region14: #{transformer_forward.36} parent=0 // pred_check
    %p16 = pneg %p15
  $region15: #{transformer_forward.36} parent=0 // pred_check_branch
    %18 = sbr.rel (%p16) target = $region17
  $region16: #{transformer_forward.36} parent=0 // pred_region
    %19 = vst [vmem:[#allocation2] sm:$0xff] 0.0
    %20 = vst [vmem:[#allocation2 + $0x8] sm:$0xff] 0.0
    %21 = vst [vmem:[#allocation2 + $0x10] sm:$0xff] 0.0
    %22 = vst [vmem:[#allocation2 + $0x18] sm:$0xff] 0.0
    %23 = vst [vmem:[#allocation2 + $0x20] sm:$0xff] 0.0
    %24 = vst [vmem:[#allocation2 + $0x28] sm:$0xff] 0.0
    %25 = vst [vmem:[#allocation2 + $0x30] sm:$0xff] 0.0
    %26 = vst [vmem:[#allocation2 + $0x38] sm:$0xff] 0.0
    %27 = vst [vmem:[#allocation2 + $0x40] sm:$0xff] 0.0
    %28 = vst [vmem:[#allocation2 + $0x48] sm:$0xff] 0.0
    %29 = vst [vmem:[#allocation2 + $0x50] sm:$0xff] 0.0
    %30 = vst [vmem:[#allocation2 + $0x58] sm:$0xff] 0.0
  $region17: #{transformer_forward.36} parent=0 // pred_fallthru
    _
  %v31 = vld [vmem:[#allocation2] sm:$0xff]
  %v32 = vld [vmem:[#allocation2 + $0x8] sm:$0xff]
  %v33 = vld [vmem:[#allocation2 + $0x10] sm:$0xff]
  %v34 = vld [vmem:[#allocation2 + $0x18] sm:$0xff]
  %v35 = vld [vmem:[#allocation2 + $0x20] sm:$0xff]
  %v36 = vld [vmem:[#allocation2 + $0x28] sm:$0xff]
  %v37 = vld [vmem:[#allocation2 + $0x30] sm:$0xff]
  %v38 = vld [vmem:[#allocation2 + $0x38] sm:$0xff]
  %v39 = vld [vmem:[#allocation2 + $0x40] sm:$0xff]
  %v40 = vld [vmem:[#allocation2 + $0x48] sm:$0xff]
  %v41 = vld [vmem:[#allocation2 + $0x50] sm:$0xff]
  %v42 = vld [vmem:[#allocation2 + $0x58] sm:$0xff]
  %v43 = vld [vmem:[%s0] sm:$0xf]
  %v44 = vld [vmem:[%s0 + $0x4] sm:$0xf]
  %v45 = vld [vmem:[%s0 + $0x8] sm:$0xf]
  %v46 = vld [vmem:[%s0 + $0xc] sm:$0xf]
  %v47 = vld [vmem:[%s1] sm:$0xff]
  %v48 = vld [vmem:[%s1 + $0x8] sm:$0xf]
  %v49 = vld [vmem:[%s1 + $0xc] sm:$0xff]
  %v50 = vld [vmem:[%s1 + $0x14] sm:$0xf]
  %v51 = vld [vmem:[%s1 + $0x18] sm:$0xff]
  %v52 = vld [vmem:[%s1 + $0x20] sm:$0xf]
  %v53 = vld [vmem:[%s1 + $0x24] sm:$0xff]
  %v54 = vld [vmem:[%s1 + $0x2c] sm:$0xf]
  %v55 = vld [vmem:[%s1 + $0x30] sm:$0xff]
  %v56 = vld [vmem:[%s1 + $0x38] sm:$0xf]
  %v57 = vld [vmem:[%s1 + $0x3c] sm:$0xff]
  %v58 = vld [vmem:[%s1 + $0x44] sm:$0xf]
  %v59 = vld [vmem:[%s1 + $0x48] sm:$0xff]
  %v60 = vld [vmem:[%s1 + $0x50] sm:$0xf]
  %v61 = vld [vmem:[%s1 + $0x54] sm:$0xff]
  %v62 = vld [vmem:[%s1 + $0x5c] sm:$0xf]
  %v63 = vld [vmem:[%s1 + $0x60] sm:$0xff]
  %v64 = vld [vmem:[%s1 + $0x68] sm:$0xf]
  %v65 = vld [vmem:[%s1 + $0x6c] sm:$0xff]
  %v66 = vld [vmem:[%s1 + $0x74] sm:$0xf]
  %v67 = vld [vmem:[%s1 + $0x78] sm:$0xff]
  %v68 = vld [vmem:[%s1 + $0x80] sm:$0xf]
  %v69 = vld [vmem:[%s1 + $0x84] sm:$0xff]
  %v70 = vld [vmem:[%s1 + $0x8c] sm:$0xf]
  %v71 = vld [vmem:[%s1 + $0x90] sm:$0xff]
  %v72 = vld [vmem:[%s1 + $0x98] sm:$0xf]
  %v73 = vld [vmem:[%s1 + $0x9c] sm:$0xff]
  %v74 = vld [vmem:[%s1 + $0xa4] sm:$0xf]
  %v75 = vld [vmem:[%s1 + $0xa8] sm:$0xff]
  %v76 = vld [vmem:[%s1 + $0xb0] sm:$0xf]
  %v77 = vld [vmem:[%s1 + $0xb4] sm:$0xff]
  %v78 = vld [vmem:[%s1 + $0xbc] sm:$0xf]
  %v83 = vunpack.c.l.b16 %v43
  %v84 = vunpack.c.l.b16 %v44
  %v85 = vunpack.c.l.b16 %v45
  %v86 = vunpack.c.l.b16 %v46
  %v87 = vpack.c.b16 %v84, %v83
  %v88 = vpack.c.b16 %v86, %v85
  %v123 = vunpack.c.l.b16 %v47
  %v124 = vunpack.c.h.b16 %v47
  %v125 = vunpack.c.l.b16 %v48
  %v126 = vunpack.c.l.b16 %v49
  %v127 = vunpack.c.h.b16 %v49
  %v128 = vunpack.c.l.b16 %v50
  %v129 = vunpack.c.l.b16 %v51
  %v130 = vunpack.c.h.b16 %v51
  %v131 = vunpack.c.l.b16 %v52
  %v132 = vunpack.c.l.b16 %v53
  %v133 = vunpack.c.h.b16 %v53
  %v134 = vunpack.c.l.b16 %v54
  %v135 = vunpack.c.l.b16 %v55
  %v136 = vunpack.c.h.b16 %v55
  %v137 = vunpack.c.l.b16 %v56
  %v138 = vunpack.c.l.b16 %v57
  %v139 = vunpack.c.h.b16 %v57
  %v140 = vunpack.c.l.b16 %v58
  %v141 = vunpack.c.l.b16 %v59
  %v142 = vunpack.c.h.b16 %v59
  %v143 = vunpack.c.l.b16 %v60
  %v144 = vunpack.c.l.b16 %v61
  %v145 = vunpack.c.h.b16 %v61
  %v146 = vunpack.c.l.b16 %v62
  %v147 = vunpack.c.l.b16 %v63
  %v148 = vunpack.c.h.b16 %v63
  %v149 = vunpack.c.l.b16 %v64
  %v150 = vunpack.c.l.b16 %v65
  %v151 = vunpack.c.h.b16 %v65
  %v152 = vunpack.c.l.b16 %v66
  %v153 = vunpack.c.l.b16 %v67
  %v154 = vunpack.c.h.b16 %v67
  %v155 = vunpack.c.l.b16 %v68
  %v156 = vunpack.c.l.b16 %v69
  %v157 = vunpack.c.h.b16 %v69
  %v158 = vunpack.c.l.b16 %v70
  %v159 = vunpack.c.l.b16 %v71
  %v160 = vunpack.c.h.b16 %v71
  %v161 = vunpack.c.l.b16 %v72
  %v162 = vunpack.c.l.b16 %v73
  %v163 = vunpack.c.h.b16 %v73
  %v164 = vunpack.c.l.b16 %v74
  %v165 = vunpack.c.l.b16 %v75
  %v166 = vunpack.c.h.b16 %v75
  %v167 = vunpack.c.l.b16 %v76
  %v168 = vunpack.c.l.b16 %v77
  %v169 = vunpack.c.h.b16 %v77
  %v170 = vunpack.c.l.b16 %v78
  %v171 = vpack.c.b16 %v126, %v123
  %v172 = vpack.c.b16 %v127, %v124
  %v173 = vpack.c.b16 %v128, %v125
  %v174 = vpack.c.b16 %v132, %v129
  %v175 = vpack.c.b16 %v133, %v130
  %v176 = vpack.c.b16 %v134, %v131
  %v177 = vpack.c.b16 %v138, %v135
  %v178 = vpack.c.b16 %v139, %v136
  %v179 = vpack.c.b16 %v140, %v137
  %v180 = vpack.c.b16 %v144, %v141
  %v181 = vpack.c.b16 %v145, %v142
  %v182 = vpack.c.b16 %v146, %v143
  %v183 = vpack.c.b16 %v150, %v147
  %v184 = vpack.c.b16 %v151, %v148
  %v185 = vpack.c.b16 %v152, %v149
  %v186 = vpack.c.b16 %v156, %v153
  %v187 = vpack.c.b16 %v157, %v154
  %v188 = vpack.c.b16 %v158, %v155
  %v189 = vpack.c.b16 %v162, %v159
  %v190 = vpack.c.b16 %v163, %v160
  %v191 = vpack.c.b16 %v164, %v161
  %v192 = vpack.c.b16 %v168, %v165
  %v193 = vpack.c.b16 %v169, %v166
  %v194 = vpack.c.b16 %v170, %v167
  %219 = vmatprep.subr.bf16.mxu0 %v193
  %220 = vmatpush1.bf16.msra.mxu0 %v192
  %221 = vmatprep.subr.bf16.mxu0 %v190
  %222 = vmatpush1.bf16.msra.mxu0 %v189
  %223 = vmatprep.subr.bf16.mxu0 %v187
  %224 = vmatpush1.bf16.msra.mxu0 %v186
  %225 = vmatprep.subr.bf16.mxu0 %v184
  %226 = vmatpush1.bf16.msra.mxu0 %v183
  %227 = vmatprep.subr.bf16.mxu0 %v181
  %228 = vmatpush1.bf16.msra.mxu0 %v180
  %229 = vmatprep.subr.bf16.mxu0 %v178
  %230 = vmatpush1.bf16.msra.mxu0 %v177
  %231 = vmatprep.subr.bf16.mxu0 %v175
  %232 = vmatpush1.bf16.msra.mxu0 %v174
  %233 = vmatprep.subr.bf16.mxu0 %v172
  %234 = vmatpush1.bf16.msra.mxu0 %v171
  %235 = vmatprep.subr.bf16.mxu0 0
  %236 = vmatpush2.bf16.msra.mxu0 0
  %237 = vmatprep.subr.bf16.mxu0 0
  %238 = vmatpush2.bf16.msra.mxu0 0
  %239 = vmatprep.subr.bf16.mxu0 0
  %240 = vmatpush2.bf16.msra.mxu0 0
  %241 = vmatprep.subr.bf16.mxu0 0
  %242 = vmatpush2.bf16.msra.mxu0 0
  %243 = vmatprep.subr.bf16.mxu0 0
  %244 = vmatpush2.bf16.msra.mxu0 0
  %245 = vmatprep.subr.bf16.mxu0 0
  %246 = vmatpush2.bf16.msra.mxu0 0
  %247 = vmatprep.subr.bf16.mxu0 0
  %248 = vmatpush2.bf16.msra.mxu0 0
  %249 = vmatprep.subr.bf16.mxu0 0
  %250 = vmatpush2.bf16.msra.mxu0 0
  %251 = vmatprep.mubr.bf16.mxu0 0
  %252 = vmatmul.mubr.bf16.gmra.mxu0 %v87
  %v253 = vpop.f32.mrf.mxu0
  %v254 = vadd.f32 0.0, %v253
  %v255 = vpop.f32.mrf.mxu0
  %v256 = vadd.f32 0.0, %v255
  %v257 = vpop.f32.mrf.mxu0
  %v258 = vadd.f32 0.0, %v257
  %v259 = vpop.f32.mrf.mxu0
  %v260 = vadd.f32 0.0, %v259
  %261 = vmatprep.mubr.bf16.mxu0 0
  %262 = vmatmul.mubr.bf16.gmra.mxu0 %v88
  %v263 = vpop.f32.mrf.mxu0
  %v264 = vadd.f32 0.0, %v263
  %v265 = vpop.f32.mrf.mxu0
  %v266 = vadd.f32 0.0, %v265
  %v267 = vpop.f32.mrf.mxu0
  %v268 = vadd.f32 0.0, %v267
  %v269 = vpop.f32.mrf.mxu0
  %v270 = vadd.f32 0.0, %v269
  %271 = vdwg.mxu0
  %272 = vmatprep.subr.bf16.mxu0 0
  %273 = vmatpush1.bf16.msra.mxu0 %v194
  %274 = vmatprep.subr.bf16.mxu0 0
  %275 = vmatpush1.bf16.msra.mxu0 %v191
  %276 = vmatprep.subr.bf16.mxu0 0
  %277 = vmatpush1.bf16.msra.mxu0 %v188
  %278 = vmatprep.subr.bf16.mxu0 0
  %279 = vmatpush1.bf16.msra.mxu0 %v185
  %280 = vmatprep.subr.bf16.mxu0 0
  %281 = vmatpush1.bf16.msra.mxu0 %v182
  %282 = vmatprep.subr.bf16.mxu0 0
  %283 = vmatpush1.bf16.msra.mxu0 %v179
  %284 = vmatprep.subr.bf16.mxu0 0
  %285 = vmatpush1.bf16.msra.mxu0 %v176
  %286 = vmatprep.subr.bf16.mxu0 0
  %287 = vmatpush1.bf16.msra.mxu0 %v173
  %288 = vmatprep.subr.bf16.mxu0 0
  %289 = vmatpush2.bf16.msra.mxu0 0
  %290 = vmatprep.subr.bf16.mxu0 0
  %291 = vmatpush2.bf16.msra.mxu0 0
  %292 = vmatprep.subr.bf16.mxu0 0
  %293 = vmatpush2.bf16.msra.mxu0 0
  %294 = vmatprep.subr.bf16.mxu0 0
  %295 = vmatpush2.bf16.msra.mxu0 0
  %296 = vmatprep.subr.bf16.mxu0 0
  %297 = vmatpush2.bf16.msra.mxu0 0
  %298 = vmatprep.subr.bf16.mxu0 0
  %299 = vmatpush2.bf16.msra.mxu0 0
  %300 = vmatprep.subr.bf16.mxu0 0
  %301 = vmatpush2.bf16.msra.mxu0 0
  %302 = vmatprep.subr.bf16.mxu0 0
  %303 = vmatpush2.bf16.msra.mxu0 0
  %304 = vmatprep.mubr.bf16.mxu0 0
  %305 = vmatmul.mubr.bf16.gmra.mxu0 %v87
  %v306 = vpop.f32.mrf.mxu0
  %v307 = vadd.f32 0.0, %v306
  %v308 = vpop.f32.mrf.mxu0
  %v309 = vpop.f32.mrf.mxu0
  %v310 = vadd.f32 0.0, %v309
  %v311 = vpop.f32.mrf.mxu0
  %312 = vmatprep.mubr.bf16.mxu0 0
  %313 = vmatmul.mubr.bf16.gmra.mxu0 %v88
  %v314 = vpop.f32.mrf.mxu0
  %v315 = vadd.f32 0.0, %v314
  %v316 = vpop.f32.mrf.mxu0
  %v317 = vpop.f32.mrf.mxu0
  %v318 = vadd.f32 0.0, %v317
  %v319 = vpop.f32.mrf.mxu0
  %320 = vdwg.mxu0
  %v321 = vadd.f32 %v31, %v254
  %v322 = vadd.f32 %v32, %v256
  %v323 = vadd.f32 %v33, %v307
  %v324 = vadd.f32 %v34, %v258
  %v325 = vadd.f32 %v35, %v260
  %v326 = vadd.f32 %v36, %v310
  %v327 = vadd.f32 %v37, %v264
  %v328 = vadd.f32 %v38, %v266
  %v329 = vadd.f32 %v39, %v315
  %v330 = vadd.f32 %v40, %v268
  %v331 = vadd.f32 %v41, %v270
  %v332 = vadd.f32 %v42, %v318
  %333 = vst [vmem:[#allocation2] sm:$0xff] %v321
  %334 = vst [vmem:[#allocation2 + $0x8] sm:$0xff] %v322
  %335 = vst [vmem:[#allocation2 + $0x10] sm:$0xff] %v323
  %336 = vst [vmem:[#allocation2 + $0x18] sm:$0xff] %v324
  %337 = vst [vmem:[#allocation2 + $0x20] sm:$0xff] %v325
  %338 = vst [vmem:[#allocation2 + $0x28] sm:$0xff] %v326
  %339 = vst [vmem:[#allocation2 + $0x30] sm:$0xff] %v327
  %340 = vst [vmem:[#allocation2 + $0x38] sm:$0xff] %v328
  %341 = vst [vmem:[#allocation2 + $0x40] sm:$0xff] %v329
  %342 = vst [vmem:[#allocation2 + $0x48] sm:$0xff] %v330
  %343 = vst [vmem:[#allocation2 + $0x50] sm:$0xff] %v331
  %344 = vst [vmem:[#allocation2 + $0x58] sm:$0xff] %v332
  // Predicated region
  $region18: #{transformer_forward.36} parent=0 // pred_check
    %p345 = pneg %p15
  $region19: #{transformer_forward.36} parent=0 // pred_check_branch
    %347 = sbr.rel (%p345) target = $region21
  $region20: #{transformer_forward.36} parent=0 // pred_region
    %v348 = vld [vmem:[#allocation2] sm:$0xff]
    %v349 = vld [vmem:[#allocation2 + $0x8] sm:$0xff]
    %v350 = vld [vmem:[#allocation2 + $0x10] sm:$0xff]
    %v351 = vld [vmem:[#allocation2 + $0x18] sm:$0xff]
    %v352 = vld [vmem:[#allocation2 + $0x20] sm:$0xff]
    %v353 = vld [vmem:[#allocation2 + $0x28] sm:$0xff]
    %v354 = vld [vmem:[#allocation2 + $0x30] sm:$0xff]
    %v355 = vld [vmem:[#allocation2 + $0x38] sm:$0xff]
    %v356 = vld [vmem:[#allocation2 + $0x40] sm:$0xff]
    %v357 = vld [vmem:[#allocation2 + $0x48] sm:$0xff]
    %v358 = vld [vmem:[#allocation2 + $0x50] sm:$0xff]
    %v359 = vld [vmem:[#allocation2 + $0x58] sm:$0xff]
    %v360 = vld [vmem:[%s2] sm:$0x7]
    %v362 = vlaneseq
    %v363 = vshrl.u32 %v362, 7
    %v364 = vsub.s32 0, %v363
    %v365 = vrot.slane %v360, %v364
    %v366 = vlaneseq
    %v367 = vshrl.u32 %v366, 7
    %v368 = vsub.s32 1, %v367
    %v369 = vrot.slane %v360, %v368
    %v370 = vlaneseq
    %v371 = vshrl.u32 %v370, 7
    %v372 = vsub.s32 2, %v371
    %v373 = vrot.slane %v360, %v372
    %v377 = vadd.f32 %v348, %v365
    %v378 = vadd.f32 %v349, %v369
    %v379 = vadd.f32 %v350, %v373
    %v380 = vadd.f32 %v351, %v365
    %v381 = vadd.f32 %v352, %v369
    %v382 = vadd.f32 %v353, %v373
    %v383 = vadd.f32 %v354, %v365
    %v384 = vadd.f32 %v355, %v369
    %v385 = vadd.f32 %v356, %v373
    %v386 = vadd.f32 %v357, %v365
    %v387 = vadd.f32 %v358, %v369
    %v388 = vadd.f32 %v359, %v373
    %v389 = vpack.c.bf16 %v380, %v377
    %v390 = vpack.c.bf16 %v381, %v378
    %v391 = vpack.c.bf16 %v382, %v379
    %v392 = vpack.c.bf16 %v386, %v383
    %v393 = vpack.c.bf16 %v387, %v384
    %v394 = vpack.c.bf16 %v388, %v385
    %v401 = vunpack.c.l.b16 %v389
    %v402 = vunpack.c.l.b16 %v390
    %v403 = vunpack.c.l.b16 %v391
    %v404 = vunpack.c.h.b16 %v389
    %v405 = vunpack.c.h.b16 %v390
    %v406 = vunpack.c.h.b16 %v391
    %v407 = vunpack.c.l.b16 %v392
    %v408 = vunpack.c.l.b16 %v393
    %v409 = vunpack.c.l.b16 %v394
    %v410 = vunpack.c.h.b16 %v392
    %v411 = vunpack.c.h.b16 %v393
    %v412 = vunpack.c.h.b16 %v394
    %v413 = vpack.c.b16 %v402, %v401
    %v414 = vpack.c.b16 %v403, %v403
    %v415 = vpack.c.b16 %v405, %v404
    %v416 = vpack.c.b16 %v406, %v406
    %v417 = vpack.c.b16 %v408, %v407
    %v418 = vpack.c.b16 %v409, %v409
    %v419 = vpack.c.b16 %v411, %v410
    %v420 = vpack.c.b16 %v412, %v412
    %429 = vst [vmem:[%s3] sm:$0xff] %v413
    %430 = vst [vmem:[%s3 + $0x8] sm:$0xf] %v414
    %431 = vst [vmem:[%s3 + $0xc] sm:$0xff] %v415
    %432 = vst [vmem:[%s3 + $0x14] sm:$0xf] %v416
    %433 = vst [vmem:[%s3 + $0x18] sm:$0xff] %v417
    %434 = vst [vmem:[%s3 + $0x20] sm:$0xf] %v418
    %435 = vst [vmem:[%s3 + $0x24] sm:$0xff] %v419
    %436 = vst [vmem:[%s3 + $0x2c] sm:$0xf] %v420
  $region21: #{transformer_forward.36} parent=0 // pred_fallthru
    _
  // Predicated region
  $region22: #{transformer_forward.36} parent=0 // pred_check
    _
  $region23: #{transformer_forward.36} parent=0 // pred_check_branch
    %438 = sbr.rel (0) target = $region25
  $region24: #{transformer_forward.36} parent=0 // pred_region
    _
  $region25: #{transformer_forward.36} parent=0 // pred_fallthru
    _
  // Predicated region
  $region26: #{transformer_forward.36} parent=0 // pred_check
    _
  $region27: #{transformer_forward.36} parent=0 // pred_check_branch
    %440 = sbr.rel (0) target = $region29
  $region28: #{transformer_forward.36} parent=0 // pred_region
    _
  $region29: #{transformer_forward.36} parent=0 // pred_fallthru
    _

// kernel: transformer_forward.37
$region0: #{transformer_forward.37}
  #allocation0 [shape = 'u32[]', space=smem, size = 0x4, offset = 0x4, fixed_abs, tag = 'smem constant byte address 0x4 - core index']
  #allocation1 [shape = 'u32[144,128]{1,0:T(1,128)}', space=vmem, size = 0x12000, scoped, tag = 'internal scratch']
  #allocation2 [shape = 'f32[4,16,1]{2,1,0:T(8,128)}', space=vmem, size = 0x8000, scoped, tag = 'scratch operand']
  #allocation3 [shape = 'f32[4,16,1]{2,1,0:T(8,128)}', space=vmem, size = 0x8000, scoped, tag = 'scratch operand']
  #allocation4 [shape = 'f32[4,16,32]{2,1,0:T(8,128)}', space=vmem, size = 0x8000, scoped, tag = 'scratch operand']
  %s0 = inlined_call_operand.vmem [shape: bf16[2,16,384], index: 0, kind: input, shape index: {}, may-alias: {0,1,2}]
  %s1 = inlined_call_operand.vmem [shape: bf16[2,16,384], index: 1, kind: input, shape index: {}, may-alias: {0,1,2}]
  %s2 = inlined_call_operand.vmem [shape: bf16[2,16,384], index: 2, kind: input, shape index: {}, may-alias: {0,1,2}]
  %s3 = inlined_call_operand.vmem [shape: bf16[2,16,128], index: 3, kind: output, shape index: {}]
  %s4 = sld [smem:[#allocation0]]
  $region176: #{transformer_forward.37} parent=0
    _
  %s6 = ssub.s32 1, %s4
  %s7 = scalar_select 0, %s6, %s4
  $region1: #{transformer_forward.37} parent=0
    #allocation5 [shape = 'u8[8192]{0}', space=vmem, size = 0x2000, scoped, tag = 'input window, operand 0']
    #allocation6 [shape = 'u8[8192]{0}', space=vmem, size = 0x2000, scoped, tag = 'input window, operand 1']
    #allocation7 [shape = 'u8[8192]{0}', space=vmem, size = 0x2000, scoped, tag = 'input window, operand 2']
    loop: start=0, step=1, limit=4
    $region2: #{transformer_forward.37} parent=1 // loop_pre_header
      _
    $region3: #{transformer_forward.37} parent=1 // loop_header
      %s9 = sphi 0, %s13
      %p10 = scmp.ge.s32.totalorder %s9, 4
      %s16 = sphi 0, %s35
      %s17 = sphi 0, %s31
      %s18 = sphi 0, %s27
      %s19 = sphi 0, %s16
      %s20 = sphi 0, %s17
      %s21 = sphi 0, %s18
      %s22 = sphi 0, %s19
      %s23 = sphi 0, %s20
      %s24 = sphi 0, %s21
      %s40 = sphi 0, %s42
      %s43 = sphi 0, %s40
      %s44 = sphi 0, %s43
      %s60 = sphi 0, %s44
      %s68 = sphi 0, %s70
      %s71 = sphi 0, %s68
      %s72 = sphi 0, %s71
      %s88 = sphi 0, %s72
      %s96 = sphi 0, %s98
      %s99 = sphi 0, %s96
      %s100 = sphi 0, %s99
      %s116 = sphi 0, %s100
      %s124 = sphi 0, %s126
      %s127 = sphi 0, %s124
      %s128 = sphi 0, %s127
      %s144 = sphi 0, %s128
    $region4: #{transformer_forward.37} parent=1 // loop_header_branch
      %12 = sbr.rel (%p10) target = $region8
    $region5: #{transformer_forward.37} parent=1 // loop_body
      %s14 = ssub.s32 %s9, 1
      %s15 = ssub.s32 %s9, 2
      %s25 = sadd.s32 1, %s18
      %p26 = scmp.ge.s32.totalorder %s25, 1
      %s27 = scalar_select %p26, 0, %s25
      %s28 = sadd.s32 1, %s17
      %s29 = scalar_select %p26, %s28, %s17
      %p30 = scmp.ge.s32.totalorder %s29, 1
      %s31 = scalar_select %p30, 0, %s29
      %s32 = sadd.s32 1, %s16
      %s33 = scalar_select %p30, %s32, %s16
      %p34 = scmp.ge.s32.totalorder %s33, 2
      %s35 = scalar_select %p34, 0, %s33
      %s36 = ssub.s32 %s16, %s35
      %s37 = ssub.s32 %s17, %s31
      %s38 = sor.u32 %s36, %s37
      %p39 = scmp.eq.s32.totalorder %s38, 0
      %s41 = sadd.s32 %s40, 1
      %s42 = scalar_select %p39, %s40, %s41
      %p45 = pneg %p39
      %p46 = scmp.eq.s32.totalorder %s9, 1
      %p47 = por %p45, %p46
      %p48 = scmp.ne.s32.totalorder %s40, %s43
      %p49 = scmp.eq.s32.totalorder %s9, 0
      %p50 = por %p48, %p49
      %p51 = scmp.ne.s32.totalorder %s40, %s43
      %p52 = scmp.eq.s32.totalorder %s14, 1
      %p53 = por %p51, %p52
      %p54 = scmp.ne.s32.totalorder %s43, %s44
      %p55 = scmp.eq.s32.totalorder %s14, 0
      %p56 = por %p54, %p55
      %p57 = scmp.ne.s32.totalorder %s43, %s44
      %p58 = scmp.eq.s32.totalorder %s15, 1
      %p59 = por %p57, %p58
      %p61 = scmp.ne.s32.totalorder %s44, %s60
      %p62 = scmp.eq.s32.totalorder %s15, 0
      %p63 = por %p61, %p62
      %s64 = ssub.s32 %s16, %s35
      %s65 = ssub.s32 %s18, %s27
      %s66 = sor.u32 %s64, %s65
      %p67 = scmp.eq.s32.totalorder %s66, 0
      %s69 = sadd.s32 %s68, 1
      %s70 = scalar_select %p67, %s68, %s69
      %p73 = pneg %p67
      %p74 = scmp.eq.s32.totalorder %s9, 1
      %p75 = por %p73, %p74
      %p76 = scmp.ne.s32.totalorder %s68, %s71
      %p77 = scmp.eq.s32.totalorder %s9, 0
      %p78 = por %p76, %p77
      %p79 = scmp.ne.s32.totalorder %s68, %s71
      %p80 = scmp.eq.s32.totalorder %s14, 1
      %p81 = por %p79, %p80
      %p82 = scmp.ne.s32.totalorder %s71, %s72
      %p83 = scmp.eq.s32.totalorder %s14, 0
      %p84 = por %p82, %p83
      %p85 = scmp.ne.s32.totalorder %s71, %s72
      %p86 = scmp.eq.s32.totalorder %s15, 1
      %p87 = por %p85, %p86
      %p89 = scmp.ne.s32.totalorder %s72, %s88
      %p90 = scmp.eq.s32.totalorder %s15, 0
      %p91 = por %p89, %p90
      %s92 = ssub.s32 %s16, %s35
      %s93 = ssub.s32 %s18, %s27
      %s94 = sor.u32 %s92, %s93
      %p95 = scmp.eq.s32.totalorder %s94, 0
      %s97 = sadd.s32 %s96, 1
      %s98 = scalar_select %p95, %s96, %s97
      %p101 = pneg %p95
      %p102 = scmp.eq.s32.totalorder %s9, 1
      %p103 = por %p101, %p102
      %p104 = scmp.ne.s32.totalorder %s96, %s99
      %p105 = scmp.eq.s32.totalorder %s9, 0
      %p106 = por %p104, %p105
      %p107 = scmp.ne.s32.totalorder %s96, %s99
      %p108 = scmp.eq.s32.totalorder %s14, 1
      %p109 = por %p107, %p108
      %p110 = scmp.ne.s32.totalorder %s99, %s100
      %p111 = scmp.eq.s32.totalorder %s14, 0
      %p112 = por %p110, %p111
      %p113 = scmp.ne.s32.totalorder %s99, %s100
      %p114 = scmp.eq.s32.totalorder %s15, 1
      %p115 = por %p113, %p114
      %p117 = scmp.ne.s32.totalorder %s100, %s116
      %p118 = scmp.eq.s32.totalorder %s15, 0
      %p119 = por %p117, %p118
      %s120 = ssub.s32 %s16, %s35
      %s121 = ssub.s32 %s17, %s31
      %s122 = sor.u32 %s120, %s121
      %p123 = scmp.eq.s32.totalorder %s122, 0
      %s125 = sadd.s32 %s124, 1
      %s126 = scalar_select %p123, %s124, %s125
      %p129 = pneg %p123
      %p130 = scmp.eq.s32.totalorder %s9, 1
      %p131 = por %p129, %p130
      %p132 = scmp.ne.s32.totalorder %s124, %s127
      %p133 = scmp.eq.s32.totalorder %s9, 0
      %p134 = por %p132, %p133
      %p135 = scmp.ne.s32.totalorder %s124, %s127
      %p136 = scmp.eq.s32.totalorder %s14, 1
      %p137 = por %p135, %p136
      %p138 = scmp.ne.s32.totalorder %s127, %s128
      %p139 = scmp.eq.s32.totalorder %s14, 0
      %p140 = por %p138, %p139
      %p141 = scmp.ne.s32.totalorder %s127, %s128
      %p142 = scmp.eq.s32.totalorder %s15, 1
      %p143 = por %p141, %p142
      %p145 = scmp.ne.s32.totalorder %s128, %s144
      %p146 = scmp.eq.s32.totalorder %s15, 0
      %p147 = por %p145, %p146
      %p148 = scmp.le.s32.totalorder 1, %s9
      %p149 = scmp.lt.s32.totalorder %s9, 3
      %p150 = pnand %p148, %p149
      %p151 = pneg %p150
      // Predicated region
      $region9: #{transformer_forward.37} parent=5 // pred_check
        _
      $region10: #{transformer_forward.37} parent=5 // pred_check_branch
        %153 = sbr.rel (%p150) target = $region12
      $region11: #{transformer_forward.37} parent=5 // pred_region
        %s154 = ssub.s32 %s9, 1
      $region12: #{transformer_forward.37} parent=5 // pred_fallthru
        _
      %p155 = scmp.lt.s32.totalorder %s9, 2
      // Predicated region
      $region13: #{transformer_forward.37} parent=5 // pred_check
        %p156 = pneg %p155
      $region14: #{transformer_forward.37} parent=5 // pred_check_branch
        %158 = sbr.rel (%p156) target = $region16
      $region15: #{transformer_forward.37} parent=5 // pred_region
        // Predicated region
        $region17: #{transformer_forward.37} parent=15 // pred_check
          %p159 = pneg %p50
        $region18: #{transformer_forward.37} parent=15 // pred_check_branch
          %161 = sbr.rel (%p159) target = $region20
        $region19: #{transformer_forward.37} parent=15 // pred_region
          %s162 = sand.u32 %s40, 1
          %s163 = sand.u32 %s40, 1
          %s164 = smul.addr %s163, 8
          %s165 = scalar_lea.vmem [#allocation5], %s164
          %s166 = smul.u32 2, %s17
          %s167 = smul.addr %s166, 3
          %s168 = smul.addr %s16, 6
          %s169 = sadd.s32 %s167, %s168
          %s170 = smul.addr %s169, 4
          %s171 = scalar_lea.vmem %s0, %s170
          // Predicated region
          $region21: #{transformer_forward.37} parent=19 // pred_check
            _
          $region22: #{transformer_forward.37} parent=19 // pred_check_branch
            %173 = sbr.rel (0) target = $region24
          $region23: #{transformer_forward.37} parent=19 // pred_region
            // Predicated region
            $region25: #{transformer_forward.37} parent=23 // pred_check
              _
            $region26: #{transformer_forward.37} parent=23 // pred_check_branch
              %175 = sbr.rel target = $region28
            $region27: #{transformer_forward.37} parent=23 // pred_region
              // Predicated region
              $region40: #{transformer_forward.37} parent=27 // pred_check
                _
              $region41: #{transformer_forward.37} parent=27 // pred_check_branch
                %193 = sbr.rel (0) target = $region43
              $region42: #{transformer_forward.37} parent=27 // pred_region
                loop: start=0, step=1, limit=1
                $region44: #{transformer_forward.37} parent=42 // loop_pre_header
                  _
                $region45: #{transformer_forward.37} parent=42 // loop_header
                  %s195 = sphi 0, %s199
                  %p196 = scmp.ge.s32.totalorder %s195, 1
                  %s200 = sphi %s171, %s171
                  %s201 = sphi %s165, %s165
                $region46: #{transformer_forward.37} parent=42 // loop_header_branch
                  %198 = sbr.rel (%p196) target = $region50
                $region47: #{transformer_forward.37} parent=42 // loop_body
                  _
                $region48: #{transformer_forward.37} parent=42 // loop_footer
                  %s199 = sadd.s32 1, %s195
                $region49: #{transformer_forward.37} parent=42 // loop_footer_branch
                  %194 = sbr.rel target = $region45
                $region50: #{transformer_forward.37} parent=42 // loop_exit
                  _
                %s203 = ssub.s32 16, 1
                loop: start=0, step=1, limit=1
                $region51: #{transformer_forward.37} parent=42 // loop_pre_header
                  _
                $region52: #{transformer_forward.37} parent=42 // loop_header
                  %s205 = sphi 0, %s209
                  %p206 = scmp.ge.s32.totalorder %s205, 1
                  %s210 = sphi %s171, %s171
                  %s211 = sphi %s165, %s165
                $region53: #{transformer_forward.37} parent=42 // loop_header_branch
                  %208 = sbr.rel (%p206) target = $region57
                $region54: #{transformer_forward.37} parent=42 // loop_body
                  %v212 = vld [vmem:[%s210] sm:%s203]
                  %213 = vst [vmem:[%s211] sm:%s203] %v212
                  %v214 = vld [vmem:[%s210 + $0xc] sm:%s203]
                  %215 = vst [vmem:[%s211 + $0x4] sm:%s203] %v214
                $region55: #{transformer_forward.37} parent=42 // loop_footer
                  %s209 = sadd.s32 1, %s205
                $region56: #{transformer_forward.37} parent=42 // loop_footer_branch
                  %204 = sbr.rel target = $region52
                $region57: #{transformer_forward.37} parent=42 // loop_exit
                  _
              $region43: #{transformer_forward.37} parent=27 // pred_fallthru
                _
            $region28: #{transformer_forward.37} parent=23 // pred_fallthru
              _
            // Predicated region
            $region29: #{transformer_forward.37} parent=23 // pred_check
              _
            $region30: #{transformer_forward.37} parent=23 // pred_check_branch
              %177 = sbr.rel (0) target = $region32
            $region31: #{transformer_forward.37} parent=23 // pred_region
              %s179 = ssub.s32 16, 1
              loop: start=0, step=1, limit=1
              $region33: #{transformer_forward.37} parent=31 // loop_pre_header
                _
              $region34: #{transformer_forward.37} parent=31 // loop_header
                %s181 = sphi 0, %s185
                %p182 = scmp.ge.s32.totalorder %s181, 1
                %s186 = sphi %s171, %s171
                %s187 = sphi %s165, %s165
              $region35: #{transformer_forward.37} parent=31 // loop_header_branch
                %184 = sbr.rel (%p182) target = $region39
              $region36: #{transformer_forward.37} parent=31 // loop_body
                %v188 = vld [vmem:[%s186] sm:%s179]
                %189 = vst [vmem:[%s187] sm:%s179] %v188
                %v190 = vld [vmem:[%s186 + $0xc] sm:%s179]
                %191 = vst [vmem:[%s187 + $0x4] sm:%s179] %v190
              $region37: #{transformer_forward.37} parent=31 // loop_footer
                %s185 = sadd.s32 1, %s181
              $region38: #{transformer_forward.37} parent=31 // loop_footer_branch
                %180 = sbr.rel target = $region34
              $region39: #{transformer_forward.37} parent=31 // loop_exit
                _
            $region32: #{transformer_forward.37} parent=23 // pred_fallthru
              _
          $region24: #{transformer_forward.37} parent=19 // pred_fallthru
            _
          %216 = vnop
        $region20: #{transformer_forward.37} parent=15 // pred_fallthru
          _
        // Predicated region
        $region58: #{transformer_forward.37} parent=15 // pred_check
          %p217 = pneg %p78
        $region59: #{transformer_forward.37} parent=15 // pred_check_branch
          %219 = sbr.rel (%p217) target = $region61
        $region60: #{transformer_forward.37} parent=15 // pred_region
          %s220 = sand.u32 %s68, 1
          %s221 = sand.u32 %s68, 1
          %s222 = smul.addr %s221, 8
          %s223 = scalar_lea.vmem [#allocation6], %s222
          %s224 = smul.u32 2, %s18
          %s225 = smul.addr %s224, 3
          %s226 = sadd.s32 1, %s225
          %s227 = smul.addr %s16, 6
          %s228 = sadd.s32 %s226, %s227
          %s229 = smul.addr %s228, 4
          %s230 = scalar_lea.vmem %s1, %s229
          // Predicated region
          $region62: #{transformer_forward.37} parent=60 // pred_check
            _
          $region63: #{transformer_forward.37} parent=60 // pred_check_branch
            %232 = sbr.rel (0) target = $region65
          $region64: #{transformer_forward.37} parent=60 // pred_region
            // Predicated region
            $region66: #{transformer_forward.37} parent=64 // pred_check
              _
            $region67: #{transformer_forward.37} parent=64 // pred_check_branch
              %234 = sbr.rel target = $region69
            $region68: #{transformer_forward.37} parent=64 // pred_region
              // Predicated region
              $region81: #{transformer_forward.37} parent=68 // pred_check
                _
              $region82: #{transformer_forward.37} parent=68 // pred_check_branch
                %252 = sbr.rel (0) target = $region84
              $region83: #{transformer_forward.37} parent=68 // pred_region
                loop: start=0, step=1, limit=1
                $region85: #{transformer_forward.37} parent=83 // loop_pre_header
                  _
                $region86: #{transformer_forward.37} parent=83 // loop_header
                  %s254 = sphi 0, %s258
                  %p255 = scmp.ge.s32.totalorder %s254, 1
                  %s259 = sphi %s230, %s230
                  %s260 = sphi %s223, %s223
                $region87: #{transformer_forward.37} parent=83 // loop_header_branch
                  %257 = sbr.rel (%p255) target = $region91
                $region88: #{transformer_forward.37} parent=83 // loop_body
                  _
                $region89: #{transformer_forward.37} parent=83 // loop_footer
                  %s258 = sadd.s32 1, %s254
                $region90: #{transformer_forward.37} parent=83 // loop_footer_branch
                  %253 = sbr.rel target = $region86
                $region91: #{transformer_forward.37} parent=83 // loop_exit
                  _
                %s262 = ssub.s32 16, 1
                loop: start=0, step=1, limit=1
                $region92: #{transformer_forward.37} parent=83 // loop_pre_header
                  _
                $region93: #{transformer_forward.37} parent=83 // loop_header
                  %s264 = sphi 0, %s268
                  %p265 = scmp.ge.s32.totalorder %s264, 1
                  %s269 = sphi %s230, %s230
                  %s270 = sphi %s223, %s223
                $region94: #{transformer_forward.37} parent=83 // loop_header_branch
                  %267 = sbr.rel (%p265) target = $region98
                $region95: #{transformer_forward.37} parent=83 // loop_body
                  %v271 = vld [vmem:[%s269] sm:%s262]
                  %272 = vst [vmem:[%s270] sm:%s262] %v271
                  %v273 = vld [vmem:[%s269 + $0xc] sm:%s262]
                  %274 = vst [vmem:[%s270 + $0x4] sm:%s262] %v273
                $region96: #{transformer_forward.37} parent=83 // loop_footer
                  %s268 = sadd.s32 1, %s264
                $region97: #{transformer_forward.37} parent=83 // loop_footer_branch
                  %263 = sbr.rel target = $region93
                $region98: #{transformer_forward.37} parent=83 // loop_exit
                  _
              $region84: #{transformer_forward.37} parent=68 // pred_fallthru
                _
            $region69: #{transformer_forward.37} parent=64 // pred_fallthru
              _
            // Predicated region
            $region70: #{transformer_forward.37} parent=64 // pred_check
              _
            $region71: #{transformer_forward.37} parent=64 // pred_check_branch
              %236 = sbr.rel (0) target = $region73
            $region72: #{transformer_forward.37} parent=64 // pred_region
              %s238 = ssub.s32 16, 1
              loop: start=0, step=1, limit=1
              $region74: #{transformer_forward.37} parent=72 // loop_pre_header
                _
              $region75: #{transformer_forward.37} parent=72 // loop_header
                %s240 = sphi 0, %s244
                %p241 = scmp.ge.s32.totalorder %s240, 1
                %s245 = sphi %s230, %s230
                %s246 = sphi %s223, %s223
              $region76: #{transformer_forward.37} parent=72 // loop_header_branch
                %243 = sbr.rel (%p241) target = $region80
              $region77: #{transformer_forward.37} parent=72 // loop_body
                %v247 = vld [vmem:[%s245] sm:%s238]
                %248 = vst [vmem:[%s246] sm:%s238] %v247
                %v249 = vld [vmem:[%s245 + $0xc] sm:%s238]
                %250 = vst [vmem:[%s246 + $0x4] sm:%s238] %v249
              $region78: #{transformer_forward.37} parent=72 // loop_footer
                %s244 = sadd.s32 1, %s240
              $region79: #{transformer_forward.37} parent=72 // loop_footer_branch
                %239 = sbr.rel target = $region75
              $region80: #{transformer_forward.37} parent=72 // loop_exit
                _
            $region73: #{transformer_forward.37} parent=64 // pred_fallthru
              _
          $region65: #{transformer_forward.37} parent=60 // pred_fallthru
            _
          %275 = vnop
        $region61: #{transformer_forward.37} parent=15 // pred_fallthru
          _
        // Predicated region
        $region99: #{transformer_forward.37} parent=15 // pred_check
          %p276 = pneg %p106
        $region100: #{transformer_forward.37} parent=15 // pred_check_branch
          %278 = sbr.rel (%p276) target = $region102
        $region101: #{transformer_forward.37} parent=15 // pred_region
          %s279 = sand.u32 %s96, 1
          %s280 = sand.u32 %s96, 1
          %s281 = smul.addr %s280, 8
          %s282 = scalar_lea.vmem [#allocation7], %s281
          %s283 = smul.u32 2, %s18
          %s284 = smul.addr %s283, 3
          %s285 = sadd.s32 2, %s284
          %s286 = smul.addr %s16, 6
          %s287 = sadd.s32 %s285, %s286
          %s288 = smul.addr %s287, 4
          %s289 = scalar_lea.vmem %s2, %s288
          // Predicated region
          $region103: #{transformer_forward.37} parent=101 // pred_check
            _
          $region104: #{transformer_forward.37} parent=101 // pred_check_branch
            %291 = sbr.rel (0) target = $region106
          $region105: #{transformer_forward.37} parent=101 // pred_region
            // Predicated region
            $region107: #{transformer_forward.37} parent=105 // pred_check
              _
            $region108: #{transformer_forward.37} parent=105 // pred_check_branch
              %293 = sbr.rel target = $region110
            $region109: #{transformer_forward.37} parent=105 // pred_region
              // Predicated region
              $region122: #{transformer_forward.37} parent=109 // pred_check
                _
              $region123: #{transformer_forward.37} parent=109 // pred_check_branch
                %311 = sbr.rel (0) target = $region125
              $region124: #{transformer_forward.37} parent=109 // pred_region
                loop: start=0, step=1, limit=1
                $region126: #{transformer_forward.37} parent=124 // loop_pre_header
                  _
                $region127: #{transformer_forward.37} parent=124 // loop_header
                  %s313 = sphi 0, %s317
                  %p314 = scmp.ge.s32.totalorder %s313, 1
                  %s318 = sphi %s289, %s289
                  %s319 = sphi %s282, %s282
                $region128: #{transformer_forward.37} parent=124 // loop_header_branch
                  %316 = sbr.rel (%p314) target = $region132
                $region129: #{transformer_forward.37} parent=124 // loop_body
                  _
                $region130: #{transformer_forward.37} parent=124 // loop_footer
                  %s317 = sadd.s32 1, %s313
                $region131: #{transformer_forward.37} parent=124 // loop_footer_branch
                  %312 = sbr.rel target = $region127
                $region132: #{transformer_forward.37} parent=124 // loop_exit
                  _
                %s321 = ssub.s32 16, 1
                loop: start=0, step=1, limit=1
                $region133: #{transformer_forward.37} parent=124 // loop_pre_header
                  _
                $region134: #{transformer_forward.37} parent=124 // loop_header
                  %s323 = sphi 0, %s327
                  %p324 = scmp.ge.s32.totalorder %s323, 1
                  %s328 = sphi %s289, %s289
                  %s329 = sphi %s282, %s282
                $region135: #{transformer_forward.37} parent=124 // loop_header_branch
                  %326 = sbr.rel (%p324) target = $region139
                $region136: #{transformer_forward.37} parent=124 // loop_body
                  %v330 = vld [vmem:[%s328] sm:%s321]
                  %331 = vst [vmem:[%s329] sm:%s321] %v330
                  %v332 = vld [vmem:[%s328 + $0xc] sm:%s321]
                  %333 = vst [vmem:[%s329 + $0x4] sm:%s321] %v332
                $region137: #{transformer_forward.37} parent=124 // loop_footer
                  %s327 = sadd.s32 1, %s323
                $region138: #{transformer_forward.37} parent=124 // loop_footer_branch
                  %322 = sbr.rel target = $region134
                $region139: #{transformer_forward.37} parent=124 // loop_exit
                  _
              $region125: #{transformer_forward.37} parent=109 // pred_fallthru
                _
            $region110: #{transformer_forward.37} parent=105 // pred_fallthru
              _
            // Predicated region
            $region111: #{transformer_forward.37} parent=105 // pred_check
              _
            $region112: #{transformer_forward.37} parent=105 // pred_check_branch
              %295 = sbr.rel (0) target = $region114
            $region113: #{transformer_forward.37} parent=105 // pred_region
              %s297 = ssub.s32 16, 1
              loop: start=0, step=1, limit=1
              $region115: #{transformer_forward.37} parent=113 // loop_pre_header
                _
              $region116: #{transformer_forward.37} parent=113 // loop_header
                %s299 = sphi 0, %s303
                %p300 = scmp.ge.s32.totalorder %s299, 1
                %s304 = sphi %s289, %s289
                %s305 = sphi %s282, %s282
              $region117: #{transformer_forward.37} parent=113 // loop_header_branch
                %302 = sbr.rel (%p300) target = $region121
              $region118: #{transformer_forward.37} parent=113 // loop_body
                %v306 = vld [vmem:[%s304] sm:%s297]
                %307 = vst [vmem:[%s305] sm:%s297] %v306
                %v308 = vld [vmem:[%s304 + $0xc] sm:%s297]
                %309 = vst [vmem:[%s305 + $0x4] sm:%s297] %v308
              $region119: #{transformer_forward.37} parent=113 // loop_footer
                %s303 = sadd.s32 1, %s299
              $region120: #{transformer_forward.37} parent=113 // loop_footer_branch
                %298 = sbr.rel target = $region116
              $region121: #{transformer_forward.37} parent=113 // loop_exit
                _
            $region114: #{transformer_forward.37} parent=105 // pred_fallthru
              _
          $region106: #{transformer_forward.37} parent=101 // pred_fallthru
            _
          %334 = vnop
        $region102: #{transformer_forward.37} parent=15 // pred_fallthru
          _
      $region16: #{transformer_forward.37} parent=5 // pred_fallthru
        _
      %p335 = scmp.le.s32.totalorder 1, %s9
      %p336 = scmp.lt.s32.totalorder %s9, 3
      %p337 = pnand %p335, %p336
      %p338 = pneg %p337
      // Predicated region
      $region140: #{transformer_forward.37} parent=5 // pred_check
        _
      $region141: #{transformer_forward.37} parent=5 // pred_check_branch
        %340 = sbr.rel (%p337) target = $region143
      $region142: #{transformer_forward.37} parent=5 // pred_region
        %s341 = ssub.s32 %s9, 1
        %s342 = sand.u32 %s43, 1
        %s343 = sand.u32 %s43, 1
        %s344 = smul.addr %s343, 8
        %s345 = scalar_lea.vmem [#allocation5], %s344
        // Predicated region
        $region144: #{transformer_forward.37} parent=142 // pred_check
          %p346 = pneg %p56
        $region145: #{transformer_forward.37} parent=142 // pred_check_branch
          %348 = sbr.rel (%p346) target = $region147
        $region146: #{transformer_forward.37} parent=142 // pred_region
          _
        $region147: #{transformer_forward.37} parent=142 // pred_fallthru
          _
        %s349 = sand.u32 %s71, 1
        %s350 = sand.u32 %s71, 1
        %s351 = smul.addr %s350, 8
        %s352 = scalar_lea.vmem [#allocation6], %s351
        // Predicated region
        $region148: #{transformer_forward.37} parent=142 // pred_check
          %p353 = pneg %p84
        $region149: #{transformer_forward.37} parent=142 // pred_check_branch
          %355 = sbr.rel (%p353) target = $region151
        $region150: #{transformer_forward.37} parent=142 // pred_region
          _
        $region151: #{transformer_forward.37} parent=142 // pred_fallthru
          _
        %s356 = sand.u32 %s99, 1
        %s357 = sand.u32 %s99, 1
        %s358 = smul.addr %s357, 8
        %s359 = scalar_lea.vmem [#allocation7], %s358
        // Predicated region
        $region152: #{transformer_forward.37} parent=142 // pred_check
          %p360 = pneg %p112
        $region153: #{transformer_forward.37} parent=142 // pred_check_branch
          %362 = sbr.rel (%p360) target = $region155
        $region154: #{transformer_forward.37} parent=142 // pred_region
          _
        $region155: #{transformer_forward.37} parent=142 // pred_fallthru
          _
        %s363 = sand.u32 %s43, 1
        %s364 = sand.u32 %s43, 1
        %s365 = smul.addr %s364, 8
        %s366 = scalar_lea.vmem [#allocation5], %s365
        %p367 = pneg %p56
        %p368 = pneg %p53
        %s369 = sand.u32 %s71, 1
        %s370 = sand.u32 %s71, 1
        %s371 = smul.addr %s370, 8
        %s372 = scalar_lea.vmem [#allocation6], %s371
        %p373 = pneg %p84
        %p374 = pneg %p81
        %s375 = sand.u32 %s99, 1
        %s376 = sand.u32 %s99, 1
        %s377 = smul.addr %s376, 8
        %s378 = scalar_lea.vmem [#allocation7], %s377
        %p379 = pneg %p112
        %p380 = pneg %p109
        %p381 = pneg %p140
        %p382 = pneg %p137
        %s383 = smul.u32 2, %s20
        %p384 = scmp.lt.s32.totalorder %s19, 1
        %s385 = scalar_select %p384, %s19, 1
        %p386 = scmp.lt.s32.totalorder %s383, 1
        %s387 = scalar_select %p386, %s383, 1
        %s388 = smul.addr %s385, 2
        %s389 = sadd.s32 %s387, %s388
        %s390 = smul.addr %s389, 4
        %s391 = scalar_lea.vmem %s3, %s390
        %s392 = smul.u32 2, %s20
        %s393 = smul.u32 2, %s21
        %s394 = smul.u32 2, %s21
        %s395 = smul.u32 2, %s20
        %p396 = scmp.lt.s32.totalorder %s19, 1
        %s397 = scalar_select %p396, %s19, 1
        %p398 = scmp.lt.s32.totalorder %s395, 1
        %s399 = scalar_select %p398, %s395, 1
        %s400 = smul.addr %s397, 2
        %s401 = sadd.s32 %s399, %s400
        %s402 = smul.addr %s401, 4
        %s403 = scalar_lea.vmem %s3, %s402
        %s404 = smul.u32 2, %s20
        %p406 = scmp.eq.s32.totalorder %s21, 0
        // Predicated region
        $region156: #{transformer_forward.37} parent=142 // pred_check
          %p407 = pneg %p406
        $region157: #{transformer_forward.37} parent=142 // pred_check_branch
          %409 = sbr.rel (%p407) target = $region159
        $region158: #{transformer_forward.37} parent=142 // pred_region
          %vm410 = vcmask 7168
          %411 = vst.msk [vmem:[#allocation2] sm:$0xff] %vm410, -inf
          %412 = vst.msk [vmem:[#allocation2 + $0x8] sm:$0xff] %vm410, -inf
          %413 = vst.msk [vmem:[#allocation2 + $0x10] sm:$0xff] %vm410, -inf
          %414 = vst.msk [vmem:[#allocation2 + $0x18] sm:$0xff] %vm410, -inf
          %415 = vst.msk [vmem:[#allocation2 + $0x20] sm:$0xff] %vm410, -inf
          %416 = vst.msk [vmem:[#allocation2 + $0x28] sm:$0xff] %vm410, -inf
          %417 = vst.msk [vmem:[#allocation2 + $0x30] sm:$0xff] %vm410, -inf
          %418 = vst.msk [vmem:[#allocation2 + $0x38] sm:$0xff] %vm410, -inf
          %419 = vst.msk [vmem:[#allocation3] sm:$0xff] %vm410, 0.0
          %420 = vst.msk [vmem:[#allocation3 + $0x8] sm:$0xff] %vm410, 0.0
          %421 = vst.msk [vmem:[#allocation3 + $0x10] sm:$0xff] %vm410, 0.0
          %422 = vst.msk [vmem:[#allocation3 + $0x18] sm:$0xff] %vm410, 0.0
          %423 = vst.msk [vmem:[#allocation3 + $0x20] sm:$0xff] %vm410, 0.0
          %424 = vst.msk [vmem:[#allocation3 + $0x28] sm:$0xff] %vm410, 0.0
          %425 = vst.msk [vmem:[#allocation3 + $0x30] sm:$0xff] %vm410, 0.0
          %426 = vst.msk [vmem:[#allocation3 + $0x38] sm:$0xff] %vm410, 0.0
          %vm427 = vcmask 261120
          %428 = vst.msk [vmem:[#allocation4] sm:$0xff] %vm427, 0.0
          %429 = vst.msk [vmem:[#allocation4 + $0x8] sm:$0xff] %vm427, 0.0
          %430 = vst.msk [vmem:[#allocation4 + $0x10] sm:$0xff] %vm427, 0.0
          %431 = vst.msk [vmem:[#allocation4 + $0x18] sm:$0xff] %vm427, 0.0
          %432 = vst.msk [vmem:[#allocation4 + $0x20] sm:$0xff] %vm427, 0.0
          %433 = vst.msk [vmem:[#allocation4 + $0x28] sm:$0xff] %vm427, 0.0
          %434 = vst.msk [vmem:[#allocation4 + $0x30] sm:$0xff] %vm427, 0.0
          %435 = vst.msk [vmem:[#allocation4 + $0x38] sm:$0xff] %vm427, 0.0
        $region159: #{transformer_forward.37} parent=142 // pred_fallthru
          _
        %v436 = vld [vmem:[%s345] sm:$0xf]
        %v437 = vld [vmem:[%s345 + $0x4] sm:$0xf]
        %v438 = vld [vmem:[%s352] sm:$0xf]
        %v439 = vld [vmem:[%s352 + $0x4] sm:$0xf]
        %v440 = vld [vmem:[%s359] sm:$0xf]
        %v441 = vld [vmem:[%s359 + $0x4] sm:$0xf]
        %v444 = vunpack.c.l.b16 %v436
        %v445 = vunpack.c.l.b16 %v437
        %v446 = vpack.c.b16 %v445, %v444
        %v449 = vunpack.c.l.b16 %v438
        %v450 = vunpack.c.l.b16 %v439
        %v451 = vpack.c.b16 %v450, %v449
        %vm452 = vcmask 261120
        %v454 = vsel %vm452, %v446, 0
        %v457 = vsel %vm452, %v451, 0
        %459 = vmatprep.subr.bf16.mxu0 0
        %460 = vmatpush1.bf16.xpose.msra.mxu0 0
        %461 = vmatprep.subr.bf16.mxu0 0
        %462 = vmatpush1.bf16.xpose.msra.mxu0 0
        %463 = vmatprep.subr.bf16.mxu0 0
        %464 = vmatpush1.bf16.xpose.msra.mxu0 0
        %465 = vmatprep.subr.bf16.mxu0 0
        %466 = vmatpush1.bf16.xpose.msra.mxu0 0
        %467 = vmatprep.subr.bf16.mxu0 0
        %468 = vmatpush1.bf16.xpose.msra.mxu0 0
        %469 = vmatprep.subr.bf16.mxu0 0
        %470 = vmatpush1.bf16.xpose.msra.mxu0 0
        %471 = vmatprep.subr.bf16.mxu0 0
        %472 = vmatpush1.bf16.xpose.msra.mxu0 0
        %473 = vmatprep.subr.bf16.mxu0 0
        %474 = vmatpush1.bf16.xpose.msra.mxu0 %v457
        %475 = vmatprep.subr.bf16.mxu0 0
        %476 = vmatpush2.bf16.xpose.msra.mxu0 0
        %477 = vmatprep.subr.bf16.mxu0 0
        %478 = vmatpush2.bf16.xpose.msra.mxu0 0
        %479 = vmatprep.subr.bf16.mxu0 0
        %480 = vmatpush2.bf16.xpose.msra.mxu0 0
        %481 = vmatprep.subr.bf16.mxu0 0
        %482 = vmatpush2.bf16.xpose.msra.mxu0 0
        %483 = vmatprep.subr.bf16.mxu0 0
        %484 = vmatpush2.bf16.xpose.msra.mxu0 0
        %485 = vmatprep.subr.bf16.mxu0 0
        %486 = vmatpush2.bf16.xpose.msra.mxu0 0
        %487 = vmatprep.subr.bf16.mxu0 0
        %488 = vmatpush2.bf16.xpose.msra.mxu0 0
        %489 = vmatprep.subr.bf16.mxu0 0
        %490 = vmatpush2.bf16.xpose.msra.mxu0 0
        %491 = vmatprep.mubr.bf16.mxu0 0
        %492 = vmatmul.mubr.bf16.gmra.mxu0 %v454
        %v493 = vpop.f32.mrf.mxu0
        %v494 = vadd.f32 0.0, %v493
        %v495 = vpop.f32.mrf.mxu0
        %v496 = vpop.f32.mrf.mxu0
        %v497 = vadd.f32 0.0, %v496
        %v498 = vpop.f32.mrf.mxu0
        %499 = vdwg.mxu0
        %v500 = vmul.f32 %v494, 0.17677669
        %v501 = vmul.f32 %v497, 0.17677669
        %v502 = vld [vmem:[#allocation2] sm:$0xff]
        %v503 = vld [vmem:[#allocation2 + $0x8] sm:$0xff]
        %vm504 = vcmask 130048
        %v505 = vsel %vm504, %v500, -inf
        %506 = vmax.xlane.f32.xlu0 %v505
        %v507 = vpop.xlane.xlu0 %506
        %v508 = vsel %vm504, %v501, -inf
        %509 = vmax.xlane.f32.xlu0 %v508
        %v510 = vpop.xlane.xlu0 %509
        %v511 = vmax.f32 %v502, %v507
        %v512 = vmax.f32 %v503, %v510
        %v513 = vsub.f32 %v502, %v511
        %v514 = vsub.f32 %v503, %v512
        %v515 = vmul.f32 %v513, 1.442695
        %v516 = vpow.pop %v515
        %v517 = vmul.f32 %v514, 1.442695
        %v518 = vpow.pop %v517
        %520 = vset.pattern.permute.xlu0 0
        %521 = vperm.xlu0 %520, %v511
        %v522 = vpop.permute.xlu0 %521
        %525 = vset.pattern.permute.xlu0 0
        %526 = vperm.xlu0 %525, %v512
        %v527 = vpop.permute.xlu0 %526
        %v529 = vsub.f32 %v500, %v522
        %v530 = vsub.f32 %v501, %v527
        %v531 = vmul.f32 %v529, 1.442695
        %v532 = vpow.pop %v531
        %v533 = vmul.f32 %v530, 1.442695
        %v534 = vpow.pop %v533
        %v535 = vld [vmem:[#allocation3] sm:$0xff]
        %v536 = vld [vmem:[#allocation3 + $0x8] sm:$0xff]
        %v537 = vmul.f32 %v516, %v535
        %v538 = vmul.f32 %v518, %v536
        %v539 = vsel %vm504, %v532, 0.0
        %540 = vadd.xlane.f32.xlu0 %v539
        %v541 = vpop.xlane.xlu0 %540
        %v542 = vsel %vm504, %v534, 0.0
        %543 = vadd.xlane.f32.xlu0 %v542
        %v544 = vpop.xlane.xlu0 %543
        %v545 = vadd.f32 %v537, %v541
        %v546 = vadd.f32 %v538, %v544
        %vm547 = vcmask 7168
        %548 = vst.msk [vmem:[#allocation3] sm:$0xff] %vm547, %v545
        %549 = vst.msk [vmem:[#allocation3 + $0x8] sm:$0xff] %vm547, %v546
        %v550 = vld [vmem:[#allocation4] sm:$0xff]
        %v551 = vld [vmem:[#allocation4 + $0x8] sm:$0xff]
        %553 = vset.pattern.permute.xlu0 0
        %554 = vperm.xlu0 %553, %v516
        %v555 = vpop.permute.xlu0 %554
        %558 = vset.pattern.permute.xlu0 0
        %559 = vperm.xlu0 %558, %v518
        %v560 = vpop.permute.xlu0 %559
        %v562 = vmul.f32 %v555, %v550
        %v563 = vmul.f32 %v560, %v551
        %v564 = vpack.c.bf16 %v534, %v532
        %v567 = vunpack.c.l.b16 %v440
        %v568 = vunpack.c.l.b16 %v441
        %v569 = vpack.c.b16 %v568, %v567
        %v572 = vsel %vm504, %v564, 0
        %574 = vmatprep.subr.bf16.mxu0 0
        %575 = vmatpush1.bf16.msra.mxu0 0
        %576 = vmatprep.subr.bf16.mxu0 0
        %577 = vmatpush1.bf16.msra.mxu0 0
        %578 = vmatprep.subr.bf16.mxu0 0
        %579 = vmatpush1.bf16.msra.mxu0 0
        %580 = vmatprep.subr.bf16.mxu0 0
        %581 = vmatpush1.bf16.msra.mxu0 0
        %582 = vmatprep.subr.bf16.mxu0 0
        %583 = vmatpush1.bf16.msra.mxu0 0
        %584 = vmatprep.subr.bf16.mxu0 0
        %585 = vmatpush1.bf16.msra.mxu0 0
        %586 = vmatprep.subr.bf16.mxu0 0
        %587 = vmatpush1.bf16.msra.mxu0 0
        %588 = vmatprep.subr.bf16.mxu0 0
        %589 = vmatpush1.bf16.msra.mxu0 %v569
        %590 = vmatprep.subr.bf16.mxu0 0
        %591 = vmatpush2.bf16.msra.mxu0 0
        %592 = vmatprep.subr.bf16.mxu0 0
        %593 = vmatpush2.bf16.msra.mxu0 0
        %594 = vmatprep.subr.bf16.mxu0 0
        %595 = vmatpush2.bf16.msra.mxu0 0
        %596 = vmatprep.subr.bf16.mxu0 0
        %597 = vmatpush2.bf16.msra.mxu0 0
        %598 = vmatprep.subr.bf16.mxu0 0
        %599 = vmatpush2.bf16.msra.mxu0 0
        %600 = vmatprep.subr.bf16.mxu0 0
        %601 = vmatpush2.bf16.msra.mxu0 0
        %602 = vmatprep.subr.bf16.mxu0 0
        %603 = vmatpush2.bf16.msra.mxu0 0
        %604 = vmatprep.subr.bf16.mxu0 0
        %605 = vmatpush2.bf16.msra.mxu0 0
        %606 = vmatprep.mubr.bf16.mxu0 0
        %607 = vmatmul.mubr.bf16.gmra.mxu0 %v572
        %v608 = vpop.f32.mrf.mxu0
        %v609 = vadd.f32 0.0, %v608
        %v610 = vpop.f32.mrf.mxu0
        %v611 = vpop.f32.mrf.mxu0
        %v612 = vadd.f32 0.0, %v611
        %v613 = vpop.f32.mrf.mxu0
        %614 = vdwg.mxu0
        %v615 = vadd.f32 %v562, %v609
        %v616 = vadd.f32 %v563, %v612
        %617 = vst.msk [vmem:[#allocation4] sm:$0xff] %vm452, %v615
        %618 = vst.msk [vmem:[#allocation4 + $0x8] sm:$0xff] %vm452, %v616
        %619 = vst.msk [vmem:[#allocation2] sm:$0xff] %vm547, %v511
        %620 = vst.msk [vmem:[#allocation2 + $0x8] sm:$0xff] %vm547, %v512
        %621 = vrot.lane.b32.xlu0 %v446, 96
        %v622 = vpop.permute.xlu0 %621
        %623 = vrot.lane.b32.xlu0 %v451, 96
        %v624 = vpop.permute.xlu0 %623
        %v626 = vsel %vm452, %v622, 0
        %v629 = vsel %vm452, %v624, 0
        %631 = vmatprep.subr.bf16.mxu0 0
        %632 = vmatpush1.bf16.xpose.msra.mxu0 0
        %633 = vmatprep.subr.bf16.mxu0 0
        %634 = vmatpush1.bf16.xpose.msra.mxu0 0
        %635 = vmatprep.subr.bf16.mxu0 0
        %636 = vmatpush1.bf16.xpose.msra.mxu0 0
        %637 = vmatprep.subr.bf16.mxu0 0
        %638 = vmatpush1.bf16.xpose.msra.mxu0 0
        %639 = vmatprep.subr.bf16.mxu0 0
        %640 = vmatpush1.bf16.xpose.msra.mxu0 0
        %641 = vmatprep.subr.bf16.mxu0 0
        %642 = vmatpush1.bf16.xpose.msra.mxu0 0
        %643 = vmatprep.subr.bf16.mxu0 0
        %644 = vmatpush1.bf16.xpose.msra.mxu0 0
        %645 = vmatprep.subr.bf16.mxu0 0
        %646 = vmatpush1.bf16.xpose.msra.mxu0 %v629
        %647 = vmatprep.subr.bf16.mxu0 0
        %648 = vmatpush2.bf16.xpose.msra.mxu0 0
        %649 = vmatprep.subr.bf16.mxu0 0
        %650 = vmatpush2.bf16.xpose.msra.mxu0 0
        %651 = vmatprep.subr.bf16.mxu0 0
        %652 = vmatpush2.bf16.xpose.msra.mxu0 0
        %653 = vmatprep.subr.bf16.mxu0 0
        %654 = vmatpush2.bf16.xpose.msra.mxu0 0
        %655 = vmatprep.subr.bf16.mxu0 0
        %656 = vmatpush2.bf16.xpose.msra.mxu0 0
        %657 = vmatprep.subr.bf16.mxu0 0
        %658 = vmatpush2.bf16.xpose.msra.mxu0 0
        %659 = vmatprep.subr.bf16.mxu0 0
        %660 = vmatpush2.bf16.xpose.msra.mxu0 0
        %661 = vmatprep.subr.bf16.mxu0 0
        %662 = vmatpush2.bf16.xpose.msra.mxu0 0
        %663 = vmatprep.mubr.bf16.mxu0 0
        %664 = vmatmul.mubr.bf16.gmra.mxu0 %v626
        %v665 = vpop.f32.mrf.mxu0
        %v666 = vadd.f32 0.0, %v665
        %v667 = vpop.f32.mrf.mxu0
        %v668 = vpop.f32.mrf.mxu0
        %v669 = vadd.f32 0.0, %v668
        %v670 = vpop.f32.mrf.mxu0
        %671 = vdwg.mxu0
        %v672 = vmul.f32 %v666, 0.17677669
        %v673 = vmul.f32 %v669, 0.17677669
        %s674 = scalar_lea.vmem [#allocation2], 16
        %v675 = vld [vmem:[%s674] sm:$0xff]
        %v676 = vld [vmem:[%s674 + $0x8] sm:$0xff]
        %v677 = vsel %vm504, %v672, -inf
        %678 = vmax.xlane.f32.xlu0 %v677
        %v679 = vpop.xlane.xlu0 %678
        %v680 = vsel %vm504, %v673, -inf
        %681 = vmax.xlane.f32.xlu0 %v680
        %v682 = vpop.xlane.xlu0 %681
        %v683 = vmax.f32 %v675, %v679
        %v684 = vmax.f32 %v676, %v682
        %v685 = vsub.f32 %v675, %v683
        %v686 = vsub.f32 %v676, %v684
        %v687 = vmul.f32 %v685, 1.442695
        %v688 = vpow.pop %v687
        %v689 = vmul.f32 %v686, 1.442695
        %v690 = vpow.pop %v689
        %692 = vset.pattern.permute.xlu0 0
        %693 = vperm.xlu0 %692, %v683
        %v694 = vpop.permute.xlu0 %693
        %697 = vset.pattern.permute.xlu0 0
        %698 = vperm.xlu0 %697, %v684
        %v699 = vpop.permute.xlu0 %698
        %v701 = vsub.f32 %v672, %v694
        %v702 = vsub.f32 %v673, %v699
        %v703 = vmul.f32 %v701, 1.442695
        %v704 = vpow.pop %v703
        %v705 = vmul.f32 %v702, 1.442695
        %v706 = vpow.pop %v705
        %s707 = scalar_lea.vmem [#allocation3], 16
        %v708 = vld [vmem:[%s707] sm:$0xff]
        %v709 = vld [vmem:[%s707 + $0x8] sm:$0xff]
        %v710 = vmul.f32 %v688, %v708
        %v711 = vmul.f32 %v690, %v709
        %v712 = vsel %vm504, %v704, 0.0
        %713 = vadd.xlane.f32.xlu0 %v712
        %v714 = vpop.xlane.xlu0 %713
        %v715 = vsel %vm504, %v706, 0.0
        %716 = vadd.xlane.f32.xlu0 %v715
        %v717 = vpop.xlane.xlu0 %716
        %v718 = vadd.f32 %v710, %v714
        %v719 = vadd.f32 %v711, %v717
        %720 = vst.msk [vmem:[%s707] sm:$0xff] %vm547, %v718
        %721 = vst.msk [vmem:[%s707 + $0x8] sm:$0xff] %vm547, %v719
        %s722 = scalar_lea.vmem [#allocation4], 16
        %v723 = vld [vmem:[%s722] sm:$0xff]
        %v724 = vld [vmem:[%s722 + $0x8] sm:$0xff]
        %726 = vset.pattern.permute.xlu0 0
        %727 = vperm.xlu0 %726, %v688
        %v728 = vpop.permute.xlu0 %727
        %731 = vset.pattern.permute.xlu0 0
        %732 = vperm.xlu0 %731, %v690
        %v733 = vpop.permute.xlu0 %732
        %v735 = vmul.f32 %v728, %v723
        %v736 = vmul.f32 %v733, %v724
        %v737 = vpack.c.bf16 %v706, %v704
        %738 = vrot.lane.b32.xlu0 %v569, 96
        %v739 = vpop.permute.xlu0 %738
        %v742 = vsel %vm504, %v737, 0
        %744 = vmatprep.subr.bf16.mxu0 0
        %745 = vmatpush1.bf16.msra.mxu0 0
        %746 = vmatprep.subr.bf16.mxu0 0
        %747 = vmatpush1.bf16.msra.mxu0 0
        %748 = vmatprep.subr.bf16.mxu0 0
        %749 = vmatpush1.bf16.msra.mxu0 0
        %750 = vmatprep.subr.bf16.mxu0 0
        %751 = vmatpush1.bf16.msra.mxu0 0
        %752 = vmatprep.subr.bf16.mxu0 0
        %753 = vmatpush1.bf16.msra.mxu0 0
        %754 = vmatprep.subr.bf16.mxu0 0
        %755 = vmatpush1.bf16.msra.mxu0 0
        %756 = vmatprep.subr.bf16.mxu0 0
        %757 = vmatpush1.bf16.msra.mxu0 0
        %758 = vmatprep.subr.bf16.mxu0 0
        %759 = vmatpush1.bf16.msra.mxu0 %v739
        %760 = vmatprep.subr.bf16.mxu0 0
        %761 = vmatpush2.bf16.msra.mxu0 0
        %762 = vmatprep.subr.bf16.mxu0 0
        %763 = vmatpush2.bf16.msra.mxu0 0
        %764 = vmatprep.subr.bf16.mxu0 0
        %765 = vmatpush2.bf16.msra.mxu0 0
        %766 = vmatprep.subr.bf16.mxu0 0
        %767 = vmatpush2.bf16.msra.mxu0 0
        %768 = vmatprep.subr.bf16.mxu0 0
        %769 = vmatpush2.bf16.msra.mxu0 0
        %770 = vmatprep.subr.bf16.mxu0 0
        %771 = vmatpush2.bf16.msra.mxu0 0
        %772 = vmatprep.subr.bf16.mxu0 0
        %773 = vmatpush2.bf16.msra.mxu0 0
        %774 = vmatprep.subr.bf16.mxu0 0
        %775 = vmatpush2.bf16.msra.mxu0 0
        %776 = vmatprep.mubr.bf16.mxu0 0
        %777 = vmatmul.mubr.bf16.gmra.mxu0 %v742
        %v778 = vpop.f32.mrf.mxu0
        %v779 = vadd.f32 0.0, %v778
        %v780 = vpop.f32.mrf.mxu0
        %v781 = vpop.f32.mrf.mxu0
        %v782 = vadd.f32 0.0, %v781
        %v783 = vpop.f32.mrf.mxu0
        %784 = vdwg.mxu0
        %v785 = vadd.f32 %v735, %v779
        %v786 = vadd.f32 %v736, %v782
        %787 = vst.msk [vmem:[%s722] sm:$0xff] %vm452, %v785
        %788 = vst.msk [vmem:[%s722 + $0x8] sm:$0xff] %vm452, %v786
        %789 = vst.msk [vmem:[%s674] sm:$0xff] %vm547, %v683
        %790 = vst.msk [vmem:[%s674 + $0x8] sm:$0xff] %vm547, %v684
        %791 = vrot.lane.b32.xlu0 %v446, 64
        %v792 = vpop.permute.xlu0 %791
        %793 = vrot.lane.b32.xlu0 %v451, 64
        %v794 = vpop.permute.xlu0 %793
        %v796 = vsel %vm452, %v792, 0
        %v799 = vsel %vm452, %v794, 0
        %801 = vmatprep.subr.bf16.mxu0 0
        %802 = vmatpush1.bf16.xpose.msra.mxu0 0
        %803 = vmatprep.subr.bf16.mxu0 0
        %804 = vmatpush1.bf16.xpose.msra.mxu0 0
        %805 = vmatprep.subr.bf16.mxu0 0
        %806 = vmatpush1.bf16.xpose.msra.mxu0 0
        %807 = vmatprep.subr.bf16.mxu0 0
        %808 = vmatpush1.bf16.xpose.msra.mxu0 0
        %809 = vmatprep.subr.bf16.mxu0 0
        %810 = vmatpush1.bf16.xpose.msra.mxu0 0
        %811 = vmatprep.subr.bf16.mxu0 0
        %812 = vmatpush1.bf16.xpose.msra.mxu0 0
        %813 = vmatprep.subr.bf16.mxu0 0
        %814 = vmatpush1.bf16.xpose.msra.mxu0 0
        %815 = vmatprep.subr.bf16.mxu0 0
        %816 = vmatpush1.bf16.xpose.msra.mxu0 %v799
        %817 = vmatprep.subr.bf16.mxu0 0
        %818 = vmatpush2.bf16.xpose.msra.mxu0 0
        %819 = vmatprep.subr.bf16.mxu0 0
        %820 = vmatpush2.bf16.xpose.msra.mxu0 0
        %821 = vmatprep.subr.bf16.mxu0 0
        %822 = vmatpush2.bf16.xpose.msra.mxu0 0
        %823 = vmatprep.subr.bf16.mxu0 0
        %824 = vmatpush2.bf16.xpose.msra.mxu0 0
        %825 = vmatprep.subr.bf16.mxu0 0
        %826 = vmatpush2.bf16.xpose.msra.mxu0 0
        %827 = vmatprep.subr.bf16.mxu0 0
        %828 = vmatpush2.bf16.xpose.msra.mxu0 0
        %829 = vmatprep.subr.bf16.mxu0 0
        %830 = vmatpush2.bf16.xpose.msra.mxu0 0
        %831 = vmatprep.subr.bf16.mxu0 0
        %832 = vmatpush2.bf16.xpose.msra.mxu0 0
        %833 = vmatprep.mubr.bf16.mxu0 0
        %834 = vmatmul.mubr.bf16.gmra.mxu0 %v796
        %v835 = vpop.f32.mrf.mxu0
        %v836 = vadd.f32 0.0, %v835
        %v837 = vpop.f32.mrf.mxu0
        %v838 = vpop.f32.mrf.mxu0
        %v839 = vadd.f32 0.0, %v838
        %v840 = vpop.f32.mrf.mxu0
        %841 = vdwg.mxu0
        %v842 = vmul.f32 %v836, 0.17677669
        %v843 = vmul.f32 %v839, 0.17677669
        %s844 = scalar_lea.vmem [#allocation2], 32
        %v845 = vld [vmem:[%s844] sm:$0xff]
        %v846 = vld [vmem:[%s844 + $0x8] sm:$0xff]
        %v847 = vsel %vm504, %v842, -inf
        %848 = vmax.xlane.f32.xlu0 %v847
        %v849 = vpop.xlane.xlu0 %848
        %v850 = vsel %vm504, %v843, -inf
        %851 = vmax.xlane.f32.xlu0 %v850
        %v852 = vpop.xlane.xlu0 %851
        %v853 = vmax.f32 %v845, %v849
        %v854 = vmax.f32 %v846, %v852
        %v855 = vsub.f32 %v845, %v853
        %v856 = vsub.f32 %v846, %v854
        %v857 = vmul.f32 %v855, 1.442695
        %v858 = vpow.pop %v857
        %v859 = vmul.f32 %v856, 1.442695
        %v860 = vpow.pop %v859
        %862 = vset.pattern.permute.xlu0 0
        %863 = vperm.xlu0 %862, %v853
        %v864 = vpop.permute.xlu0 %863
        %867 = vset.pattern.permute.xlu0 0
        %868 = vperm.xlu0 %867, %v854
        %v869 = vpop.permute.xlu0 %868
        %v871 = vsub.f32 %v842, %v864
        %v872 = vsub.f32 %v843, %v869
        %v873 = vmul.f32 %v871, 1.442695
        %v874 = vpow.pop %v873
        %v875 = vmul.f32 %v872, 1.442695
        %v876 = vpow.pop %v875
        %s877 = scalar_lea.vmem [#allocation3], 32
        %v878 = vld [vmem:[%s877] sm:$0xff]
        %v879 = vld [vmem:[%s877 + $0x8] sm:$0xff]
        %v880 = vmul.f32 %v858, %v878
        %v881 = vmul.f32 %v860, %v879
        %v882 = vsel %vm504, %v874, 0.0
        %883 = vadd.xlane.f32.xlu0 %v882
        %v884 = vpop.xlane.xlu0 %883
        %v885 = vsel %vm504, %v876, 0.0
        %886 = vadd.xlane.f32.xlu0 %v885
        %v887 = vpop.xlane.xlu0 %886
        %v888 = vadd.f32 %v880, %v884
        %v889 = vadd.f32 %v881, %v887
        %890 = vst.msk [vmem:[%s877] sm:$0xff] %vm547, %v888
        %891 = vst.msk [vmem:[%s877 + $0x8] sm:$0xff] %vm547, %v889
        %s892 = scalar_lea.vmem [#allocation4], 32
        %v893 = vld [vmem:[%s892] sm:$0xff]
        %v894 = vld [vmem:[%s892 + $0x8] sm:$0xff]
        %896 = vset.pattern.permute.xlu0 0
        %897 = vperm.xlu0 %896, %v858
        %v898 = vpop.permute.xlu0 %897
        %901 = vset.pattern.permute.xlu0 0
        %902 = vperm.xlu0 %901, %v860
        %v903 = vpop.permute.xlu0 %902
        %v905 = vmul.f32 %v898, %v893
        %v906 = vmul.f32 %v903, %v894
        %v907 = vpack.c.bf16 %v876, %v874
        %908 = vrot.lane.b32.xlu0 %v569, 64
        %v909 = vpop.permute.xlu0 %908
        %v912 = vsel %vm504, %v907, 0
        %914 = vmatprep.subr.bf16.mxu0 0
        %915 = vmatpush1.bf16.msra.mxu0 0
        %916 = vmatprep.subr.bf16.mxu0 0
        %917 = vmatpush1.bf16.msra.mxu0 0
        %918 = vmatprep.subr.bf16.mxu0 0
        %919 = vmatpush1.bf16.msra.mxu0 0
        %920 = vmatprep.subr.bf16.mxu0 0
        %921 = vmatpush1.bf16.msra.mxu0 0
        %922 = vmatprep.subr.bf16.mxu0 0
        %923 = vmatpush1.bf16.msra.mxu0 0
        %924 = vmatprep.subr.bf16.mxu0 0
        %925 = vmatpush1.bf16.msra.mxu0 0
        %926 = vmatprep.subr.bf16.mxu0 0
        %927 = vmatpush1.bf16.msra.mxu0 0
        %928 = vmatprep.subr.bf16.mxu0 0
        %929 = vmatpush1.bf16.msra.mxu0 %v909
        %930 = vmatprep.subr.bf16.mxu0 0
        %931 = vmatpush2.bf16.msra.mxu0 0
        %932 = vmatprep.subr.bf16.mxu0 0
        %933 = vmatpush2.bf16.msra.mxu0 0
        %934 = vmatprep.subr.bf16.mxu0 0
        %935 = vmatpush2.bf16.msra.mxu0 0
        %936 = vmatprep.subr.bf16.mxu0 0
        %937 = vmatpush2.bf16.msra.mxu0 0
        %938 = vmatprep.subr.bf16.mxu0 0
        %939 = vmatpush2.bf16.msra.mxu0 0
        %940 = vmatprep.subr.bf16.mxu0 0
        %941 = vmatpush2.bf16.msra.mxu0 0
        %942 = vmatprep.subr.bf16.mxu0 0
        %943 = vmatpush2.bf16.msra.mxu0 0
        %944 = vmatprep.subr.bf16.mxu0 0
        %945 = vmatpush2.bf16.msra.mxu0 0
        %946 = vmatprep.mubr.bf16.mxu0 0
        %947 = vmatmul.mubr.bf16.gmra.mxu0 %v912
        %v948 = vpop.f32.mrf.mxu0
        %v949 = vadd.f32 0.0, %v948
        %v950 = vpop.f32.mrf.mxu0
        %v951 = vpop.f32.mrf.mxu0
        %v952 = vadd.f32 0.0, %v951
        %v953 = vpop.f32.mrf.mxu0
        %954 = vdwg.mxu0
        %v955 = vadd.f32 %v905, %v949
        %v956 = vadd.f32 %v906, %v952
        %957 = vst.msk [vmem:[%s892] sm:$0xff] %vm452, %v955
        %958 = vst.msk [vmem:[%s892 + $0x8] sm:$0xff] %vm452, %v956
        %959 = vst.msk [vmem:[%s844] sm:$0xff] %vm547, %v853
        %960 = vst.msk [vmem:[%s844 + $0x8] sm:$0xff] %vm547, %v854
        %961 = vrot.lane.b32.xlu0 %v446, 32
        %v962 = vpop.permute.xlu0 %961
        %963 = vrot.lane.b32.xlu0 %v451, 32
        %v964 = vpop.permute.xlu0 %963
        %v966 = vsel %vm452, %v962, 0
        %v969 = vsel %vm452, %v964, 0
        %971 = vmatprep.subr.bf16.mxu0 0
        %972 = vmatpush1.bf16.xpose.msra.mxu0 0
        %973 = vmatprep.subr.bf16.mxu0 0
        %974 = vmatpush1.bf16.xpose.msra.mxu0 0
        %975 = vmatprep.subr.bf16.mxu0 0
        %976 = vmatpush1.bf16.xpose.msra.mxu0 0
        %977 = vmatprep.subr.bf16.mxu0 0
        %978 = vmatpush1.bf16.xpose.msra.mxu0 0
        %979 = vmatprep.subr.bf16.mxu0 0
        %980 = vmatpush1.bf16.xpose.msra.mxu0 0
        %981 = vmatprep.subr.bf16.mxu0 0
        %982 = vmatpush1.bf16.xpose.msra.mxu0 0
        %983 = vmatprep.subr.bf16.mxu0 0
        %984 = vmatpush1.bf16.xpose.msra.mxu0 0
        %985 = vmatprep.subr.bf16.mxu0 0
        %986 = vmatpush1.bf16.xpose.msra.mxu0 %v969
        %987 = vmatprep.subr.bf16.mxu0 0
        %988 = vmatpush2.bf16.xpose.msra.mxu0 0
        %989 = vmatprep.subr.bf16.mxu0 0
        %990 = vmatpush2.bf16.xpose.msra.mxu0 0
        %991 = vmatprep.subr.bf16.mxu0 0
        %992 = vmatpush2.bf16.xpose.msra.mxu0 0
        %993 = vmatprep.subr.bf16.mxu0 0
        %994 = vmatpush2.bf16.xpose.msra.mxu0 0
        %995 = vmatprep.subr.bf16.mxu0 0
        %996 = vmatpush2.bf16.xpose.msra.mxu0 0
        %997 = vmatprep.subr.bf16.mxu0 0
        %998 = vmatpush2.bf16.xpose.msra.mxu0 0
        %999 = vmatprep.subr.bf16.mxu0 0
        %1000 = vmatpush2.bf16.xpose.msra.mxu0 0
        %1001 = vmatprep.subr.bf16.mxu0 0
        %1002 = vmatpush2.bf16.xpose.msra.mxu0 0
        %1003 = vmatprep.mubr.bf16.mxu0 0
        %1004 = vmatmul.mubr.bf16.gmra.mxu0 %v966
        %v1005 = vpop.f32.mrf.mxu0
        %v1006 = vadd.f32 0.0, %v1005
        %v1007 = vpop.f32.mrf.mxu0
        %v1008 = vpop.f32.mrf.mxu0
        %v1009 = vadd.f32 0.0, %v1008
        %v1010 = vpop.f32.mrf.mxu0
        %1011 = vdwg.mxu0
        %v1012 = vmul.f32 %v1006, 0.17677669
        %v1013 = vmul.f32 %v1009, 0.17677669
        %s1014 = scalar_lea.vmem [#allocation2], 48
        %v1015 = vld [vmem:[%s1014] sm:$0xff]
        %v1016 = vld [vmem:[%s1014 + $0x8] sm:$0xff]
        %v1017 = vsel %vm504, %v1012, -inf
        %1018 = vmax.xlane.f32.xlu0 %v1017
        %v1019 = vpop.xlane.xlu0 %1018
        %v1020 = vsel %vm504, %v1013, -inf
        %1021 = vmax.xlane.f32.xlu0 %v1020
        %v1022 = vpop.xlane.xlu0 %1021
        %v1023 = vmax.f32 %v1015, %v1019
        %v1024 = vmax.f32 %v1016, %v1022
        %v1025 = vsub.f32 %v1015, %v1023
        %v1026 = vsub.f32 %v1016, %v1024
        %v1027 = vmul.f32 %v1025, 1.442695
        %v1028 = vpow.pop %v1027
        %v1029 = vmul.f32 %v1026, 1.442695
        %v1030 = vpow.pop %v1029
        %1032 = vset.pattern.permute.xlu0 0
        %1033 = vperm.xlu0 %1032, %v1023
        %v1034 = vpop.permute.xlu0 %1033
        %1037 = vset.pattern.permute.xlu0 0
        %1038 = vperm.xlu0 %1037, %v1024
        %v1039 = vpop.permute.xlu0 %1038
        %v1041 = vsub.f32 %v1012, %v1034
        %v1042 = vsub.f32 %v1013, %v1039
        %v1043 = vmul.f32 %v1041, 1.442695
        %v1044 = vpow.pop %v1043
        %v1045 = vmul.f32 %v1042, 1.442695
        %v1046 = vpow.pop %v1045
        %s1047 = scalar_lea.vmem [#allocation3], 48
        %v1048 = vld [vmem:[%s1047] sm:$0xff]
        %v1049 = vld [vmem:[%s1047 + $0x8] sm:$0xff]
        %v1050 = vmul.f32 %v1028, %v1048
        %v1051 = vmul.f32 %v1030, %v1049
        %v1052 = vsel %vm504, %v1044, 0.0
        %1053 = vadd.xlane.f32.xlu0 %v1052
        %v1054 = vpop.xlane.xlu0 %1053
        %v1055 = vsel %vm504, %v1046, 0.0
        %1056 = vadd.xlane.f32.xlu0 %v1055
        %v1057 = vpop.xlane.xlu0 %1056
        %v1058 = vadd.f32 %v1050, %v1054
        %v1059 = vadd.f32 %v1051, %v1057
        %1060 = vst.msk [vmem:[%s1047] sm:$0xff] %vm547, %v1058
        %1061 = vst.msk [vmem:[%s1047 + $0x8] sm:$0xff] %vm547, %v1059
        %s1062 = scalar_lea.vmem [#allocation4], 48
        %v1063 = vld [vmem:[%s1062] sm:$0xff]
        %v1064 = vld [vmem:[%s1062 + $0x8] sm:$0xff]
        %1066 = vset.pattern.permute.xlu0 0
        %1067 = vperm.xlu0 %1066, %v1028
        %v1068 = vpop.permute.xlu0 %1067
        %1071 = vset.pattern.permute.xlu0 0
        %1072 = vperm.xlu0 %1071, %v1030
        %v1073 = vpop.permute.xlu0 %1072
        %v1075 = vmul.f32 %v1068, %v1063
        %v1076 = vmul.f32 %v1073, %v1064
        %v1077 = vpack.c.bf16 %v1046, %v1044
        %1078 = vrot.lane.b32.xlu0 %v569, 32
        %v1079 = vpop.permute.xlu0 %1078
        %v1082 = vsel %vm504, %v1077, 0
        %1084 = vmatprep.subr.bf16.mxu0 0
        %1085 = vmatpush1.bf16.msra.mxu0 0
        %1086 = vmatprep.subr.bf16.mxu0 0
        %1087 = vmatpush1.bf16.msra.mxu0 0
        %1088 = vmatprep.subr.bf16.mxu0 0
        %1089 = vmatpush1.bf16.msra.mxu0 0
        %1090 = vmatprep.subr.bf16.mxu0 0
        %1091 = vmatpush1.bf16.msra.mxu0 0
        %1092 = vmatprep.subr.bf16.mxu0 0
        %1093 = vmatpush1.bf16.msra.mxu0 0
        %1094 = vmatprep.subr.bf16.mxu0 0
        %1095 = vmatpush1.bf16.msra.mxu0 0
        %1096 = vmatprep.subr.bf16.mxu0 0
        %1097 = vmatpush1.bf16.msra.mxu0 0
        %1098 = vmatprep.subr.bf16.mxu0 0
        %1099 = vmatpush1.bf16.msra.mxu0 %v1079
        %1100 = vmatprep.subr.bf16.mxu0 0
        %1101 = vmatpush2.bf16.msra.mxu0 0
        %1102 = vmatprep.subr.bf16.mxu0 0
        %1103 = vmatpush2.bf16.msra.mxu0 0
        %1104 = vmatprep.subr.bf16.mxu0 0
        %1105 = vmatpush2.bf16.msra.mxu0 0
        %1106 = vmatprep.subr.bf16.mxu0 0
        %1107 = vmatpush2.bf16.msra.mxu0 0
        %1108 = vmatprep.subr.bf16.mxu0 0
        %1109 = vmatpush2.bf16.msra.mxu0 0
        %1110 = vmatprep.subr.bf16.mxu0 0
        %1111 = vmatpush2.bf16.msra.mxu0 0
        %1112 = vmatprep.subr.bf16.mxu0 0
        %1113 = vmatpush2.bf16.msra.mxu0 0
        %1114 = vmatprep.subr.bf16.mxu0 0
        %1115 = vmatpush2.bf16.msra.mxu0 0
        %1116 = vmatprep.mubr.bf16.mxu0 0
        %1117 = vmatmul.mubr.bf16.gmra.mxu0 %v1082
        %v1118 = vpop.f32.mrf.mxu0
        %v1119 = vadd.f32 0.0, %v1118
        %v1120 = vpop.f32.mrf.mxu0
        %v1121 = vpop.f32.mrf.mxu0
        %v1122 = vadd.f32 0.0, %v1121
        %v1123 = vpop.f32.mrf.mxu0
        %1124 = vdwg.mxu0
        %v1125 = vadd.f32 %v1075, %v1119
        %v1126 = vadd.f32 %v1076, %v1122
        %1127 = vst.msk [vmem:[%s1062] sm:$0xff] %vm452, %v1125
        %1128 = vst.msk [vmem:[%s1062 + $0x8] sm:$0xff] %vm452, %v1126
        %1129 = vst.msk [vmem:[%s1014] sm:$0xff] %vm547, %v1023
        %1130 = vst.msk [vmem:[%s1014 + $0x8] sm:$0xff] %vm547, %v1024
        // Predicated region
        $region160: #{transformer_forward.37} parent=142 // pred_check
          %p1131 = pneg %p406
        $region161: #{transformer_forward.37} parent=142 // pred_check_branch
          %1133 = sbr.rel (%p1131) target = $region163
        $region162: #{transformer_forward.37} parent=142 // pred_region
          %v1134 = vld [vmem:[#allocation4] sm:$0xff]
          %v1135 = vld [vmem:[#allocation4 + $0x8] sm:$0xff]
          %v1136 = vld [vmem:[#allocation3] sm:$0xff]
          %v1137 = vld [vmem:[#allocation3 + $0x8] sm:$0xff]
          %v1138 = vrcp.pop %v1136
          %v1139 = vrcp.pop %v1137
          %1141 = vset.pattern.permute.xlu0 0
          %1142 = vperm.xlu0 %1141, %v1138
          %v1143 = vpop.permute.xlu0 %1142
          %1146 = vset.pattern.permute.xlu0 0
          %1147 = vperm.xlu0 %1146, %v1139
          %v1148 = vpop.permute.xlu0 %1147
          %v1150 = vmul.f32 %v1134, %v1143
          %v1151 = vmul.f32 %v1135, %v1148
          %v1152 = vpack.c.bf16 %v1151, %v1150
          %v1154 = vunpack.c.l.b16 %v1152
          %v1155 = vunpack.c.h.b16 %v1152
          %v1156 = vpack.c.b16 %v1154, %v1154
          %v1157 = vpack.c.b16 %v1155, %v1155
          %vm1160 = vcmask 257024
          %1161 = vst.msk [vmem:[%s403] sm:$0xf] %vm1160, %v1156
          %1162 = vst.msk [vmem:[%s403 + $0x4] sm:$0xf] %vm1160, %v1157
          %v1163 = vld [vmem:[%s722] sm:$0xff]
          %v1164 = vld [vmem:[%s722 + $0x8] sm:$0xff]
          %v1165 = vld [vmem:[%s707] sm:$0xff]
          %v1166 = vld [vmem:[%s707 + $0x8] sm:$0xff]
          %v1167 = vrcp.pop %v1165
          %v1168 = vrcp.pop %v1166
          %1170 = vset.pattern.permute.xlu0 0
          %1171 = vperm.xlu0 %1170, %v1167
          %v1172 = vpop.permute.xlu0 %1171
          %1175 = vset.pattern.permute.xlu0 0
          %1176 = vperm.xlu0 %1175, %v1168
          %v1177 = vpop.permute.xlu0 %1176
          %v1179 = vmul.f32 %v1163, %v1172
          %v1180 = vmul.f32 %v1164, %v1177
          %v1181 = vpack.c.bf16 %v1180, %v1179
          %v1183 = vunpack.c.l.b16 %v1181
          %v1184 = vunpack.c.h.b16 %v1181
          %v1185 = vpack.c.b16 %v1183, %v1183
          %v1186 = vpack.c.b16 %v1184, %v1184
          %1187 = vrot.lane.b32.xlu0 %v1185, 32
          %v1188 = vpop.permute.xlu0 %1187
          %1189 = vrot.lane.b32.xlu0 %v1186, 32
          %v1190 = vpop.permute.xlu0 %1189
          %vm1193 = vcmask 519424
          %1194 = vst.msk [vmem:[%s403] sm:$0xf] %vm1193, %v1188
          %1195 = vst.msk [vmem:[%s403 + $0x4] sm:$0xf] %vm1193, %v1190
          %v1196 = vld [vmem:[%s892] sm:$0xff]
          %v1197 = vld [vmem:[%s892 + $0x8] sm:$0xff]
          %v1198 = vld [vmem:[%s877] sm:$0xff]
          %v1199 = vld [vmem:[%s877 + $0x8] sm:$0xff]
          %v1200 = vrcp.pop %v1198
          %v1201 = vrcp.pop %v1199
          %1203 = vset.pattern.permute.xlu0 0
          %1204 = vperm.xlu0 %1203, %v1200
          %v1205 = vpop.permute.xlu0 %1204
          %1208 = vset.pattern.permute.xlu0 0
          %1209 = vperm.xlu0 %1208, %v1201
          %v1210 = vpop.permute.xlu0 %1209
          %v1212 = vmul.f32 %v1196, %v1205
          %v1213 = vmul.f32 %v1197, %v1210
          %v1214 = vpack.c.bf16 %v1213, %v1212
          %v1216 = vunpack.c.l.b16 %v1214
          %v1217 = vunpack.c.h.b16 %v1214
          %v1218 = vpack.c.b16 %v1216, %v1216
          %v1219 = vpack.c.b16 %v1217, %v1217
          %1220 = vrot.lane.b32.xlu0 %v1218, 64
          %v1221 = vpop.permute.xlu0 %1220
          %1222 = vrot.lane.b32.xlu0 %v1219, 64
          %v1223 = vpop.permute.xlu0 %1222
          %vm1226 = vcmask 781824
          %1227 = vst.msk [vmem:[%s403] sm:$0xf] %vm1226, %v1221
          %1228 = vst.msk [vmem:[%s403 + $0x4] sm:$0xf] %vm1226, %v1223
          %v1229 = vld [vmem:[%s1062] sm:$0xff]
          %v1230 = vld [vmem:[%s1062 + $0x8] sm:$0xff]
          %v1231 = vld [vmem:[%s1047] sm:$0xff]
          %v1232 = vld [vmem:[%s1047 + $0x8] sm:$0xff]
          %v1233 = vrcp.pop %v1231
          %v1234 = vrcp.pop %v1232
          %1236 = vset.pattern.permute.xlu0 0
          %1237 = vperm.xlu0 %1236, %v1233
          %v1238 = vpop.permute.xlu0 %1237
          %1241 = vset.pattern.permute.xlu0 0
          %1242 = vperm.xlu0 %1241, %v1234
          %v1243 = vpop.permute.xlu0 %1242
          %v1245 = vmul.f32 %v1229, %v1238
          %v1246 = vmul.f32 %v1230, %v1243
          %v1247 = vpack.c.bf16 %v1246, %v1245
          %v1249 = vunpack.c.l.b16 %v1247
          %v1250 = vunpack.c.h.b16 %v1247
          %v1251 = vpack.c.b16 %v1249, %v1249
          %v1252 = vpack.c.b16 %v1250, %v1250
          %1253 = vrot.lane.b32.xlu0 %v1251, 96
          %v1254 = vpop.permute.xlu0 %1253
          %1255 = vrot.lane.b32.xlu0 %v1252, 96
          %v1256 = vpop.permute.xlu0 %1255
          %vm1259 = vcmask 1044224
          %1260 = vst.msk [vmem:[%s403] sm:$0xf] %vm1259, %v1254
          %1261 = vst.msk [vmem:[%s403 + $0x4] sm:$0xf] %vm1259, %v1256
        $region163: #{transformer_forward.37} parent=142 // pred_fallthru
          _
        %s1262 = smul.u32 2, %s20
        %p1263 = scmp.lt.s32.totalorder %s19, 1
        %s1264 = scalar_select %p1263, %s19, 1
        %p1265 = scmp.lt.s32.totalorder %s1262, 1
        %s1266 = scalar_select %p1265, %s1262, 1
        %s1267 = smul.addr %s1264, 2
        %s1268 = sadd.s32 %s1266, %s1267
        %s1269 = smul.addr %s1268, 4
        %s1270 = scalar_lea.vmem %s3, %s1269
        // Predicated region
        $region164: #{transformer_forward.37} parent=142 // pred_check
          %p1271 = pneg %p137
        $region165: #{transformer_forward.37} parent=142 // pred_check_branch
          %1273 = sbr.rel (%p1271) target = $region167
        $region166: #{transformer_forward.37} parent=142 // pred_region
          %s1274 = smul.u32 2, %s20
        $region167: #{transformer_forward.37} parent=142 // pred_fallthru
          _
      $region143: #{transformer_forward.37} parent=5 // pred_fallthru
        _
      %p1275 = scmp.le.s32.totalorder 2, %s9
      // Predicated region
      $region168: #{transformer_forward.37} parent=5 // pred_check
        %p1276 = pneg %p1275
      $region169: #{transformer_forward.37} parent=5 // pred_check_branch
        %1278 = sbr.rel (%p1276) target = $region171
      $region170: #{transformer_forward.37} parent=5 // pred_region
        %s1279 = ssub.s32 %s9, 2
        // Predicated region
        $region172: #{transformer_forward.37} parent=170 // pred_check
          %p1280 = pneg %p143
        $region173: #{transformer_forward.37} parent=170 // pred_check_branch
          %1282 = sbr.rel (%p1280) target = $region175
        $region174: #{transformer_forward.37} parent=170 // pred_region
          %s1283 = smul.u32 2, %s23
          %p1284 = scmp.lt.s32.totalorder %s22, 1
          %s1285 = scalar_select %p1284, %s22, 1
          %p1286 = scmp.lt.s32.totalorder %s1283, 1
          %s1287 = scalar_select %p1286, %s1283, 1
          %s1288 = smul.addr %s1285, 2
          %s1289 = sadd.s32 %s1287, %s1288
          %s1290 = smul.addr %s1289, 4
          %s1291 = scalar_lea.vmem %s3, %s1290
        $region175: #{transformer_forward.37} parent=170 // pred_fallthru
          _
      $region171: #{transformer_forward.37} parent=5 // pred_fallthru
        _
    $region6: #{transformer_forward.37} parent=1 // loop_footer
      %s13 = sadd.s32 1, %s9
    $region7: #{transformer_forward.37} parent=1 // loop_footer_branch
      %8 = sbr.rel target = $region3
    $region8: #{transformer_forward.37} parent=1 // loop_exit
      _

// kernel: transformer_forward.35
$region0: #{transformer_forward.35}
  #allocation0 [shape = 'u32[]', space=smem, size = 0x4, offset = 0x4, fixed_abs, tag = 'smem constant byte address 0x4 - core index']
  #allocation1 [shape = 'u32[144,128]{1,0:T(1,128)}', space=vmem, size = 0x12000, scoped, tag = 'internal scratch']
  %s0 = inlined_call_operand.vmem [shape: bf16[32,128], index: 0, kind: input, shape index: {}]
  %s1 = inlined_call_operand.vmem [shape: f32[1,128], index: 1, kind: input, shape index: {}]
  %s2 = inlined_call_operand.vmem [shape: f32[1,128], index: 2, kind: input, shape index: {}]
  %s3 = inlined_call_operand.vmem [shape: bf16[32,128], index: 3, kind: output, shape index: {}]
  %s4 = sld [smem:[#allocation0]]
  $region22: #{transformer_forward.35} parent=0
    _
  %s6 = ssub.s32 1, %s4
  %s7 = scalar_select 0, %s6, %s4
  // Predicated region
  $region2: #{transformer_forward.35} parent=0 // pred_check
    _
  $region3: #{transformer_forward.35} parent=0 // pred_check_branch
    %9 = sbr.rel (0) target = $region5
  $region4: #{transformer_forward.35} parent=0 // pred_region
    _
  $region5: #{transformer_forward.35} parent=0 // pred_fallthru
    _
  // Predicated region
  $region6: #{transformer_forward.35} parent=0 // pred_check
    _
  $region7: #{transformer_forward.35} parent=0 // pred_check_branch
    %11 = sbr.rel (0) target = $region9
  $region8: #{transformer_forward.35} parent=0 // pred_region
    _
  $region9: #{transformer_forward.35} parent=0 // pred_fallthru
    _
  // Predicated region
  $region10: #{transformer_forward.35} parent=0 // pred_check
    _
  $region11: #{transformer_forward.35} parent=0 // pred_check_branch
    %13 = sbr.rel (0) target = $region13
  $region12: #{transformer_forward.35} parent=0 // pred_region
    _
  $region13: #{transformer_forward.35} parent=0 // pred_fallthru
    _
  %v14 = vld [vmem:[%s0] sm:$0xf]
  %v15 = vld [vmem:[%s0 + $0x4] sm:$0xf]
  %v16 = vld [vmem:[%s0 + $0x8] sm:$0xf]
  %v17 = vld [vmem:[%s0 + $0xc] sm:$0xf]
  %v18 = vld [vmem:[%s1] sm:$0x1]
  %v19 = vld [vmem:[%s2] sm:$0x1]
  %v20 = vunpack.c.l.bf16 %v14
  %v21 = vunpack.c.l.bf16 %v15
  %v22 = vunpack.c.l.bf16 %v16
  %v23 = vunpack.c.l.bf16 %v17
  %24 = vadd.xlane.f32.xlu0 %v20
  %v25 = vpop.xlane.xlu0 %24
  %26 = vadd.xlane.f32.xlu0 %v21
  %v27 = vpop.xlane.xlu0 %26
  %28 = vadd.xlane.f32.xlu0 %v22
  %v29 = vpop.xlane.xlu0 %28
  %30 = vadd.xlane.f32.xlu0 %v23
  %v31 = vpop.xlane.xlu0 %30
  %v32 = vrcp.pop 128.0
  %v33 = vmul.f32 %v25, %v32
  %v34 = vmul.f32 %v27, %v32
  %v35 = vmul.f32 %v29, %v32
  %v36 = vmul.f32 %v31, %v32
  %v37 = vsub.f32 %v20, %v33
  %v38 = vsub.f32 %v21, %v34
  %v39 = vsub.f32 %v22, %v35
  %v40 = vsub.f32 %v23, %v36
  %v41 = vmul.f32 %v37, %v37
  %v42 = vmul.f32 %v38, %v38
  %v43 = vmul.f32 %v39, %v39
  %v44 = vmul.f32 %v40, %v40
  %45 = vadd.xlane.f32.xlu0 %v41
  %v46 = vpop.xlane.xlu0 %45
  %47 = vadd.xlane.f32.xlu0 %v42
  %v48 = vpop.xlane.xlu0 %47
  %49 = vadd.xlane.f32.xlu0 %v43
  %v50 = vpop.xlane.xlu0 %49
  %51 = vadd.xlane.f32.xlu0 %v44
  %v52 = vpop.xlane.xlu0 %51
  %v53 = vmul.f32 %v46, %v32
  %v54 = vmul.f32 %v48, %v32
  %v55 = vmul.f32 %v50, %v32
  %v56 = vmul.f32 %v52, %v32
  %v57 = vadd.f32 %v53, 1e-05
  %v58 = vadd.f32 %v54, 1e-05
  %v59 = vadd.f32 %v55, 1e-05
  %v60 = vadd.f32 %v56, 1e-05
  %v61 = vrsqrt.pop %v57
  %v62 = vrsqrt.pop %v58
  %v63 = vrsqrt.pop %v59
  %v64 = vrsqrt.pop %v60
  %v65 = vmul.f32 %v37, %v61
  %v66 = vmul.f32 %v38, %v62
  %v67 = vmul.f32 %v39, %v63
  %v68 = vmul.f32 %v40, %v64
  %v70 = vlaneseq
  %v71 = vshrl.u32 %v70, 7
  %v72 = vsub.s32 0, %v71
  %v73 = vrot.slane %v18, %v72
  %v75 = vmul.f32 %v65, %v73
  %v76 = vmul.f32 %v66, %v73
  %v77 = vmul.f32 %v67, %v73
  %v78 = vmul.f32 %v68, %v73
  %v80 = vlaneseq
  %v81 = vshrl.u32 %v80, 7
  %v82 = vsub.s32 0, %v81
  %v83 = vrot.slane %v19, %v82
  %v85 = vadd.f32 %v75, %v83
  %v86 = vadd.f32 %v76, %v83
  %v87 = vadd.f32 %v77, %v83
  %v88 = vadd.f32 %v78, %v83
  %v89 = vpack.c.bf16 %v86, %v85
  %v90 = vpack.c.bf16 %v88, %v87
  %v93 = vunpack.c.l.b16 %v89
  %v94 = vunpack.c.h.b16 %v89
  %v95 = vunpack.c.l.b16 %v90
  %v96 = vunpack.c.h.b16 %v90
  %v97 = vpack.c.b16 %v93, %v93
  %v98 = vpack.c.b16 %v94, %v94
  %v99 = vpack.c.b16 %v95, %v95
  %v100 = vpack.c.b16 %v96, %v96
  %105 = vst [vmem:[%s3] sm:$0xf] %v97
  %106 = vst [vmem:[%s3 + $0x4] sm:$0xf] %v98
  %107 = vst [vmem:[%s3 + $0x8] sm:$0xf] %v99
  %108 = vst [vmem:[%s3 + $0xc] sm:$0xf] %v100
  // Predicated region
  $region14: #{transformer_forward.35} parent=0 // pred_check
    _
  $region15: #{transformer_forward.35} parent=0 // pred_check_branch
    %110 = sbr.rel (0) target = $region17
  $region16: #{transformer_forward.35} parent=0 // pred_region
    _
  $region17: #{transformer_forward.35} parent=0 // pred_fallthru
    _
  // Predicated region
  $region18: #{transformer_forward.35} parent=0 // pred_check
    _
  $region19: #{transformer_forward.35} parent=0 // pred_check_branch
    %112 = sbr.rel (0) target = $region21
  $region20: #{transformer_forward.35} parent=0 // pred_region
    _
  $region21: #{transformer_forward.35} parent=0 // pred_fallthru
    _

// kernel: transformer_forward.30
$region0: #{transformer_forward.30}
  #allocation0 [shape = 'u32[]', space=smem, size = 0x4, offset = 0x4, fixed_abs, tag = 'smem constant byte address 0x4 - core index']
  #allocation1 [shape = 'u32[144,128]{1,0:T(1,128)}', space=vmem, size = 0x12000, scoped, tag = 'internal scratch']
  %s0 = inlined_call_operand.vmem [shape: bf16[32,128], index: 0, kind: input, shape index: {}]
  %s1 = inlined_call_operand.vmem [shape: bf16[128,256], index: 1, kind: input, shape index: {}]
  %s2 = inlined_call_operand.vmem [shape: f32[1,256], index: 2, kind: input, shape index: {}]
  %s3 = inlined_call_operand.vmem [shape: bf16[256,128], index: 3, kind: input, shape index: {}]
  %s4 = inlined_call_operand.vmem [shape: f32[1,128], index: 4, kind: input, shape index: {}]
  %s5 = inlined_call_operand.vmem [shape: f32[1,128], index: 5, kind: input, shape index: {}]
  %s6 = inlined_call_operand.vmem [shape: f32[1,128], index: 6, kind: input, shape index: {}]
  %s7 = inlined_call_operand.vmem [shape: bf16[32,128], index: 7, kind: output, shape index: {}]
  %s8 = sld [smem:[#allocation0]]
  $region38: #{transformer_forward.30} parent=0
    _
  %s10 = ssub.s32 1, %s8
  %s11 = scalar_select 0, %s10, %s8
  // Predicated region
  $region2: #{transformer_forward.30} parent=0 // pred_check
    _
  $region3: #{transformer_forward.30} parent=0 // pred_check_branch
    %13 = sbr.rel (0) target = $region5
  $region4: #{transformer_forward.30} parent=0 // pred_region
    _
  $region5: #{transformer_forward.30} parent=0 // pred_fallthru
    _
  // Predicated region
  $region6: #{transformer_forward.30} parent=0 // pred_check
    _
  $region7: #{transformer_forward.30} parent=0 // pred_check_branch
    %15 = sbr.rel (0) target = $region9
  $region8: #{transformer_forward.30} parent=0 // pred_region
    _
  $region9: #{transformer_forward.30} parent=0 // pred_fallthru
    _
  // Predicated region
  $region10: #{transformer_forward.30} parent=0 // pred_check
    _
  $region11: #{transformer_forward.30} parent=0 // pred_check_branch
    %17 = sbr.rel (0) target = $region13
  $region12: #{transformer_forward.30} parent=0 // pred_region
    _
  $region13: #{transformer_forward.30} parent=0 // pred_fallthru
    _
  // Predicated region
  $region14: #{transformer_forward.30} parent=0 // pred_check
    _
  $region15: #{transformer_forward.30} parent=0 // pred_check_branch
    %19 = sbr.rel (0) target = $region17
  $region16: #{transformer_forward.30} parent=0 // pred_region
    _
  $region17: #{transformer_forward.30} parent=0 // pred_fallthru
    _
  // Predicated region
  $region18: #{transformer_forward.30} parent=0 // pred_check
    _
  $region19: #{transformer_forward.30} parent=0 // pred_check_branch
    %21 = sbr.rel (0) target = $region21
  $region20: #{transformer_forward.30} parent=0 // pred_region
    _
  $region21: #{transformer_forward.30} parent=0 // pred_fallthru
    _
  // Predicated region
  $region22: #{transformer_forward.30} parent=0 // pred_check
    _
  $region23: #{transformer_forward.30} parent=0 // pred_check_branch
    %23 = sbr.rel (0) target = $region25
  $region24: #{transformer_forward.30} parent=0 // pred_region
    _
  $region25: #{transformer_forward.30} parent=0 // pred_fallthru
    _
  // Predicated region
  $region26: #{transformer_forward.30} parent=0 // pred_check
    _
  $region27: #{transformer_forward.30} parent=0 // pred_check_branch
    %25 = sbr.rel (0) target = $region29
  $region28: #{transformer_forward.30} parent=0 // pred_region
    _
  $region29: #{transformer_forward.30} parent=0 // pred_fallthru
    _
  %v27 = vld [vmem:[%s0] sm:$0xf]
  %v28 = vld [vmem:[%s0 + $0x4] sm:$0xf]
  %v29 = vld [vmem:[%s0 + $0x8] sm:$0xf]
  %v30 = vld [vmem:[%s0 + $0xc] sm:$0xf]
  %v31 = vld [vmem:[%s1] sm:$0xff]
  %v32 = vld [vmem:[%s1 + $0x8] sm:$0xff]
  %v33 = vld [vmem:[%s1 + $0x10] sm:$0xff]
  %v34 = vld [vmem:[%s1 + $0x18] sm:$0xff]
  %v35 = vld [vmem:[%s1 + $0x20] sm:$0xff]
  %v36 = vld [vmem:[%s1 + $0x28] sm:$0xff]
  %v37 = vld [vmem:[%s1 + $0x30] sm:$0xff]
  %v38 = vld [vmem:[%s1 + $0x38] sm:$0xff]
  %v39 = vld [vmem:[%s1 + $0x40] sm:$0xff]
  %v40 = vld [vmem:[%s1 + $0x48] sm:$0xff]
  %v41 = vld [vmem:[%s1 + $0x50] sm:$0xff]
  %v42 = vld [vmem:[%s1 + $0x58] sm:$0xff]
  %v43 = vld [vmem:[%s1 + $0x60] sm:$0xff]
  %v44 = vld [vmem:[%s1 + $0x68] sm:$0xff]
  %v45 = vld [vmem:[%s1 + $0x70] sm:$0xff]
  %v46 = vld [vmem:[%s1 + $0x78] sm:$0xff]
  %v47 = vld [vmem:[%s2] sm:$0x3]
  %v49 = vlaneseq
  %v50 = vshrl.u32 %v49, 7
  %v51 = vsub.s32 0, %v50
  %v52 = vrot.slane %v47, %v51
  %v53 = vlaneseq
  %v54 = vshrl.u32 %v53, 7
  %v55 = vsub.s32 1, %v54
  %v56 = vrot.slane %v47, %v55
  %v63 = vunpack.c.l.b16 %v27
  %v64 = vunpack.c.l.b16 %v28
  %v65 = vunpack.c.l.b16 %v29
  %v66 = vunpack.c.l.b16 %v30
  %v67 = vpack.c.b16 %v64, %v63
  %v68 = vpack.c.b16 %v66, %v65
  %v87 = vunpack.c.l.b16 %v31
  %v88 = vunpack.c.h.b16 %v31
  %v89 = vunpack.c.l.b16 %v32
  %v90 = vunpack.c.h.b16 %v32
  %v91 = vunpack.c.l.b16 %v33
  %v92 = vunpack.c.h.b16 %v33
  %v93 = vunpack.c.l.b16 %v34
  %v94 = vunpack.c.h.b16 %v34
  %v95 = vunpack.c.l.b16 %v35
  %v96 = vunpack.c.h.b16 %v35
  %v97 = vunpack.c.l.b16 %v36
  %v98 = vunpack.c.h.b16 %v36
  %v99 = vunpack.c.l.b16 %v37
  %v100 = vunpack.c.h.b16 %v37
  %v101 = vunpack.c.l.b16 %v38
  %v102 = vunpack.c.h.b16 %v38
  %v103 = vunpack.c.l.b16 %v39
  %v104 = vunpack.c.h.b16 %v39
  %v105 = vunpack.c.l.b16 %v40
  %v106 = vunpack.c.h.b16 %v40
  %v107 = vunpack.c.l.b16 %v41
  %v108 = vunpack.c.h.b16 %v41
  %v109 = vunpack.c.l.b16 %v42
  %v110 = vunpack.c.h.b16 %v42
  %v111 = vunpack.c.l.b16 %v43
  %v112 = vunpack.c.h.b16 %v43
  %v113 = vunpack.c.l.b16 %v44
  %v114 = vunpack.c.h.b16 %v44
  %v115 = vunpack.c.l.b16 %v45
  %v116 = vunpack.c.h.b16 %v45
  %v117 = vunpack.c.l.b16 %v46
  %v118 = vunpack.c.h.b16 %v46
  %v119 = vpack.c.b16 %v89, %v87
  %v120 = vpack.c.b16 %v90, %v88
  %v121 = vpack.c.b16 %v93, %v91
  %v122 = vpack.c.b16 %v94, %v92
  %v123 = vpack.c.b16 %v97, %v95
  %v124 = vpack.c.b16 %v98, %v96
  %v125 = vpack.c.b16 %v101, %v99
  %v126 = vpack.c.b16 %v102, %v100
  %v127 = vpack.c.b16 %v105, %v103
  %v128 = vpack.c.b16 %v106, %v104
  %v129 = vpack.c.b16 %v109, %v107
  %v130 = vpack.c.b16 %v110, %v108
  %v131 = vpack.c.b16 %v113, %v111
  %v132 = vpack.c.b16 %v114, %v112
  %v133 = vpack.c.b16 %v117, %v115
  %v134 = vpack.c.b16 %v118, %v116
  %151 = vmatprep.subr.bf16.mxu0 %v134
  %152 = vmatpush1.bf16.msra.mxu0 %v133
  %153 = vmatprep.subr.bf16.mxu0 %v132
  %154 = vmatpush1.bf16.msra.mxu0 %v131
  %155 = vmatprep.subr.bf16.mxu0 %v130
  %156 = vmatpush1.bf16.msra.mxu0 %v129
  %157 = vmatprep.subr.bf16.mxu0 %v128
  %158 = vmatpush1.bf16.msra.mxu0 %v127
  %159 = vmatprep.subr.bf16.mxu0 %v126
  %160 = vmatpush1.bf16.msra.mxu0 %v125
  %161 = vmatprep.subr.bf16.mxu0 %v124
  %162 = vmatpush1.bf16.msra.mxu0 %v123
  %163 = vmatprep.subr.bf16.mxu0 %v122
  %164 = vmatpush1.bf16.msra.mxu0 %v121
  %165 = vmatprep.subr.bf16.mxu0 %v120
  %166 = vmatpush1.bf16.msra.mxu0 %v119
  %167 = vmatprep.subr.bf16.mxu0 0
  %168 = vmatpush2.bf16.msra.mxu0 0
  %169 = vmatprep.subr.bf16.mxu0 0
  %170 = vmatpush2.bf16.msra.mxu0 0
  %171 = vmatprep.subr.bf16.mxu0 0
  %172 = vmatpush2.bf16.msra.mxu0 0
  %173 = vmatprep.subr.bf16.mxu0 0
  %174 = vmatpush2.bf16.msra.mxu0 0
  %175 = vmatprep.subr.bf16.mxu0 0
  %176 = vmatpush2.bf16.msra.mxu0 0
  %177 = vmatprep.subr.bf16.mxu0 0
  %178 = vmatpush2.bf16.msra.mxu0 0
  %179 = vmatprep.subr.bf16.mxu0 0
  %180 = vmatpush2.bf16.msra.mxu0 0
  %181 = vmatprep.subr.bf16.mxu0 0
  %182 = vmatpush2.bf16.msra.mxu0 0
  %183 = vmatprep.mubr.bf16.mxu0 0
  %184 = vmatmul.mubr.bf16.gmra.mxu0 %v67
  %v185 = vpop.f32.mrf.mxu0
  %v186 = vadd.f32 %v52, %v185
  %v187 = vpop.f32.mrf.mxu0
  %v188 = vadd.f32 %v56, %v187
  %v189 = vpop.f32.mrf.mxu0
  %v190 = vadd.f32 %v52, %v189
  %v191 = vpop.f32.mrf.mxu0
  %v192 = vadd.f32 %v56, %v191
  %193 = vmatprep.mubr.bf16.mxu0 0
  %194 = vmatmul.mubr.bf16.gmra.mxu0 %v68
  %v195 = vpop.f32.mrf.mxu0
  %v196 = vadd.f32 %v52, %v195
  %v197 = vpop.f32.mrf.mxu0
  %v198 = vadd.f32 %v56, %v197
  %v199 = vpop.f32.mrf.mxu0
  %v200 = vadd.f32 %v52, %v199
  %v201 = vpop.f32.mrf.mxu0
  %v202 = vadd.f32 %v56, %v201
  %203 = vdwg.mxu0
  %v204 = vmax.f32 %v186, 0.0
  %v205 = vmax.f32 %v188, 0.0
  %v206 = vmax.f32 %v190, 0.0
  %v207 = vmax.f32 %v192, 0.0
  %v208 = vmax.f32 %v196, 0.0
  %v209 = vmax.f32 %v198, 0.0
  %v210 = vmax.f32 %v200, 0.0
  %v211 = vmax.f32 %v202, 0.0
  %v212 = vpack.c.bf16 %v206, %v204
  %v213 = vpack.c.bf16 %v207, %v205
  %v214 = vpack.c.bf16 %v210, %v208
  %v215 = vpack.c.bf16 %v211, %v209
  %v216 = vld [vmem:[%s3] sm:$0xf]
  %v217 = vld [vmem:[%s3 + $0x4] sm:$0xf]
  %v218 = vld [vmem:[%s3 + $0x8] sm:$0xf]
  %v219 = vld [vmem:[%s3 + $0xc] sm:$0xf]
  %v220 = vld [vmem:[%s3 + $0x10] sm:$0xf]
  %v221 = vld [vmem:[%s3 + $0x14] sm:$0xf]
  %v222 = vld [vmem:[%s3 + $0x18] sm:$0xf]
  %v223 = vld [vmem:[%s3 + $0x1c] sm:$0xf]
  %v224 = vld [vmem:[%s3 + $0x20] sm:$0xf]
  %v225 = vld [vmem:[%s3 + $0x24] sm:$0xf]
  %v226 = vld [vmem:[%s3 + $0x28] sm:$0xf]
  %v227 = vld [vmem:[%s3 + $0x2c] sm:$0xf]
  %v228 = vld [vmem:[%s3 + $0x30] sm:$0xf]
  %v229 = vld [vmem:[%s3 + $0x34] sm:$0xf]
  %v230 = vld [vmem:[%s3 + $0x38] sm:$0xf]
  %v231 = vld [vmem:[%s3 + $0x3c] sm:$0xf]
  %v232 = vld [vmem:[%s3 + $0x40] sm:$0xf]
  %v233 = vld [vmem:[%s3 + $0x44] sm:$0xf]
  %v234 = vld [vmem:[%s3 + $0x48] sm:$0xf]
  %v235 = vld [vmem:[%s3 + $0x4c] sm:$0xf]
  %v236 = vld [vmem:[%s3 + $0x50] sm:$0xf]
  %v237 = vld [vmem:[%s3 + $0x54] sm:$0xf]
  %v238 = vld [vmem:[%s3 + $0x58] sm:$0xf]
  %v239 = vld [vmem:[%s3 + $0x5c] sm:$0xf]
  %v240 = vld [vmem:[%s3 + $0x60] sm:$0xf]
  %v241 = vld [vmem:[%s3 + $0x64] sm:$0xf]
  %v242 = vld [vmem:[%s3 + $0x68] sm:$0xf]
  %v243 = vld [vmem:[%s3 + $0x6c] sm:$0xf]
  %v244 = vld [vmem:[%s3 + $0x70] sm:$0xf]
  %v245 = vld [vmem:[%s3 + $0x74] sm:$0xf]
  %v246 = vld [vmem:[%s3 + $0x78] sm:$0xf]
  %v247 = vld [vmem:[%s3 + $0x7c] sm:$0xf]
  %v280 = vunpack.c.l.b16 %v216
  %v281 = vunpack.c.l.b16 %v217
  %v282 = vunpack.c.l.b16 %v218
  %v283 = vunpack.c.l.b16 %v219
  %v284 = vunpack.c.l.b16 %v220
  %v285 = vunpack.c.l.b16 %v221
  %v286 = vunpack.c.l.b16 %v222
  %v287 = vunpack.c.l.b16 %v223
  %v288 = vunpack.c.l.b16 %v224
  %v289 = vunpack.c.l.b16 %v225
  %v290 = vunpack.c.l.b16 %v226
  %v291 = vunpack.c.l.b16 %v227
  %v292 = vunpack.c.l.b16 %v228
  %v293 = vunpack.c.l.b16 %v229
  %v294 = vunpack.c.l.b16 %v230
  %v295 = vunpack.c.l.b16 %v231
  %v296 = vunpack.c.l.b16 %v232
  %v297 = vunpack.c.l.b16 %v233
  %v298 = vunpack.c.l.b16 %v234
  %v299 = vunpack.c.l.b16 %v235
  %v300 = vunpack.c.l.b16 %v236
  %v301 = vunpack.c.l.b16 %v237
  %v302 = vunpack.c.l.b16 %v238
  %v303 = vunpack.c.l.b16 %v239
  %v304 = vunpack.c.l.b16 %v240
  %v305 = vunpack.c.l.b16 %v241
  %v306 = vunpack.c.l.b16 %v242
  %v307 = vunpack.c.l.b16 %v243
  %v308 = vunpack.c.l.b16 %v244
  %v309 = vunpack.c.l.b16 %v245
  %v310 = vunpack.c.l.b16 %v246
  %v311 = vunpack.c.l.b16 %v247
  %v312 = vpack.c.b16 %v281, %v280
  %v313 = vpack.c.b16 %v283, %v282
  %v314 = vpack.c.b16 %v285, %v284
  %v315 = vpack.c.b16 %v287, %v286
  %v316 = vpack.c.b16 %v289, %v288
  %v317 = vpack.c.b16 %v291, %v290
  %v318 = vpack.c.b16 %v293, %v292
  %v319 = vpack.c.b16 %v295, %v294
  %v320 = vpack.c.b16 %v297, %v296
  %v321 = vpack.c.b16 %v299, %v298
  %v322 = vpack.c.b16 %v301, %v300
  %v323 = vpack.c.b16 %v303, %v302
  %v324 = vpack.c.b16 %v305, %v304
  %v325 = vpack.c.b16 %v307, %v306
  %v326 = vpack.c.b16 %v309, %v308
  %v327 = vpack.c.b16 %v311, %v310
  %344 = vmatprep.subr.bf16.mxu0 0
  %345 = vmatpush1.bf16.msra.mxu0 %v319
  %346 = vmatprep.subr.bf16.mxu0 0
  %347 = vmatpush1.bf16.msra.mxu0 %v318
  %348 = vmatprep.subr.bf16.mxu0 0
  %349 = vmatpush1.bf16.msra.mxu0 %v317
  %350 = vmatprep.subr.bf16.mxu0 0
  %351 = vmatpush1.bf16.msra.mxu0 %v316
  %352 = vmatprep.subr.bf16.mxu0 0
  %353 = vmatpush1.bf16.msra.mxu0 %v315
  %354 = vmatprep.subr.bf16.mxu0 0
  %355 = vmatpush1.bf16.msra.mxu0 %v314
  %356 = vmatprep.subr.bf16.mxu0 0
  %357 = vmatpush1.bf16.msra.mxu0 %v313
  %358 = vmatprep.subr.bf16.mxu0 0
  %359 = vmatpush1.bf16.msra.mxu0 %v312
  %360 = vmatprep.subr.bf16.mxu0 0
  %361 = vmatpush2.bf16.msra.mxu0 %v327
  %362 = vmatprep.subr.bf16.mxu0 0
  %363 = vmatpush2.bf16.msra.mxu0 %v326
  %364 = vmatprep.subr.bf16.mxu0 0
  %365 = vmatpush2.bf16.msra.mxu0 %v325
  %366 = vmatprep.subr.bf16.mxu0 0
  %367 = vmatpush2.bf16.msra.mxu0 %v324
  %368 = vmatprep.subr.bf16.mxu0 0
  %369 = vmatpush2.bf16.msra.mxu0 %v323
  %370 = vmatprep.subr.bf16.mxu0 0
  %371 = vmatpush2.bf16.msra.mxu0 %v322
  %372 = vmatprep.subr.bf16.mxu0 0
  %373 = vmatpush2.bf16.msra.mxu0 %v321
  %374 = vmatprep.subr.bf16.mxu0 0
  %375 = vmatpush2.bf16.msra.mxu0 %v320
  %376 = vmatprep.mubr.bf16.mxu0 %v213
  %377 = vmatmul.mubr.bf16.gmra.mxu0 %v212
  %v378 = vpop.f32.mrf.mxu0
  %v379 = vadd.f32 0.0, %v378
  %v380 = vpop.f32.mrf.mxu0
  %v381 = vpop.f32.mrf.mxu0
  %v382 = vadd.f32 0.0, %v381
  %v383 = vpop.f32.mrf.mxu0
  %384 = vmatprep.mubr.bf16.mxu0 %v215
  %385 = vmatmul.mubr.bf16.gmra.mxu0 %v214
  %v386 = vpop.f32.mrf.mxu0
  %v387 = vadd.f32 0.0, %v386
  %v388 = vpop.f32.mrf.mxu0
  %v389 = vpop.f32.mrf.mxu0
  %v390 = vadd.f32 0.0, %v389
  %v391 = vpop.f32.mrf.mxu0
  %392 = vdwg.mxu0
  %v393 = vunpack.c.l.bf16 %v27
  %v394 = vunpack.c.l.bf16 %v28
  %v395 = vunpack.c.l.bf16 %v29
  %v396 = vunpack.c.l.bf16 %v30
  %v397 = vadd.f32 %v393, %v379
  %v398 = vadd.f32 %v394, %v382
  %v399 = vadd.f32 %v395, %v387
  %v400 = vadd.f32 %v396, %v390
  %v401 = vld [vmem:[%s4] sm:$0x1]
  %v403 = vlaneseq
  %v404 = vshrl.u32 %v403, 7
  %v405 = vsub.s32 0, %v404
  %v406 = vrot.slane %v401, %v405
  %v408 = vadd.f32 %v397, %v406
  %v409 = vadd.f32 %v398, %v406
  %v410 = vadd.f32 %v399, %v406
  %v411 = vadd.f32 %v400, %v406
  %v412 = vld [vmem:[%s5] sm:$0x1]
  %v413 = vld [vmem:[%s6] sm:$0x1]
  %414 = vadd.xlane.f32.xlu0 %v408
  %v415 = vpop.xlane.xlu0 %414
  %416 = vadd.xlane.f32.xlu0 %v409
  %v417 = vpop.xlane.xlu0 %416
  %418 = vadd.xlane.f32.xlu0 %v410
  %v419 = vpop.xlane.xlu0 %418
  %420 = vadd.xlane.f32.xlu0 %v411
  %v421 = vpop.xlane.xlu0 %420
  %v422 = vrcp.pop 128.0
  %v423 = vmul.f32 %v415, %v422
  %v424 = vmul.f32 %v417, %v422
  %v425 = vmul.f32 %v419, %v422
  %v426 = vmul.f32 %v421, %v422
  %v427 = vsub.f32 %v408, %v423
  %v428 = vsub.f32 %v409, %v424
  %v429 = vsub.f32 %v410, %v425
  %v430 = vsub.f32 %v411, %v426
  %v431 = vmul.f32 %v427, %v427
  %v432 = vmul.f32 %v428, %v428
  %v433 = vmul.f32 %v429, %v429
  %v434 = vmul.f32 %v430, %v430
  %435 = vadd.xlane.f32.xlu0 %v431
  %v436 = vpop.xlane.xlu0 %435
  %437 = vadd.xlane.f32.xlu0 %v432
  %v438 = vpop.xlane.xlu0 %437
  %439 = vadd.xlane.f32.xlu0 %v433
  %v440 = vpop.xlane.xlu0 %439
  %441 = vadd.xlane.f32.xlu0 %v434
  %v442 = vpop.xlane.xlu0 %441
  %v443 = vmul.f32 %v436, %v422
  %v444 = vmul.f32 %v438, %v422
  %v445 = vmul.f32 %v440, %v422
  %v446 = vmul.f32 %v442, %v422
  %v447 = vadd.f32 %v443, 1e-05
  %v448 = vadd.f32 %v444, 1e-05
  %v449 = vadd.f32 %v445, 1e-05
  %v450 = vadd.f32 %v446, 1e-05
  %v451 = vrsqrt.pop %v447
  %v452 = vrsqrt.pop %v448
  %v453 = vrsqrt.pop %v449
  %v454 = vrsqrt.pop %v450
  %v455 = vmul.f32 %v427, %v451
  %v456 = vmul.f32 %v428, %v452
  %v457 = vmul.f32 %v429, %v453
  %v458 = vmul.f32 %v430, %v454
  %v460 = vlaneseq
  %v461 = vshrl.u32 %v460, 7
  %v462 = vsub.s32 0, %v461
  %v463 = vrot.slane %v412, %v462
  %v465 = vmul.f32 %v455, %v463
  %v466 = vmul.f32 %v456, %v463
  %v467 = vmul.f32 %v457, %v463
  %v468 = vmul.f32 %v458, %v463
  %v470 = vlaneseq
  %v471 = vshrl.u32 %v470, 7
  %v472 = vsub.s32 0, %v471
  %v473 = vrot.slane %v413, %v472
  %v475 = vadd.f32 %v465, %v473
  %v476 = vadd.f32 %v466, %v473
  %v477 = vadd.f32 %v467, %v473
  %v478 = vadd.f32 %v468, %v473
  %v479 = vpack.c.bf16 %v476, %v475
  %v480 = vpack.c.bf16 %v478, %v477
  %v483 = vunpack.c.l.b16 %v479
  %v484 = vunpack.c.h.b16 %v479
  %v485 = vunpack.c.l.b16 %v480
  %v486 = vunpack.c.h.b16 %v480
  %v487 = vpack.c.b16 %v483, %v483
  %v488 = vpack.c.b16 %v484, %v484
  %v489 = vpack.c.b16 %v485, %v485
  %v490 = vpack.c.b16 %v486, %v486
  %495 = vst [vmem:[%s7] sm:$0xf] %v487
  %496 = vst [vmem:[%s7 + $0x4] sm:$0xf] %v488
  %497 = vst [vmem:[%s7 + $0x8] sm:$0xf] %v489
  %498 = vst [vmem:[%s7 + $0xc] sm:$0xf] %v490
  // Predicated region
  $region30: #{transformer_forward.30} parent=0 // pred_check
    _
  $region31: #{transformer_forward.30} parent=0 // pred_check_branch
    %500 = sbr.rel (0) target = $region33
  $region32: #{transformer_forward.30} parent=0 // pred_region
    _
  $region33: #{transformer_forward.30} parent=0 // pred_fallthru
    _
  // Predicated region
  $region34: #{transformer_forward.30} parent=0 // pred_check
    _
  $region35: #{transformer_forward.30} parent=0 // pred_check_branch
    %502 = sbr.rel (0) target = $region37
  $region36: #{transformer_forward.30} parent=0 // pred_region
    _
  $region37: #{transformer_forward.30} parent=0 // pred_fallthru
    _

// kernel: transformer_forward.40
$region0: #{transformer_forward.40}
  #allocation0 [shape = 'u32[]', space=smem, size = 0x4, offset = 0x4, fixed_abs, tag = 'smem constant byte address 0x4 - core index']
  #allocation1 [shape = 'u32[144,128]{1,0:T(1,128)}', space=vmem, size = 0x12000, scoped, tag = 'internal scratch']
  #allocation2 [shape = 'f32[32,256]{1,0:T(8,128)}', space=vmem, size = 0x8000, scoped, tag = 'scratch operand']
  %s0 = inlined_call_operand.vmem [shape: bf16[32,128], index: 0, kind: input, shape index: {}]
  %s1 = inlined_call_operand.vmem [shape: bf16[128,256], index: 1, kind: input, shape index: {}]
  %s2 = inlined_call_operand.vmem [shape: f32[1,256], index: 2, kind: input, shape index: {}]
  %s3 = inlined_call_operand.vmem [shape: bf16[32,256], index: 3, kind: output, shape index: {}]
  %s4 = sld [smem:[#allocation0]]
  $region30: #{transformer_forward.40} parent=0
    _
  %s6 = ssub.s32 1, %s4
  %s7 = scalar_select 0, %s6, %s4
  // Predicated region
  $region2: #{transformer_forward.40} parent=0 // pred_check
    _
  $region3: #{transformer_forward.40} parent=0 // pred_check_branch
    %9 = sbr.rel (0) target = $region5
  $region4: #{transformer_forward.40} parent=0 // pred_region
    _
  $region5: #{transformer_forward.40} parent=0 // pred_fallthru
    _
  // Predicated region
  $region6: #{transformer_forward.40} parent=0 // pred_check
    _
  $region7: #{transformer_forward.40} parent=0 // pred_check_branch
    %11 = sbr.rel (0) target = $region9
  $region8: #{transformer_forward.40} parent=0 // pred_region
    _
  $region9: #{transformer_forward.40} parent=0 // pred_fallthru
    _
  // Predicated region
  $region10: #{transformer_forward.40} parent=0 // pred_check
    _
  $region11: #{transformer_forward.40} parent=0 // pred_check_branch
    %13 = sbr.rel (0) target = $region13
  $region12: #{transformer_forward.40} parent=0 // pred_region
    _
  $region13: #{transformer_forward.40} parent=0 // pred_fallthru
    _
  %p15 = scmp.eq.s32.totalorder 0, 0
  // Predicated region
  $region14: #{transformer_forward.40} parent=0 // pred_check
    %p16 = pneg %p15
  $region15: #{transformer_forward.40} parent=0 // pred_check_branch
    %18 = sbr.rel (%p16) target = $region17
  $region16: #{transformer_forward.40} parent=0 // pred_region
    %19 = vst [vmem:[#allocation2] sm:$0xff] 0.0
    %20 = vst [vmem:[#allocation2 + $0x8] sm:$0xff] 0.0
    %21 = vst [vmem:[#allocation2 + $0x10] sm:$0xff] 0.0
    %22 = vst [vmem:[#allocation2 + $0x18] sm:$0xff] 0.0
    %23 = vst [vmem:[#allocation2 + $0x20] sm:$0xff] 0.0
    %24 = vst [vmem:[#allocation2 + $0x28] sm:$0xff] 0.0
    %25 = vst [vmem:[#allocation2 + $0x30] sm:$0xff] 0.0
    %26 = vst [vmem:[#allocation2 + $0x38] sm:$0xff] 0.0
  $region17: #{transformer_forward.40} parent=0 // pred_fallthru
    _
  %v27 = vld [vmem:[#allocation2] sm:$0xff]
  %v28 = vld [vmem:[#allocation2 + $0x8] sm:$0xff]
  %v29 = vld [vmem:[#allocation2 + $0x10] sm:$0xff]
  %v30 = vld [vmem:[#allocation2 + $0x18] sm:$0xff]
  %v31 = vld [vmem:[#allocation2 + $0x20] sm:$0xff]
  %v32 = vld [vmem:[#allocation2 + $0x28] sm:$0xff]
  %v33 = vld [vmem:[#allocation2 + $0x30] sm:$0xff]
  %v34 = vld [vmem:[#allocation2 + $0x38] sm:$0xff]
  %v35 = vld [vmem:[%s0] sm:$0xf]
  %v36 = vld [vmem:[%s0 + $0x4] sm:$0xf]
  %v37 = vld [vmem:[%s0 + $0x8] sm:$0xf]
  %v38 = vld [vmem:[%s0 + $0xc] sm:$0xf]
  %v39 = vld [vmem:[%s1] sm:$0xff]
  %v40 = vld [vmem:[%s1 + $0x8] sm:$0xff]
  %v41 = vld [vmem:[%s1 + $0x10] sm:$0xff]
  %v42 = vld [vmem:[%s1 + $0x18] sm:$0xff]
  %v43 = vld [vmem:[%s1 + $0x20] sm:$0xff]
  %v44 = vld [vmem:[%s1 + $0x28] sm:$0xff]
  %v45 = vld [vmem:[%s1 + $0x30] sm:$0xff]
  %v46 = vld [vmem:[%s1 + $0x38] sm:$0xff]
  %v47 = vld [vmem:[%s1 + $0x40] sm:$0xff]
  %v48 = vld [vmem:[%s1 + $0x48] sm:$0xff]
  %v49 = vld [vmem:[%s1 + $0x50] sm:$0xff]
  %v50 = vld [vmem:[%s1 + $0x58] sm:$0xff]
  %v51 = vld [vmem:[%s1 + $0x60] sm:$0xff]
  %v52 = vld [vmem:[%s1 + $0x68] sm:$0xff]
  %v53 = vld [vmem:[%s1 + $0x70] sm:$0xff]
  %v54 = vld [vmem:[%s1 + $0x78] sm:$0xff]
  %v59 = vunpack.c.l.b16 %v35
  %v60 = vunpack.c.l.b16 %v36
  %v61 = vunpack.c.l.b16 %v37
  %v62 = vunpack.c.l.b16 %v38
  %v63 = vpack.c.b16 %v60, %v59
  %v64 = vpack.c.b16 %v62, %v61
  %v83 = vunpack.c.l.b16 %v39
  %v84 = vunpack.c.h.b16 %v39
  %v85 = vunpack.c.l.b16 %v40
  %v86 = vunpack.c.h.b16 %v40
  %v87 = vunpack.c.l.b16 %v41
  %v88 = vunpack.c.h.b16 %v41
  %v89 = vunpack.c.l.b16 %v42
  %v90 = vunpack.c.h.b16 %v42
  %v91 = vunpack.c.l.b16 %v43
  %v92 = vunpack.c.h.b16 %v43
  %v93 = vunpack.c.l.b16 %v44
  %v94 = vunpack.c.h.b16 %v44
  %v95 = vunpack.c.l.b16 %v45
  %v96 = vunpack.c.h.b16 %v45
  %v97 = vunpack.c.l.b16 %v46
  %v98 = vunpack.c.h.b16 %v46
  %v99 = vunpack.c.l.b16 %v47
  %v100 = vunpack.c.h.b16 %v47
  %v101 = vunpack.c.l.b16 %v48
  %v102 = vunpack.c.h.b16 %v48
  %v103 = vunpack.c.l.b16 %v49
  %v104 = vunpack.c.h.b16 %v49
  %v105 = vunpack.c.l.b16 %v50
  %v106 = vunpack.c.h.b16 %v50
  %v107 = vunpack.c.l.b16 %v51
  %v108 = vunpack.c.h.b16 %v51
  %v109 = vunpack.c.l.b16 %v52
  %v110 = vunpack.c.h.b16 %v52
  %v111 = vunpack.c.l.b16 %v53
  %v112 = vunpack.c.h.b16 %v53
  %v113 = vunpack.c.l.b16 %v54
  %v114 = vunpack.c.h.b16 %v54
  %v115 = vpack.c.b16 %v85, %v83
  %v116 = vpack.c.b16 %v86, %v84
  %v117 = vpack.c.b16 %v89, %v87
  %v118 = vpack.c.b16 %v90, %v88
  %v119 = vpack.c.b16 %v93, %v91
  %v120 = vpack.c.b16 %v94, %v92
  %v121 = vpack.c.b16 %v97, %v95
  %v122 = vpack.c.b16 %v98, %v96
  %v123 = vpack.c.b16 %v101, %v99
  %v124 = vpack.c.b16 %v102, %v100
  %v125 = vpack.c.b16 %v105, %v103
  %v126 = vpack.c.b16 %v106, %v104
  %v127 = vpack.c.b16 %v109, %v107
  %v128 = vpack.c.b16 %v110, %v108
  %v129 = vpack.c.b16 %v113, %v111
  %v130 = vpack.c.b16 %v114, %v112
  %147 = vmatprep.subr.bf16.mxu0 %v130
  %148 = vmatpush1.bf16.msra.mxu0 %v129
  %149 = vmatprep.subr.bf16.mxu0 %v128
  %150 = vmatpush1.bf16.msra.mxu0 %v127
  %151 = vmatprep.subr.bf16.mxu0 %v126
  %152 = vmatpush1.bf16.msra.mxu0 %v125
  %153 = vmatprep.subr.bf16.mxu0 %v124
  %154 = vmatpush1.bf16.msra.mxu0 %v123
  %155 = vmatprep.subr.bf16.mxu0 %v122
  %156 = vmatpush1.bf16.msra.mxu0 %v121
  %157 = vmatprep.subr.bf16.mxu0 %v120
  %158 = vmatpush1.bf16.msra.mxu0 %v119
  %159 = vmatprep.subr.bf16.mxu0 %v118
  %160 = vmatpush1.bf16.msra.mxu0 %v117
  %161 = vmatprep.subr.bf16.mxu0 %v116
  %162 = vmatpush1.bf16.msra.mxu0 %v115
  %163 = vmatprep.subr.bf16.mxu0 0
  %164 = vmatpush2.bf16.msra.mxu0 0
  %165 = vmatprep.subr.bf16.mxu0 0
  %166 = vmatpush2.bf16.msra.mxu0 0
  %167 = vmatprep.subr.bf16.mxu0 0
  %168 = vmatpush2.bf16.msra.mxu0 0
  %169 = vmatprep.subr.bf16.mxu0 0
  %170 = vmatpush2.bf16.msra.mxu0 0
  %171 = vmatprep.subr.bf16.mxu0 0
  %172 = vmatpush2.bf16.msra.mxu0 0
  %173 = vmatprep.subr.bf16.mxu0 0
  %174 = vmatpush2.bf16.msra.mxu0 0
  %175 = vmatprep.subr.bf16.mxu0 0
  %176 = vmatpush2.bf16.msra.mxu0 0
  %177 = vmatprep.subr.bf16.mxu0 0
  %178 = vmatpush2.bf16.msra.mxu0 0
  %179 = vmatprep.mubr.bf16.mxu0 0
  %180 = vmatmul.mubr.bf16.gmra.mxu0 %v63
  %v181 = vpop.f32.mrf.mxu0
  %v182 = vadd.f32 0.0, %v181
  %v183 = vpop.f32.mrf.mxu0
  %v184 = vadd.f32 0.0, %v183
  %v185 = vpop.f32.mrf.mxu0
  %v186 = vadd.f32 0.0, %v185
  %v187 = vpop.f32.mrf.mxu0
  %v188 = vadd.f32 0.0, %v187
  %189 = vmatprep.mubr.bf16.mxu0 0
  %190 = vmatmul.mubr.bf16.gmra.mxu0 %v64
  %v191 = vpop.f32.mrf.mxu0
  %v192 = vadd.f32 0.0, %v191
  %v193 = vpop.f32.mrf.mxu0
  %v194 = vadd.f32 0.0, %v193
  %v195 = vpop.f32.mrf.mxu0
  %v196 = vadd.f32 0.0, %v195
  %v197 = vpop.f32.mrf.mxu0
  %v198 = vadd.f32 0.0, %v197
  %199 = vdwg.mxu0
  %v200 = vadd.f32 %v27, %v182
  %v201 = vadd.f32 %v28, %v184
  %v202 = vadd.f32 %v29, %v186
  %v203 = vadd.f32 %v30, %v188
  %v204 = vadd.f32 %v31, %v192
  %v205 = vadd.f32 %v32, %v194
  %v206 = vadd.f32 %v33, %v196
  %v207 = vadd.f32 %v34, %v198
  %208 = vst [vmem:[#allocation2] sm:$0xff] %v200
  %209 = vst [vmem:[#allocation2 + $0x8] sm:$0xff] %v201
  %210 = vst [vmem:[#allocation2 + $0x10] sm:$0xff] %v202
  %211 = vst [vmem:[#allocation2 + $0x18] sm:$0xff] %v203
  %212 = vst [vmem:[#allocation2 + $0x20] sm:$0xff] %v204
  %213 = vst [vmem:[#allocation2 + $0x28] sm:$0xff] %v205
  %214 = vst [vmem:[#allocation2 + $0x30] sm:$0xff] %v206
  %215 = vst [vmem:[#allocation2 + $0x38] sm:$0xff] %v207
  // Predicated region
  $region18: #{transformer_forward.40} parent=0 // pred_check
    %p216 = pneg %p15
  $region19: #{transformer_forward.40} parent=0 // pred_check_branch
    %218 = sbr.rel (%p216) target = $region21
  $region20: #{transformer_forward.40} parent=0 // pred_region
    %v219 = vld [vmem:[#allocation2] sm:$0xff]
    %v220 = vld [vmem:[#allocation2 + $0x8] sm:$0xff]
    %v221 = vld [vmem:[#allocation2 + $0x10] sm:$0xff]
    %v222 = vld [vmem:[#allocation2 + $0x18] sm:$0xff]
    %v223 = vld [vmem:[#allocation2 + $0x20] sm:$0xff]
    %v224 = vld [vmem:[#allocation2 + $0x28] sm:$0xff]
    %v225 = vld [vmem:[#allocation2 + $0x30] sm:$0xff]
    %v226 = vld [vmem:[#allocation2 + $0x38] sm:$0xff]
    %v227 = vld [vmem:[%s2] sm:$0x3]
    %v229 = vlaneseq
    %v230 = vshrl.u32 %v229, 7
    %v231 = vsub.s32 0, %v230
    %v232 = vrot.slane %v227, %v231
    %v233 = vlaneseq
    %v234 = vshrl.u32 %v233, 7
    %v235 = vsub.s32 1, %v234
    %v236 = vrot.slane %v227, %v235
    %v239 = vadd.f32 %v219, %v232
    %v240 = vadd.f32 %v220, %v236
    %v241 = vadd.f32 %v221, %v232
    %v242 = vadd.f32 %v222, %v236
    %v243 = vadd.f32 %v223, %v232
    %v244 = vadd.f32 %v224, %v236
    %v245 = vadd.f32 %v225, %v232
    %v246 = vadd.f32 %v226, %v236
    %v247 = vpack.c.bf16 %v241, %v239
    %v248 = vpack.c.bf16 %v242, %v240
    %v249 = vpack.c.bf16 %v245, %v243
    %v250 = vpack.c.bf16 %v246, %v244
    %v255 = vunpack.c.l.b16 %v247
    %v256 = vunpack.c.l.b16 %v248
    %v257 = vunpack.c.h.b16 %v247
    %v258 = vunpack.c.h.b16 %v248
    %v259 = vunpack.c.l.b16 %v249
    %v260 = vunpack.c.l.b16 %v250
    %v261 = vunpack.c.h.b16 %v249
    %v262 = vunpack.c.h.b16 %v250
    %v263 = vpack.c.b16 %v256, %v255
    %v264 = vpack.c.b16 %v258, %v257
    %v265 = vpack.c.b16 %v260, %v259
    %v266 = vpack.c.b16 %v262, %v261
    %271 = vst [vmem:[%s3] sm:$0xff] %v263
    %272 = vst [vmem:[%s3 + $0x8] sm:$0xff] %v264
    %273 = vst [vmem:[%s3 + $0x10] sm:$0xff] %v265
    %274 = vst [vmem:[%s3 + $0x18] sm:$0xff] %v266
  $region21: #{transformer_forward.40} parent=0 // pred_fallthru
    _
  // Predicated region
  $region22: #{transformer_forward.40} parent=0 // pred_check
    _
  $region23: #{transformer_forward.40} parent=0 // pred_check_branch
    %276 = sbr.rel (0) target = $region25
  $region24: #{transformer_forward.40} parent=0 // pred_region
    _
  $region25: #{transformer_forward.40} parent=0 // pred_fallthru
    _
  // Predicated region
  $region26: #{transformer_forward.40} parent=0 // pred_check
    _
  $region27: #{transformer_forward.40} parent=0 // pred_check_branch
    %278 = sbr.rel (0) target = $region29
  $region28: #{transformer_forward.40} parent=0 // pred_region
    _
  $region29: #{transformer_forward.40} parent=0 // pred_fallthru
    _

// kernel: transformer_forward.53
$region0: #{transformer_forward.53}
  #allocation0 [shape = 'u32[]', space=smem, size = 0x4, offset = 0x4, fixed_abs, tag = 'smem constant byte address 0x4 - core index']
  #allocation1 [shape = 'u32[144,128]{1,0:T(1,128)}', space=vmem, size = 0x12000, scoped, tag = 'internal scratch']
  #allocation2 [shape = 'f32[32,128]{1,0:T(8,128)}', space=vmem, size = 0x4000, scoped, tag = 'scratch operand']
  %s0 = inlined_call_operand.vmem [shape: bf16[32,128], index: 0, kind: input, shape index: {}]
  %s1 = inlined_call_operand.vmem [shape: bf16[128,128], index: 1, kind: input, shape index: {}]
  %s2 = inlined_call_operand.vmem [shape: f32[1,128], index: 2, kind: input, shape index: {}]
  %s3 = inlined_call_operand.hbm [shape: f32[32,128], index: 3, kind: output, shape index: {}]
  %s4 = sld [smem:[#allocation0]]
  $region30: #{transformer_forward.53} parent=0
    _
  %s6 = ssub.s32 1, %s4
  %s7 = scalar_select 0, %s6, %s4
  $region1: #{transformer_forward.53} parent=0
    #allocation3 [shape = 'u8[16384]{0}', space=vmem, size = 0x4000, scoped, tag = 'output window, operand 0, single buffered']
    #allocation4 [shape = 's32[1]{0}', space=sflag, size = 0x4, scoped, tag = 'scoped memory for transformer_forward.53']
    %8 = vsyncpa [#allocation4], 0
    // Predicated region
    $region2: #{transformer_forward.53} parent=1 // pred_check
      _
    $region3: #{transformer_forward.53} parent=1 // pred_check_branch
      %10 = sbr.rel (0) target = $region5
    $region4: #{transformer_forward.53} parent=1 // pred_region
      _
    $region5: #{transformer_forward.53} parent=1 // pred_fallthru
      _
    // Predicated region
    $region6: #{transformer_forward.53} parent=1 // pred_check
      _
    $region7: #{transformer_forward.53} parent=1 // pred_check_branch
      %12 = sbr.rel (0) target = $region9
    $region8: #{transformer_forward.53} parent=1 // pred_region
      _
    $region9: #{transformer_forward.53} parent=1 // pred_fallthru
      _
    // Predicated region
    $region10: #{transformer_forward.53} parent=1 // pred_check
      _
    $region11: #{transformer_forward.53} parent=1 // pred_check_branch
      %14 = sbr.rel (0) target = $region13
    $region12: #{transformer_forward.53} parent=1 // pred_region
      _
    $region13: #{transformer_forward.53} parent=1 // pred_fallthru
      _
    %p16 = scmp.eq.s32.totalorder 0, 0
    // Predicated region
    $region14: #{transformer_forward.53} parent=1 // pred_check
      %p17 = pneg %p16
    $region15: #{transformer_forward.53} parent=1 // pred_check_branch
      %19 = sbr.rel (%p17) target = $region17
    $region16: #{transformer_forward.53} parent=1 // pred_region
      %20 = vst [vmem:[#allocation2] sm:$0xff] 0.0
      %21 = vst [vmem:[#allocation2 + $0x8] sm:$0xff] 0.0
      %22 = vst [vmem:[#allocation2 + $0x10] sm:$0xff] 0.0
      %23 = vst [vmem:[#allocation2 + $0x18] sm:$0xff] 0.0
    $region17: #{transformer_forward.53} parent=1 // pred_fallthru
      _
    %v24 = vld [vmem:[#allocation2] sm:$0xff]
    %v25 = vld [vmem:[#allocation2 + $0x8] sm:$0xff]
    %v26 = vld [vmem:[#allocation2 + $0x10] sm:$0xff]
    %v27 = vld [vmem:[#allocation2 + $0x18] sm:$0xff]
    %v28 = vld [vmem:[%s0] sm:$0xf]
    %v29 = vld [vmem:[%s0 + $0x4] sm:$0xf]
    %v30 = vld [vmem:[%s0 + $0x8] sm:$0xf]
    %v31 = vld [vmem:[%s0 + $0xc] sm:$0xf]
    %v32 = vld [vmem:[%s1] sm:$0xf]
    %v33 = vld [vmem:[%s1 + $0x4] sm:$0xf]
    %v34 = vld [vmem:[%s1 + $0x8] sm:$0xf]
    %v35 = vld [vmem:[%s1 + $0xc] sm:$0xf]
    %v36 = vld [vmem:[%s1 + $0x10] sm:$0xf]
    %v37 = vld [vmem:[%s1 + $0x14] sm:$0xf]
    %v38 = vld [vmem:[%s1 + $0x18] sm:$0xf]
    %v39 = vld [vmem:[%s1 + $0x1c] sm:$0xf]
    %v40 = vld [vmem:[%s1 + $0x20] sm:$0xf]
    %v41 = vld [vmem:[%s1 + $0x24] sm:$0xf]
    %v42 = vld [vmem:[%s1 + $0x28] sm:$0xf]
    %v43 = vld [vmem:[%s1 + $0x2c] sm:$0xf]
    %v44 = vld [vmem:[%s1 + $0x30] sm:$0xf]
    %v45 = vld [vmem:[%s1 + $0x34] sm:$0xf]
    %v46 = vld [vmem:[%s1 + $0x38] sm:$0xf]
    %v47 = vld [vmem:[%s1 + $0x3c] sm:$0xf]
    %v52 = vunpack.c.l.b16 %v28
    %v53 = vunpack.c.l.b16 %v29
    %v54 = vunpack.c.l.b16 %v30
    %v55 = vunpack.c.l.b16 %v31
    %v56 = vpack.c.b16 %v53, %v52
    %v57 = vpack.c.b16 %v55, %v54
    %v76 = vunpack.c.l.b16 %v32
    %v77 = vunpack.c.l.b16 %v33
    %v78 = vunpack.c.l.b16 %v34
    %v79 = vunpack.c.l.b16 %v35
    %v80 = vunpack.c.l.b16 %v36
    %v81 = vunpack.c.l.b16 %v37
    %v82 = vunpack.c.l.b16 %v38
    %v83 = vunpack.c.l.b16 %v39
    %v84 = vunpack.c.l.b16 %v40
    %v85 = vunpack.c.l.b16 %v41
    %v86 = vunpack.c.l.b16 %v42
    %v87 = vunpack.c.l.b16 %v43
    %v88 = vunpack.c.l.b16 %v44
    %v89 = vunpack.c.l.b16 %v45
    %v90 = vunpack.c.l.b16 %v46
    %v91 = vunpack.c.l.b16 %v47
    %v92 = vpack.c.b16 %v77, %v76
    %v93 = vpack.c.b16 %v79, %v78
    %v94 = vpack.c.b16 %v81, %v80
    %v95 = vpack.c.b16 %v83, %v82
    %v96 = vpack.c.b16 %v85, %v84
    %v97 = vpack.c.b16 %v87, %v86
    %v98 = vpack.c.b16 %v89, %v88
    %v99 = vpack.c.b16 %v91, %v90
    %108 = vmatprep.subr.bf16.mxu0 0
    %109 = vmatpush1.bf16.msra.mxu0 %v99
    %110 = vmatprep.subr.bf16.mxu0 0
    %111 = vmatpush1.bf16.msra.mxu0 %v98
    %112 = vmatprep.subr.bf16.mxu0 0
    %113 = vmatpush1.bf16.msra.mxu0 %v97
    %114 = vmatprep.subr.bf16.mxu0 0
    %115 = vmatpush1.bf16.msra.mxu0 %v96
    %116 = vmatprep.subr.bf16.mxu0 0
    %117 = vmatpush1.bf16.msra.mxu0 %v95
    %118 = vmatprep.subr.bf16.mxu0 0
    %119 = vmatpush1.bf16.msra.mxu0 %v94
    %120 = vmatprep.subr.bf16.mxu0 0
    %121 = vmatpush1.bf16.msra.mxu0 %v93
    %122 = vmatprep.subr.bf16.mxu0 0
    %123 = vmatpush1.bf16.msra.mxu0 %v92
    %124 = vmatprep.subr.bf16.mxu0 0
    %125 = vmatpush2.bf16.msra.mxu0 0
    %126 = vmatprep.subr.bf16.mxu0 0
    %127 = vmatpush2.bf16.msra.mxu0 0
    %128 = vmatprep.subr.bf16.mxu0 0
    %129 = vmatpush2.bf16.msra.mxu0 0
    %130 = vmatprep.subr.bf16.mxu0 0
    %131 = vmatpush2.bf16.msra.mxu0 0
    %132 = vmatprep.subr.bf16.mxu0 0
    %133 = vmatpush2.bf16.msra.mxu0 0
    %134 = vmatprep.subr.bf16.mxu0 0
    %135 = vmatpush2.bf16.msra.mxu0 0
    %136 = vmatprep.subr.bf16.mxu0 0
    %137 = vmatpush2.bf16.msra.mxu0 0
    %138 = vmatprep.subr.bf16.mxu0 0
    %139 = vmatpush2.bf16.msra.mxu0 0
    %140 = vmatprep.mubr.bf16.mxu0 0
    %141 = vmatmul.mubr.bf16.gmra.mxu0 %v56
    %v142 = vpop.f32.mrf.mxu0
    %v143 = vadd.f32 0.0, %v142
    %v144 = vpop.f32.mrf.mxu0
    %v145 = vpop.f32.mrf.mxu0
    %v146 = vadd.f32 0.0, %v145
    %v147 = vpop.f32.mrf.mxu0
    %148 = vmatprep.mubr.bf16.mxu0 0
    %149 = vmatmul.mubr.bf16.gmra.mxu0 %v57
    %v150 = vpop.f32.mrf.mxu0
    %v151 = vadd.f32 0.0, %v150
    %v152 = vpop.f32.mrf.mxu0
    %v153 = vpop.f32.mrf.mxu0
    %v154 = vadd.f32 0.0, %v153
    %v155 = vpop.f32.mrf.mxu0
    %156 = vdwg.mxu0
    %v157 = vadd.f32 %v24, %v143
    %v158 = vadd.f32 %v25, %v146
    %v159 = vadd.f32 %v26, %v151
    %v160 = vadd.f32 %v27, %v154
    %161 = vst [vmem:[#allocation2] sm:$0xff] %v157
    %162 = vst [vmem:[#allocation2 + $0x8] sm:$0xff] %v158
    %163 = vst [vmem:[#allocation2 + $0x10] sm:$0xff] %v159
    %164 = vst [vmem:[#allocation2 + $0x18] sm:$0xff] %v160
    // Predicated region
    $region18: #{transformer_forward.53} parent=1 // pred_check
      %p165 = pneg %p16
    $region19: #{transformer_forward.53} parent=1 // pred_check_branch
      %167 = sbr.rel (%p165) target = $region21
    $region20: #{transformer_forward.53} parent=1 // pred_region
      %v168 = vld [vmem:[#allocation2] sm:$0xff]
      %v169 = vld [vmem:[#allocation2 + $0x8] sm:$0xff]
      %v170 = vld [vmem:[#allocation2 + $0x10] sm:$0xff]
      %v171 = vld [vmem:[#allocation2 + $0x18] sm:$0xff]
      %v172 = vld [vmem:[%s2] sm:$0x1]
      %v174 = vlaneseq
      %v175 = vshrl.u32 %v174, 7
      %v176 = vsub.s32 0, %v175
      %v177 = vrot.slane %v172, %v176
      %v179 = vadd.f32 %v168, %v177
      %v180 = vadd.f32 %v169, %v177
      %v181 = vadd.f32 %v170, %v177
      %v182 = vadd.f32 %v171, %v177
      %183 = vst [vmem:[#allocation3] sm:$0xff] %v179
      %184 = vst [vmem:[#allocation3 + $0x8] sm:$0xff] %v180
      %185 = vst [vmem:[#allocation3 + $0x10] sm:$0xff] %v181
      %186 = vst [vmem:[#allocation3 + $0x18] sm:$0xff] %v182
    $region21: #{transformer_forward.53} parent=1 // pred_fallthru
      _
    // Predicated region
    $region22: #{transformer_forward.53} parent=1 // pred_check
      _
    $region23: #{transformer_forward.53} parent=1 // pred_check_branch
      %188 = sbr.rel (0) target = $region25
    $region24: #{transformer_forward.53} parent=1 // pred_region
      %s190 = ssub.s32 512, 512
      %191 = vsyncadd [#allocation4], %s190
      %s192 = sshll.u32 [#allocation3], 4
      %s193 = int_to_ptr.vmem [resolvable:$true] %s192
      %198 = dma.vmem_to_hbm [thread:$0]  %s193, 512, %s3, [#allocation4], 128, 128, 8
    $region25: #{transformer_forward.53} parent=1 // pred_fallthru
      _
    // Predicated region
    $region26: #{transformer_forward.53} parent=1 // pred_check
      _
    $region27: #{transformer_forward.53} parent=1 // pred_check_branch
      %200 = sbr.rel (0) target = $region29
    $region28: #{transformer_forward.53} parent=1 // pred_region
      %201 = dma.done [#allocation4], 512
    $region29: #{transformer_forward.53} parent=1 // pred_fallthru
      _
    %202 = vsyncpa [#allocation4], 1

// kernel: transformer_forward.41
$region0: #{transformer_forward.41}
  #allocation0 [shape = 'u32[]', space=smem, size = 0x4, offset = 0x4, fixed_abs, tag = 'smem constant byte address 0x4 - core index']
  #allocation1 [shape = 'u32[144,128]{1,0:T(1,128)}', space=vmem, size = 0x12000, scoped, tag = 'internal scratch']
  #allocation2 [shape = 'f32[4,16,1]{2,1,0:T(8,128)}', space=vmem, size = 0x8000, scoped, tag = 'scratch operand']
  #allocation3 [shape = 'f32[4,16,1]{2,1,0:T(8,128)}', space=vmem, size = 0x8000, scoped, tag = 'scratch operand']
  #allocation4 [shape = 'f32[4,16,32]{2,1,0:T(8,128)}', space=vmem, size = 0x8000, scoped, tag = 'scratch operand']
  %s0 = inlined_call_operand.vmem [shape: bf16[2,16,128], index: 0, kind: input, shape index: {}]
  %s1 = inlined_call_operand.vmem [shape: bf16[2,16,256], index: 1, kind: input, shape index: {}, may-alias: {1,2}]
  %s2 = inlined_call_operand.vmem [shape: bf16[2,16,256], index: 2, kind: input, shape index: {}, may-alias: {1,2}]
  %s3 = inlined_call_operand.vmem [shape: bf16[2,16,128], index: 3, kind: output, shape index: {}]
  %s4 = sld [smem:[#allocation0]]
  $region135: #{transformer_forward.41} parent=0
    _
  %s6 = ssub.s32 1, %s4
  %s7 = scalar_select 0, %s6, %s4
  $region1: #{transformer_forward.41} parent=0
    #allocation5 [shape = 'u8[8192]{0}', space=vmem, size = 0x2000, scoped, tag = 'input window, operand 1']
    #allocation6 [shape = 'u8[8192]{0}', space=vmem, size = 0x2000, scoped, tag = 'input window, operand 2']
    loop: start=0, step=1, limit=4
    $region2: #{transformer_forward.41} parent=1 // loop_pre_header
      _
    $region3: #{transformer_forward.41} parent=1 // loop_header
      %s9 = sphi 0, %s13
      %p10 = scmp.ge.s32.totalorder %s9, 4
      %s16 = sphi 0, %s35
      %s17 = sphi 0, %s31
      %s18 = sphi 0, %s27
      %s19 = sphi 0, %s16
      %s20 = sphi 0, %s17
      %s21 = sphi 0, %s18
      %s22 = sphi 0, %s19
      %s23 = sphi 0, %s20
      %s24 = sphi 0, %s21
      %s40 = sphi 0, %s42
      %s43 = sphi 0, %s40
      %s44 = sphi 0, %s43
      %s60 = sphi 0, %s44
      %s68 = sphi 0, %s70
      %s71 = sphi 0, %s68
      %s72 = sphi 0, %s71
      %s88 = sphi 0, %s72
      %s96 = sphi 0, %s98
      %s99 = sphi 0, %s96
      %s100 = sphi 0, %s99
      %s116 = sphi 0, %s100
      %s124 = sphi 0, %s126
      %s127 = sphi 0, %s124
      %s128 = sphi 0, %s127
      %s144 = sphi 0, %s128
    $region4: #{transformer_forward.41} parent=1 // loop_header_branch
      %12 = sbr.rel (%p10) target = $region8
    $region5: #{transformer_forward.41} parent=1 // loop_body
      %s14 = ssub.s32 %s9, 1
      %s15 = ssub.s32 %s9, 2
      %s25 = sadd.s32 1, %s18
      %p26 = scmp.ge.s32.totalorder %s25, 1
      %s27 = scalar_select %p26, 0, %s25
      %s28 = sadd.s32 1, %s17
      %s29 = scalar_select %p26, %s28, %s17
      %p30 = scmp.ge.s32.totalorder %s29, 1
      %s31 = scalar_select %p30, 0, %s29
      %s32 = sadd.s32 1, %s16
      %s33 = scalar_select %p30, %s32, %s16
      %p34 = scmp.ge.s32.totalorder %s33, 2
      %s35 = scalar_select %p34, 0, %s33
      %s36 = ssub.s32 %s16, %s35
      %s37 = ssub.s32 %s17, %s31
      %s38 = sor.u32 %s36, %s37
      %p39 = scmp.eq.s32.totalorder %s38, 0
      %s41 = sadd.s32 %s40, 1
      %s42 = scalar_select %p39, %s40, %s41
      %p45 = pneg %p39
      %p46 = scmp.eq.s32.totalorder %s9, 1
      %p47 = por %p45, %p46
      %p48 = scmp.ne.s32.totalorder %s40, %s43
      %p49 = scmp.eq.s32.totalorder %s9, 0
      %p50 = por %p48, %p49
      %p51 = scmp.ne.s32.totalorder %s40, %s43
      %p52 = scmp.eq.s32.totalorder %s14, 1
      %p53 = por %p51, %p52
      %p54 = scmp.ne.s32.totalorder %s43, %s44
      %p55 = scmp.eq.s32.totalorder %s14, 0
      %p56 = por %p54, %p55
      %p57 = scmp.ne.s32.totalorder %s43, %s44
      %p58 = scmp.eq.s32.totalorder %s15, 1
      %p59 = por %p57, %p58
      %p61 = scmp.ne.s32.totalorder %s44, %s60
      %p62 = scmp.eq.s32.totalorder %s15, 0
      %p63 = por %p61, %p62
      %s64 = ssub.s32 %s16, %s35
      %s65 = ssub.s32 %s18, %s27
      %s66 = sor.u32 %s64, %s65
      %p67 = scmp.eq.s32.totalorder %s66, 0
      %s69 = sadd.s32 %s68, 1
      %s70 = scalar_select %p67, %s68, %s69
      %p73 = pneg %p67
      %p74 = scmp.eq.s32.totalorder %s9, 1
      %p75 = por %p73, %p74
      %p76 = scmp.ne.s32.totalorder %s68, %s71
      %p77 = scmp.eq.s32.totalorder %s9, 0
      %p78 = por %p76, %p77
      %p79 = scmp.ne.s32.totalorder %s68, %s71
      %p80 = scmp.eq.s32.totalorder %s14, 1
      %p81 = por %p79, %p80
      %p82 = scmp.ne.s32.totalorder %s71, %s72
      %p83 = scmp.eq.s32.totalorder %s14, 0
      %p84 = por %p82, %p83
      %p85 = scmp.ne.s32.totalorder %s71, %s72
      %p86 = scmp.eq.s32.totalorder %s15, 1
      %p87 = por %p85, %p86
      %p89 = scmp.ne.s32.totalorder %s72, %s88
      %p90 = scmp.eq.s32.totalorder %s15, 0
      %p91 = por %p89, %p90
      %s92 = ssub.s32 %s16, %s35
      %s93 = ssub.s32 %s18, %s27
      %s94 = sor.u32 %s92, %s93
      %p95 = scmp.eq.s32.totalorder %s94, 0
      %s97 = sadd.s32 %s96, 1
      %s98 = scalar_select %p95, %s96, %s97
      %p101 = pneg %p95
      %p102 = scmp.eq.s32.totalorder %s9, 1
      %p103 = por %p101, %p102
      %p104 = scmp.ne.s32.totalorder %s96, %s99
      %p105 = scmp.eq.s32.totalorder %s9, 0
      %p106 = por %p104, %p105
      %p107 = scmp.ne.s32.totalorder %s96, %s99
      %p108 = scmp.eq.s32.totalorder %s14, 1
      %p109 = por %p107, %p108
      %p110 = scmp.ne.s32.totalorder %s99, %s100
      %p111 = scmp.eq.s32.totalorder %s14, 0
      %p112 = por %p110, %p111
      %p113 = scmp.ne.s32.totalorder %s99, %s100
      %p114 = scmp.eq.s32.totalorder %s15, 1
      %p115 = por %p113, %p114
      %p117 = scmp.ne.s32.totalorder %s100, %s116
      %p118 = scmp.eq.s32.totalorder %s15, 0
      %p119 = por %p117, %p118
      %s120 = ssub.s32 %s16, %s35
      %s121 = ssub.s32 %s17, %s31
      %s122 = sor.u32 %s120, %s121
      %p123 = scmp.eq.s32.totalorder %s122, 0
      %s125 = sadd.s32 %s124, 1
      %s126 = scalar_select %p123, %s124, %s125
      %p129 = pneg %p123
      %p130 = scmp.eq.s32.totalorder %s9, 1
      %p131 = por %p129, %p130
      %p132 = scmp.ne.s32.totalorder %s124, %s127
      %p133 = scmp.eq.s32.totalorder %s9, 0
      %p134 = por %p132, %p133
      %p135 = scmp.ne.s32.totalorder %s124, %s127
      %p136 = scmp.eq.s32.totalorder %s14, 1
      %p137 = por %p135, %p136
      %p138 = scmp.ne.s32.totalorder %s127, %s128
      %p139 = scmp.eq.s32.totalorder %s14, 0
      %p140 = por %p138, %p139
      %p141 = scmp.ne.s32.totalorder %s127, %s128
      %p142 = scmp.eq.s32.totalorder %s15, 1
      %p143 = por %p141, %p142
      %p145 = scmp.ne.s32.totalorder %s128, %s144
      %p146 = scmp.eq.s32.totalorder %s15, 0
      %p147 = por %p145, %p146
      %p148 = scmp.le.s32.totalorder 1, %s9
      %p149 = scmp.lt.s32.totalorder %s9, 3
      %p150 = pnand %p148, %p149
      %p151 = pneg %p150
      // Predicated region
      $region9: #{transformer_forward.41} parent=5 // pred_check
        _
      $region10: #{transformer_forward.41} parent=5 // pred_check_branch
        %153 = sbr.rel (%p150) target = $region12
      $region11: #{transformer_forward.41} parent=5 // pred_region
        %s154 = ssub.s32 %s9, 1
      $region12: #{transformer_forward.41} parent=5 // pred_fallthru
        _
      %p155 = scmp.lt.s32.totalorder %s9, 2
      // Predicated region
      $region13: #{transformer_forward.41} parent=5 // pred_check
        %p156 = pneg %p155
      $region14: #{transformer_forward.41} parent=5 // pred_check_branch
        %158 = sbr.rel (%p156) target = $region16
      $region15: #{transformer_forward.41} parent=5 // pred_region
        // Predicated region
        $region17: #{transformer_forward.41} parent=15 // pred_check
          %p159 = pneg %p50
        $region18: #{transformer_forward.41} parent=15 // pred_check_branch
          %161 = sbr.rel (%p159) target = $region20
        $region19: #{transformer_forward.41} parent=15 // pred_region
          %s162 = smul.u32 2, %s17
          %p163 = scmp.lt.s32.totalorder %s16, 1
          %s164 = scalar_select %p163, %s16, 1
          %p165 = scmp.lt.s32.totalorder %s162, 1
          %s166 = scalar_select %p165, %s162, 1
          %s167 = smul.addr %s164, 2
          %s168 = sadd.s32 %s166, %s167
          %s169 = smul.addr %s168, 4
          %s170 = scalar_lea.vmem %s0, %s169
          %s171 = smul.u32 2, %s17
        $region20: #{transformer_forward.41} parent=15 // pred_fallthru
          _
        // Predicated region
        $region21: #{transformer_forward.41} parent=15 // pred_check
          %p172 = pneg %p78
        $region22: #{transformer_forward.41} parent=15 // pred_check_branch
          %174 = sbr.rel (%p172) target = $region24
        $region23: #{transformer_forward.41} parent=15 // pred_region
          %s175 = sand.u32 %s68, 1
          %s176 = sand.u32 %s68, 1
          %s177 = smul.addr %s176, 8
          %s178 = scalar_lea.vmem [#allocation5], %s177
          %s179 = smul.u32 2, %s18
          %s180 = smul.addr %s179, 2
          %s181 = smul.addr %s16, 4
          %s182 = sadd.s32 %s180, %s181
          %s183 = smul.addr %s182, 4
          %s184 = scalar_lea.vmem %s1, %s183
          // Predicated region
          $region25: #{transformer_forward.41} parent=23 // pred_check
            _
          $region26: #{transformer_forward.41} parent=23 // pred_check_branch
            %186 = sbr.rel (0) target = $region28
          $region27: #{transformer_forward.41} parent=23 // pred_region
            // Predicated region
            $region29: #{transformer_forward.41} parent=27 // pred_check
              _
            $region30: #{transformer_forward.41} parent=27 // pred_check_branch
              %188 = sbr.rel target = $region32
            $region31: #{transformer_forward.41} parent=27 // pred_region
              // Predicated region
              $region44: #{transformer_forward.41} parent=31 // pred_check
                _
              $region45: #{transformer_forward.41} parent=31 // pred_check_branch
                %206 = sbr.rel (0) target = $region47
              $region46: #{transformer_forward.41} parent=31 // pred_region
                loop: start=0, step=1, limit=1
                $region48: #{transformer_forward.41} parent=46 // loop_pre_header
                  _
                $region49: #{transformer_forward.41} parent=46 // loop_header
                  %s208 = sphi 0, %s212
                  %p209 = scmp.ge.s32.totalorder %s208, 1
                  %s213 = sphi %s184, %s184
                  %s214 = sphi %s178, %s178
                $region50: #{transformer_forward.41} parent=46 // loop_header_branch
                  %211 = sbr.rel (%p209) target = $region54
                $region51: #{transformer_forward.41} parent=46 // loop_body
                  _
                $region52: #{transformer_forward.41} parent=46 // loop_footer
                  %s212 = sadd.s32 1, %s208
                $region53: #{transformer_forward.41} parent=46 // loop_footer_branch
                  %207 = sbr.rel target = $region49
                $region54: #{transformer_forward.41} parent=46 // loop_exit
                  _
                %s216 = ssub.s32 16, 1
                loop: start=0, step=1, limit=1
                $region55: #{transformer_forward.41} parent=46 // loop_pre_header
                  _
                $region56: #{transformer_forward.41} parent=46 // loop_header
                  %s218 = sphi 0, %s222
                  %p219 = scmp.ge.s32.totalorder %s218, 1
                  %s223 = sphi %s184, %s184
                  %s224 = sphi %s178, %s178
                $region57: #{transformer_forward.41} parent=46 // loop_header_branch
                  %221 = sbr.rel (%p219) target = $region61
                $region58: #{transformer_forward.41} parent=46 // loop_body
                  %v225 = vld [vmem:[%s223] sm:%s216]
                  %226 = vst [vmem:[%s224] sm:%s216] %v225
                  %v227 = vld [vmem:[%s223 + $0x8] sm:%s216]
                  %228 = vst [vmem:[%s224 + $0x4] sm:%s216] %v227
                $region59: #{transformer_forward.41} parent=46 // loop_footer
                  %s222 = sadd.s32 1, %s218
                $region60: #{transformer_forward.41} parent=46 // loop_footer_branch
                  %217 = sbr.rel target = $region56
                $region61: #{transformer_forward.41} parent=46 // loop_exit
                  _
              $region47: #{transformer_forward.41} parent=31 // pred_fallthru
                _
            $region32: #{transformer_forward.41} parent=27 // pred_fallthru
              _
            // Predicated region
            $region33: #{transformer_forward.41} parent=27 // pred_check
              _
            $region34: #{transformer_forward.41} parent=27 // pred_check_branch
              %190 = sbr.rel (0) target = $region36
            $region35: #{transformer_forward.41} parent=27 // pred_region
              %s192 = ssub.s32 16, 1
              loop: start=0, step=1, limit=1
              $region37: #{transformer_forward.41} parent=35 // loop_pre_header
                _
              $region38: #{transformer_forward.41} parent=35 // loop_header
                %s194 = sphi 0, %s198
                %p195 = scmp.ge.s32.totalorder %s194, 1
                %s199 = sphi %s184, %s184
                %s200 = sphi %s178, %s178
              $region39: #{transformer_forward.41} parent=35 // loop_header_branch
                %197 = sbr.rel (%p195) target = $region43
              $region40: #{transformer_forward.41} parent=35 // loop_body
                %v201 = vld [vmem:[%s199] sm:%s192]
                %202 = vst [vmem:[%s200] sm:%s192] %v201
                %v203 = vld [vmem:[%s199 + $0x8] sm:%s192]
                %204 = vst [vmem:[%s200 + $0x4] sm:%s192] %v203
              $region41: #{transformer_forward.41} parent=35 // loop_footer
                %s198 = sadd.s32 1, %s194
              $region42: #{transformer_forward.41} parent=35 // loop_footer_branch
                %193 = sbr.rel target = $region38
              $region43: #{transformer_forward.41} parent=35 // loop_exit
                _
            $region36: #{transformer_forward.41} parent=27 // pred_fallthru
              _
          $region28: #{transformer_forward.41} parent=23 // pred_fallthru
            _
          %229 = vnop
        $region24: #{transformer_forward.41} parent=15 // pred_fallthru
          _
        // Predicated region
        $region62: #{transformer_forward.41} parent=15 // pred_check
          %p230 = pneg %p106
        $region63: #{transformer_forward.41} parent=15 // pred_check_branch
          %232 = sbr.rel (%p230) target = $region65
        $region64: #{transformer_forward.41} parent=15 // pred_region
          %s233 = sand.u32 %s96, 1
          %s234 = sand.u32 %s96, 1
          %s235 = smul.addr %s234, 8
          %s236 = scalar_lea.vmem [#allocation6], %s235
          %s237 = smul.u32 2, %s18
          %s238 = smul.addr %s237, 2
          %s239 = sadd.s32 1, %s238
          %s240 = smul.addr %s16, 4
          %s241 = sadd.s32 %s239, %s240
          %s242 = smul.addr %s241, 4
          %s243 = scalar_lea.vmem %s2, %s242
          // Predicated region
          $region66: #{transformer_forward.41} parent=64 // pred_check
            _
          $region67: #{transformer_forward.41} parent=64 // pred_check_branch
            %245 = sbr.rel (0) target = $region69
          $region68: #{transformer_forward.41} parent=64 // pred_region
            // Predicated region
            $region70: #{transformer_forward.41} parent=68 // pred_check
              _
            $region71: #{transformer_forward.41} parent=68 // pred_check_branch
              %247 = sbr.rel target = $region73
            $region72: #{transformer_forward.41} parent=68 // pred_region
              // Predicated region
              $region85: #{transformer_forward.41} parent=72 // pred_check
                _
              $region86: #{transformer_forward.41} parent=72 // pred_check_branch
                %265 = sbr.rel (0) target = $region88
              $region87: #{transformer_forward.41} parent=72 // pred_region
                loop: start=0, step=1, limit=1
                $region89: #{transformer_forward.41} parent=87 // loop_pre_header
                  _
                $region90: #{transformer_forward.41} parent=87 // loop_header
                  %s267 = sphi 0, %s271
                  %p268 = scmp.ge.s32.totalorder %s267, 1
                  %s272 = sphi %s243, %s243
                  %s273 = sphi %s236, %s236
                $region91: #{transformer_forward.41} parent=87 // loop_header_branch
                  %270 = sbr.rel (%p268) target = $region95
                $region92: #{transformer_forward.41} parent=87 // loop_body
                  _
                $region93: #{transformer_forward.41} parent=87 // loop_footer
                  %s271 = sadd.s32 1, %s267
                $region94: #{transformer_forward.41} parent=87 // loop_footer_branch
                  %266 = sbr.rel target = $region90
                $region95: #{transformer_forward.41} parent=87 // loop_exit
                  _
                %s275 = ssub.s32 16, 1
                loop: start=0, step=1, limit=1
                $region96: #{transformer_forward.41} parent=87 // loop_pre_header
                  _
                $region97: #{transformer_forward.41} parent=87 // loop_header
                  %s277 = sphi 0, %s281
                  %p278 = scmp.ge.s32.totalorder %s277, 1
                  %s282 = sphi %s243, %s243
                  %s283 = sphi %s236, %s236
                $region98: #{transformer_forward.41} parent=87 // loop_header_branch
                  %280 = sbr.rel (%p278) target = $region102
                $region99: #{transformer_forward.41} parent=87 // loop_body
                  %v284 = vld [vmem:[%s282] sm:%s275]
                  %285 = vst [vmem:[%s283] sm:%s275] %v284
                  %v286 = vld [vmem:[%s282 + $0x8] sm:%s275]
                  %287 = vst [vmem:[%s283 + $0x4] sm:%s275] %v286
                $region100: #{transformer_forward.41} parent=87 // loop_footer
                  %s281 = sadd.s32 1, %s277
                $region101: #{transformer_forward.41} parent=87 // loop_footer_branch
                  %276 = sbr.rel target = $region97
                $region102: #{transformer_forward.41} parent=87 // loop_exit
                  _
              $region88: #{transformer_forward.41} parent=72 // pred_fallthru
                _
            $region73: #{transformer_forward.41} parent=68 // pred_fallthru
              _
            // Predicated region
            $region74: #{transformer_forward.41} parent=68 // pred_check
              _
            $region75: #{transformer_forward.41} parent=68 // pred_check_branch
              %249 = sbr.rel (0) target = $region77
            $region76: #{transformer_forward.41} parent=68 // pred_region
              %s251 = ssub.s32 16, 1
              loop: start=0, step=1, limit=1
              $region78: #{transformer_forward.41} parent=76 // loop_pre_header
                _
              $region79: #{transformer_forward.41} parent=76 // loop_header
                %s253 = sphi 0, %s257
                %p254 = scmp.ge.s32.totalorder %s253, 1
                %s258 = sphi %s243, %s243
                %s259 = sphi %s236, %s236
              $region80: #{transformer_forward.41} parent=76 // loop_header_branch
                %256 = sbr.rel (%p254) target = $region84
              $region81: #{transformer_forward.41} parent=76 // loop_body
                %v260 = vld [vmem:[%s258] sm:%s251]
                %261 = vst [vmem:[%s259] sm:%s251] %v260
                %v262 = vld [vmem:[%s258 + $0x8] sm:%s251]
                %263 = vst [vmem:[%s259 + $0x4] sm:%s251] %v262
              $region82: #{transformer_forward.41} parent=76 // loop_footer
                %s257 = sadd.s32 1, %s253
              $region83: #{transformer_forward.41} parent=76 // loop_footer_branch
                %252 = sbr.rel target = $region79
              $region84: #{transformer_forward.41} parent=76 // loop_exit
                _
            $region77: #{transformer_forward.41} parent=68 // pred_fallthru
              _
          $region69: #{transformer_forward.41} parent=64 // pred_fallthru
            _
          %288 = vnop
        $region65: #{transformer_forward.41} parent=15 // pred_fallthru
          _
      $region16: #{transformer_forward.41} parent=5 // pred_fallthru
        _
      %p289 = scmp.le.s32.totalorder 1, %s9
      %p290 = scmp.lt.s32.totalorder %s9, 3
      %p291 = pnand %p289, %p290
      %p292 = pneg %p291
      // Predicated region
      $region103: #{transformer_forward.41} parent=5 // pred_check
        _
      $region104: #{transformer_forward.41} parent=5 // pred_check_branch
        %294 = sbr.rel (%p291) target = $region106
      $region105: #{transformer_forward.41} parent=5 // pred_region
        %s295 = ssub.s32 %s9, 1
        %s296 = sand.u32 %s71, 1
        %s297 = sand.u32 %s71, 1
        %s298 = smul.addr %s297, 8
        %s299 = scalar_lea.vmem [#allocation5], %s298
        // Predicated region
        $region107: #{transformer_forward.41} parent=105 // pred_check
          %p300 = pneg %p84
        $region108: #{transformer_forward.41} parent=105 // pred_check_branch
          %302 = sbr.rel (%p300) target = $region110
        $region109: #{transformer_forward.41} parent=105 // pred_region
          _
        $region110: #{transformer_forward.41} parent=105 // pred_fallthru
          _
        %s303 = sand.u32 %s99, 1
        %s304 = sand.u32 %s99, 1
        %s305 = smul.addr %s304, 8
        %s306 = scalar_lea.vmem [#allocation6], %s305
        // Predicated region
        $region111: #{transformer_forward.41} parent=105 // pred_check
          %p307 = pneg %p112
        $region112: #{transformer_forward.41} parent=105 // pred_check_branch
          %309 = sbr.rel (%p307) target = $region114
        $region113: #{transformer_forward.41} parent=105 // pred_region
          _
        $region114: #{transformer_forward.41} parent=105 // pred_fallthru
          _
        %s310 = smul.u32 2, %s20
        %p311 = scmp.lt.s32.totalorder %s19, 1
        %s312 = scalar_select %p311, %s19, 1
        %p313 = scmp.lt.s32.totalorder %s310, 1
        %s314 = scalar_select %p313, %s310, 1
        %s315 = smul.addr %s312, 2
        %s316 = sadd.s32 %s314, %s315
        %s317 = smul.addr %s316, 4
        %s318 = scalar_lea.vmem %s0, %s317
        %p319 = pneg %p56
        %p320 = pneg %p53
        %s321 = sand.u32 %s71, 1
        %s322 = sand.u32 %s71, 1
        %s323 = smul.addr %s322, 8
        %s324 = scalar_lea.vmem [#allocation5], %s323
        %p325 = pneg %p84
        %p326 = pneg %p81
        %s327 = sand.u32 %s99, 1
        %s328 = sand.u32 %s99, 1
        %s329 = smul.addr %s328, 8
        %s330 = scalar_lea.vmem [#allocation6], %s329
        %p331 = pneg %p112
        %p332 = pneg %p109
        %p333 = pneg %p140
        %p334 = pneg %p137
        %s335 = smul.u32 2, %s20
        %p336 = scmp.lt.s32.totalorder %s19, 1
        %s337 = scalar_select %p336, %s19, 1
        %p338 = scmp.lt.s32.totalorder %s335, 1
        %s339 = scalar_select %p338, %s335, 1
        %s340 = smul.addr %s337, 2
        %s341 = sadd.s32 %s339, %s340
        %s342 = smul.addr %s341, 4
        %s343 = scalar_lea.vmem %s3, %s342
        %s344 = smul.u32 2, %s20
        %p345 = scmp.lt.s32.totalorder %s19, 1
        %s346 = scalar_select %p345, %s19, 1
        %p347 = scmp.lt.s32.totalorder %s344, 1
        %s348 = scalar_select %p347, %s344, 1
        %s349 = smul.addr %s346, 2
        %s350 = sadd.s32 %s348, %s349
        %s351 = smul.addr %s350, 4
        %s352 = scalar_lea.vmem %s0, %s351
        %s353 = smul.u32 2, %s20
        %s354 = smul.u32 2, %s21
        %s355 = smul.u32 2, %s21
        %s356 = smul.u32 2, %s20
        %p357 = scmp.lt.s32.totalorder %s19, 1
        %s358 = scalar_select %p357, %s19, 1
        %p359 = scmp.lt.s32.totalorder %s356, 1
        %s360 = scalar_select %p359, %s356, 1
        %s361 = smul.addr %s358, 2
        %s362 = sadd.s32 %s360, %s361
        %s363 = smul.addr %s362, 4
        %s364 = scalar_lea.vmem %s3, %s363
        %s365 = smul.u32 2, %s20
        %p367 = scmp.eq.s32.totalorder %s21, 0
        // Predicated region
        $region115: #{transformer_forward.41} parent=105 // pred_check
          %p368 = pneg %p367
        $region116: #{transformer_forward.41} parent=105 // pred_check_branch
          %370 = sbr.rel (%p368) target = $region118
        $region117: #{transformer_forward.41} parent=105 // pred_region
          %vm371 = vcmask 7168
          %372 = vst.msk [vmem:[#allocation2] sm:$0xff] %vm371, -inf
          %373 = vst.msk [vmem:[#allocation2 + $0x8] sm:$0xff] %vm371, -inf
          %374 = vst.msk [vmem:[#allocation2 + $0x10] sm:$0xff] %vm371, -inf
          %375 = vst.msk [vmem:[#allocation2 + $0x18] sm:$0xff] %vm371, -inf
          %376 = vst.msk [vmem:[#allocation2 + $0x20] sm:$0xff] %vm371, -inf
          %377 = vst.msk [vmem:[#allocation2 + $0x28] sm:$0xff] %vm371, -inf
          %378 = vst.msk [vmem:[#allocation2 + $0x30] sm:$0xff] %vm371, -inf
          %379 = vst.msk [vmem:[#allocation2 + $0x38] sm:$0xff] %vm371, -inf
          %380 = vst.msk [vmem:[#allocation3] sm:$0xff] %vm371, 0.0
          %381 = vst.msk [vmem:[#allocation3 + $0x8] sm:$0xff] %vm371, 0.0
          %382 = vst.msk [vmem:[#allocation3 + $0x10] sm:$0xff] %vm371, 0.0
          %383 = vst.msk [vmem:[#allocation3 + $0x18] sm:$0xff] %vm371, 0.0
          %384 = vst.msk [vmem:[#allocation3 + $0x20] sm:$0xff] %vm371, 0.0
          %385 = vst.msk [vmem:[#allocation3 + $0x28] sm:$0xff] %vm371, 0.0
          %386 = vst.msk [vmem:[#allocation3 + $0x30] sm:$0xff] %vm371, 0.0
          %387 = vst.msk [vmem:[#allocation3 + $0x38] sm:$0xff] %vm371, 0.0
          %vm388 = vcmask 261120
          %389 = vst.msk [vmem:[#allocation4] sm:$0xff] %vm388, 0.0
          %390 = vst.msk [vmem:[#allocation4 + $0x8] sm:$0xff] %vm388, 0.0
          %391 = vst.msk [vmem:[#allocation4 + $0x10] sm:$0xff] %vm388, 0.0
          %392 = vst.msk [vmem:[#allocation4 + $0x18] sm:$0xff] %vm388, 0.0
          %393 = vst.msk [vmem:[#allocation4 + $0x20] sm:$0xff] %vm388, 0.0
          %394 = vst.msk [vmem:[#allocation4 + $0x28] sm:$0xff] %vm388, 0.0
          %395 = vst.msk [vmem:[#allocation4 + $0x30] sm:$0xff] %vm388, 0.0
          %396 = vst.msk [vmem:[#allocation4 + $0x38] sm:$0xff] %vm388, 0.0
        $region118: #{transformer_forward.41} parent=105 // pred_fallthru
          _
        %v397 = vld [vmem:[%s352] sm:$0xf]
        %v398 = vld [vmem:[%s352 + $0x4] sm:$0xf]
        %v399 = vld [vmem:[%s299] sm:$0xf]
        %v400 = vld [vmem:[%s299 + $0x4] sm:$0xf]
        %v401 = vld [vmem:[%s306] sm:$0xf]
        %v402 = vld [vmem:[%s306 + $0x4] sm:$0xf]
        %v405 = vunpack.c.l.b16 %v397
        %v406 = vunpack.c.l.b16 %v398
        %v407 = vpack.c.b16 %v406, %v405
        %v410 = vunpack.c.l.b16 %v399
        %v411 = vunpack.c.l.b16 %v400
        %v412 = vpack.c.b16 %v411, %v410
        %vm413 = vcmask 261120
        %v415 = vsel %vm413, %v407, 0
        %v418 = vsel %vm413, %v412, 0
        %420 = vmatprep.subr.bf16.mxu0 0
        %421 = vmatpush1.bf16.xpose.msra.mxu0 0
        %422 = vmatprep.subr.bf16.mxu0 0
        %423 = vmatpush1.bf16.xpose.msra.mxu0 0
        %424 = vmatprep.subr.bf16.mxu0 0
        %425 = vmatpush1.bf16.xpose.msra.mxu0 0
        %426 = vmatprep.subr.bf16.mxu0 0
        %427 = vmatpush1.bf16.xpose.msra.mxu0 0
        %428 = vmatprep.subr.bf16.mxu0 0
        %429 = vmatpush1.bf16.xpose.msra.mxu0 0
        %430 = vmatprep.subr.bf16.mxu0 0
        %431 = vmatpush1.bf16.xpose.msra.mxu0 0
        %432 = vmatprep.subr.bf16.mxu0 0
        %433 = vmatpush1.bf16.xpose.msra.mxu0 0
        %434 = vmatprep.subr.bf16.mxu0 0
        %435 = vmatpush1.bf16.xpose.msra.mxu0 %v418
        %436 = vmatprep.subr.bf16.mxu0 0
        %437 = vmatpush2.bf16.xpose.msra.mxu0 0
        %438 = vmatprep.subr.bf16.mxu0 0
        %439 = vmatpush2.bf16.xpose.msra.mxu0 0
        %440 = vmatprep.subr.bf16.mxu0 0
        %441 = vmatpush2.bf16.xpose.msra.mxu0 0
        %442 = vmatprep.subr.bf16.mxu0 0
        %443 = vmatpush2.bf16.xpose.msra.mxu0 0
        %444 = vmatprep.subr.bf16.mxu0 0
        %445 = vmatpush2.bf16.xpose.msra.mxu0 0
        %446 = vmatprep.subr.bf16.mxu0 0
        %447 = vmatpush2.bf16.xpose.msra.mxu0 0
        %448 = vmatprep.subr.bf16.mxu0 0
        %449 = vmatpush2.bf16.xpose.msra.mxu0 0
        %450 = vmatprep.subr.bf16.mxu0 0
        %451 = vmatpush2.bf16.xpose.msra.mxu0 0
        %452 = vmatprep.mubr.bf16.mxu0 0
        %453 = vmatmul.mubr.bf16.gmra.mxu0 %v415
        %v454 = vpop.f32.mrf.mxu0
        %v455 = vadd.f32 0.0, %v454
        %v456 = vpop.f32.mrf.mxu0
        %v457 = vpop.f32.mrf.mxu0
        %v458 = vadd.f32 0.0, %v457
        %v459 = vpop.f32.mrf.mxu0
        %460 = vdwg.mxu0
        %v461 = vmul.f32 %v455, 0.17677669
        %v462 = vmul.f32 %v458, 0.17677669
        %v463 = vld [vmem:[#allocation2] sm:$0xff]
        %v464 = vld [vmem:[#allocation2 + $0x8] sm:$0xff]
        %vm465 = vcmask 130048
        %v466 = vsel %vm465, %v461, -inf
        %467 = vmax.xlane.f32.xlu0 %v466
        %v468 = vpop.xlane.xlu0 %467
        %v469 = vsel %vm465, %v462, -inf
        %470 = vmax.xlane.f32.xlu0 %v469
        %v471 = vpop.xlane.xlu0 %470
        %v472 = vmax.f32 %v463, %v468
        %v473 = vmax.f32 %v464, %v471
        %v474 = vsub.f32 %v463, %v472
        %v475 = vsub.f32 %v464, %v473
        %v476 = vmul.f32 %v474, 1.442695
        %v477 = vpow.pop %v476
        %v478 = vmul.f32 %v475, 1.442695
        %v479 = vpow.pop %v478
        %481 = vset.pattern.permute.xlu0 0
        %482 = vperm.xlu0 %481, %v472
        %v483 = vpop.permute.xlu0 %482
        %486 = vset.pattern.permute.xlu0 0
        %487 = vperm.xlu0 %486, %v473
        %v488 = vpop.permute.xlu0 %487
        %v490 = vsub.f32 %v461, %v483
        %v491 = vsub.f32 %v462, %v488
        %v492 = vmul.f32 %v490, 1.442695
        %v493 = vpow.pop %v492
        %v494 = vmul.f32 %v491, 1.442695
        %v495 = vpow.pop %v494
        %v496 = vld [vmem:[#allocation3] sm:$0xff]
        %v497 = vld [vmem:[#allocation3 + $0x8] sm:$0xff]
        %v498 = vmul.f32 %v477, %v496
        %v499 = vmul.f32 %v479, %v497
        %v500 = vsel %vm465, %v493, 0.0
        %501 = vadd.xlane.f32.xlu0 %v500
        %v502 = vpop.xlane.xlu0 %501
        %v503 = vsel %vm465, %v495, 0.0
        %504 = vadd.xlane.f32.xlu0 %v503
        %v505 = vpop.xlane.xlu0 %504
        %v506 = vadd.f32 %v498, %v502
        %v507 = vadd.f32 %v499, %v505
        %vm508 = vcmask 7168
        %509 = vst.msk [vmem:[#allocation3] sm:$0xff] %vm508, %v506
        %510 = vst.msk [vmem:[#allocation3 + $0x8] sm:$0xff] %vm508, %v507
        %v511 = vld [vmem:[#allocation4] sm:$0xff]
        %v512 = vld [vmem:[#allocation4 + $0x8] sm:$0xff]
        %514 = vset.pattern.permute.xlu0 0
        %515 = vperm.xlu0 %514, %v477
        %v516 = vpop.permute.xlu0 %515
        %519 = vset.pattern.permute.xlu0 0
        %520 = vperm.xlu0 %519, %v479
        %v521 = vpop.permute.xlu0 %520
        %v523 = vmul.f32 %v516, %v511
        %v524 = vmul.f32 %v521, %v512
        %v525 = vpack.c.bf16 %v495, %v493
        %v528 = vunpack.c.l.b16 %v401
        %v529 = vunpack.c.l.b16 %v402
        %v530 = vpack.c.b16 %v529, %v528
        %v533 = vsel %vm465, %v525, 0
        %535 = vmatprep.subr.bf16.mxu0 0
        %536 = vmatpush1.bf16.msra.mxu0 0
        %537 = vmatprep.subr.bf16.mxu0 0
        %538 = vmatpush1.bf16.msra.mxu0 0
        %539 = vmatprep.subr.bf16.mxu0 0
        %540 = vmatpush1.bf16.msra.mxu0 0
        %541 = vmatprep.subr.bf16.mxu0 0
        %542 = vmatpush1.bf16.msra.mxu0 0
        %543 = vmatprep.subr.bf16.mxu0 0
        %544 = vmatpush1.bf16.msra.mxu0 0
        %545 = vmatprep.subr.bf16.mxu0 0
        %546 = vmatpush1.bf16.msra.mxu0 0
        %547 = vmatprep.subr.bf16.mxu0 0
        %548 = vmatpush1.bf16.msra.mxu0 0
        %549 = vmatprep.subr.bf16.mxu0 0
        %550 = vmatpush1.bf16.msra.mxu0 %v530
        %551 = vmatprep.subr.bf16.mxu0 0
        %552 = vmatpush2.bf16.msra.mxu0 0
        %553 = vmatprep.subr.bf16.mxu0 0
        %554 = vmatpush2.bf16.msra.mxu0 0
        %555 = vmatprep.subr.bf16.mxu0 0
        %556 = vmatpush2.bf16.msra.mxu0 0
        %557 = vmatprep.subr.bf16.mxu0 0
        %558 = vmatpush2.bf16.msra.mxu0 0
        %559 = vmatprep.subr.bf16.mxu0 0
        %560 = vmatpush2.bf16.msra.mxu0 0
        %561 = vmatprep.subr.bf16.mxu0 0
        %562 = vmatpush2.bf16.msra.mxu0 0
        %563 = vmatprep.subr.bf16.mxu0 0
        %564 = vmatpush2.bf16.msra.mxu0 0
        %565 = vmatprep.subr.bf16.mxu0 0
        %566 = vmatpush2.bf16.msra.mxu0 0
        %567 = vmatprep.mubr.bf16.mxu0 0
        %568 = vmatmul.mubr.bf16.gmra.mxu0 %v533
        %v569 = vpop.f32.mrf.mxu0
        %v570 = vadd.f32 0.0, %v569
        %v571 = vpop.f32.mrf.mxu0
        %v572 = vpop.f32.mrf.mxu0
        %v573 = vadd.f32 0.0, %v572
        %v574 = vpop.f32.mrf.mxu0
        %575 = vdwg.mxu0
        %v576 = vadd.f32 %v523, %v570
        %v577 = vadd.f32 %v524, %v573
        %578 = vst.msk [vmem:[#allocation4] sm:$0xff] %vm413, %v576
        %579 = vst.msk [vmem:[#allocation4 + $0x8] sm:$0xff] %vm413, %v577
        %580 = vst.msk [vmem:[#allocation2] sm:$0xff] %vm508, %v472
        %581 = vst.msk [vmem:[#allocation2 + $0x8] sm:$0xff] %vm508, %v473
        %582 = vrot.lane.b32.xlu0 %v407, 96
        %v583 = vpop.permute.xlu0 %582
        %584 = vrot.lane.b32.xlu0 %v412, 96
        %v585 = vpop.permute.xlu0 %584
        %v587 = vsel %vm413, %v583, 0
        %v590 = vsel %vm413, %v585, 0
        %592 = vmatprep.subr.bf16.mxu0 0
        %593 = vmatpush1.bf16.xpose.msra.mxu0 0
        %594 = vmatprep.subr.bf16.mxu0 0
        %595 = vmatpush1.bf16.xpose.msra.mxu0 0
        %596 = vmatprep.subr.bf16.mxu0 0
        %597 = vmatpush1.bf16.xpose.msra.mxu0 0
        %598 = vmatprep.subr.bf16.mxu0 0
        %599 = vmatpush1.bf16.xpose.msra.mxu0 0
        %600 = vmatprep.subr.bf16.mxu0 0
        %601 = vmatpush1.bf16.xpose.msra.mxu0 0
        %602 = vmatprep.subr.bf16.mxu0 0
        %603 = vmatpush1.bf16.xpose.msra.mxu0 0
        %604 = vmatprep.subr.bf16.mxu0 0
        %605 = vmatpush1.bf16.xpose.msra.mxu0 0
        %606 = vmatprep.subr.bf16.mxu0 0
        %607 = vmatpush1.bf16.xpose.msra.mxu0 %v590
        %608 = vmatprep.subr.bf16.mxu0 0
        %609 = vmatpush2.bf16.xpose.msra.mxu0 0
        %610 = vmatprep.subr.bf16.mxu0 0
        %611 = vmatpush2.bf16.xpose.msra.mxu0 0
        %612 = vmatprep.subr.bf16.mxu0 0
        %613 = vmatpush2.bf16.xpose.msra.mxu0 0
        %614 = vmatprep.subr.bf16.mxu0 0
        %615 = vmatpush2.bf16.xpose.msra.mxu0 0
        %616 = vmatprep.subr.bf16.mxu0 0
        %617 = vmatpush2.bf16.xpose.msra.mxu0 0
        %618 = vmatprep.subr.bf16.mxu0 0
        %619 = vmatpush2.bf16.xpose.msra.mxu0 0
        %620 = vmatprep.subr.bf16.mxu0 0
        %621 = vmatpush2.bf16.xpose.msra.mxu0 0
        %622 = vmatprep.subr.bf16.mxu0 0
        %623 = vmatpush2.bf16.xpose.msra.mxu0 0
        %624 = vmatprep.mubr.bf16.mxu0 0
        %625 = vmatmul.mubr.bf16.gmra.mxu0 %v587
        %v626 = vpop.f32.mrf.mxu0
        %v627 = vadd.f32 0.0, %v626
        %v628 = vpop.f32.mrf.mxu0
        %v629 = vpop.f32.mrf.mxu0
        %v630 = vadd.f32 0.0, %v629
        %v631 = vpop.f32.mrf.mxu0
        %632 = vdwg.mxu0
        %v633 = vmul.f32 %v627, 0.17677669
        %v634 = vmul.f32 %v630, 0.17677669
        %s635 = scalar_lea.vmem [#allocation2], 16
        %v636 = vld [vmem:[%s635] sm:$0xff]
        %v637 = vld [vmem:[%s635 + $0x8] sm:$0xff]
        %v638 = vsel %vm465, %v633, -inf
        %639 = vmax.xlane.f32.xlu0 %v638
        %v640 = vpop.xlane.xlu0 %639
        %v641 = vsel %vm465, %v634, -inf
        %642 = vmax.xlane.f32.xlu0 %v641
        %v643 = vpop.xlane.xlu0 %642
        %v644 = vmax.f32 %v636, %v640
        %v645 = vmax.f32 %v637, %v643
        %v646 = vsub.f32 %v636, %v644
        %v647 = vsub.f32 %v637, %v645
        %v648 = vmul.f32 %v646, 1.442695
        %v649 = vpow.pop %v648
        %v650 = vmul.f32 %v647, 1.442695
        %v651 = vpow.pop %v650
        %653 = vset.pattern.permute.xlu0 0
        %654 = vperm.xlu0 %653, %v644
        %v655 = vpop.permute.xlu0 %654
        %658 = vset.pattern.permute.xlu0 0
        %659 = vperm.xlu0 %658, %v645
        %v660 = vpop.permute.xlu0 %659
        %v662 = vsub.f32 %v633, %v655
        %v663 = vsub.f32 %v634, %v660
        %v664 = vmul.f32 %v662, 1.442695
        %v665 = vpow.pop %v664
        %v666 = vmul.f32 %v663, 1.442695
        %v667 = vpow.pop %v666
        %s668 = scalar_lea.vmem [#allocation3], 16
        %v669 = vld [vmem:[%s668] sm:$0xff]
        %v670 = vld [vmem:[%s668 + $0x8] sm:$0xff]
        %v671 = vmul.f32 %v649, %v669
        %v672 = vmul.f32 %v651, %v670
        %v673 = vsel %vm465, %v665, 0.0
        %674 = vadd.xlane.f32.xlu0 %v673
        %v675 = vpop.xlane.xlu0 %674
        %v676 = vsel %vm465, %v667, 0.0
        %677 = vadd.xlane.f32.xlu0 %v676
        %v678 = vpop.xlane.xlu0 %677
        %v679 = vadd.f32 %v671, %v675
        %v680 = vadd.f32 %v672, %v678
        %681 = vst.msk [vmem:[%s668] sm:$0xff] %vm508, %v679
        %682 = vst.msk [vmem:[%s668 + $0x8] sm:$0xff] %vm508, %v680
        %s683 = scalar_lea.vmem [#allocation4], 16
        %v684 = vld [vmem:[%s683] sm:$0xff]
        %v685 = vld [vmem:[%s683 + $0x8] sm:$0xff]
        %687 = vset.pattern.permute.xlu0 0
        %688 = vperm.xlu0 %687, %v649
        %v689 = vpop.permute.xlu0 %688
        %692 = vset.pattern.permute.xlu0 0
        %693 = vperm.xlu0 %692, %v651
        %v694 = vpop.permute.xlu0 %693
        %v696 = vmul.f32 %v689, %v684
        %v697 = vmul.f32 %v694, %v685
        %v698 = vpack.c.bf16 %v667, %v665
        %699 = vrot.lane.b32.xlu0 %v530, 96
        %v700 = vpop.permute.xlu0 %699
        %v703 = vsel %vm465, %v698, 0
        %705 = vmatprep.subr.bf16.mxu0 0
        %706 = vmatpush1.bf16.msra.mxu0 0
        %707 = vmatprep.subr.bf16.mxu0 0
        %708 = vmatpush1.bf16.msra.mxu0 0
        %709 = vmatprep.subr.bf16.mxu0 0
        %710 = vmatpush1.bf16.msra.mxu0 0
        %711 = vmatprep.subr.bf16.mxu0 0
        %712 = vmatpush1.bf16.msra.mxu0 0
        %713 = vmatprep.subr.bf16.mxu0 0
        %714 = vmatpush1.bf16.msra.mxu0 0
        %715 = vmatprep.subr.bf16.mxu0 0
        %716 = vmatpush1.bf16.msra.mxu0 0
        %717 = vmatprep.subr.bf16.mxu0 0
        %718 = vmatpush1.bf16.msra.mxu0 0
        %719 = vmatprep.subr.bf16.mxu0 0
        %720 = vmatpush1.bf16.msra.mxu0 %v700
        %721 = vmatprep.subr.bf16.mxu0 0
        %722 = vmatpush2.bf16.msra.mxu0 0
        %723 = vmatprep.subr.bf16.mxu0 0
        %724 = vmatpush2.bf16.msra.mxu0 0
        %725 = vmatprep.subr.bf16.mxu0 0
        %726 = vmatpush2.bf16.msra.mxu0 0
        %727 = vmatprep.subr.bf16.mxu0 0
        %728 = vmatpush2.bf16.msra.mxu0 0
        %729 = vmatprep.subr.bf16.mxu0 0
        %730 = vmatpush2.bf16.msra.mxu0 0
        %731 = vmatprep.subr.bf16.mxu0 0
        %732 = vmatpush2.bf16.msra.mxu0 0
        %733 = vmatprep.subr.bf16.mxu0 0
        %734 = vmatpush2.bf16.msra.mxu0 0
        %735 = vmatprep.subr.bf16.mxu0 0
        %736 = vmatpush2.bf16.msra.mxu0 0
        %737 = vmatprep.mubr.bf16.mxu0 0
        %738 = vmatmul.mubr.bf16.gmra.mxu0 %v703
        %v739 = vpop.f32.mrf.mxu0
        %v740 = vadd.f32 0.0, %v739
        %v741 = vpop.f32.mrf.mxu0
        %v742 = vpop.f32.mrf.mxu0
        %v743 = vadd.f32 0.0, %v742
        %v744 = vpop.f32.mrf.mxu0
        %745 = vdwg.mxu0
        %v746 = vadd.f32 %v696, %v740
        %v747 = vadd.f32 %v697, %v743
        %748 = vst.msk [vmem:[%s683] sm:$0xff] %vm413, %v746
        %749 = vst.msk [vmem:[%s683 + $0x8] sm:$0xff] %vm413, %v747
        %750 = vst.msk [vmem:[%s635] sm:$0xff] %vm508, %v644
        %751 = vst.msk [vmem:[%s635 + $0x8] sm:$0xff] %vm508, %v645
        %752 = vrot.lane.b32.xlu0 %v407, 64
        %v753 = vpop.permute.xlu0 %752
        %754 = vrot.lane.b32.xlu0 %v412, 64
        %v755 = vpop.permute.xlu0 %754
        %v757 = vsel %vm413, %v753, 0
        %v760 = vsel %vm413, %v755, 0
        %762 = vmatprep.subr.bf16.mxu0 0
        %763 = vmatpush1.bf16.xpose.msra.mxu0 0
        %764 = vmatprep.subr.bf16.mxu0 0
        %765 = vmatpush1.bf16.xpose.msra.mxu0 0
        %766 = vmatprep.subr.bf16.mxu0 0
        %767 = vmatpush1.bf16.xpose.msra.mxu0 0
        %768 = vmatprep.subr.bf16.mxu0 0
        %769 = vmatpush1.bf16.xpose.msra.mxu0 0
        %770 = vmatprep.subr.bf16.mxu0 0
        %771 = vmatpush1.bf16.xpose.msra.mxu0 0
        %772 = vmatprep.subr.bf16.mxu0 0
        %773 = vmatpush1.bf16.xpose.msra.mxu0 0
        %774 = vmatprep.subr.bf16.mxu0 0
        %775 = vmatpush1.bf16.xpose.msra.mxu0 0
        %776 = vmatprep.subr.bf16.mxu0 0
        %777 = vmatpush1.bf16.xpose.msra.mxu0 %v760
        %778 = vmatprep.subr.bf16.mxu0 0
        %779 = vmatpush2.bf16.xpose.msra.mxu0 0
        %780 = vmatprep.subr.bf16.mxu0 0
        %781 = vmatpush2.bf16.xpose.msra.mxu0 0
        %782 = vmatprep.subr.bf16.mxu0 0
        %783 = vmatpush2.bf16.xpose.msra.mxu0 0
        %784 = vmatprep.subr.bf16.mxu0 0
        %785 = vmatpush2.bf16.xpose.msra.mxu0 0
        %786 = vmatprep.subr.bf16.mxu0 0
        %787 = vmatpush2.bf16.xpose.msra.mxu0 0
        %788 = vmatprep.subr.bf16.mxu0 0
        %789 = vmatpush2.bf16.xpose.msra.mxu0 0
        %790 = vmatprep.subr.bf16.mxu0 0
        %791 = vmatpush2.bf16.xpose.msra.mxu0 0
        %792 = vmatprep.subr.bf16.mxu0 0
        %793 = vmatpush2.bf16.xpose.msra.mxu0 0
        %794 = vmatprep.mubr.bf16.mxu0 0
        %795 = vmatmul.mubr.bf16.gmra.mxu0 %v757
        %v796 = vpop.f32.mrf.mxu0
        %v797 = vadd.f32 0.0, %v796
        %v798 = vpop.f32.mrf.mxu0
        %v799 = vpop.f32.mrf.mxu0
        %v800 = vadd.f32 0.0, %v799
        %v801 = vpop.f32.mrf.mxu0
        %802 = vdwg.mxu0
        %v803 = vmul.f32 %v797, 0.17677669
        %v804 = vmul.f32 %v800, 0.17677669
        %s805 = scalar_lea.vmem [#allocation2], 32
        %v806 = vld [vmem:[%s805] sm:$0xff]
        %v807 = vld [vmem:[%s805 + $0x8] sm:$0xff]
        %v808 = vsel %vm465, %v803, -inf
        %809 = vmax.xlane.f32.xlu0 %v808
        %v810 = vpop.xlane.xlu0 %809
        %v811 = vsel %vm465, %v804, -inf
        %812 = vmax.xlane.f32.xlu0 %v811
        %v813 = vpop.xlane.xlu0 %812
        %v814 = vmax.f32 %v806, %v810
        %v815 = vmax.f32 %v807, %v813
        %v816 = vsub.f32 %v806, %v814
        %v817 = vsub.f32 %v807, %v815
        %v818 = vmul.f32 %v816, 1.442695
        %v819 = vpow.pop %v818
        %v820 = vmul.f32 %v817, 1.442695
        %v821 = vpow.pop %v820
        %823 = vset.pattern.permute.xlu0 0
        %824 = vperm.xlu0 %823, %v814
        %v825 = vpop.permute.xlu0 %824
        %828 = vset.pattern.permute.xlu0 0
        %829 = vperm.xlu0 %828, %v815
        %v830 = vpop.permute.xlu0 %829
        %v832 = vsub.f32 %v803, %v825
        %v833 = vsub.f32 %v804, %v830
        %v834 = vmul.f32 %v832, 1.442695
        %v835 = vpow.pop %v834
        %v836 = vmul.f32 %v833, 1.442695
        %v837 = vpow.pop %v836
        %s838 = scalar_lea.vmem [#allocation3], 32
        %v839 = vld [vmem:[%s838] sm:$0xff]
        %v840 = vld [vmem:[%s838 + $0x8] sm:$0xff]
        %v841 = vmul.f32 %v819, %v839
        %v842 = vmul.f32 %v821, %v840
        %v843 = vsel %vm465, %v835, 0.0
        %844 = vadd.xlane.f32.xlu0 %v843
        %v845 = vpop.xlane.xlu0 %844
        %v846 = vsel %vm465, %v837, 0.0
        %847 = vadd.xlane.f32.xlu0 %v846
        %v848 = vpop.xlane.xlu0 %847
        %v849 = vadd.f32 %v841, %v845
        %v850 = vadd.f32 %v842, %v848
        %851 = vst.msk [vmem:[%s838] sm:$0xff] %vm508, %v849
        %852 = vst.msk [vmem:[%s838 + $0x8] sm:$0xff] %vm508, %v850
        %s853 = scalar_lea.vmem [#allocation4], 32
        %v854 = vld [vmem:[%s853] sm:$0xff]
        %v855 = vld [vmem:[%s853 + $0x8] sm:$0xff]
        %857 = vset.pattern.permute.xlu0 0
        %858 = vperm.xlu0 %857, %v819
        %v859 = vpop.permute.xlu0 %858
        %862 = vset.pattern.permute.xlu0 0
        %863 = vperm.xlu0 %862, %v821
        %v864 = vpop.permute.xlu0 %863
        %v866 = vmul.f32 %v859, %v854
        %v867 = vmul.f32 %v864, %v855
        %v868 = vpack.c.bf16 %v837, %v835
        %869 = vrot.lane.b32.xlu0 %v530, 64
        %v870 = vpop.permute.xlu0 %869
        %v873 = vsel %vm465, %v868, 0
        %875 = vmatprep.subr.bf16.mxu0 0
        %876 = vmatpush1.bf16.msra.mxu0 0
        %877 = vmatprep.subr.bf16.mxu0 0
        %878 = vmatpush1.bf16.msra.mxu0 0
        %879 = vmatprep.subr.bf16.mxu0 0
        %880 = vmatpush1.bf16.msra.mxu0 0
        %881 = vmatprep.subr.bf16.mxu0 0
        %882 = vmatpush1.bf16.msra.mxu0 0
        %883 = vmatprep.subr.bf16.mxu0 0
        %884 = vmatpush1.bf16.msra.mxu0 0
        %885 = vmatprep.subr.bf16.mxu0 0
        %886 = vmatpush1.bf16.msra.mxu0 0
        %887 = vmatprep.subr.bf16.mxu0 0
        %888 = vmatpush1.bf16.msra.mxu0 0
        %889 = vmatprep.subr.bf16.mxu0 0
        %890 = vmatpush1.bf16.msra.mxu0 %v870
        %891 = vmatprep.subr.bf16.mxu0 0
        %892 = vmatpush2.bf16.msra.mxu0 0
        %893 = vmatprep.subr.bf16.mxu0 0
        %894 = vmatpush2.bf16.msra.mxu0 0
        %895 = vmatprep.subr.bf16.mxu0 0
        %896 = vmatpush2.bf16.msra.mxu0 0
        %897 = vmatprep.subr.bf16.mxu0 0
        %898 = vmatpush2.bf16.msra.mxu0 0
        %899 = vmatprep.subr.bf16.mxu0 0
        %900 = vmatpush2.bf16.msra.mxu0 0
        %901 = vmatprep.subr.bf16.mxu0 0
        %902 = vmatpush2.bf16.msra.mxu0 0
        %903 = vmatprep.subr.bf16.mxu0 0
        %904 = vmatpush2.bf16.msra.mxu0 0
        %905 = vmatprep.subr.bf16.mxu0 0
        %906 = vmatpush2.bf16.msra.mxu0 0
        %907 = vmatprep.mubr.bf16.mxu0 0
        %908 = vmatmul.mubr.bf16.gmra.mxu0 %v873
        %v909 = vpop.f32.mrf.mxu0
        %v910 = vadd.f32 0.0, %v909
        %v911 = vpop.f32.mrf.mxu0
        %v912 = vpop.f32.mrf.mxu0
        %v913 = vadd.f32 0.0, %v912
        %v914 = vpop.f32.mrf.mxu0
        %915 = vdwg.mxu0
        %v916 = vadd.f32 %v866, %v910
        %v917 = vadd.f32 %v867, %v913
        %918 = vst.msk [vmem:[%s853] sm:$0xff] %vm413, %v916
        %919 = vst.msk [vmem:[%s853 + $0x8] sm:$0xff] %vm413, %v917
        %920 = vst.msk [vmem:[%s805] sm:$0xff] %vm508, %v814
        %921 = vst.msk [vmem:[%s805 + $0x8] sm:$0xff] %vm508, %v815
        %922 = vrot.lane.b32.xlu0 %v407, 32
        %v923 = vpop.permute.xlu0 %922
        %924 = vrot.lane.b32.xlu0 %v412, 32
        %v925 = vpop.permute.xlu0 %924
        %v927 = vsel %vm413, %v923, 0
        %v930 = vsel %vm413, %v925, 0
        %932 = vmatprep.subr.bf16.mxu0 0
        %933 = vmatpush1.bf16.xpose.msra.mxu0 0
        %934 = vmatprep.subr.bf16.mxu0 0
        %935 = vmatpush1.bf16.xpose.msra.mxu0 0
        %936 = vmatprep.subr.bf16.mxu0 0
        %937 = vmatpush1.bf16.xpose.msra.mxu0 0
        %938 = vmatprep.subr.bf16.mxu0 0
        %939 = vmatpush1.bf16.xpose.msra.mxu0 0
        %940 = vmatprep.subr.bf16.mxu0 0
        %941 = vmatpush1.bf16.xpose.msra.mxu0 0
        %942 = vmatprep.subr.bf16.mxu0 0
        %943 = vmatpush1.bf16.xpose.msra.mxu0 0
        %944 = vmatprep.subr.bf16.mxu0 0
        %945 = vmatpush1.bf16.xpose.msra.mxu0 0
        %946 = vmatprep.subr.bf16.mxu0 0
        %947 = vmatpush1.bf16.xpose.msra.mxu0 %v930
        %948 = vmatprep.subr.bf16.mxu0 0
        %949 = vmatpush2.bf16.xpose.msra.mxu0 0
        %950 = vmatprep.subr.bf16.mxu0 0
        %951 = vmatpush2.bf16.xpose.msra.mxu0 0
        %952 = vmatprep.subr.bf16.mxu0 0
        %953 = vmatpush2.bf16.xpose.msra.mxu0 0
        %954 = vmatprep.subr.bf16.mxu0 0
        %955 = vmatpush2.bf16.xpose.msra.mxu0 0
        %956 = vmatprep.subr.bf16.mxu0 0
        %957 = vmatpush2.bf16.xpose.msra.mxu0 0
        %958 = vmatprep.subr.bf16.mxu0 0
        %959 = vmatpush2.bf16.xpose.msra.mxu0 0
        %960 = vmatprep.subr.bf16.mxu0 0
        %961 = vmatpush2.bf16.xpose.msra.mxu0 0
        %962 = vmatprep.subr.bf16.mxu0 0
        %963 = vmatpush2.bf16.xpose.msra.mxu0 0
        %964 = vmatprep.mubr.bf16.mxu0 0
        %965 = vmatmul.mubr.bf16.gmra.mxu0 %v927
        %v966 = vpop.f32.mrf.mxu0
        %v967 = vadd.f32 0.0, %v966
        %v968 = vpop.f32.mrf.mxu0
        %v969 = vpop.f32.mrf.mxu0
        %v970 = vadd.f32 0.0, %v969
        %v971 = vpop.f32.mrf.mxu0
        %972 = vdwg.mxu0
        %v973 = vmul.f32 %v967, 0.17677669
        %v974 = vmul.f32 %v970, 0.17677669
        %s975 = scalar_lea.vmem [#allocation2], 48
        %v976 = vld [vmem:[%s975] sm:$0xff]
        %v977 = vld [vmem:[%s975 + $0x8] sm:$0xff]
        %v978 = vsel %vm465, %v973, -inf
        %979 = vmax.xlane.f32.xlu0 %v978
        %v980 = vpop.xlane.xlu0 %979
        %v981 = vsel %vm465, %v974, -inf
        %982 = vmax.xlane.f32.xlu0 %v981
        %v983 = vpop.xlane.xlu0 %982
        %v984 = vmax.f32 %v976, %v980
        %v985 = vmax.f32 %v977, %v983
        %v986 = vsub.f32 %v976, %v984
        %v987 = vsub.f32 %v977, %v985
        %v988 = vmul.f32 %v986, 1.442695
        %v989 = vpow.pop %v988
        %v990 = vmul.f32 %v987, 1.442695
        %v991 = vpow.pop %v990
        %993 = vset.pattern.permute.xlu0 0
        %994 = vperm.xlu0 %993, %v984
        %v995 = vpop.permute.xlu0 %994
        %998 = vset.pattern.permute.xlu0 0
        %999 = vperm.xlu0 %998, %v985
        %v1000 = vpop.permute.xlu0 %999
        %v1002 = vsub.f32 %v973, %v995
        %v1003 = vsub.f32 %v974, %v1000
        %v1004 = vmul.f32 %v1002, 1.442695
        %v1005 = vpow.pop %v1004
        %v1006 = vmul.f32 %v1003, 1.442695
        %v1007 = vpow.pop %v1006
        %s1008 = scalar_lea.vmem [#allocation3], 48
        %v1009 = vld [vmem:[%s1008] sm:$0xff]
        %v1010 = vld [vmem:[%s1008 + $0x8] sm:$0xff]
        %v1011 = vmul.f32 %v989, %v1009
        %v1012 = vmul.f32 %v991, %v1010
        %v1013 = vsel %vm465, %v1005, 0.0
        %1014 = vadd.xlane.f32.xlu0 %v1013
        %v1015 = vpop.xlane.xlu0 %1014
        %v1016 = vsel %vm465, %v1007, 0.0
        %1017 = vadd.xlane.f32.xlu0 %v1016
        %v1018 = vpop.xlane.xlu0 %1017
        %v1019 = vadd.f32 %v1011, %v1015
        %v1020 = vadd.f32 %v1012, %v1018
        %1021 = vst.msk [vmem:[%s1008] sm:$0xff] %vm508, %v1019
        %1022 = vst.msk [vmem:[%s1008 + $0x8] sm:$0xff] %vm508, %v1020
        %s1023 = scalar_lea.vmem [#allocation4], 48
        %v1024 = vld [vmem:[%s1023] sm:$0xff]
        %v1025 = vld [vmem:[%s1023 + $0x8] sm:$0xff]
        %1027 = vset.pattern.permute.xlu0 0
        %1028 = vperm.xlu0 %1027, %v989
        %v1029 = vpop.permute.xlu0 %1028
        %1032 = vset.pattern.permute.xlu0 0
        %1033 = vperm.xlu0 %1032, %v991
        %v1034 = vpop.permute.xlu0 %1033
        %v1036 = vmul.f32 %v1029, %v1024
        %v1037 = vmul.f32 %v1034, %v1025
        %v1038 = vpack.c.bf16 %v1007, %v1005
        %1039 = vrot.lane.b32.xlu0 %v530, 32
        %v1040 = vpop.permute.xlu0 %1039
        %v1043 = vsel %vm465, %v1038, 0
        %1045 = vmatprep.subr.bf16.mxu0 0
        %1046 = vmatpush1.bf16.msra.mxu0 0
        %1047 = vmatprep.subr.bf16.mxu0 0
        %1048 = vmatpush1.bf16.msra.mxu0 0
        %1049 = vmatprep.subr.bf16.mxu0 0
        %1050 = vmatpush1.bf16.msra.mxu0 0
        %1051 = vmatprep.subr.bf16.mxu0 0
        %1052 = vmatpush1.bf16.msra.mxu0 0
        %1053 = vmatprep.subr.bf16.mxu0 0
        %1054 = vmatpush1.bf16.msra.mxu0 0
        %1055 = vmatprep.subr.bf16.mxu0 0
        %1056 = vmatpush1.bf16.msra.mxu0 0
        %1057 = vmatprep.subr.bf16.mxu0 0
        %1058 = vmatpush1.bf16.msra.mxu0 0
        %1059 = vmatprep.subr.bf16.mxu0 0
        %1060 = vmatpush1.bf16.msra.mxu0 %v1040
        %1061 = vmatprep.subr.bf16.mxu0 0
        %1062 = vmatpush2.bf16.msra.mxu0 0
        %1063 = vmatprep.subr.bf16.mxu0 0
        %1064 = vmatpush2.bf16.msra.mxu0 0
        %1065 = vmatprep.subr.bf16.mxu0 0
        %1066 = vmatpush2.bf16.msra.mxu0 0
        %1067 = vmatprep.subr.bf16.mxu0 0
        %1068 = vmatpush2.bf16.msra.mxu0 0
        %1069 = vmatprep.subr.bf16.mxu0 0
        %1070 = vmatpush2.bf16.msra.mxu0 0
        %1071 = vmatprep.subr.bf16.mxu0 0
        %1072 = vmatpush2.bf16.msra.mxu0 0
        %1073 = vmatprep.subr.bf16.mxu0 0
        %1074 = vmatpush2.bf16.msra.mxu0 0
        %1075 = vmatprep.subr.bf16.mxu0 0
        %1076 = vmatpush2.bf16.msra.mxu0 0
        %1077 = vmatprep.mubr.bf16.mxu0 0
        %1078 = vmatmul.mubr.bf16.gmra.mxu0 %v1043
        %v1079 = vpop.f32.mrf.mxu0
        %v1080 = vadd.f32 0.0, %v1079
        %v1081 = vpop.f32.mrf.mxu0
        %v1082 = vpop.f32.mrf.mxu0
        %v1083 = vadd.f32 0.0, %v1082
        %v1084 = vpop.f32.mrf.mxu0
        %1085 = vdwg.mxu0
        %v1086 = vadd.f32 %v1036, %v1080
        %v1087 = vadd.f32 %v1037, %v1083
        %1088 = vst.msk [vmem:[%s1023] sm:$0xff] %vm413, %v1086
        %1089 = vst.msk [vmem:[%s1023 + $0x8] sm:$0xff] %vm413, %v1087
        %1090 = vst.msk [vmem:[%s975] sm:$0xff] %vm508, %v984
        %1091 = vst.msk [vmem:[%s975 + $0x8] sm:$0xff] %vm508, %v985
        // Predicated region
        $region119: #{transformer_forward.41} parent=105 // pred_check
          %p1092 = pneg %p367
        $region120: #{transformer_forward.41} parent=105 // pred_check_branch
          %1094 = sbr.rel (%p1092) target = $region122
        $region121: #{transformer_forward.41} parent=105 // pred_region
          %v1095 = vld [vmem:[#allocation4] sm:$0xff]
          %v1096 = vld [vmem:[#allocation4 + $0x8] sm:$0xff]
          %v1097 = vld [vmem:[#allocation3] sm:$0xff]
          %v1098 = vld [vmem:[#allocation3 + $0x8] sm:$0xff]
          %v1099 = vrcp.pop %v1097
          %v1100 = vrcp.pop %v1098
          %1102 = vset.pattern.permute.xlu0 0
          %1103 = vperm.xlu0 %1102, %v1099
          %v1104 = vpop.permute.xlu0 %1103
          %1107 = vset.pattern.permute.xlu0 0
          %1108 = vperm.xlu0 %1107, %v1100
          %v1109 = vpop.permute.xlu0 %1108
          %v1111 = vmul.f32 %v1095, %v1104
          %v1112 = vmul.f32 %v1096, %v1109
          %v1113 = vpack.c.bf16 %v1112, %v1111
          %v1115 = vunpack.c.l.b16 %v1113
          %v1116 = vunpack.c.h.b16 %v1113
          %v1117 = vpack.c.b16 %v1115, %v1115
          %v1118 = vpack.c.b16 %v1116, %v1116
          %vm1121 = vcmask 257024
          %1122 = vst.msk [vmem:[%s364] sm:$0xf] %vm1121, %v1117
          %1123 = vst.msk [vmem:[%s364 + $0x4] sm:$0xf] %vm1121, %v1118
          %v1124 = vld [vmem:[%s683] sm:$0xff]
          %v1125 = vld [vmem:[%s683 + $0x8] sm:$0xff]
          %v1126 = vld [vmem:[%s668] sm:$0xff]
          %v1127 = vld [vmem:[%s668 + $0x8] sm:$0xff]
          %v1128 = vrcp.pop %v1126
          %v1129 = vrcp.pop %v1127
          %1131 = vset.pattern.permute.xlu0 0
          %1132 = vperm.xlu0 %1131, %v1128
          %v1133 = vpop.permute.xlu0 %1132
          %1136 = vset.pattern.permute.xlu0 0
          %1137 = vperm.xlu0 %1136, %v1129
          %v1138 = vpop.permute.xlu0 %1137
          %v1140 = vmul.f32 %v1124, %v1133
          %v1141 = vmul.f32 %v1125, %v1138
          %v1142 = vpack.c.bf16 %v1141, %v1140
          %v1144 = vunpack.c.l.b16 %v1142
          %v1145 = vunpack.c.h.b16 %v1142
          %v1146 = vpack.c.b16 %v1144, %v1144
          %v1147 = vpack.c.b16 %v1145, %v1145
          %1148 = vrot.lane.b32.xlu0 %v1146, 32
          %v1149 = vpop.permute.xlu0 %1148
          %1150 = vrot.lane.b32.xlu0 %v1147, 32
          %v1151 = vpop.permute.xlu0 %1150
          %vm1154 = vcmask 519424
          %1155 = vst.msk [vmem:[%s364] sm:$0xf] %vm1154, %v1149
          %1156 = vst.msk [vmem:[%s364 + $0x4] sm:$0xf] %vm1154, %v1151
          %v1157 = vld [vmem:[%s853] sm:$0xff]
          %v1158 = vld [vmem:[%s853 + $0x8] sm:$0xff]
          %v1159 = vld [vmem:[%s838] sm:$0xff]
          %v1160 = vld [vmem:[%s838 + $0x8] sm:$0xff]
          %v1161 = vrcp.pop %v1159
          %v1162 = vrcp.pop %v1160
          %1164 = vset.pattern.permute.xlu0 0
          %1165 = vperm.xlu0 %1164, %v1161
          %v1166 = vpop.permute.xlu0 %1165
          %1169 = vset.pattern.permute.xlu0 0
          %1170 = vperm.xlu0 %1169, %v1162
          %v1171 = vpop.permute.xlu0 %1170
          %v1173 = vmul.f32 %v1157, %v1166
          %v1174 = vmul.f32 %v1158, %v1171
          %v1175 = vpack.c.bf16 %v1174, %v1173
          %v1177 = vunpack.c.l.b16 %v1175
          %v1178 = vunpack.c.h.b16 %v1175
          %v1179 = vpack.c.b16 %v1177, %v1177
          %v1180 = vpack.c.b16 %v1178, %v1178
          %1181 = vrot.lane.b32.xlu0 %v1179, 64
          %v1182 = vpop.permute.xlu0 %1181
          %1183 = vrot.lane.b32.xlu0 %v1180, 64
          %v1184 = vpop.permute.xlu0 %1183
          %vm1187 = vcmask 781824
          %1188 = vst.msk [vmem:[%s364] sm:$0xf] %vm1187, %v1182
          %1189 = vst.msk [vmem:[%s364 + $0x4] sm:$0xf] %vm1187, %v1184
          %v1190 = vld [vmem:[%s1023] sm:$0xff]
          %v1191 = vld [vmem:[%s1023 + $0x8] sm:$0xff]
          %v1192 = vld [vmem:[%s1008] sm:$0xff]
          %v1193 = vld [vmem:[%s1008 + $0x8] sm:$0xff]
          %v1194 = vrcp.pop %v1192
          %v1195 = vrcp.pop %v1193
          %1197 = vset.pattern.permute.xlu0 0
          %1198 = vperm.xlu0 %1197, %v1194
          %v1199 = vpop.permute.xlu0 %1198
          %1202 = vset.pattern.permute.xlu0 0
          %1203 = vperm.xlu0 %1202, %v1195
          %v1204 = vpop.permute.xlu0 %1203
          %v1206 = vmul.f32 %v1190, %v1199
          %v1207 = vmul.f32 %v1191, %v1204
          %v1208 = vpack.c.bf16 %v1207, %v1206
          %v1210 = vunpack.c.l.b16 %v1208
          %v1211 = vunpack.c.h.b16 %v1208
          %v1212 = vpack.c.b16 %v1210, %v1210
          %v1213 = vpack.c.b16 %v1211, %v1211
          %1214 = vrot.lane.b32.xlu0 %v1212, 96
          %v1215 = vpop.permute.xlu0 %1214
          %1216 = vrot.lane.b32.xlu0 %v1213, 96
          %v1217 = vpop.permute.xlu0 %1216
          %vm1220 = vcmask 1044224
          %1221 = vst.msk [vmem:[%s364] sm:$0xf] %vm1220, %v1215
          %1222 = vst.msk [vmem:[%s364 + $0x4] sm:$0xf] %vm1220, %v1217
        $region122: #{transformer_forward.41} parent=105 // pred_fallthru
          _
        %s1223 = smul.u32 2, %s20
        %p1224 = scmp.lt.s32.totalorder %s19, 1
        %s1225 = scalar_select %p1224, %s19, 1
        %p1226 = scmp.lt.s32.totalorder %s1223, 1
        %s1227 = scalar_select %p1226, %s1223, 1
        %s1228 = smul.addr %s1225, 2
        %s1229 = sadd.s32 %s1227, %s1228
        %s1230 = smul.addr %s1229, 4
        %s1231 = scalar_lea.vmem %s3, %s1230
        // Predicated region
        $region123: #{transformer_forward.41} parent=105 // pred_check
          %p1232 = pneg %p137
        $region124: #{transformer_forward.41} parent=105 // pred_check_branch
          %1234 = sbr.rel (%p1232) target = $region126
        $region125: #{transformer_forward.41} parent=105 // pred_region
          %s1235 = smul.u32 2, %s20
        $region126: #{transformer_forward.41} parent=105 // pred_fallthru
          _
      $region106: #{transformer_forward.41} parent=5 // pred_fallthru
        _
      %p1236 = scmp.le.s32.totalorder 2, %s9
      // Predicated region
      $region127: #{transformer_forward.41} parent=5 // pred_check
        %p1237 = pneg %p1236
      $region128: #{transformer_forward.41} parent=5 // pred_check_branch
        %1239 = sbr.rel (%p1237) target = $region130
      $region129: #{transformer_forward.41} parent=5 // pred_region
        %s1240 = ssub.s32 %s9, 2
        // Predicated region
        $region131: #{transformer_forward.41} parent=129 // pred_check
          %p1241 = pneg %p143
        $region132: #{transformer_forward.41} parent=129 // pred_check_branch
          %1243 = sbr.rel (%p1241) target = $region134
        $region133: #{transformer_forward.41} parent=129 // pred_region
          %s1244 = smul.u32 2, %s23
          %p1245 = scmp.lt.s32.totalorder %s22, 1
          %s1246 = scalar_select %p1245, %s22, 1
          %p1247 = scmp.lt.s32.totalorder %s1244, 1
          %s1248 = scalar_select %p1247, %s1244, 1
          %s1249 = smul.addr %s1246, 2
          %s1250 = sadd.s32 %s1248, %s1249
          %s1251 = smul.addr %s1250, 4
          %s1252 = scalar_lea.vmem %s3, %s1251
        $region134: #{transformer_forward.41} parent=129 // pred_fallthru
          _
      $region130: #{transformer_forward.41} parent=5 // pred_fallthru
        _
    $region6: #{transformer_forward.41} parent=1 // loop_footer
      %s13 = sadd.s32 1, %s9
    $region7: #{transformer_forward.41} parent=1 // loop_footer_branch
      %8 = sbr.rel target = $region3
    $region8: #{transformer_forward.41} parent=1 // loop_exit
      _

</llo_original>
